<compile_context>
chip_gen: v7x
topology: tpu7x:2x2x1
jax: 0.10.0
libtpu: 0.0.40
codegen_flags: <defaults>
</compile_context>

<pallas_src>
import functools

import jax
import jax.numpy as jnp
from jax import lax
from jax.experimental import pallas as pl
from jax.experimental.pallas import tpu as pltpu


# ----------------------------------------------------------------------------
# conv1 as matmul: out = LeakyReLU_0.2( (X @ W) * scale + bias )
#   grid = (Nout blocks [parallel], K blocks [arbitrary/reduction])
#   accumulate directly into the resident f32 output block (no scratch).
# ----------------------------------------------------------------------------
def _conv_matmul_kernel(x_ref, w_ref, scale_ref, bias_ref, o_ref):
    k = pl.program_id(1)

    @pl.when(k == 0)
    def _():
        o_ref[...] = jnp.zeros_like(o_ref)

    o_ref[...] += jnp.dot(x_ref[...], w_ref[...],
                          preferred_element_type=jnp.float32)

    @pl.when(k == pl.num_programs(1) - 1)
    def _():
        y = o_ref[...] * scale_ref[...] + bias_ref[...]
        o_ref[...] = jnp.where(y > 0, y, 0.2 * y)


def conv_matmul(x_cols, w, scale, bias, *, tk_cap=4096, bn_cap=256):
    """x_cols: (M, K) bf16, w: (K, Nout) bf16, scale/bias: (1, Nout) f32 -> (M, Nout) f32."""
    x_cols = x_cols.astype(jnp.bfloat16)
    M, K = x_cols.shape
    Kw, Nout = w.shape
    assert K == Kw

    # Pad M up to a multiple of 16 (bf16 sublane packing).
    Mp = max(16, ((M + 15) // 16) * 16)
    if Mp != M:
        x_cols = jnp.pad(x_cols, ((0, Mp - M), (0, 0)))

    # K tile: biggest tile <= 4096 that divides K (K = 8192 in this model).
    tk = min(tk_cap, K)
    while K % tk:
        tk -= 512
    assert tk > 0 and K % tk == 0, (K, tk)

    # Nout tile: 256-wide "parallel" blocks (v7x: one per TensorCore).
    bn = bn_cap if (Nout > bn_cap and Nout % bn_cap == 0) else Nout
    grid = (Nout // bn, K // tk)

    out = pl.pallas_call(
        _conv_matmul_kernel,
        out_shape=jax.ShapeDtypeStruct((Mp, Nout), jnp.float32),
        grid_spec=pltpu.PrefetchScalarGridSpec(
            num_scalar_prefetch=0,
            grid=grid,
            in_specs=[
                pl.BlockSpec((Mp, tk), lambda j, k: (0, k)),
                pl.BlockSpec((tk, bn), lambda j, k: (k, j)),
                pl.BlockSpec((1, bn), lambda j, k: (0, j)),
                pl.BlockSpec((1, bn), lambda j, k: (0, j)),
            ],
            out_specs=pl.BlockSpec((Mp, bn), lambda j, k: (0, j)),
        ),
        compiler_params=pltpu.CompilerParams(
            dimension_semantics=("parallel", "arbitrary")),
    )(x_cols, w, scale, bias)
    return out[:M]


# ----------------------------------------------------------------------------
# Fused conv2 + BN2 + LeakyReLU + fc1 (Linear+LeakyReLU) + fc2:
#   K-reduction of the conv2 matmul accumulates into VMEM scratch; the last
#   grid step applies folded BN / LeakyReLU and both Linear layers on-chip.
#   fc weights keep a constant block index, so they are DMA'd only once.
# ----------------------------------------------------------------------------
def _conv2_fc_fused_kernel(x_ref, wc_ref, s_ref, bc_ref,
                           w1_ref, b1_ref, w2_ref, b2_ref,
                           o_ref, acc_ref):
    k = pl.program_id(0)

    @pl.when(k == 0)
    def _():
        acc_ref[...] = jnp.zeros_like(acc_ref)

    acc_ref[...] += jnp.dot(x_ref[...], wc_ref[...],
                            preferred_element_type=jnp.float32)

    @pl.when(k == pl.num_programs(0) - 1)
    def _():
        # conv2 epilogue: folded conv-bias + BN, then LeakyReLU(0.2)
        h = acc_ref[...] * s_ref[...] + bc_ref[...]
        h = jnp.where(h > 0, h, 0.2 * h)
        # fc1: Linear + LeakyReLU(0.2)
        h1 = jnp.dot(h.astype(jnp.bfloat16), w1_ref[...],
                     preferred_element_type=jnp.float32) + b1_ref[...]
        h1 = jnp.where(h1 > 0, h1, 0.2 * h1)
        # fc2: Linear (lane-padded to 128 output columns)
        o_ref[...] = jnp.dot(h1.astype(jnp.bfloat16), w2_ref[...],
                             preferred_element_type=jnp.float32) + b2_ref[...]


def conv2_fc_fused(x_cols, wc, s, bc, w1, b1, w2, b2, *, tk_cap=2048):
    """x_cols: (M, K) bf16 (im2col of conv2), wc: (K, 512) bf16,
       s/bc: (1, 512) f32 folded BN, w1: (512, 512) bf16, b1: (1, 512) f32,
       w2: (512, Np) bf16 (lane-padded), b2: (1, Np) f32  ->  (M, Np) f32."""
    x_cols = x_cols.astype(jnp.bfloat16)
    M, K = x_cols.shape
    C = wc.shape[1]
    Np = w2.shape[1]

    Mp = max(16, ((M + 15) // 16) * 16)
    if Mp != M:
        x_cols = jnp.pad(x_cols, ((0, Mp - M), (0, 0)))

    tk = min(tk_cap, K)
    while K % tk:
        tk -= 512
    assert tk > 0 and K % tk == 0, (K, tk)
    grid = (K // tk,)

    out = pl.pallas_call(
        _conv2_fc_fused_kernel,
        out_shape=jax.ShapeDtypeStruct((Mp, Np), jnp.float32),
        grid_spec=pltpu.PrefetchScalarGridSpec(
            num_scalar_prefetch=0,
            grid=grid,
            in_specs=[
                pl.BlockSpec((Mp, tk), lambda k: (0, k)),
                pl.BlockSpec((tk, C), lambda k: (k, 0)),
                pl.BlockSpec((1, C), lambda k: (0, 0)),
                pl.BlockSpec((1, C), lambda k: (0, 0)),
                pl.BlockSpec((C, C), lambda k: (0, 0)),
                pl.BlockSpec((1, C), lambda k: (0, 0)),
                pl.BlockSpec((C, Np), lambda k: (0, 0)),
                pl.BlockSpec((1, Np), lambda k: (0, 0)),
            ],
            out_specs=pl.BlockSpec((Mp, Np), lambda k: (0, 0)),
            scratch_shapes=[pltpu.VMEM((Mp, C), jnp.float32)],
        ),
        compiler_params=pltpu.CompilerParams(
            dimension_semantics=("arbitrary",)),
    )(x_cols, wc, s, bc, w1, b1, w2, b2)
    return out[:M]


# ----------------------------------------------------------------------------
# Glue: NHWC im2col for Conv2d(k=4, stride=2, pad=1).  K-order is (kh, kw, c),
# matching the weight packing below.
# ----------------------------------------------------------------------------
def im2col_nhwc(x, k=4, stride=2, pad=1):
    N, H, W, C = x.shape
    xp = jnp.pad(x, ((0, 0), (pad, pad), (pad, pad), (0, 0)))
    Ho = (H + 2 * pad - k) // stride + 1
    Wo = (W + 2 * pad - k) // stride + 1
    taps = []
    for kh in range(k):
        for kw in range(k):
            taps.append(
                xp[:, kh:kh + (Ho - 1) * stride + 1:stride,
                   kw:kw + (Wo - 1) * stride + 1:stride, :])   # (N, Ho, Wo, C)
    cols = jnp.stack(taps, axis=3)                              # (N, Ho, Wo, k*k, C)
    return cols.reshape(N * Ho * Wo, k * k * C), Ho, Wo


# ----------------------------------------------------------------------------
# One-time parameter packing: BN folding, layout transforms, bf16 cast,
# fc2 lane-padding.  Done once, outside the per-forward path.
# ----------------------------------------------------------------------------
def pack_params(params, y_dim, nout_pad=128, eps=1e-5):
    def fold_bn(conv_b, g, b, m, v):
        inv_std = 1.0 / jnp.sqrt(v + eps)
        scale = g * inv_std
        bias = (conv_b - m) * scale + b
        return scale[None, :].astype(jnp.float32), bias[None, :].astype(jnp.float32)

    def pack_conv_w(w):  # (Cout, Cin, kh, kw) -> (kh*kw*Cin, Cout) bf16
        return jnp.transpose(w, (2, 3, 1, 0)).reshape(-1, w.shape[0]).astype(jnp.bfloat16)

    s1, b1 = fold_bn(params["conv1_b"], params["bn1_g"], params["bn1_b"],
                     params["bn1_m"], params["bn1_v"])
    s2, b2 = fold_bn(params["conv2_b"], params["bn2_g"], params["bn2_b"],
                     params["bn2_m"], params["bn2_v"])

    n2 = 2 * y_dim
    np_ = max(nout_pad, n2)
    fc2_w = jnp.zeros((512, np_), jnp.float32).at[:, :n2].set(params["fc2_w"].T)
    fc2_b = jnp.zeros((1, np_), jnp.float32).at[:, :n2].set(params["fc2_b"][None, :])

    return {
        "w1": pack_conv_w(params["conv1_w"]), "s1": s1, "b1": b1,
        "w2": pack_conv_w(params["conv2_w"]), "s2": s2, "b2": b2,
        "fc1_w": params["fc1_w"].T.astype(jnp.bfloat16),
        "fc1_b": params["fc1_b"][None, :].astype(jnp.float32),
        "fc2_w": fc2_w.astype(jnp.bfloat16),
        "fc2_b": fc2_b,
    }


# ----------------------------------------------------------------------------
# LatentDiscriminator forward (Pallas)
# ----------------------------------------------------------------------------
def latent_discriminator_forward(z, packed, y_dim):
    """z: (N, 512, H, W) f32 NCHW (PyTorch layout)."""
    N = z.shape[0]
    C = 512

    x = jnp.transpose(z, (0, 2, 3, 1)).astype(jnp.bfloat16)   # NHWC activations

    # conv1 + BN1 + LeakyReLU(0.2)  (+ Dropout2d as identity, eval mode)
    cols, Ho, Wo = im2col_nhwc(x)
    y = conv_matmul(cols, packed["w1"], packed["s1"], packed["b1"])
    x = y.astype(jnp.bfloat16).reshape(N, Ho, Wo, C)

    # conv2 + BN2 + LeakyReLU(0.2) + fc1 + fc2 fused into one pallas_call
    # (Dropout2d as identity, eval mode; x.view(-1, 512) assumes 1x1 spatial).
    cols, Ho2, Wo2 = im2col_nhwc(x)
    assert Ho2 == 1 and Wo2 == 1, "x.view(-1, 512) assumes 1x1 spatial after conv2"
    out = conv2_fc_fused(cols, packed["w2"], packed["s2"], packed["b2"],
                         packed["fc1_w"], packed["fc1_b"],
                         packed["fc2_w"], packed["fc2_b"])   # (N, 128) f32
    return out[:, :2 * y_dim].reshape(-1, y_dim, 2)


# ----------------------------------------------------------------------------
# References for correctness checks
# ----------------------------------------------------------------------------
def reference_forward_f32(z, params, y_dim, eps=1e-5):
    """Full-precision eval-mode forward (matches the PyTorch module)."""
    def conv_bn_lrelu(x, w, b, g, beta, m, v):
        y = lax.conv_general_dilated(
            x, w, window_strides=(2, 2), padding=[(1, 1), (1, 1)],
            dimension_numbers=("NCHW", "OIHW", "NCHW"))
        y = y + b[None, :, None, None]
        y = (y - m[None, :, None, None]) / jnp.sqrt(v[None, :, None, None] + eps)
        y = y * g[None, :, None, None] + beta[None, :, None, None]
        return jnp.where(y > 0, y, 0.2 * y)

    x = conv_bn_lrelu(z, params["conv1_w"], params["conv1_b"], params["bn1_g"],
                      params["bn1_b"], params["bn1_m"], params["bn1_v"])
    x = conv_bn_lrelu(x, params["conv2_w"], params["conv2_b"], params["bn2_g"],
                      params["bn2_b"], params["bn2_m"], params["bn2_v"])
    x = x.reshape(-1, 512)
    x = x @ params["fc1_w"].T + params["fc1_b"]
    x = jnp.where(x > 0, x, 0.2 * x)
    x = x @ params["fc2_w"].T + params["fc2_b"]
    return x.reshape(-1, y_dim, 2)


def reference_forward_mixed(z, packed, y_dim):
    """Plain-JAX forward with the same bf16-in / f32-accumulate numerics as the kernels."""
    N = z.shape[0]
    x = jnp.transpose(z, (0, 2, 3, 1)).astype(jnp.bfloat16)

    def layer(x, w, s, b):
        cols, Ho, Wo = im2col_nhwc(x)
        y = jnp.dot(cols, w, preferred_element_type=jnp.float32) * s + b
        return jnp.where(y > 0, y, 0.2 * y), Ho, Wo

    y, Ho, Wo = layer(x, packed["w1"], packed["s1"], packed["b1"])
    x = y.astype(jnp.bfloat16).reshape(N, Ho, Wo, 512)
    y, _, _ = layer(x, packed["w2"], packed["s2"], packed["b2"])
    h = y.astype(jnp.bfloat16)
    h1 = jnp.dot(h, packed["fc1_w"], preferred_element_type=jnp.float32) + packed["fc1_b"]
    h1 = jnp.where(h1 > 0, h1, 0.2 * h1)
    out = jnp.dot(h1.astype(jnp.bfloat16), packed["fc2_w"],
                  preferred_element_type=jnp.float32) + packed["fc2_b"]
    return out[:, :2 * y_dim].reshape(-1, y_dim, 2)


# ----------------------------------------------------------------------------
# Deterministic parameter init + driver
# ----------------------------------------------------------------------------
def init_params(key, y_dim):
    ks = jax.random.split(key, 16)
    n = lambda k, s, sc=0.02: sc * jax.random.normal(k, s, jnp.float32)
    return {
        "conv1_w": n(ks[0], (512, 512, 4, 4)),
        "conv1_b": n(ks[1], (512,)),
        "bn1_g": 1.0 + n(ks[2], (512,), 0.1),
        "bn1_b": n(ks[3], (512,), 0.1),
        "bn1_m": n(ks[4], (512,), 0.1),
        "bn1_v": 0.5 + jax.random.uniform(ks[5], (512,), jnp.float32),
        "conv2_w": n(ks[6], (512, 512, 4, 4)),
        "conv2_b": n(ks[7], (512,)),
        "bn2_g": 1.0 + n(ks[8], (512,), 0.1),
        "bn2_b": n(ks[9], (512,), 0.1),
        "bn2_m": n(ks[10], (512,), 0.1),
        "bn2_v": 0.5 + jax.random.uniform(ks[11], (512,), jnp.float32),
        "fc1_w": n(ks[12], (512, 512)),       # (out, in) like nn.Linear
        "fc1_b": n(ks[13], (512,)),
        "fc2_w": n(ks[14], (2 * y_dim, 512)),
        "fc2_b": n(ks[15], (2 * y_dim,)),
    }


if __name__ == "__main__":
    y_dim = 8
    key = jax.random.PRNGKey(0)
    k_z, k_p = jax.random.split(key)

    # Channel count (512) is fixed by the module; batch=2 and 4x4 spatial so that
    # after two stride-2 convs the spatial is 1x1 and x.view(-1, 512) is (N, 512).
    z = jax.random.normal(k_z, (2, 512, 4, 4), jnp.float32)
    params = init_params(k_p, y_dim)

    packed = pack_params(params, y_dim)          # one-time weight prep (bf16, folded BN)
    fwd = jax.jit(functools.partial(latent_discriminator_forward, y_dim=y_dim))

    out = jax.block_until_ready(fwd(z, packed))
    assert out.shape == (2, y_dim, 2), out.shape

    # Tight check against a plain-JAX forward with identical bf16/f32 numerics.
    ref_mixed = jax.block_until_ready(reference_forward_mixed(z, packed, y_dim))
    err_m = float(jnp.max(jnp.abs(out - ref_mixed)))
    assert jnp.allclose(out, ref_mixed, rtol=1e-2, atol=1e-2), err_m

    # Sanity check against the full-precision eval-mode reference (bf16 rounding bound).
    ref_f32 = jax.block_until_ready(reference_forward_f32(z, params, y_dim))
    err_f = float(jnp.max(jnp.abs(out - ref_f32)))
    assert jnp.allclose(out, ref_f32, rtol=5e-2, atol=5e-2), err_f

    print("KERNEL_OK")
</pallas_src>

<mosaic_0001>
module attributes {stable_mosaic.version = 11 : i64} {
  func.func @_conv_matmul_kernel(%arg0: i32, %arg1: i32, %arg2: memref<16x4096xbf16, #tpu.memory_space<vmem>>, %arg3: memref<4096x256xbf16, #tpu.memory_space<vmem>>, %arg4: memref<1x256xf32, #tpu.memory_space<vmem>>, %arg5: memref<1x256xf32, #tpu.memory_space<vmem>>, %arg6: memref<16x256xf32, #tpu.memory_space<vmem>>) attributes {dimension_semantics = [#tpu.dimension_semantics<parallel>, #tpu.dimension_semantics<arbitrary>], iteration_bounds = array<i64: 2, 2>, scalar_prefetch = 0 : i64, scratch_operands = 0 : i64, tpu.core_type = #tpu.core_type<tc>, window_params = [{transform_indices = @transform_0, window_bounds = array<i64: 16, 4096>}, {transform_indices = @transform_1, window_bounds = array<i64: 4096, 256>}, {transform_indices = @transform_2, window_bounds = array<i64: 1, 256>}, {transform_indices = @transform_3, window_bounds = array<i64: 1, 256>}, {transform_indices = @transform_4, window_bounds = array<i64: 16, 256>}]} {
    %c0_i32 = arith.constant 0 : i32
    %0 = arith.cmpi eq, %arg1, %c0_i32 : i32
    %1 = arith.extui %0 : i1 to i32
    %c0_i32_0 = arith.constant 0 : i32
    %2 = arith.cmpi ne, %1, %c0_i32_0 : i32
    scf.if %2 {
      %cst_9 = arith.constant 0.000000e+00 : f32
      %12 = vector.broadcast %cst_9 : f32 to vector<16x256xf32>
      %c0_10 = arith.constant 0 : index
      %c0_11 = arith.constant 0 : index
      %13 = vector.load %arg6[%c0_10, %c0_11] : memref<16x256xf32, #tpu.memory_space<vmem>>, vector<16x256xf32>
      tpu.vector_store %arg6[%c0_10, %c0_11], %12 {strides = array<i32>} : memref<16x256xf32, #tpu.memory_space<vmem>>, vector<16x256xf32>,
    } else {
    }
    %c0 = arith.constant 0 : index
    %c0_1 = arith.constant 0 : index
    %3 = vector.load %arg6[%c0, %c0_1] : memref<16x256xf32, #tpu.memory_space<vmem>>, vector<16x256xf32>
    %c0_2 = arith.constant 0 : index
    %c0_3 = arith.constant 0 : index
    %4 = vector.load %arg2[%c0_2, %c0_3] : memref<16x4096xbf16, #tpu.memory_space<vmem>>, vector<16x4096xbf16>
    %c0_4 = arith.constant 0 : index
    %c0_5 = arith.constant 0 : index
    %5 = vector.load %arg3[%c0_4, %c0_5] : memref<4096x256xbf16, #tpu.memory_space<vmem>>, vector<4096x256xbf16>
    %cst = arith.constant dense<0.000000e+00> : vector<16x256xf32>
    %6 = tpu.matmul %4, %5, %cst {dimension_numbers = #tpu.dot_dimension_numbers<[1], [0], [0], [1], [0, 0, 1, 1], [], []>} : vector<16x4096xbf16>, vector<4096x256xbf16>, vector<16x256xf32> -> vector<16x256xf32>
    %7 = arith.addf %3, %6 : vector<16x256xf32>
    %c0_6 = arith.constant 0 : index
    %c0_7 = arith.constant 0 : index
    %8 = vector.load %arg6[%c0_6, %c0_7] : memref<16x256xf32, #tpu.memory_space<vmem>>, vector<16x256xf32>
    tpu.vector_store %arg6[%c0_6, %c0_7], %7 {strides = array<i32>} : memref<16x256xf32, #tpu.memory_space<vmem>>, vector<16x256xf32>,
    %c1_i32 = arith.constant 1 : i32
    %9 = arith.cmpi eq, %arg1, %c1_i32 : i32
    %10 = arith.extui %9 : i1 to i32
    %c0_i32_8 = arith.constant 0 : i32
    %11 = arith.cmpi ne, %10, %c0_i32_8 : i32
    scf.if %11 {
      %c0_9 = arith.constant 0 : index
      %c0_10 = arith.constant 0 : index
      %12 = vector.load %arg6[%c0_9, %c0_10] : memref<16x256xf32, #tpu.memory_space<vmem>>, vector<16x256xf32>
      %c0_11 = arith.constant 0 : index
      %c0_12 = arith.constant 0 : index
      %13 = vector.load %arg4[%c0_11, %c0_12] : memref<1x256xf32, #tpu.memory_space<vmem>>, vector<1x256xf32>
      %14 = vector.broadcast %13 : vector<1x256xf32> to vector<16x256xf32>
      %15 = arith.mulf %12, %14 : vector<16x256xf32>
      %c0_13 = arith.constant 0 : index
      %c0_14 = arith.constant 0 : index
      %16 = vector.load %arg5[%c0_13, %c0_14] : memref<1x256xf32, #tpu.memory_space<vmem>>, vector<1x256xf32>
      %17 = vector.broadcast %16 : vector<1x256xf32> to vector<16x256xf32>
      %18 = arith.addf %15, %17 : vector<16x256xf32>
      %cst_15 = arith.constant 0.000000e+00 : f32
      %19 = vector.broadcast %cst_15 : f32 to vector<16x256xf32>
      %20 = arith.cmpf ogt, %18, %19 : vector<16x256xf32>
      %cst_16 = arith.constant 2.000000e-01 : f32
      %21 = vector.broadcast %cst_16 : f32 to vector<16x256xf32>
      %22 = arith.mulf %21, %18 : vector<16x256xf32>
      %23 = arith.select %20, %18, %22 : vector<16x256xi1>, vector<16x256xf32>
      %c0_17 = arith.constant 0 : index
      %c0_18 = arith.constant 0 : index
      %24 = vector.load %arg6[%c0_17, %c0_18] : memref<16x256xf32, #tpu.memory_space<vmem>>, vector<16x256xf32>
      tpu.vector_store %arg6[%c0_17, %c0_18], %23 {strides = array<i32>} : memref<16x256xf32, #tpu.memory_space<vmem>>, vector<16x256xf32>,
    } else {
    }
    return
  }
  func.func @transform_0(%arg0: i32, %arg1: i32) -> (i32, i32) {
    %c0_i32 = arith.constant 0 : i32
    %c0_i32_0 = arith.constant 0 : i32
    return %c0_i32, %arg1 : i32, i32
  }
  func.func @transform_1(%arg0: i32, %arg1: i32) -> (i32, i32) {
    %c0_i32 = arith.constant 0 : i32
    return %arg1, %arg0 : i32, i32
  }
  func.func @transform_2(%arg0: i32, %arg1: i32) -> (i32, i32) {
    %c0_i32 = arith.constant 0 : i32
    %c0_i32_0 = arith.constant 0 : i32
    return %c0_i32, %arg0 : i32, i32
  }
  func.func @transform_3(%arg0: i32, %arg1: i32) -> (i32, i32) {
    %c0_i32 = arith.constant 0 : i32
    %c0_i32_0 = arith.constant 0 : i32
    return %c0_i32, %arg0 : i32, i32
  }
  func.func @transform_4(%arg0: i32, %arg1: i32) -> (i32, i32) {
    %c0_i32 = arith.constant 0 : i32
    %c0_i32_0 = arith.constant 0 : i32
    return %c0_i32, %arg0 : i32, i32
  }
}

module attributes {stable_mosaic.version = 11 : i64} {
  func.func @_conv2_fc_fused_kernel(%arg0: i32, %arg1: memref<16x2048xbf16, #tpu.memory_space<vmem>>, %arg2: memref<2048x512xbf16, #tpu.memory_space<vmem>>, %arg3: memref<1x512xf32, #tpu.memory_space<vmem>>, %arg4: memref<1x512xf32, #tpu.memory_space<vmem>>, %arg5: memref<512x512xbf16, #tpu.memory_space<vmem>>, %arg6: memref<1x512xf32, #tpu.memory_space<vmem>>, %arg7: memref<512x128xbf16, #tpu.memory_space<vmem>>, %arg8: memref<1x128xf32, #tpu.memory_space<vmem>>, %arg9: memref<16x128xf32, #tpu.memory_space<vmem>>, %arg10: memref<16x512xf32, #tpu.memory_space<vmem>>) attributes {dimension_semantics = [#tpu.dimension_semantics<arbitrary>], iteration_bounds = array<i64: 4>, scalar_prefetch = 0 : i64, scratch_operands = 1 : i64, tpu.core_type = #tpu.core_type<tc>, window_params = [{transform_indices = @transform_0, window_bounds = array<i64: 16, 2048>}, {transform_indices = @transform_1, window_bounds = array<i64: 2048, 512>}, {pipeline_mode = #tpu.pipeline_mode<synchronous>, transform_indices = @transform_2, window_bounds = array<i64: 1, 512>}, {pipeline_mode = #tpu.pipeline_mode<synchronous>, transform_indices = @transform_3, window_bounds = array<i64: 1, 512>}, {pipeline_mode = #tpu.pipeline_mode<synchronous>, transform_indices = @transform_4, window_bounds = array<i64: 512, 512>}, {pipeline_mode = #tpu.pipeline_mode<synchronous>, transform_indices = @transform_5, window_bounds = array<i64: 1, 512>}, {pipeline_mode = #tpu.pipeline_mode<synchronous>, transform_indices = @transform_6, window_bounds = array<i64: 512, 128>}, {pipeline_mode = #tpu.pipeline_mode<synchronous>, transform_indices = @transform_7, window_bounds = array<i64: 1, 128>}, {pipeline_mode = #tpu.pipeline_mode<synchronous>, transform_indices = @transform_8, window_bounds = array<i64: 16, 128>}]} {
    %c0_i32 = arith.constant 0 : i32
    %0 = arith.cmpi eq, %arg0, %c0_i32 : i32
    %1 = arith.extui %0 : i1 to i32
    %c0_i32_0 = arith.constant 0 : i32
    %2 = arith.cmpi ne, %1, %c0_i32_0 : i32
    scf.if %2 {
      %cst_9 = arith.constant 0.000000e+00 : f32
      %12 = vector.broadcast %cst_9 : f32 to vector<16x512xf32>
      %c0_10 = arith.constant 0 : index
      %c0_11 = arith.constant 0 : index
      %13 = vector.load %arg10[%c0_10, %c0_11] : memref<16x512xf32, #tpu.memory_space<vmem>>, vector<16x512xf32>
      tpu.vector_store %arg10[%c0_10, %c0_11], %12 {strides = array<i32>} : memref<16x512xf32, #tpu.memory_space<vmem>>, vector<16x512xf32>,
    } else {
    }
    %c0 = arith.constant 0 : index
    %c0_1 = arith.constant 0 : index
    %3 = vector.load %arg10[%c0, %c0_1] : memref<16x512xf32, #tpu.memory_space<vmem>>, vector<16x512xf32>
    %c0_2 = arith.constant 0 : index
    %c0_3 = arith.constant 0 : index
    %4 = vector.load %arg1[%c0_2, %c0_3] : memref<16x2048xbf16, #tpu.memory_space<vmem>>, vector<16x2048xbf16>
    %c0_4 = arith.constant 0 : index
    %c0_5 = arith.constant 0 : index
    %5 = vector.load %arg2[%c0_4, %c0_5] : memref<2048x512xbf16, #tpu.memory_space<vmem>>, vector<2048x512xbf16>
    %cst = arith.constant dense<0.000000e+00> : vector<16x512xf32>
    %6 = tpu.matmul %4, %5, %cst {dimension_numbers = #tpu.dot_dimension_numbers<[1], [0], [0], [1], [0, 0, 1, 1], [], []>} : vector<16x2048xbf16>, vector<2048x512xbf16>, vector<16x512xf32> -> vector<16x512xf32>
    %7 = arith.addf %3, %6 : vector<16x512xf32>
    %c0_6 = arith.constant 0 : index
    %c0_7 = arith.constant 0 : index
    %8 = vector.load %arg10[%c0_6, %c0_7] : memref<16x512xf32, #tpu.memory_space<vmem>>, vector<16x512xf32>
    tpu.vector_store %arg10[%c0_6, %c0_7], %7 {strides = array<i32>} : memref<16x512xf32, #tpu.memory_space<vmem>>, vector<16x512xf32>,
    %c3_i32 = arith.constant 3 : i32
    %9 = arith.cmpi eq, %arg0, %c3_i32 : i32
    %10 = arith.extui %9 : i1 to i32
    %c0_i32_8 = arith.constant 0 : i32
    %11 = arith.cmpi ne, %10, %c0_i32_8 : i32
    scf.if %11 {
      %c0_9 = arith.constant 0 : index
      %c0_10 = arith.constant 0 : index
      %12 = vector.load %arg10[%c0_9, %c0_10] : memref<16x512xf32, #tpu.memory_space<vmem>>, vector<16x512xf32>
      %c0_11 = arith.constant 0 : index
      %c0_12 = arith.constant 0 : index
      %13 = vector.load %arg3[%c0_11, %c0_12] : memref<1x512xf32, #tpu.memory_space<vmem>>, vector<1x512xf32>
      %14 = vector.broadcast %13 : vector<1x512xf32> to vector<16x512xf32>
      %15 = arith.mulf %12, %14 : vector<16x512xf32>
      %c0_13 = arith.constant 0 : index
      %c0_14 = arith.constant 0 : index
      %16 = vector.load %arg4[%c0_13, %c0_14] : memref<1x512xf32, #tpu.memory_space<vmem>>, vector<1x512xf32>
      %17 = vector.broadcast %16 : vector<1x512xf32> to vector<16x512xf32>
      %18 = arith.addf %15, %17 : vector<16x512xf32>
      %cst_15 = arith.constant 0.000000e+00 : f32
      %19 = vector.broadcast %cst_15 : f32 to vector<16x512xf32>
      %20 = arith.cmpf ogt, %18, %19 : vector<16x512xf32>
      %cst_16 = arith.constant 2.000000e-01 : f32
      %21 = vector.broadcast %cst_16 : f32 to vector<16x512xf32>
      %22 = arith.mulf %21, %18 : vector<16x512xf32>
      %23 = arith.select %20, %18, %22 : vector<16x512xi1>, vector<16x512xf32>
      %24 = arith.truncf %23 : vector<16x512xf32> to vector<16x512xbf16>
      %c0_17 = arith.constant 0 : index
      %c0_18 = arith.constant 0 : index
      %25 = vector.load %arg5[%c0_17, %c0_18] : memref<512x512xbf16, #tpu.memory_space<vmem>>, vector<512x512xbf16>
      %cst_19 = arith.constant dense<0.000000e+00> : vector<16x512xf32>
      %26 = tpu.matmul %24, %25, %cst_19 {dimension_numbers = #tpu.dot_dimension_numbers<[1], [0], [0], [1], [0, 0, 1, 1], [], []>} : vector<16x512xbf16>, vector<512x512xbf16>, vector<16x512xf32> -> vector<16x512xf32>
      %c0_20 = arith.constant 0 : index
      %c0_21 = arith.constant 0 : index
      %27 = vector.load %arg6[%c0_20, %c0_21] : memref<1x512xf32, #tpu.memory_space<vmem>>, vector<1x512xf32>
      %28 = vector.broadcast %27 : vector<1x512xf32> to vector<16x512xf32>
      %29 = arith.addf %26, %28 : vector<16x512xf32>
      %cst_22 = arith.constant 0.000000e+00 : f32
      %30 = vector.broadcast %cst_22 : f32 to vector<16x512xf32>
      %31 = arith.cmpf ogt, %29, %30 : vector<16x512xf32>
      %cst_23 = arith.constant 2.000000e-01 : f32
      %32 = vector.broadcast %cst_23 : f32 to vector<16x512xf32>
      %33 = arith.mulf %32, %29 : vector<16x512xf32>
      %34 = arith.select %31, %29, %33 : vector<16x512xi1>, vector<16x512xf32>
      %35 = arith.truncf %34 : vector<16x512xf32> to vector<16x512xbf16>
      %c0_24 = arith.constant 0 : index
      %c0_25 = arith.constant 0 : index
      %36 = vector.load %arg7[%c0_24, %c0_25] : memref<512x128xbf16, #tpu.memory_space<vmem>>, vector<512x128xbf16>
      %cst_26 = arith.constant dense<0.000000e+00> : vector<16x128xf32>
      %37 = tpu.matmul %35, %36, %cst_26 {dimension_numbers = #tpu.dot_dimension_numbers<[1], [0], [0], [1], [0, 0, 1, 1], [], []>} : vector<16x512xbf16>, vector<512x128xbf16>, vector<16x128xf32> -> vector<16x128xf32>
      %c0_27 = arith.constant 0 : index
      %c0_28 = arith.constant 0 : index
      %38 = vector.load %arg8[%c0_27, %c0_28] : memref<1x128xf32, #tpu.memory_space<vmem>>, vector<1x128xf32>
      %39 = vector.broadcast %38 : vector<1x128xf32> to vector<16x128xf32>
      %40 = arith.addf %37, %39 : vector<16x128xf32>
      %c0_29 = arith.constant 0 : index
      %c0_30 = arith.constant 0 : index
      %41 = vector.load %arg9[%c0_29, %c0_30] : memref<16x128xf32, #tpu.memory_space<vmem>>, vector<16x128xf32>
      tpu.vector_store %arg9[%c0_29, %c0_30], %40 {strides = array<i32>} : memref<16x128xf32, #tpu.memory_space<vmem>>, vector<16x128xf32>,
    } else {
    }
    return
  }
  func.func @transform_0(%arg0: i32) -> (i32, i32) {
    %c0_i32 = arith.constant 0 : i32
    %c0_i32_0 = arith.constant 0 : i32
    return %c0_i32, %arg0 : i32, i32
  }
  func.func @transform_1(%arg0: i32) -> (i32, i32) {
    %c0_i32 = arith.constant 0 : i32
    %c0_i32_0 = arith.constant 0 : i32
    return %arg0, %c0_i32 : i32, i32
  }
  func.func @transform_2(%arg0: i32) -> (i32, i32) {
    %c0_i32 = arith.constant 0 : i32
    %c0_i32_0 = arith.constant 0 : i32
    %c0_i32_1 = arith.constant 0 : i32
    return %c0_i32, %c0_i32_0 : i32, i32
  }
  func.func @transform_3(%arg0: i32) -> (i32, i32) {
    %c0_i32 = arith.constant 0 : i32
    %c0_i32_0 = arith.constant 0 : i32
    %c0_i32_1 = arith.constant 0 : i32
    return %c0_i32, %c0_i32_0 : i32, i32
  }
  func.func @transform_4(%arg0: i32) -> (i32, i32) {
    %c0_i32 = arith.constant 0 : i32
    %c0_i32_0 = arith.constant 0 : i32
    %c0_i32_1 = arith.constant 0 : i32
    return %c0_i32, %c0_i32_0 : i32, i32
  }
  func.func @transform_5(%arg0: i32) -> (i32, i32) {
    %c0_i32 = arith.constant 0 : i32
    %c0_i32_0 = arith.constant 0 : i32
    %c0_i32_1 = arith.constant 0 : i32
    return %c0_i32, %c0_i32_0 : i32, i32
  }
  func.func @transform_6(%arg0: i32) -> (i32, i32) {
    %c0_i32 = arith.constant 0 : i32
    %c0_i32_0 = arith.constant 0 : i32
    %c0_i32_1 = arith.constant 0 : i32
    return %c0_i32, %c0_i32_0 : i32, i32
  }
  func.func @transform_7(%arg0: i32) -> (i32, i32) {
    %c0_i32 = arith.constant 0 : i32
    %c0_i32_0 = arith.constant 0 : i32
    %c0_i32_1 = arith.constant 0 : i32
    return %c0_i32, %c0_i32_0 : i32, i32
  }
  func.func @transform_8(%arg0: i32) -> (i32, i32) {
    %c0_i32 = arith.constant 0 : i32
    %c0_i32_0 = arith.constant 0 : i32
    %c0_i32_1 = arith.constant 0 : i32
    return %c0_i32, %c0_i32_0 : i32, i32
  }
}

</mosaic_0001>

<llo_original>
// kernel: latent_discriminator_forward.2
$region0: #{latent_discriminator_forward.2}
  #allocation0 [shape = 'u32[]', space=smem, size = 0x4, offset = 0x4, fixed_abs, tag = 'smem constant byte address 0x4 - core index']
  #allocation1 [shape = 'u32[144,128]{1,0:T(1,128)}', space=vmem, size = 0x12000, scoped, tag = 'internal scratch']
  %s0 = inlined_call_operand.vmem [shape: bf16[16,8192], index: 0, kind: input, shape index: {}]
  %s1 = inlined_call_operand.hbm [shape: bf16[8192,512], index: 1, kind: input, shape index: {}]
  %s2 = inlined_call_operand.hbm [shape: f32[1,512], index: 2, kind: input, shape index: {}]
  %s3 = inlined_call_operand.hbm [shape: f32[1,512], index: 3, kind: input, shape index: {}]
  %s4 = inlined_call_operand.vmem [shape: f32[16,512], index: 4, kind: output, shape index: {}]
  %s5 = sld [smem:[#allocation0]]
  $region111: #{latent_discriminator_forward.2} parent=0
    _
  %s7 = ssub.s32 1, %s5
  %s8 = scalar_select 0, %s7, %s5
  $region1: #{latent_discriminator_forward.2} parent=0
    #allocation2 [shape = 'u8[262144]{0}', space=vmem, size = 0x40000, scoped, tag = 'input window, operand 0']
    #allocation3 [shape = 'u8[4194304]{0}', space=vmem, size = 0x400000, scoped, tag = 'input window, operand 1']
    #allocation4 [shape = 's32[2]{0}', space=sflag, size = 0x8, scoped, tag = 'scoped memory for latent_discriminator_forward.2']
    #allocation5 [shape = 'u8[2048]{0}', space=vmem, size = 0x800, scoped, tag = 'input window, operand 2']
    #allocation6 [shape = 's32[2]{0}', space=sflag, size = 0x8, scoped, tag = 'scoped memory for latent_discriminator_forward.2']
    #allocation7 [shape = 'u8[2048]{0}', space=vmem, size = 0x800, scoped, tag = 'input window, operand 3']
    #allocation8 [shape = 'u8[32768]{0}', space=vmem, size = 0x8000, scoped, tag = 'output window, operand 0']
    %9 = vsyncpa [#allocation4], 0
    %s10 = scalar_lea.sflag [#allocation4], 1
    %11 = vsyncpa %s10, 0
    %12 = vsyncpa [#allocation6], 0
    %s13 = scalar_lea.sflag [#allocation6], 1
    %14 = vsyncpa %s13, 0
    loop: start=0, step=1, limit=6
    $region2: #{latent_discriminator_forward.2} parent=1 // loop_pre_header
      _
    $region3: #{latent_discriminator_forward.2} parent=1 // loop_header
      %s16 = sphi 0, %s20
      %p17 = scmp.ge.s32.totalorder %s16, 6
      %s23 = sphi 0, %s35
      %s24 = sphi 0, %s31
      %s25 = sphi 0, %s23
      %s26 = sphi 0, %s24
      %s27 = sphi 0, %s25
      %s28 = sphi 0, %s26
      %s38 = sphi 0, %s40
      %s41 = sphi 0, %s38
      %s42 = sphi 0, %s41
      %s58 = sphi 0, %s42
      %s66 = sphi 0, %s68
      %s69 = sphi 0, %s66
      %s70 = sphi 0, %s69
      %s86 = sphi 0, %s70
      %s92 = sphi 0, %s94
      %s95 = sphi 0, %s92
      %s96 = sphi 0, %s95
      %s112 = sphi 0, %s96
      %s118 = sphi 0, %s120
      %s121 = sphi 0, %s118
      %s122 = sphi 0, %s121
      %s138 = sphi 0, %s122
      %s144 = sphi 0, %s146
      %s147 = sphi 0, %s144
      %s148 = sphi 0, %s147
      %s164 = sphi 0, %s148
    $region4: #{latent_discriminator_forward.2} parent=1 // loop_header_branch
      %19 = sbr.rel (%p17) target = $region8
    $region5: #{latent_discriminator_forward.2} parent=1 // loop_body
      %s21 = ssub.s32 %s16, 1
      %s22 = ssub.s32 %s16, 2
      %s29 = sadd.s32 1, %s24
      %p30 = scmp.ge.s32.totalorder %s29, 2
      %s31 = scalar_select %p30, 0, %s29
      %s32 = sadd.s32 1, %s23
      %s33 = scalar_select %p30, %s32, %s23
      %p34 = scmp.ge.s32.totalorder %s33, 2
      %s35 = scalar_select %p34, 0, %s33
      %s36 = ssub.s32 %s24, %s31
      %p37 = scmp.eq.s32.totalorder %s36, 0
      %s39 = sadd.s32 %s38, 1
      %s40 = scalar_select %p37, %s38, %s39
      %p43 = pneg %p37
      %p44 = scmp.eq.s32.totalorder %s16, 3
      %p45 = por %p43, %p44
      %p46 = scmp.ne.s32.totalorder %s38, %s41
      %p47 = scmp.eq.s32.totalorder %s16, 0
      %p48 = por %p46, %p47
      %p49 = scmp.ne.s32.totalorder %s38, %s41
      %p50 = scmp.eq.s32.totalorder %s21, 3
      %p51 = por %p49, %p50
      %p52 = scmp.ne.s32.totalorder %s41, %s42
      %p53 = scmp.eq.s32.totalorder %s21, 0
      %p54 = por %p52, %p53
      %p55 = scmp.ne.s32.totalorder %s41, %s42
      %p56 = scmp.eq.s32.totalorder %s22, 3
      %p57 = por %p55, %p56
      %p59 = scmp.ne.s32.totalorder %s42, %s58
      %p60 = scmp.eq.s32.totalorder %s22, 0
      %p61 = por %p59, %p60
      %s62 = ssub.s32 %s24, %s31
      %s63 = ssub.s32 %s23, %s35
      %s64 = sor.u32 %s62, %s63
      %p65 = scmp.eq.s32.totalorder %s64, 0
      %s67 = sadd.s32 %s66, 1
      %s68 = scalar_select %p65, %s66, %s67
      %p71 = pneg %p65
      %p72 = scmp.eq.s32.totalorder %s16, 3
      %p73 = por %p71, %p72
      %p74 = scmp.ne.s32.totalorder %s66, %s69
      %p75 = scmp.eq.s32.totalorder %s16, 0
      %p76 = por %p74, %p75
      %p77 = scmp.ne.s32.totalorder %s66, %s69
      %p78 = scmp.eq.s32.totalorder %s21, 3
      %p79 = por %p77, %p78
      %p80 = scmp.ne.s32.totalorder %s69, %s70
      %p81 = scmp.eq.s32.totalorder %s21, 0
      %p82 = por %p80, %p81
      %p83 = scmp.ne.s32.totalorder %s69, %s70
      %p84 = scmp.eq.s32.totalorder %s22, 3
      %p85 = por %p83, %p84
      %p87 = scmp.ne.s32.totalorder %s70, %s86
      %p88 = scmp.eq.s32.totalorder %s22, 0
      %p89 = por %p87, %p88
      %s90 = ssub.s32 %s23, %s35
      %p91 = scmp.eq.s32.totalorder %s90, 0
      %s93 = sadd.s32 %s92, 1
      %s94 = scalar_select %p91, %s92, %s93
      %p97 = pneg %p91
      %p98 = scmp.eq.s32.totalorder %s16, 3
      %p99 = por %p97, %p98
      %p100 = scmp.ne.s32.totalorder %s92, %s95
      %p101 = scmp.eq.s32.totalorder %s16, 0
      %p102 = por %p100, %p101
      %p103 = scmp.ne.s32.totalorder %s92, %s95
      %p104 = scmp.eq.s32.totalorder %s21, 3
      %p105 = por %p103, %p104
      %p106 = scmp.ne.s32.totalorder %s95, %s96
      %p107 = scmp.eq.s32.totalorder %s21, 0
      %p108 = por %p106, %p107
      %p109 = scmp.ne.s32.totalorder %s95, %s96
      %p110 = scmp.eq.s32.totalorder %s22, 3
      %p111 = por %p109, %p110
      %p113 = scmp.ne.s32.totalorder %s96, %s112
      %p114 = scmp.eq.s32.totalorder %s22, 0
      %p115 = por %p113, %p114
      %s116 = ssub.s32 %s23, %s35
      %p117 = scmp.eq.s32.totalorder %s116, 0
      %s119 = sadd.s32 %s118, 1
      %s120 = scalar_select %p117, %s118, %s119
      %p123 = pneg %p117
      %p124 = scmp.eq.s32.totalorder %s16, 3
      %p125 = por %p123, %p124
      %p126 = scmp.ne.s32.totalorder %s118, %s121
      %p127 = scmp.eq.s32.totalorder %s16, 0
      %p128 = por %p126, %p127
      %p129 = scmp.ne.s32.totalorder %s118, %s121
      %p130 = scmp.eq.s32.totalorder %s21, 3
      %p131 = por %p129, %p130
      %p132 = scmp.ne.s32.totalorder %s121, %s122
      %p133 = scmp.eq.s32.totalorder %s21, 0
      %p134 = por %p132, %p133
      %p135 = scmp.ne.s32.totalorder %s121, %s122
      %p136 = scmp.eq.s32.totalorder %s22, 3
      %p137 = por %p135, %p136
      %p139 = scmp.ne.s32.totalorder %s122, %s138
      %p140 = scmp.eq.s32.totalorder %s22, 0
      %p141 = por %p139, %p140
      %s142 = ssub.s32 %s23, %s35
      %p143 = scmp.eq.s32.totalorder %s142, 0
      %s145 = sadd.s32 %s144, 1
      %s146 = scalar_select %p143, %s144, %s145
      %p149 = pneg %p143
      %p150 = scmp.eq.s32.totalorder %s16, 3
      %p151 = por %p149, %p150
      %p152 = scmp.ne.s32.totalorder %s144, %s147
      %p153 = scmp.eq.s32.totalorder %s16, 0
      %p154 = por %p152, %p153
      %p155 = scmp.ne.s32.totalorder %s144, %s147
      %p156 = scmp.eq.s32.totalorder %s21, 3
      %p157 = por %p155, %p156
      %p158 = scmp.ne.s32.totalorder %s147, %s148
      %p159 = scmp.eq.s32.totalorder %s21, 0
      %p160 = por %p158, %p159
      %p161 = scmp.ne.s32.totalorder %s147, %s148
      %p162 = scmp.eq.s32.totalorder %s22, 3
      %p163 = por %p161, %p162
      %p165 = scmp.ne.s32.totalorder %s148, %s164
      %p166 = scmp.eq.s32.totalorder %s22, 0
      %p167 = por %p165, %p166
      %p168 = scmp.le.s32.totalorder 1, %s16
      %p169 = scmp.lt.s32.totalorder %s16, 5
      %p170 = pnand %p168, %p169
      %p171 = pneg %p170
      // Predicated region
      $region9: #{latent_discriminator_forward.2} parent=5 // pred_check
        _
      $region10: #{latent_discriminator_forward.2} parent=5 // pred_check_branch
        %173 = sbr.rel (%p170) target = $region12
      $region11: #{latent_discriminator_forward.2} parent=5 // pred_region
        %s174 = ssub.s32 %s16, 1
      $region12: #{latent_discriminator_forward.2} parent=5 // pred_fallthru
        _
      %p175 = scmp.lt.s32.totalorder %s16, 4
      // Predicated region
      $region13: #{latent_discriminator_forward.2} parent=5 // pred_check
        %p176 = pneg %p175
      $region14: #{latent_discriminator_forward.2} parent=5 // pred_check_branch
        %178 = sbr.rel (%p176) target = $region16
      $region15: #{latent_discriminator_forward.2} parent=5 // pred_region
        // Predicated region
        $region17: #{latent_discriminator_forward.2} parent=15 // pred_check
          %p179 = pneg %p48
        $region18: #{latent_discriminator_forward.2} parent=15 // pred_check_branch
          %181 = sbr.rel (%p179) target = $region20
        $region19: #{latent_discriminator_forward.2} parent=15 // pred_region
          %s182 = sand.u32 %s38, 1
          %s183 = sand.u32 %s38, 1
          %s184 = smul.addr %s183, 256
          %s185 = scalar_lea.vmem [#allocation2], %s184
          %s186 = smul.u32 32, %s24
          %s187 = smul.addr %s186, 4
          %s188 = scalar_lea.vmem %s0, %s187
          // Predicated region
          $region21: #{latent_discriminator_forward.2} parent=19 // pred_check
            _
          $region22: #{latent_discriminator_forward.2} parent=19 // pred_check_branch
            %190 = sbr.rel (0) target = $region24
          $region23: #{latent_discriminator_forward.2} parent=19 // pred_region
            // Predicated region
            $region25: #{latent_discriminator_forward.2} parent=23 // pred_check
              _
            $region26: #{latent_discriminator_forward.2} parent=23 // pred_check_branch
              %192 = sbr.rel (0) target = $region28
            $region27: #{latent_discriminator_forward.2} parent=23 // pred_region
              loop: start=0, step=1, limit=1
              $region29: #{latent_discriminator_forward.2} parent=27 // loop_pre_header
                _
              $region30: #{latent_discriminator_forward.2} parent=27 // loop_header
                %s194 = sphi 0, %s198
                %p195 = scmp.ge.s32.totalorder %s194, 1
                %s199 = sphi %s188, %s188
                %s200 = sphi %s185, %s185
              $region31: #{latent_discriminator_forward.2} parent=27 // loop_header_branch
                %197 = sbr.rel (%p195) target = $region35
              $region32: #{latent_discriminator_forward.2} parent=27 // loop_body
                %v201 = vld [vmem:[%s199] sm:$0xff]
                %202 = vst [vmem:[%s200] sm:$0xff] %v201
                %v203 = vld [vmem:[%s199 + $0x8] sm:$0xff]
                %204 = vst [vmem:[%s200 + $0x8] sm:$0xff] %v203
                %v205 = vld [vmem:[%s199 + $0x10] sm:$0xff]
                %206 = vst [vmem:[%s200 + $0x10] sm:$0xff] %v205
                %v207 = vld [vmem:[%s199 + $0x18] sm:$0xff]
                %208 = vst [vmem:[%s200 + $0x18] sm:$0xff] %v207
                %v209 = vld [vmem:[%s199 + $0x20] sm:$0xff]
                %210 = vst [vmem:[%s200 + $0x20] sm:$0xff] %v209
                %v211 = vld [vmem:[%s199 + $0x28] sm:$0xff]
                %212 = vst [vmem:[%s200 + $0x28] sm:$0xff] %v211
                %v213 = vld [vmem:[%s199 + $0x30] sm:$0xff]
                %214 = vst [vmem:[%s200 + $0x30] sm:$0xff] %v213
                %v215 = vld [vmem:[%s199 + $0x38] sm:$0xff]
                %216 = vst [vmem:[%s200 + $0x38] sm:$0xff] %v215
                %v217 = vld [vmem:[%s199 + $0x40] sm:$0xff]
                %218 = vst [vmem:[%s200 + $0x40] sm:$0xff] %v217
                %v219 = vld [vmem:[%s199 + $0x48] sm:$0xff]
                %220 = vst [vmem:[%s200 + $0x48] sm:$0xff] %v219
                %v221 = vld [vmem:[%s199 + $0x50] sm:$0xff]
                %222 = vst [vmem:[%s200 + $0x50] sm:$0xff] %v221
                %v223 = vld [vmem:[%s199 + $0x58] sm:$0xff]
                %224 = vst [vmem:[%s200 + $0x58] sm:$0xff] %v223
                %v225 = vld [vmem:[%s199 + $0x60] sm:$0xff]
                %226 = vst [vmem:[%s200 + $0x60] sm:$0xff] %v225
                %v227 = vld [vmem:[%s199 + $0x68] sm:$0xff]
                %228 = vst [vmem:[%s200 + $0x68] sm:$0xff] %v227
                %v229 = vld [vmem:[%s199 + $0x70] sm:$0xff]
                %230 = vst [vmem:[%s200 + $0x70] sm:$0xff] %v229
                %v231 = vld [vmem:[%s199 + $0x78] sm:$0xff]
                %232 = vst [vmem:[%s200 + $0x78] sm:$0xff] %v231
                %v233 = vld [vmem:[%s199 + $0x100] sm:$0xff]
                %234 = vst [vmem:[%s200 + $0x80] sm:$0xff] %v233
                %v235 = vld [vmem:[%s199 + $0x108] sm:$0xff]
                %236 = vst [vmem:[%s200 + $0x88] sm:$0xff] %v235
                %v237 = vld [vmem:[%s199 + $0x110] sm:$0xff]
                %238 = vst [vmem:[%s200 + $0x90] sm:$0xff] %v237
                %v239 = vld [vmem:[%s199 + $0x118] sm:$0xff]
                %240 = vst [vmem:[%s200 + $0x98] sm:$0xff] %v239
                %v241 = vld [vmem:[%s199 + $0x120] sm:$0xff]
                %242 = vst [vmem:[%s200 + $0xa0] sm:$0xff] %v241
                %v243 = vld [vmem:[%s199 + $0x128] sm:$0xff]
                %244 = vst [vmem:[%s200 + $0xa8] sm:$0xff] %v243
                %v245 = vld [vmem:[%s199 + $0x130] sm:$0xff]
                %246 = vst [vmem:[%s200 + $0xb0] sm:$0xff] %v245
                %v247 = vld [vmem:[%s199 + $0x138] sm:$0xff]
                %248 = vst [vmem:[%s200 + $0xb8] sm:$0xff] %v247
                %v249 = vld [vmem:[%s199 + $0x140] sm:$0xff]
                %250 = vst [vmem:[%s200 + $0xc0] sm:$0xff] %v249
                %v251 = vld [vmem:[%s199 + $0x148] sm:$0xff]
                %252 = vst [vmem:[%s200 + $0xc8] sm:$0xff] %v251
                %v253 = vld [vmem:[%s199 + $0x150] sm:$0xff]
                %254 = vst [vmem:[%s200 + $0xd0] sm:$0xff] %v253
                %v255 = vld [vmem:[%s199 + $0x158] sm:$0xff]
                %256 = vst [vmem:[%s200 + $0xd8] sm:$0xff] %v255
                %v257 = vld [vmem:[%s199 + $0x160] sm:$0xff]
                %258 = vst [vmem:[%s200 + $0xe0] sm:$0xff] %v257
                %v259 = vld [vmem:[%s199 + $0x168] sm:$0xff]
                %260 = vst [vmem:[%s200 + $0xe8] sm:$0xff] %v259
                %v261 = vld [vmem:[%s199 + $0x170] sm:$0xff]
                %262 = vst [vmem:[%s200 + $0xf0] sm:$0xff] %v261
                %v263 = vld [vmem:[%s199 + $0x178] sm:$0xff]
                %264 = vst [vmem:[%s200 + $0xf8] sm:$0xff] %v263
              $region33: #{latent_discriminator_forward.2} parent=27 // loop_footer
                %s198 = sadd.s32 1, %s194
              $region34: #{latent_discriminator_forward.2} parent=27 // loop_footer_branch
                %193 = sbr.rel target = $region30
              $region35: #{latent_discriminator_forward.2} parent=27 // loop_exit
                _
            $region28: #{latent_discriminator_forward.2} parent=23 // pred_fallthru
              _
            // Predicated region
            $region36: #{latent_discriminator_forward.2} parent=23 // pred_check
              _
            $region37: #{latent_discriminator_forward.2} parent=23 // pred_check_branch
              %266 = sbr.rel target = $region39
            $region38: #{latent_discriminator_forward.2} parent=23 // pred_region
              _
            $region39: #{latent_discriminator_forward.2} parent=23 // pred_fallthru
              _
          $region24: #{latent_discriminator_forward.2} parent=19 // pred_fallthru
            _
          %267 = vnop
        $region20: #{latent_discriminator_forward.2} parent=15 // pred_fallthru
          _
        // Predicated region
        $region40: #{latent_discriminator_forward.2} parent=15 // pred_check
          %p268 = pneg %p76
        $region41: #{latent_discriminator_forward.2} parent=15 // pred_check_branch
          %270 = sbr.rel (%p268) target = $region43
        $region42: #{latent_discriminator_forward.2} parent=15 // pred_region
          %s271 = sand.u32 %s66, 1
          %s272 = scalar_lea.sflag [#allocation4], %s271
          %s273 = sand.u32 %s66, 1
          %s274 = smul.addr %s273, 4096
          %s275 = scalar_lea.vmem [#allocation3], %s274
          %s276 = smul.u32 512, %s24
          %s277 = smul.u32 2, %s23
          %s279 = ssub.s32 65536, 65536
          %280 = vsyncadd %s272, %s279
          %s281 = smul.addr %s276, 4
          %s282 = sadd.s32 %s277, %s281
          %s283 = smul.addr %s282, 64
          %s284 = scalar_lea.hbm %s1, %s283
          %s285 = sshll.u32 %s275, 4
          %s286 = int_to_ptr.vmem [resolvable:$true] %s285
          %291 = dma.hbm_to_vmem [thread:$0]  %s284, 65536, %s286, %s272, 256, 128, 8
        $region43: #{latent_discriminator_forward.2} parent=15 // pred_fallthru
          _
        // Predicated region
        $region44: #{latent_discriminator_forward.2} parent=15 // pred_check
          %p292 = pneg %p102
        $region45: #{latent_discriminator_forward.2} parent=15 // pred_check_branch
          %294 = sbr.rel (%p292) target = $region47
        $region46: #{latent_discriminator_forward.2} parent=15 // pred_region
          %s295 = sand.u32 %s16, 1
          %s296 = scalar_lea.sflag [#allocation6], %s295
          %s297 = sand.u32 %s92, 1
          %s298 = smul.addr %s297, 2
          %s299 = scalar_lea.vmem [#allocation5], %s298
          %s300 = smul.u32 2, %s23
          %s302 = ssub.s32 32, 32
          %303 = vsyncadd %s296, %s302
          %s304 = smul.addr %s300, 16
          %s305 = scalar_lea.hbm %s2, %s304
          %s307 = sshll.u32 %s299, 4
          %s308 = int_to_ptr.vmem [resolvable:$true] %s307
          %310 = dma.hbm_to_vmem [thread:$0]  %s305, 32, %s308, %s296
        $region47: #{latent_discriminator_forward.2} parent=15 // pred_fallthru
          _
        // Predicated region
        $region48: #{latent_discriminator_forward.2} parent=15 // pred_check
          %p311 = pneg %p128
        $region49: #{latent_discriminator_forward.2} parent=15 // pred_check_branch
          %313 = sbr.rel (%p311) target = $region51
        $region50: #{latent_discriminator_forward.2} parent=15 // pred_region
          %s314 = sand.u32 %s16, 1
          %s315 = scalar_lea.sflag [#allocation6], %s314
          %s316 = sand.u32 %s118, 1
          %s317 = smul.addr %s316, 2
          %s318 = scalar_lea.vmem [#allocation7], %s317
          %s319 = smul.u32 2, %s23
          %s321 = ssub.s32 32, 32
          %322 = vsyncadd %s315, %s321
          %s323 = smul.addr %s319, 16
          %s324 = scalar_lea.hbm %s3, %s323
          %s326 = sshll.u32 %s318, 4
          %s327 = int_to_ptr.vmem [resolvable:$true] %s326
          %329 = dma.hbm_to_vmem [thread:$0]  %s324, 32, %s327, %s315
        $region51: #{latent_discriminator_forward.2} parent=15 // pred_fallthru
          _
      $region16: #{latent_discriminator_forward.2} parent=5 // pred_fallthru
        _
      %p330 = scmp.le.s32.totalorder 1, %s16
      %p331 = scmp.lt.s32.totalorder %s16, 5
      %p332 = pnand %p330, %p331
      %p333 = pneg %p332
      // Predicated region
      $region52: #{latent_discriminator_forward.2} parent=5 // pred_check
        _
      $region53: #{latent_discriminator_forward.2} parent=5 // pred_check_branch
        %335 = sbr.rel (%p332) target = $region55
      $region54: #{latent_discriminator_forward.2} parent=5 // pred_region
        %s336 = ssub.s32 %s16, 1
        %s337 = sand.u32 %s41, 1
        %s338 = sand.u32 %s41, 1
        %s339 = smul.addr %s338, 256
        %s340 = scalar_lea.vmem [#allocation2], %s339
        // Predicated region
        $region56: #{latent_discriminator_forward.2} parent=54 // pred_check
          %p341 = pneg %p54
        $region57: #{latent_discriminator_forward.2} parent=54 // pred_check_branch
          %343 = sbr.rel (%p341) target = $region59
        $region58: #{latent_discriminator_forward.2} parent=54 // pred_region
          _
        $region59: #{latent_discriminator_forward.2} parent=54 // pred_fallthru
          _
        %s344 = sand.u32 %s69, 1
        %s345 = scalar_lea.sflag [#allocation4], %s344
        %s346 = sand.u32 %s69, 1
        %s347 = smul.addr %s346, 4096
        %s348 = scalar_lea.vmem [#allocation3], %s347
        // Predicated region
        $region60: #{latent_discriminator_forward.2} parent=54 // pred_check
          %p349 = pneg %p82
        $region61: #{latent_discriminator_forward.2} parent=54 // pred_check_branch
          %351 = sbr.rel (%p349) target = $region63
        $region62: #{latent_discriminator_forward.2} parent=54 // pred_region
          %352 = dma.done %s345, 65536
        $region63: #{latent_discriminator_forward.2} parent=54 // pred_fallthru
          _
        %s353 = sand.u32 %s21, 1
        %s354 = scalar_lea.sflag [#allocation6], %s353
        %s355 = sand.u32 %s95, 1
        %s356 = smul.addr %s355, 2
        %s357 = scalar_lea.vmem [#allocation5], %s356
        // Predicated region
        $region64: #{latent_discriminator_forward.2} parent=54 // pred_check
          %p358 = pneg %p108
        $region65: #{latent_discriminator_forward.2} parent=54 // pred_check_branch
          %360 = sbr.rel (%p358) target = $region67
        $region66: #{latent_discriminator_forward.2} parent=54 // pred_region
          %361 = dma.done %s354, 32
        $region67: #{latent_discriminator_forward.2} parent=54 // pred_fallthru
          _
        %s362 = sand.u32 %s21, 1
        %s363 = scalar_lea.sflag [#allocation6], %s362
        %s364 = sand.u32 %s121, 1
        %s365 = smul.addr %s364, 2
        %s366 = scalar_lea.vmem [#allocation7], %s365
        // Predicated region
        $region68: #{latent_discriminator_forward.2} parent=54 // pred_check
          %p367 = pneg %p134
        $region69: #{latent_discriminator_forward.2} parent=54 // pred_check_branch
          %369 = sbr.rel (%p367) target = $region71
        $region70: #{latent_discriminator_forward.2} parent=54 // pred_region
          %370 = dma.done %s363, 32
        $region71: #{latent_discriminator_forward.2} parent=54 // pred_fallthru
          _
        %s371 = sand.u32 %s41, 1
        %s372 = sand.u32 %s41, 1
        %s373 = smul.addr %s372, 256
        %s374 = scalar_lea.vmem [#allocation2], %s373
        %p375 = pneg %p54
        %p376 = pneg %p51
        %s377 = sand.u32 %s69, 1
        %s378 = scalar_lea.sflag [#allocation4], %s377
        %s379 = sand.u32 %s69, 1
        %s380 = smul.addr %s379, 4096
        %s381 = scalar_lea.vmem [#allocation3], %s380
        %p382 = pneg %p82
        %p383 = pneg %p79
        %s384 = sand.u32 %s21, 1
        %s385 = scalar_lea.sflag [#allocation6], %s384
        %s386 = sand.u32 %s95, 1
        %s387 = smul.addr %s386, 2
        %s388 = scalar_lea.vmem [#allocation5], %s387
        %p389 = pneg %p108
        %p390 = pneg %p105
        %s391 = sand.u32 %s21, 1
        %s392 = scalar_lea.sflag [#allocation6], %s391
        %s393 = sand.u32 %s121, 1
        %s394 = smul.addr %s393, 2
        %s395 = scalar_lea.vmem [#allocation7], %s394
        %p396 = pneg %p134
        %p397 = pneg %p131
        %p398 = pneg %p160
        %p399 = pneg %p157
        %s400 = sand.u32 %s147, 1
        %s401 = sand.u32 %s147, 1
        %s402 = smul.addr %s401, 32
        %s403 = scalar_lea.vmem [#allocation8], %s402
        %s404 = smul.u32 32, %s26
        %s405 = smul.u32 512, %s26
        %s406 = smul.u32 2, %s25
        %s407 = smul.u32 2, %s25
        %s408 = smul.u32 2, %s25
        %s409 = smul.u32 2, %s25
        %p410 = scmp.eq.s32.totalorder %s26, 0
        // Predicated region
        $region72: #{latent_discriminator_forward.2} parent=54 // pred_check
          %p411 = pneg %p410
        $region73: #{latent_discriminator_forward.2} parent=54 // pred_check_branch
          %413 = sbr.rel (%p411) target = $region75
        $region74: #{latent_discriminator_forward.2} parent=54 // pred_region
          %414 = vst [vmem:[%s403] sm:$0xff] 0.0
          %415 = vst [vmem:[%s403 + $0x8] sm:$0xff] 0.0
          %416 = vst [vmem:[%s403 + $0x10] sm:$0xff] 0.0
          %417 = vst [vmem:[%s403 + $0x18] sm:$0xff] 0.0
        $region75: #{latent_discriminator_forward.2} parent=54 // pred_fallthru
          _
        %v418 = vld [vmem:[%s403] sm:$0xff]
        %v419 = vld [vmem:[%s403 + $0x8] sm:$0xff]
        %v420 = vld [vmem:[%s403 + $0x10] sm:$0xff]
        %v421 = vld [vmem:[%s403 + $0x18] sm:$0xff]
        %v422 = vld [vmem:[%s340] sm:$0xff]
        %v423 = vld [vmem:[%s340 + $0x8] sm:$0xff]
        %v424 = vld [vmem:[%s340 + $0x10] sm:$0xff]
        %v425 = vld [vmem:[%s340 + $0x18] sm:$0xff]
        %v426 = vld [vmem:[%s340 + $0x20] sm:$0xff]
        %v427 = vld [vmem:[%s340 + $0x28] sm:$0xff]
        %v428 = vld [vmem:[%s340 + $0x30] sm:$0xff]
        %v429 = vld [vmem:[%s340 + $0x38] sm:$0xff]
        %v430 = vld [vmem:[%s340 + $0x40] sm:$0xff]
        %v431 = vld [vmem:[%s340 + $0x48] sm:$0xff]
        %v432 = vld [vmem:[%s340 + $0x50] sm:$0xff]
        %v433 = vld [vmem:[%s340 + $0x58] sm:$0xff]
        %v434 = vld [vmem:[%s340 + $0x60] sm:$0xff]
        %v435 = vld [vmem:[%s340 + $0x68] sm:$0xff]
        %v436 = vld [vmem:[%s340 + $0x70] sm:$0xff]
        %v437 = vld [vmem:[%s340 + $0x78] sm:$0xff]
        %v438 = vld [vmem:[%s340 + $0x80] sm:$0xff]
        %v439 = vld [vmem:[%s340 + $0x88] sm:$0xff]
        %v440 = vld [vmem:[%s340 + $0x90] sm:$0xff]
        %v441 = vld [vmem:[%s340 + $0x98] sm:$0xff]
        %v442 = vld [vmem:[%s340 + $0xa0] sm:$0xff]
        %v443 = vld [vmem:[%s340 + $0xa8] sm:$0xff]
        %v444 = vld [vmem:[%s340 + $0xb0] sm:$0xff]
        %v445 = vld [vmem:[%s340 + $0xb8] sm:$0xff]
        %v446 = vld [vmem:[%s340 + $0xc0] sm:$0xff]
        %v447 = vld [vmem:[%s340 + $0xc8] sm:$0xff]
        %v448 = vld [vmem:[%s340 + $0xd0] sm:$0xff]
        %v449 = vld [vmem:[%s340 + $0xd8] sm:$0xff]
        %v450 = vld [vmem:[%s340 + $0xe0] sm:$0xff]
        %v451 = vld [vmem:[%s340 + $0xe8] sm:$0xff]
        %v452 = vld [vmem:[%s340 + $0xf0] sm:$0xff]
        %v453 = vld [vmem:[%s340 + $0xf8] sm:$0xff]
        %v454 = vld [vmem:[%s348] sm:$0xff]
        %v455 = vld [vmem:[%s348 + $0x8] sm:$0xff]
        %v456 = vld [vmem:[%s348 + $0x10] sm:$0xff]
        %v457 = vld [vmem:[%s348 + $0x18] sm:$0xff]
        %v458 = vld [vmem:[%s348 + $0x20] sm:$0xff]
        %v459 = vld [vmem:[%s348 + $0x28] sm:$0xff]
        %v460 = vld [vmem:[%s348 + $0x30] sm:$0xff]
        %v461 = vld [vmem:[%s348 + $0x38] sm:$0xff]
        %v462 = vld [vmem:[%s348 + $0x40] sm:$0xff]
        %v463 = vld [vmem:[%s348 + $0x48] sm:$0xff]
        %v464 = vld [vmem:[%s348 + $0x50] sm:$0xff]
        %v465 = vld [vmem:[%s348 + $0x58] sm:$0xff]
        %v466 = vld [vmem:[%s348 + $0x60] sm:$0xff]
        %v467 = vld [vmem:[%s348 + $0x68] sm:$0xff]
        %v468 = vld [vmem:[%s348 + $0x70] sm:$0xff]
        %v469 = vld [vmem:[%s348 + $0x78] sm:$0xff]
        %v470 = vld [vmem:[%s348 + $0x80] sm:$0xff]
        %v471 = vld [vmem:[%s348 + $0x88] sm:$0xff]
        %v472 = vld [vmem:[%s348 + $0x90] sm:$0xff]
        %v473 = vld [vmem:[%s348 + $0x98] sm:$0xff]
        %v474 = vld [vmem:[%s348 + $0xa0] sm:$0xff]
        %v475 = vld [vmem:[%s348 + $0xa8] sm:$0xff]
        %v476 = vld [vmem:[%s348 + $0xb0] sm:$0xff]
        %v477 = vld [vmem:[%s348 + $0xb8] sm:$0xff]
        %v478 = vld [vmem:[%s348 + $0xc0] sm:$0xff]
        %v479 = vld [vmem:[%s348 + $0xc8] sm:$0xff]
        %v480 = vld [vmem:[%s348 + $0xd0] sm:$0xff]
        %v481 = vld [vmem:[%s348 + $0xd8] sm:$0xff]
        %v482 = vld [vmem:[%s348 + $0xe0] sm:$0xff]
        %v483 = vld [vmem:[%s348 + $0xe8] sm:$0xff]
        %v484 = vld [vmem:[%s348 + $0xf0] sm:$0xff]
        %v485 = vld [vmem:[%s348 + $0xf8] sm:$0xff]
        %v486 = vld [vmem:[%s348 + $0x100] sm:$0xff]
        %v487 = vld [vmem:[%s348 + $0x108] sm:$0xff]
        %v488 = vld [vmem:[%s348 + $0x110] sm:$0xff]
        %v489 = vld [vmem:[%s348 + $0x118] sm:$0xff]
        %v490 = vld [vmem:[%s348 + $0x120] sm:$0xff]
        %v491 = vld [vmem:[%s348 + $0x128] sm:$0xff]
        %v492 = vld [vmem:[%s348 + $0x130] sm:$0xff]
        %v493 = vld [vmem:[%s348 + $0x138] sm:$0xff]
        %v494 = vld [vmem:[%s348 + $0x140] sm:$0xff]
        %v495 = vld [vmem:[%s348 + $0x148] sm:$0xff]
        %v496 = vld [vmem:[%s348 + $0x150] sm:$0xff]
        %v497 = vld [vmem:[%s348 + $0x158] sm:$0xff]
        %v498 = vld [vmem:[%s348 + $0x160] sm:$0xff]
        %v499 = vld [vmem:[%s348 + $0x168] sm:$0xff]
        %v500 = vld [vmem:[%s348 + $0x170] sm:$0xff]
        %v501 = vld [vmem:[%s348 + $0x178] sm:$0xff]
        %v502 = vld [vmem:[%s348 + $0x180] sm:$0xff]
        %v503 = vld [vmem:[%s348 + $0x188] sm:$0xff]
        %v504 = vld [vmem:[%s348 + $0x190] sm:$0xff]
        %v505 = vld [vmem:[%s348 + $0x198] sm:$0xff]
        %v506 = vld [vmem:[%s348 + $0x1a0] sm:$0xff]
        %v507 = vld [vmem:[%s348 + $0x1a8] sm:$0xff]
        %v508 = vld [vmem:[%s348 + $0x1b0] sm:$0xff]
        %v509 = vld [vmem:[%s348 + $0x1b8] sm:$0xff]
        %v510 = vld [vmem:[%s348 + $0x1c0] sm:$0xff]
        %v511 = vld [vmem:[%s348 + $0x1c8] sm:$0xff]
        %v512 = vld [vmem:[%s348 + $0x1d0] sm:$0xff]
        %v513 = vld [vmem:[%s348 + $0x1d8] sm:$0xff]
        %v514 = vld [vmem:[%s348 + $0x1e0] sm:$0xff]
        %v515 = vld [vmem:[%s348 + $0x1e8] sm:$0xff]
        %v516 = vld [vmem:[%s348 + $0x1f0] sm:$0xff]
        %v517 = vld [vmem:[%s348 + $0x1f8] sm:$0xff]
        %v518 = vld [vmem:[%s348 + $0x200] sm:$0xff]
        %v519 = vld [vmem:[%s348 + $0x208] sm:$0xff]
        %v520 = vld [vmem:[%s348 + $0x210] sm:$0xff]
        %v521 = vld [vmem:[%s348 + $0x218] sm:$0xff]
        %v522 = vld [vmem:[%s348 + $0x220] sm:$0xff]
        %v523 = vld [vmem:[%s348 + $0x228] sm:$0xff]
        %v524 = vld [vmem:[%s348 + $0x230] sm:$0xff]
        %v525 = vld [vmem:[%s348 + $0x238] sm:$0xff]
        %v526 = vld [vmem:[%s348 + $0x240] sm:$0xff]
        %v527 = vld [vmem:[%s348 + $0x248] sm:$0xff]
        %v528 = vld [vmem:[%s348 + $0x250] sm:$0xff]
        %v529 = vld [vmem:[%s348 + $0x258] sm:$0xff]
        %v530 = vld [vmem:[%s348 + $0x260] sm:$0xff]
        %v531 = vld [vmem:[%s348 + $0x268] sm:$0xff]
        %v532 = vld [vmem:[%s348 + $0x270] sm:$0xff]
        %v533 = vld [vmem:[%s348 + $0x278] sm:$0xff]
        %v534 = vld [vmem:[%s348 + $0x280] sm:$0xff]
        %v535 = vld [vmem:[%s348 + $0x288] sm:$0xff]
        %v536 = vld [vmem:[%s348 + $0x290] sm:$0xff]
        %v537 = vld [vmem:[%s348 + $0x298] sm:$0xff]
        %v538 = vld [vmem:[%s348 + $0x2a0] sm:$0xff]
        %v539 = vld [vmem:[%s348 + $0x2a8] sm:$0xff]
        %v540 = vld [vmem:[%s348 + $0x2b0] sm:$0xff]
        %v541 = vld [vmem:[%s348 + $0x2b8] sm:$0xff]
        %v542 = vld [vmem:[%s348 + $0x2c0] sm:$0xff]
        %v543 = vld [vmem:[%s348 + $0x2c8] sm:$0xff]
        %v544 = vld [vmem:[%s348 + $0x2d0] sm:$0xff]
        %v545 = vld [vmem:[%s348 + $0x2d8] sm:$0xff]
        %v546 = vld [vmem:[%s348 + $0x2e0] sm:$0xff]
        %v547 = vld [vmem:[%s348 + $0x2e8] sm:$0xff]
        %v548 = vld [vmem:[%s348 + $0x2f0] sm:$0xff]
        %v549 = vld [vmem:[%s348 + $0x2f8] sm:$0xff]
        %v550 = vld [vmem:[%s348 + $0x300] sm:$0xff]
        %v551 = vld [vmem:[%s348 + $0x308] sm:$0xff]
        %v552 = vld [vmem:[%s348 + $0x310] sm:$0xff]
        %v553 = vld [vmem:[%s348 + $0x318] sm:$0xff]
        %v554 = vld [vmem:[%s348 + $0x320] sm:$0xff]
        %v555 = vld [vmem:[%s348 + $0x328] sm:$0xff]
        %v556 = vld [vmem:[%s348 + $0x330] sm:$0xff]
        %v557 = vld [vmem:[%s348 + $0x338] sm:$0xff]
        %v558 = vld [vmem:[%s348 + $0x340] sm:$0xff]
        %v559 = vld [vmem:[%s348 + $0x348] sm:$0xff]
        %v560 = vld [vmem:[%s348 + $0x350] sm:$0xff]
        %v561 = vld [vmem:[%s348 + $0x358] sm:$0xff]
        %v562 = vld [vmem:[%s348 + $0x360] sm:$0xff]
        %v563 = vld [vmem:[%s348 + $0x368] sm:$0xff]
        %v564 = vld [vmem:[%s348 + $0x370] sm:$0xff]
        %v565 = vld [vmem:[%s348 + $0x378] sm:$0xff]
        %v566 = vld [vmem:[%s348 + $0x380] sm:$0xff]
        %v567 = vld [vmem:[%s348 + $0x388] sm:$0xff]
        %v568 = vld [vmem:[%s348 + $0x390] sm:$0xff]
        %v569 = vld [vmem:[%s348 + $0x398] sm:$0xff]
        %v570 = vld [vmem:[%s348 + $0x3a0] sm:$0xff]
        %v571 = vld [vmem:[%s348 + $0x3a8] sm:$0xff]
        %v572 = vld [vmem:[%s348 + $0x3b0] sm:$0xff]
        %v573 = vld [vmem:[%s348 + $0x3b8] sm:$0xff]
        %v574 = vld [vmem:[%s348 + $0x3c0] sm:$0xff]
        %v575 = vld [vmem:[%s348 + $0x3c8] sm:$0xff]
        %v576 = vld [vmem:[%s348 + $0x3d0] sm:$0xff]
        %v577 = vld [vmem:[%s348 + $0x3d8] sm:$0xff]
        %v578 = vld [vmem:[%s348 + $0x3e0] sm:$0xff]
        %v579 = vld [vmem:[%s348 + $0x3e8] sm:$0xff]
        %v580 = vld [vmem:[%s348 + $0x3f0] sm:$0xff]
        %v581 = vld [vmem:[%s348 + $0x3f8] sm:$0xff]
        %v582 = vld [vmem:[%s348 + $0x400] sm:$0xff]
        %v583 = vld [vmem:[%s348 + $0x408] sm:$0xff]
        %v584 = vld [vmem:[%s348 + $0x410] sm:$0xff]
        %v585 = vld [vmem:[%s348 + $0x418] sm:$0xff]
        %v586 = vld [vmem:[%s348 + $0x420] sm:$0xff]
        %v587 = vld [vmem:[%s348 + $0x428] sm:$0xff]
        %v588 = vld [vmem:[%s348 + $0x430] sm:$0xff]
        %v589 = vld [vmem:[%s348 + $0x438] sm:$0xff]
        %v590 = vld [vmem:[%s348 + $0x440] sm:$0xff]
        %v591 = vld [vmem:[%s348 + $0x448] sm:$0xff]
        %v592 = vld [vmem:[%s348 + $0x450] sm:$0xff]
        %v593 = vld [vmem:[%s348 + $0x458] sm:$0xff]
        %v594 = vld [vmem:[%s348 + $0x460] sm:$0xff]
        %v595 = vld [vmem:[%s348 + $0x468] sm:$0xff]
        %v596 = vld [vmem:[%s348 + $0x470] sm:$0xff]
        %v597 = vld [vmem:[%s348 + $0x478] sm:$0xff]
        %v598 = vld [vmem:[%s348 + $0x480] sm:$0xff]
        %v599 = vld [vmem:[%s348 + $0x488] sm:$0xff]
        %v600 = vld [vmem:[%s348 + $0x490] sm:$0xff]
        %v601 = vld [vmem:[%s348 + $0x498] sm:$0xff]
        %v602 = vld [vmem:[%s348 + $0x4a0] sm:$0xff]
        %v603 = vld [vmem:[%s348 + $0x4a8] sm:$0xff]
        %v604 = vld [vmem:[%s348 + $0x4b0] sm:$0xff]
        %v605 = vld [vmem:[%s348 + $0x4b8] sm:$0xff]
        %v606 = vld [vmem:[%s348 + $0x4c0] sm:$0xff]
        %v607 = vld [vmem:[%s348 + $0x4c8] sm:$0xff]
        %v608 = vld [vmem:[%s348 + $0x4d0] sm:$0xff]
        %v609 = vld [vmem:[%s348 + $0x4d8] sm:$0xff]
        %v610 = vld [vmem:[%s348 + $0x4e0] sm:$0xff]
        %v611 = vld [vmem:[%s348 + $0x4e8] sm:$0xff]
        %v612 = vld [vmem:[%s348 + $0x4f0] sm:$0xff]
        %v613 = vld [vmem:[%s348 + $0x4f8] sm:$0xff]
        %v614 = vld [vmem:[%s348 + $0x500] sm:$0xff]
        %v615 = vld [vmem:[%s348 + $0x508] sm:$0xff]
        %v616 = vld [vmem:[%s348 + $0x510] sm:$0xff]
        %v617 = vld [vmem:[%s348 + $0x518] sm:$0xff]
        %v618 = vld [vmem:[%s348 + $0x520] sm:$0xff]
        %v619 = vld [vmem:[%s348 + $0x528] sm:$0xff]
        %v620 = vld [vmem:[%s348 + $0x530] sm:$0xff]
        %v621 = vld [vmem:[%s348 + $0x538] sm:$0xff]
        %v622 = vld [vmem:[%s348 + $0x540] sm:$0xff]
        %v623 = vld [vmem:[%s348 + $0x548] sm:$0xff]
        %v624 = vld [vmem:[%s348 + $0x550] sm:$0xff]
        %v625 = vld [vmem:[%s348 + $0x558] sm:$0xff]
        %v626 = vld [vmem:[%s348 + $0x560] sm:$0xff]
        %v627 = vld [vmem:[%s348 + $0x568] sm:$0xff]
        %v628 = vld [vmem:[%s348 + $0x570] sm:$0xff]
        %v629 = vld [vmem:[%s348 + $0x578] sm:$0xff]
        %v630 = vld [vmem:[%s348 + $0x580] sm:$0xff]
        %v631 = vld [vmem:[%s348 + $0x588] sm:$0xff]
        %v632 = vld [vmem:[%s348 + $0x590] sm:$0xff]
        %v633 = vld [vmem:[%s348 + $0x598] sm:$0xff]
        %v634 = vld [vmem:[%s348 + $0x5a0] sm:$0xff]
        %v635 = vld [vmem:[%s348 + $0x5a8] sm:$0xff]
        %v636 = vld [vmem:[%s348 + $0x5b0] sm:$0xff]
        %v637 = vld [vmem:[%s348 + $0x5b8] sm:$0xff]
        %v638 = vld [vmem:[%s348 + $0x5c0] sm:$0xff]
        %v639 = vld [vmem:[%s348 + $0x5c8] sm:$0xff]
        %v640 = vld [vmem:[%s348 + $0x5d0] sm:$0xff]
        %v641 = vld [vmem:[%s348 + $0x5d8] sm:$0xff]
        %v642 = vld [vmem:[%s348 + $0x5e0] sm:$0xff]
        %v643 = vld [vmem:[%s348 + $0x5e8] sm:$0xff]
        %v644 = vld [vmem:[%s348 + $0x5f0] sm:$0xff]
        %v645 = vld [vmem:[%s348 + $0x5f8] sm:$0xff]
        %v646 = vld [vmem:[%s348 + $0x600] sm:$0xff]
        %v647 = vld [vmem:[%s348 + $0x608] sm:$0xff]
        %v648 = vld [vmem:[%s348 + $0x610] sm:$0xff]
        %v649 = vld [vmem:[%s348 + $0x618] sm:$0xff]
        %v650 = vld [vmem:[%s348 + $0x620] sm:$0xff]
        %v651 = vld [vmem:[%s348 + $0x628] sm:$0xff]
        %v652 = vld [vmem:[%s348 + $0x630] sm:$0xff]
        %v653 = vld [vmem:[%s348 + $0x638] sm:$0xff]
        %v654 = vld [vmem:[%s348 + $0x640] sm:$0xff]
        %v655 = vld [vmem:[%s348 + $0x648] sm:$0xff]
        %v656 = vld [vmem:[%s348 + $0x650] sm:$0xff]
        %v657 = vld [vmem:[%s348 + $0x658] sm:$0xff]
        %v658 = vld [vmem:[%s348 + $0x660] sm:$0xff]
        %v659 = vld [vmem:[%s348 + $0x668] sm:$0xff]
        %v660 = vld [vmem:[%s348 + $0x670] sm:$0xff]
        %v661 = vld [vmem:[%s348 + $0x678] sm:$0xff]
        %v662 = vld [vmem:[%s348 + $0x680] sm:$0xff]
        %v663 = vld [vmem:[%s348 + $0x688] sm:$0xff]
        %v664 = vld [vmem:[%s348 + $0x690] sm:$0xff]
        %v665 = vld [vmem:[%s348 + $0x698] sm:$0xff]
        %v666 = vld [vmem:[%s348 + $0x6a0] sm:$0xff]
        %v667 = vld [vmem:[%s348 + $0x6a8] sm:$0xff]
        %v668 = vld [vmem:[%s348 + $0x6b0] sm:$0xff]
        %v669 = vld [vmem:[%s348 + $0x6b8] sm:$0xff]
        %v670 = vld [vmem:[%s348 + $0x6c0] sm:$0xff]
        %v671 = vld [vmem:[%s348 + $0x6c8] sm:$0xff]
        %v672 = vld [vmem:[%s348 + $0x6d0] sm:$0xff]
        %v673 = vld [vmem:[%s348 + $0x6d8] sm:$0xff]
        %v674 = vld [vmem:[%s348 + $0x6e0] sm:$0xff]
        %v675 = vld [vmem:[%s348 + $0x6e8] sm:$0xff]
        %v676 = vld [vmem:[%s348 + $0x6f0] sm:$0xff]
        %v677 = vld [vmem:[%s348 + $0x6f8] sm:$0xff]
        %v678 = vld [vmem:[%s348 + $0x700] sm:$0xff]
        %v679 = vld [vmem:[%s348 + $0x708] sm:$0xff]
        %v680 = vld [vmem:[%s348 + $0x710] sm:$0xff]
        %v681 = vld [vmem:[%s348 + $0x718] sm:$0xff]
        %v682 = vld [vmem:[%s348 + $0x720] sm:$0xff]
        %v683 = vld [vmem:[%s348 + $0x728] sm:$0xff]
        %v684 = vld [vmem:[%s348 + $0x730] sm:$0xff]
        %v685 = vld [vmem:[%s348 + $0x738] sm:$0xff]
        %v686 = vld [vmem:[%s348 + $0x740] sm:$0xff]
        %v687 = vld [vmem:[%s348 + $0x748] sm:$0xff]
        %v688 = vld [vmem:[%s348 + $0x750] sm:$0xff]
        %v689 = vld [vmem:[%s348 + $0x758] sm:$0xff]
        %v690 = vld [vmem:[%s348 + $0x760] sm:$0xff]
        %v691 = vld [vmem:[%s348 + $0x768] sm:$0xff]
        %v692 = vld [vmem:[%s348 + $0x770] sm:$0xff]
        %v693 = vld [vmem:[%s348 + $0x778] sm:$0xff]
        %v694 = vld [vmem:[%s348 + $0x780] sm:$0xff]
        %v695 = vld [vmem:[%s348 + $0x788] sm:$0xff]
        %v696 = vld [vmem:[%s348 + $0x790] sm:$0xff]
        %v697 = vld [vmem:[%s348 + $0x798] sm:$0xff]
        %v698 = vld [vmem:[%s348 + $0x7a0] sm:$0xff]
        %v699 = vld [vmem:[%s348 + $0x7a8] sm:$0xff]
        %v700 = vld [vmem:[%s348 + $0x7b0] sm:$0xff]
        %v701 = vld [vmem:[%s348 + $0x7b8] sm:$0xff]
        %v702 = vld [vmem:[%s348 + $0x7c0] sm:$0xff]
        %v703 = vld [vmem:[%s348 + $0x7c8] sm:$0xff]
        %v704 = vld [vmem:[%s348 + $0x7d0] sm:$0xff]
        %v705 = vld [vmem:[%s348 + $0x7d8] sm:$0xff]
        %v706 = vld [vmem:[%s348 + $0x7e0] sm:$0xff]
        %v707 = vld [vmem:[%s348 + $0x7e8] sm:$0xff]
        %v708 = vld [vmem:[%s348 + $0x7f0] sm:$0xff]
        %v709 = vld [vmem:[%s348 + $0x7f8] sm:$0xff]
        %v710 = vld [vmem:[%s348 + $0x800] sm:$0xff]
        %v711 = vld [vmem:[%s348 + $0x808] sm:$0xff]
        %v712 = vld [vmem:[%s348 + $0x810] sm:$0xff]
        %v713 = vld [vmem:[%s348 + $0x818] sm:$0xff]
        %v714 = vld [vmem:[%s348 + $0x820] sm:$0xff]
        %v715 = vld [vmem:[%s348 + $0x828] sm:$0xff]
        %v716 = vld [vmem:[%s348 + $0x830] sm:$0xff]
        %v717 = vld [vmem:[%s348 + $0x838] sm:$0xff]
        %v718 = vld [vmem:[%s348 + $0x840] sm:$0xff]
        %v719 = vld [vmem:[%s348 + $0x848] sm:$0xff]
        %v720 = vld [vmem:[%s348 + $0x850] sm:$0xff]
        %v721 = vld [vmem:[%s348 + $0x858] sm:$0xff]
        %v722 = vld [vmem:[%s348 + $0x860] sm:$0xff]
        %v723 = vld [vmem:[%s348 + $0x868] sm:$0xff]
        %v724 = vld [vmem:[%s348 + $0x870] sm:$0xff]
        %v725 = vld [vmem:[%s348 + $0x878] sm:$0xff]
        %v726 = vld [vmem:[%s348 + $0x880] sm:$0xff]
        %v727 = vld [vmem:[%s348 + $0x888] sm:$0xff]
        %v728 = vld [vmem:[%s348 + $0x890] sm:$0xff]
        %v729 = vld [vmem:[%s348 + $0x898] sm:$0xff]
        %v730 = vld [vmem:[%s348 + $0x8a0] sm:$0xff]
        %v731 = vld [vmem:[%s348 + $0x8a8] sm:$0xff]
        %v732 = vld [vmem:[%s348 + $0x8b0] sm:$0xff]
        %v733 = vld [vmem:[%s348 + $0x8b8] sm:$0xff]
        %v734 = vld [vmem:[%s348 + $0x8c0] sm:$0xff]
        %v735 = vld [vmem:[%s348 + $0x8c8] sm:$0xff]
        %v736 = vld [vmem:[%s348 + $0x8d0] sm:$0xff]
        %v737 = vld [vmem:[%s348 + $0x8d8] sm:$0xff]
        %v738 = vld [vmem:[%s348 + $0x8e0] sm:$0xff]
        %v739 = vld [vmem:[%s348 + $0x8e8] sm:$0xff]
        %v740 = vld [vmem:[%s348 + $0x8f0] sm:$0xff]
        %v741 = vld [vmem:[%s348 + $0x8f8] sm:$0xff]
        %v742 = vld [vmem:[%s348 + $0x900] sm:$0xff]
        %v743 = vld [vmem:[%s348 + $0x908] sm:$0xff]
        %v744 = vld [vmem:[%s348 + $0x910] sm:$0xff]
        %v745 = vld [vmem:[%s348 + $0x918] sm:$0xff]
        %v746 = vld [vmem:[%s348 + $0x920] sm:$0xff]
        %v747 = vld [vmem:[%s348 + $0x928] sm:$0xff]
        %v748 = vld [vmem:[%s348 + $0x930] sm:$0xff]
        %v749 = vld [vmem:[%s348 + $0x938] sm:$0xff]
        %v750 = vld [vmem:[%s348 + $0x940] sm:$0xff]
        %v751 = vld [vmem:[%s348 + $0x948] sm:$0xff]
        %v752 = vld [vmem:[%s348 + $0x950] sm:$0xff]
        %v753 = vld [vmem:[%s348 + $0x958] sm:$0xff]
        %v754 = vld [vmem:[%s348 + $0x960] sm:$0xff]
        %v755 = vld [vmem:[%s348 + $0x968] sm:$0xff]
        %v756 = vld [vmem:[%s348 + $0x970] sm:$0xff]
        %v757 = vld [vmem:[%s348 + $0x978] sm:$0xff]
        %v758 = vld [vmem:[%s348 + $0x980] sm:$0xff]
        %v759 = vld [vmem:[%s348 + $0x988] sm:$0xff]
        %v760 = vld [vmem:[%s348 + $0x990] sm:$0xff]
        %v761 = vld [vmem:[%s348 + $0x998] sm:$0xff]
        %v762 = vld [vmem:[%s348 + $0x9a0] sm:$0xff]
        %v763 = vld [vmem:[%s348 + $0x9a8] sm:$0xff]
        %v764 = vld [vmem:[%s348 + $0x9b0] sm:$0xff]
        %v765 = vld [vmem:[%s348 + $0x9b8] sm:$0xff]
        %v766 = vld [vmem:[%s348 + $0x9c0] sm:$0xff]
        %v767 = vld [vmem:[%s348 + $0x9c8] sm:$0xff]
        %v768 = vld [vmem:[%s348 + $0x9d0] sm:$0xff]
        %v769 = vld [vmem:[%s348 + $0x9d8] sm:$0xff]
        %v770 = vld [vmem:[%s348 + $0x9e0] sm:$0xff]
        %v771 = vld [vmem:[%s348 + $0x9e8] sm:$0xff]
        %v772 = vld [vmem:[%s348 + $0x9f0] sm:$0xff]
        %v773 = vld [vmem:[%s348 + $0x9f8] sm:$0xff]
        %v774 = vld [vmem:[%s348 + $0xa00] sm:$0xff]
        %v775 = vld [vmem:[%s348 + $0xa08] sm:$0xff]
        %v776 = vld [vmem:[%s348 + $0xa10] sm:$0xff]
        %v777 = vld [vmem:[%s348 + $0xa18] sm:$0xff]
        %v778 = vld [vmem:[%s348 + $0xa20] sm:$0xff]
        %v779 = vld [vmem:[%s348 + $0xa28] sm:$0xff]
        %v780 = vld [vmem:[%s348 + $0xa30] sm:$0xff]
        %v781 = vld [vmem:[%s348 + $0xa38] sm:$0xff]
        %v782 = vld [vmem:[%s348 + $0xa40] sm:$0xff]
        %v783 = vld [vmem:[%s348 + $0xa48] sm:$0xff]
        %v784 = vld [vmem:[%s348 + $0xa50] sm:$0xff]
        %v785 = vld [vmem:[%s348 + $0xa58] sm:$0xff]
        %v786 = vld [vmem:[%s348 + $0xa60] sm:$0xff]
        %v787 = vld [vmem:[%s348 + $0xa68] sm:$0xff]
        %v788 = vld [vmem:[%s348 + $0xa70] sm:$0xff]
        %v789 = vld [vmem:[%s348 + $0xa78] sm:$0xff]
        %v790 = vld [vmem:[%s348 + $0xa80] sm:$0xff]
        %v791 = vld [vmem:[%s348 + $0xa88] sm:$0xff]
        %v792 = vld [vmem:[%s348 + $0xa90] sm:$0xff]
        %v793 = vld [vmem:[%s348 + $0xa98] sm:$0xff]
        %v794 = vld [vmem:[%s348 + $0xaa0] sm:$0xff]
        %v795 = vld [vmem:[%s348 + $0xaa8] sm:$0xff]
        %v796 = vld [vmem:[%s348 + $0xab0] sm:$0xff]
        %v797 = vld [vmem:[%s348 + $0xab8] sm:$0xff]
        %v798 = vld [vmem:[%s348 + $0xac0] sm:$0xff]
        %v799 = vld [vmem:[%s348 + $0xac8] sm:$0xff]
        %v800 = vld [vmem:[%s348 + $0xad0] sm:$0xff]
        %v801 = vld [vmem:[%s348 + $0xad8] sm:$0xff]
        %v802 = vld [vmem:[%s348 + $0xae0] sm:$0xff]
        %v803 = vld [vmem:[%s348 + $0xae8] sm:$0xff]
        %v804 = vld [vmem:[%s348 + $0xaf0] sm:$0xff]
        %v805 = vld [vmem:[%s348 + $0xaf8] sm:$0xff]
        %v806 = vld [vmem:[%s348 + $0xb00] sm:$0xff]
        %v807 = vld [vmem:[%s348 + $0xb08] sm:$0xff]
        %v808 = vld [vmem:[%s348 + $0xb10] sm:$0xff]
        %v809 = vld [vmem:[%s348 + $0xb18] sm:$0xff]
        %v810 = vld [vmem:[%s348 + $0xb20] sm:$0xff]
        %v811 = vld [vmem:[%s348 + $0xb28] sm:$0xff]
        %v812 = vld [vmem:[%s348 + $0xb30] sm:$0xff]
        %v813 = vld [vmem:[%s348 + $0xb38] sm:$0xff]
        %v814 = vld [vmem:[%s348 + $0xb40] sm:$0xff]
        %v815 = vld [vmem:[%s348 + $0xb48] sm:$0xff]
        %v816 = vld [vmem:[%s348 + $0xb50] sm:$0xff]
        %v817 = vld [vmem:[%s348 + $0xb58] sm:$0xff]
        %v818 = vld [vmem:[%s348 + $0xb60] sm:$0xff]
        %v819 = vld [vmem:[%s348 + $0xb68] sm:$0xff]
        %v820 = vld [vmem:[%s348 + $0xb70] sm:$0xff]
        %v821 = vld [vmem:[%s348 + $0xb78] sm:$0xff]
        %v822 = vld [vmem:[%s348 + $0xb80] sm:$0xff]
        %v823 = vld [vmem:[%s348 + $0xb88] sm:$0xff]
        %v824 = vld [vmem:[%s348 + $0xb90] sm:$0xff]
        %v825 = vld [vmem:[%s348 + $0xb98] sm:$0xff]
        %v826 = vld [vmem:[%s348 + $0xba0] sm:$0xff]
        %v827 = vld [vmem:[%s348 + $0xba8] sm:$0xff]
        %v828 = vld [vmem:[%s348 + $0xbb0] sm:$0xff]
        %v829 = vld [vmem:[%s348 + $0xbb8] sm:$0xff]
        %v830 = vld [vmem:[%s348 + $0xbc0] sm:$0xff]
        %v831 = vld [vmem:[%s348 + $0xbc8] sm:$0xff]
        %v832 = vld [vmem:[%s348 + $0xbd0] sm:$0xff]
        %v833 = vld [vmem:[%s348 + $0xbd8] sm:$0xff]
        %v834 = vld [vmem:[%s348 + $0xbe0] sm:$0xff]
        %v835 = vld [vmem:[%s348 + $0xbe8] sm:$0xff]
        %v836 = vld [vmem:[%s348 + $0xbf0] sm:$0xff]
        %v837 = vld [vmem:[%s348 + $0xbf8] sm:$0xff]
        %v838 = vld [vmem:[%s348 + $0xc00] sm:$0xff]
        %v839 = vld [vmem:[%s348 + $0xc08] sm:$0xff]
        %v840 = vld [vmem:[%s348 + $0xc10] sm:$0xff]
        %v841 = vld [vmem:[%s348 + $0xc18] sm:$0xff]
        %v842 = vld [vmem:[%s348 + $0xc20] sm:$0xff]
        %v843 = vld [vmem:[%s348 + $0xc28] sm:$0xff]
        %v844 = vld [vmem:[%s348 + $0xc30] sm:$0xff]
        %v845 = vld [vmem:[%s348 + $0xc38] sm:$0xff]
        %v846 = vld [vmem:[%s348 + $0xc40] sm:$0xff]
        %v847 = vld [vmem:[%s348 + $0xc48] sm:$0xff]
        %v848 = vld [vmem:[%s348 + $0xc50] sm:$0xff]
        %v849 = vld [vmem:[%s348 + $0xc58] sm:$0xff]
        %v850 = vld [vmem:[%s348 + $0xc60] sm:$0xff]
        %v851 = vld [vmem:[%s348 + $0xc68] sm:$0xff]
        %v852 = vld [vmem:[%s348 + $0xc70] sm:$0xff]
        %v853 = vld [vmem:[%s348 + $0xc78] sm:$0xff]
        %v854 = vld [vmem:[%s348 + $0xc80] sm:$0xff]
        %v855 = vld [vmem:[%s348 + $0xc88] sm:$0xff]
        %v856 = vld [vmem:[%s348 + $0xc90] sm:$0xff]
        %v857 = vld [vmem:[%s348 + $0xc98] sm:$0xff]
        %v858 = vld [vmem:[%s348 + $0xca0] sm:$0xff]
        %v859 = vld [vmem:[%s348 + $0xca8] sm:$0xff]
        %v860 = vld [vmem:[%s348 + $0xcb0] sm:$0xff]
        %v861 = vld [vmem:[%s348 + $0xcb8] sm:$0xff]
        %v862 = vld [vmem:[%s348 + $0xcc0] sm:$0xff]
        %v863 = vld [vmem:[%s348 + $0xcc8] sm:$0xff]
        %v864 = vld [vmem:[%s348 + $0xcd0] sm:$0xff]
        %v865 = vld [vmem:[%s348 + $0xcd8] sm:$0xff]
        %v866 = vld [vmem:[%s348 + $0xce0] sm:$0xff]
        %v867 = vld [vmem:[%s348 + $0xce8] sm:$0xff]
        %v868 = vld [vmem:[%s348 + $0xcf0] sm:$0xff]
        %v869 = vld [vmem:[%s348 + $0xcf8] sm:$0xff]
        %v870 = vld [vmem:[%s348 + $0xd00] sm:$0xff]
        %v871 = vld [vmem:[%s348 + $0xd08] sm:$0xff]
        %v872 = vld [vmem:[%s348 + $0xd10] sm:$0xff]
        %v873 = vld [vmem:[%s348 + $0xd18] sm:$0xff]
        %v874 = vld [vmem:[%s348 + $0xd20] sm:$0xff]
        %v875 = vld [vmem:[%s348 + $0xd28] sm:$0xff]
        %v876 = vld [vmem:[%s348 + $0xd30] sm:$0xff]
        %v877 = vld [vmem:[%s348 + $0xd38] sm:$0xff]
        %v878 = vld [vmem:[%s348 + $0xd40] sm:$0xff]
        %v879 = vld [vmem:[%s348 + $0xd48] sm:$0xff]
        %v880 = vld [vmem:[%s348 + $0xd50] sm:$0xff]
        %v881 = vld [vmem:[%s348 + $0xd58] sm:$0xff]
        %v882 = vld [vmem:[%s348 + $0xd60] sm:$0xff]
        %v883 = vld [vmem:[%s348 + $0xd68] sm:$0xff]
        %v884 = vld [vmem:[%s348 + $0xd70] sm:$0xff]
        %v885 = vld [vmem:[%s348 + $0xd78] sm:$0xff]
        %v886 = vld [vmem:[%s348 + $0xd80] sm:$0xff]
        %v887 = vld [vmem:[%s348 + $0xd88] sm:$0xff]
        %v888 = vld [vmem:[%s348 + $0xd90] sm:$0xff]
        %v889 = vld [vmem:[%s348 + $0xd98] sm:$0xff]
        %v890 = vld [vmem:[%s348 + $0xda0] sm:$0xff]
        %v891 = vld [vmem:[%s348 + $0xda8] sm:$0xff]
        %v892 = vld [vmem:[%s348 + $0xdb0] sm:$0xff]
        %v893 = vld [vmem:[%s348 + $0xdb8] sm:$0xff]
        %v894 = vld [vmem:[%s348 + $0xdc0] sm:$0xff]
        %v895 = vld [vmem:[%s348 + $0xdc8] sm:$0xff]
        %v896 = vld [vmem:[%s348 + $0xdd0] sm:$0xff]
        %v897 = vld [vmem:[%s348 + $0xdd8] sm:$0xff]
        %v898 = vld [vmem:[%s348 + $0xde0] sm:$0xff]
        %v899 = vld [vmem:[%s348 + $0xde8] sm:$0xff]
        %v900 = vld [vmem:[%s348 + $0xdf0] sm:$0xff]
        %v901 = vld [vmem:[%s348 + $0xdf8] sm:$0xff]
        %v902 = vld [vmem:[%s348 + $0xe00] sm:$0xff]
        %v903 = vld [vmem:[%s348 + $0xe08] sm:$0xff]
        %v904 = vld [vmem:[%s348 + $0xe10] sm:$0xff]
        %v905 = vld [vmem:[%s348 + $0xe18] sm:$0xff]
        %v906 = vld [vmem:[%s348 + $0xe20] sm:$0xff]
        %v907 = vld [vmem:[%s348 + $0xe28] sm:$0xff]
        %v908 = vld [vmem:[%s348 + $0xe30] sm:$0xff]
        %v909 = vld [vmem:[%s348 + $0xe38] sm:$0xff]
        %v910 = vld [vmem:[%s348 + $0xe40] sm:$0xff]
        %v911 = vld [vmem:[%s348 + $0xe48] sm:$0xff]
        %v912 = vld [vmem:[%s348 + $0xe50] sm:$0xff]
        %v913 = vld [vmem:[%s348 + $0xe58] sm:$0xff]
        %v914 = vld [vmem:[%s348 + $0xe60] sm:$0xff]
        %v915 = vld [vmem:[%s348 + $0xe68] sm:$0xff]
        %v916 = vld [vmem:[%s348 + $0xe70] sm:$0xff]
        %v917 = vld [vmem:[%s348 + $0xe78] sm:$0xff]
        %v918 = vld [vmem:[%s348 + $0xe80] sm:$0xff]
        %v919 = vld [vmem:[%s348 + $0xe88] sm:$0xff]
        %v920 = vld [vmem:[%s348 + $0xe90] sm:$0xff]
        %v921 = vld [vmem:[%s348 + $0xe98] sm:$0xff]
        %v922 = vld [vmem:[%s348 + $0xea0] sm:$0xff]
        %v923 = vld [vmem:[%s348 + $0xea8] sm:$0xff]
        %v924 = vld [vmem:[%s348 + $0xeb0] sm:$0xff]
        %v925 = vld [vmem:[%s348 + $0xeb8] sm:$0xff]
        %v926 = vld [vmem:[%s348 + $0xec0] sm:$0xff]
        %v927 = vld [vmem:[%s348 + $0xec8] sm:$0xff]
        %v928 = vld [vmem:[%s348 + $0xed0] sm:$0xff]
        %v929 = vld [vmem:[%s348 + $0xed8] sm:$0xff]
        %v930 = vld [vmem:[%s348 + $0xee0] sm:$0xff]
        %v931 = vld [vmem:[%s348 + $0xee8] sm:$0xff]
        %v932 = vld [vmem:[%s348 + $0xef0] sm:$0xff]
        %v933 = vld [vmem:[%s348 + $0xef8] sm:$0xff]
        %v934 = vld [vmem:[%s348 + $0xf00] sm:$0xff]
        %v935 = vld [vmem:[%s348 + $0xf08] sm:$0xff]
        %v936 = vld [vmem:[%s348 + $0xf10] sm:$0xff]
        %v937 = vld [vmem:[%s348 + $0xf18] sm:$0xff]
        %v938 = vld [vmem:[%s348 + $0xf20] sm:$0xff]
        %v939 = vld [vmem:[%s348 + $0xf28] sm:$0xff]
        %v940 = vld [vmem:[%s348 + $0xf30] sm:$0xff]
        %v941 = vld [vmem:[%s348 + $0xf38] sm:$0xff]
        %v942 = vld [vmem:[%s348 + $0xf40] sm:$0xff]
        %v943 = vld [vmem:[%s348 + $0xf48] sm:$0xff]
        %v944 = vld [vmem:[%s348 + $0xf50] sm:$0xff]
        %v945 = vld [vmem:[%s348 + $0xf58] sm:$0xff]
        %v946 = vld [vmem:[%s348 + $0xf60] sm:$0xff]
        %v947 = vld [vmem:[%s348 + $0xf68] sm:$0xff]
        %v948 = vld [vmem:[%s348 + $0xf70] sm:$0xff]
        %v949 = vld [vmem:[%s348 + $0xf78] sm:$0xff]
        %v950 = vld [vmem:[%s348 + $0xf80] sm:$0xff]
        %v951 = vld [vmem:[%s348 + $0xf88] sm:$0xff]
        %v952 = vld [vmem:[%s348 + $0xf90] sm:$0xff]
        %v953 = vld [vmem:[%s348 + $0xf98] sm:$0xff]
        %v954 = vld [vmem:[%s348 + $0xfa0] sm:$0xff]
        %v955 = vld [vmem:[%s348 + $0xfa8] sm:$0xff]
        %v956 = vld [vmem:[%s348 + $0xfb0] sm:$0xff]
        %v957 = vld [vmem:[%s348 + $0xfb8] sm:$0xff]
        %v958 = vld [vmem:[%s348 + $0xfc0] sm:$0xff]
        %v959 = vld [vmem:[%s348 + $0xfc8] sm:$0xff]
        %v960 = vld [vmem:[%s348 + $0xfd0] sm:$0xff]
        %v961 = vld [vmem:[%s348 + $0xfd8] sm:$0xff]
        %v962 = vld [vmem:[%s348 + $0xfe0] sm:$0xff]
        %v963 = vld [vmem:[%s348 + $0xfe8] sm:$0xff]
        %v964 = vld [vmem:[%s348 + $0xff0] sm:$0xff]
        %v965 = vld [vmem:[%s348 + $0xff8] sm:$0xff]
        %v998 = vunpack.c.l.b16 %v422
        %v999 = vunpack.c.h.b16 %v422
        %v1000 = vunpack.c.l.b16 %v423
        %v1001 = vunpack.c.h.b16 %v423
        %v1002 = vunpack.c.l.b16 %v424
        %v1003 = vunpack.c.h.b16 %v424
        %v1004 = vunpack.c.l.b16 %v425
        %v1005 = vunpack.c.h.b16 %v425
        %v1006 = vunpack.c.l.b16 %v426
        %v1007 = vunpack.c.h.b16 %v426
        %v1008 = vunpack.c.l.b16 %v427
        %v1009 = vunpack.c.h.b16 %v427
        %v1010 = vunpack.c.l.b16 %v428
        %v1011 = vunpack.c.h.b16 %v428
        %v1012 = vunpack.c.l.b16 %v429
        %v1013 = vunpack.c.h.b16 %v429
        %v1014 = vunpack.c.l.b16 %v430
        %v1015 = vunpack.c.h.b16 %v430
        %v1016 = vunpack.c.l.b16 %v431
        %v1017 = vunpack.c.h.b16 %v431
        %v1018 = vunpack.c.l.b16 %v432
        %v1019 = vunpack.c.h.b16 %v432
        %v1020 = vunpack.c.l.b16 %v433
        %v1021 = vunpack.c.h.b16 %v433
        %v1022 = vunpack.c.l.b16 %v434
        %v1023 = vunpack.c.h.b16 %v434
        %v1024 = vunpack.c.l.b16 %v435
        %v1025 = vunpack.c.h.b16 %v435
        %v1026 = vunpack.c.l.b16 %v436
        %v1027 = vunpack.c.h.b16 %v436
        %v1028 = vunpack.c.l.b16 %v437
        %v1029 = vunpack.c.h.b16 %v437
        %v1030 = vunpack.c.l.b16 %v438
        %v1031 = vunpack.c.h.b16 %v438
        %v1032 = vunpack.c.l.b16 %v439
        %v1033 = vunpack.c.h.b16 %v439
        %v1034 = vunpack.c.l.b16 %v440
        %v1035 = vunpack.c.h.b16 %v440
        %v1036 = vunpack.c.l.b16 %v441
        %v1037 = vunpack.c.h.b16 %v441
        %v1038 = vunpack.c.l.b16 %v442
        %v1039 = vunpack.c.h.b16 %v442
        %v1040 = vunpack.c.l.b16 %v443
        %v1041 = vunpack.c.h.b16 %v443
        %v1042 = vunpack.c.l.b16 %v444
        %v1043 = vunpack.c.h.b16 %v444
        %v1044 = vunpack.c.l.b16 %v445
        %v1045 = vunpack.c.h.b16 %v445
        %v1046 = vunpack.c.l.b16 %v446
        %v1047 = vunpack.c.h.b16 %v446
        %v1048 = vunpack.c.l.b16 %v447
        %v1049 = vunpack.c.h.b16 %v447
        %v1050 = vunpack.c.l.b16 %v448
        %v1051 = vunpack.c.h.b16 %v448
        %v1052 = vunpack.c.l.b16 %v449
        %v1053 = vunpack.c.h.b16 %v449
        %v1054 = vunpack.c.l.b16 %v450
        %v1055 = vunpack.c.h.b16 %v450
        %v1056 = vunpack.c.l.b16 %v451
        %v1057 = vunpack.c.h.b16 %v451
        %v1058 = vunpack.c.l.b16 %v452
        %v1059 = vunpack.c.h.b16 %v452
        %v1060 = vunpack.c.l.b16 %v453
        %v1061 = vunpack.c.h.b16 %v453
        %v1062 = vpack.c.b16 %v1030, %v998
        %v1063 = vpack.c.b16 %v1031, %v999
        %v1064 = vpack.c.b16 %v1032, %v1000
        %v1065 = vpack.c.b16 %v1033, %v1001
        %v1066 = vpack.c.b16 %v1034, %v1002
        %v1067 = vpack.c.b16 %v1035, %v1003
        %v1068 = vpack.c.b16 %v1036, %v1004
        %v1069 = vpack.c.b16 %v1037, %v1005
        %v1070 = vpack.c.b16 %v1038, %v1006
        %v1071 = vpack.c.b16 %v1039, %v1007
        %v1072 = vpack.c.b16 %v1040, %v1008
        %v1073 = vpack.c.b16 %v1041, %v1009
        %v1074 = vpack.c.b16 %v1042, %v1010
        %v1075 = vpack.c.b16 %v1043, %v1011
        %v1076 = vpack.c.b16 %v1044, %v1012
        %v1077 = vpack.c.b16 %v1045, %v1013
        %v1078 = vpack.c.b16 %v1046, %v1014
        %v1079 = vpack.c.b16 %v1047, %v1015
        %v1080 = vpack.c.b16 %v1048, %v1016
        %v1081 = vpack.c.b16 %v1049, %v1017
        %v1082 = vpack.c.b16 %v1050, %v1018
        %v1083 = vpack.c.b16 %v1051, %v1019
        %v1084 = vpack.c.b16 %v1052, %v1020
        %v1085 = vpack.c.b16 %v1053, %v1021
        %v1086 = vpack.c.b16 %v1054, %v1022
        %v1087 = vpack.c.b16 %v1055, %v1023
        %v1088 = vpack.c.b16 %v1056, %v1024
        %v1089 = vpack.c.b16 %v1057, %v1025
        %v1090 = vpack.c.b16 %v1058, %v1026
        %v1091 = vpack.c.b16 %v1059, %v1027
        %v1092 = vpack.c.b16 %v1060, %v1028
        %v1093 = vpack.c.b16 %v1061, %v1029
        %v1638 = vunpack.c.l.b16 %v454
        %v1639 = vunpack.c.h.b16 %v454
        %v1640 = vunpack.c.l.b16 %v455
        %v1641 = vunpack.c.h.b16 %v455
        %v1642 = vunpack.c.l.b16 %v456
        %v1643 = vunpack.c.h.b16 %v456
        %v1644 = vunpack.c.l.b16 %v457
        %v1645 = vunpack.c.h.b16 %v457
        %v1646 = vunpack.c.l.b16 %v458
        %v1647 = vunpack.c.h.b16 %v458
        %v1648 = vunpack.c.l.b16 %v459
        %v1649 = vunpack.c.h.b16 %v459
        %v1650 = vunpack.c.l.b16 %v460
        %v1651 = vunpack.c.h.b16 %v460
        %v1652 = vunpack.c.l.b16 %v461
        %v1653 = vunpack.c.h.b16 %v461
        %v1654 = vunpack.c.l.b16 %v462
        %v1655 = vunpack.c.h.b16 %v462
        %v1656 = vunpack.c.l.b16 %v463
        %v1657 = vunpack.c.h.b16 %v463
        %v1658 = vunpack.c.l.b16 %v464
        %v1659 = vunpack.c.h.b16 %v464
        %v1660 = vunpack.c.l.b16 %v465
        %v1661 = vunpack.c.h.b16 %v465
        %v1662 = vunpack.c.l.b16 %v466
        %v1663 = vunpack.c.h.b16 %v466
        %v1664 = vunpack.c.l.b16 %v467
        %v1665 = vunpack.c.h.b16 %v467
        %v1666 = vunpack.c.l.b16 %v468
        %v1667 = vunpack.c.h.b16 %v468
        %v1668 = vunpack.c.l.b16 %v469
        %v1669 = vunpack.c.h.b16 %v469
        %v1670 = vunpack.c.l.b16 %v470
        %v1671 = vunpack.c.h.b16 %v470
        %v1672 = vunpack.c.l.b16 %v471
        %v1673 = vunpack.c.h.b16 %v471
        %v1674 = vunpack.c.l.b16 %v472
        %v1675 = vunpack.c.h.b16 %v472
        %v1676 = vunpack.c.l.b16 %v473
        %v1677 = vunpack.c.h.b16 %v473
        %v1678 = vunpack.c.l.b16 %v474
        %v1679 = vunpack.c.h.b16 %v474
        %v1680 = vunpack.c.l.b16 %v475
        %v1681 = vunpack.c.h.b16 %v475
        %v1682 = vunpack.c.l.b16 %v476
        %v1683 = vunpack.c.h.b16 %v476
        %v1684 = vunpack.c.l.b16 %v477
        %v1685 = vunpack.c.h.b16 %v477
        %v1686 = vunpack.c.l.b16 %v478
        %v1687 = vunpack.c.h.b16 %v478
        %v1688 = vunpack.c.l.b16 %v479
        %v1689 = vunpack.c.h.b16 %v479
        %v1690 = vunpack.c.l.b16 %v480
        %v1691 = vunpack.c.h.b16 %v480
        %v1692 = vunpack.c.l.b16 %v481
        %v1693 = vunpack.c.h.b16 %v481
        %v1694 = vunpack.c.l.b16 %v482
        %v1695 = vunpack.c.h.b16 %v482
        %v1696 = vunpack.c.l.b16 %v483
        %v1697 = vunpack.c.h.b16 %v483
        %v1698 = vunpack.c.l.b16 %v484
        %v1699 = vunpack.c.h.b16 %v484
        %v1700 = vunpack.c.l.b16 %v485
        %v1701 = vunpack.c.h.b16 %v485
        %v1702 = vunpack.c.l.b16 %v486
        %v1703 = vunpack.c.h.b16 %v486
        %v1704 = vunpack.c.l.b16 %v487
        %v1705 = vunpack.c.h.b16 %v487
        %v1706 = vunpack.c.l.b16 %v488
        %v1707 = vunpack.c.h.b16 %v488
        %v1708 = vunpack.c.l.b16 %v489
        %v1709 = vunpack.c.h.b16 %v489
        %v1710 = vunpack.c.l.b16 %v490
        %v1711 = vunpack.c.h.b16 %v490
        %v1712 = vunpack.c.l.b16 %v491
        %v1713 = vunpack.c.h.b16 %v491
        %v1714 = vunpack.c.l.b16 %v492
        %v1715 = vunpack.c.h.b16 %v492
        %v1716 = vunpack.c.l.b16 %v493
        %v1717 = vunpack.c.h.b16 %v493
        %v1718 = vunpack.c.l.b16 %v494
        %v1719 = vunpack.c.h.b16 %v494
        %v1720 = vunpack.c.l.b16 %v495
        %v1721 = vunpack.c.h.b16 %v495
        %v1722 = vunpack.c.l.b16 %v496
        %v1723 = vunpack.c.h.b16 %v496
        %v1724 = vunpack.c.l.b16 %v497
        %v1725 = vunpack.c.h.b16 %v497
        %v1726 = vunpack.c.l.b16 %v498
        %v1727 = vunpack.c.h.b16 %v498
        %v1728 = vunpack.c.l.b16 %v499
        %v1729 = vunpack.c.h.b16 %v499
        %v1730 = vunpack.c.l.b16 %v500
        %v1731 = vunpack.c.h.b16 %v500
        %v1732 = vunpack.c.l.b16 %v501
        %v1733 = vunpack.c.h.b16 %v501
        %v1734 = vunpack.c.l.b16 %v502
        %v1735 = vunpack.c.h.b16 %v502
        %v1736 = vunpack.c.l.b16 %v503
        %v1737 = vunpack.c.h.b16 %v503
        %v1738 = vunpack.c.l.b16 %v504
        %v1739 = vunpack.c.h.b16 %v504
        %v1740 = vunpack.c.l.b16 %v505
        %v1741 = vunpack.c.h.b16 %v505
        %v1742 = vunpack.c.l.b16 %v506
        %v1743 = vunpack.c.h.b16 %v506
        %v1744 = vunpack.c.l.b16 %v507
        %v1745 = vunpack.c.h.b16 %v507
        %v1746 = vunpack.c.l.b16 %v508
        %v1747 = vunpack.c.h.b16 %v508
        %v1748 = vunpack.c.l.b16 %v509
        %v1749 = vunpack.c.h.b16 %v509
        %v1750 = vunpack.c.l.b16 %v510
        %v1751 = vunpack.c.h.b16 %v510
        %v1752 = vunpack.c.l.b16 %v511
        %v1753 = vunpack.c.h.b16 %v511
        %v1754 = vunpack.c.l.b16 %v512
        %v1755 = vunpack.c.h.b16 %v512
        %v1756 = vunpack.c.l.b16 %v513
        %v1757 = vunpack.c.h.b16 %v513
        %v1758 = vunpack.c.l.b16 %v514
        %v1759 = vunpack.c.h.b16 %v514
        %v1760 = vunpack.c.l.b16 %v515
        %v1761 = vunpack.c.h.b16 %v515
        %v1762 = vunpack.c.l.b16 %v516
        %v1763 = vunpack.c.h.b16 %v516
        %v1764 = vunpack.c.l.b16 %v517
        %v1765 = vunpack.c.h.b16 %v517
        %v1766 = vunpack.c.l.b16 %v518
        %v1767 = vunpack.c.h.b16 %v518
        %v1768 = vunpack.c.l.b16 %v519
        %v1769 = vunpack.c.h.b16 %v519
        %v1770 = vunpack.c.l.b16 %v520
        %v1771 = vunpack.c.h.b16 %v520
        %v1772 = vunpack.c.l.b16 %v521
        %v1773 = vunpack.c.h.b16 %v521
        %v1774 = vunpack.c.l.b16 %v522
        %v1775 = vunpack.c.h.b16 %v522
        %v1776 = vunpack.c.l.b16 %v523
        %v1777 = vunpack.c.h.b16 %v523
        %v1778 = vunpack.c.l.b16 %v524
        %v1779 = vunpack.c.h.b16 %v524
        %v1780 = vunpack.c.l.b16 %v525
        %v1781 = vunpack.c.h.b16 %v525
        %v1782 = vunpack.c.l.b16 %v526
        %v1783 = vunpack.c.h.b16 %v526
        %v1784 = vunpack.c.l.b16 %v527
        %v1785 = vunpack.c.h.b16 %v527
        %v1786 = vunpack.c.l.b16 %v528
        %v1787 = vunpack.c.h.b16 %v528
        %v1788 = vunpack.c.l.b16 %v529
        %v1789 = vunpack.c.h.b16 %v529
        %v1790 = vunpack.c.l.b16 %v530
        %v1791 = vunpack.c.h.b16 %v530
        %v1792 = vunpack.c.l.b16 %v531
        %v1793 = vunpack.c.h.b16 %v531
        %v1794 = vunpack.c.l.b16 %v532
        %v1795 = vunpack.c.h.b16 %v532
        %v1796 = vunpack.c.l.b16 %v533
        %v1797 = vunpack.c.h.b16 %v533
        %v1798 = vunpack.c.l.b16 %v534
        %v1799 = vunpack.c.h.b16 %v534
        %v1800 = vunpack.c.l.b16 %v535
        %v1801 = vunpack.c.h.b16 %v535
        %v1802 = vunpack.c.l.b16 %v536
        %v1803 = vunpack.c.h.b16 %v536
        %v1804 = vunpack.c.l.b16 %v537
        %v1805 = vunpack.c.h.b16 %v537
        %v1806 = vunpack.c.l.b16 %v538
        %v1807 = vunpack.c.h.b16 %v538
        %v1808 = vunpack.c.l.b16 %v539
        %v1809 = vunpack.c.h.b16 %v539
        %v1810 = vunpack.c.l.b16 %v540
        %v1811 = vunpack.c.h.b16 %v540
        %v1812 = vunpack.c.l.b16 %v541
        %v1813 = vunpack.c.h.b16 %v541
        %v1814 = vunpack.c.l.b16 %v542
        %v1815 = vunpack.c.h.b16 %v542
        %v1816 = vunpack.c.l.b16 %v543
        %v1817 = vunpack.c.h.b16 %v543
        %v1818 = vunpack.c.l.b16 %v544
        %v1819 = vunpack.c.h.b16 %v544
        %v1820 = vunpack.c.l.b16 %v545
        %v1821 = vunpack.c.h.b16 %v545
        %v1822 = vunpack.c.l.b16 %v546
        %v1823 = vunpack.c.h.b16 %v546
        %v1824 = vunpack.c.l.b16 %v547
        %v1825 = vunpack.c.h.b16 %v547
        %v1826 = vunpack.c.l.b16 %v548
        %v1827 = vunpack.c.h.b16 %v548
        %v1828 = vunpack.c.l.b16 %v549
        %v1829 = vunpack.c.h.b16 %v549
        %v1830 = vunpack.c.l.b16 %v550
        %v1831 = vunpack.c.h.b16 %v550
        %v1832 = vunpack.c.l.b16 %v551
        %v1833 = vunpack.c.h.b16 %v551
        %v1834 = vunpack.c.l.b16 %v552
        %v1835 = vunpack.c.h.b16 %v552
        %v1836 = vunpack.c.l.b16 %v553
        %v1837 = vunpack.c.h.b16 %v553
        %v1838 = vunpack.c.l.b16 %v554
        %v1839 = vunpack.c.h.b16 %v554
        %v1840 = vunpack.c.l.b16 %v555
        %v1841 = vunpack.c.h.b16 %v555
        %v1842 = vunpack.c.l.b16 %v556
        %v1843 = vunpack.c.h.b16 %v556
        %v1844 = vunpack.c.l.b16 %v557
        %v1845 = vunpack.c.h.b16 %v557
        %v1846 = vunpack.c.l.b16 %v558
        %v1847 = vunpack.c.h.b16 %v558
        %v1848 = vunpack.c.l.b16 %v559
        %v1849 = vunpack.c.h.b16 %v559
        %v1850 = vunpack.c.l.b16 %v560
        %v1851 = vunpack.c.h.b16 %v560
        %v1852 = vunpack.c.l.b16 %v561
        %v1853 = vunpack.c.h.b16 %v561
        %v1854 = vunpack.c.l.b16 %v562
        %v1855 = vunpack.c.h.b16 %v562
        %v1856 = vunpack.c.l.b16 %v563
        %v1857 = vunpack.c.h.b16 %v563
        %v1858 = vunpack.c.l.b16 %v564
        %v1859 = vunpack.c.h.b16 %v564
        %v1860 = vunpack.c.l.b16 %v565
        %v1861 = vunpack.c.h.b16 %v565
        %v1862 = vunpack.c.l.b16 %v566
        %v1863 = vunpack.c.h.b16 %v566
        %v1864 = vunpack.c.l.b16 %v567
        %v1865 = vunpack.c.h.b16 %v567
        %v1866 = vunpack.c.l.b16 %v568
        %v1867 = vunpack.c.h.b16 %v568
        %v1868 = vunpack.c.l.b16 %v569
        %v1869 = vunpack.c.h.b16 %v569
        %v1870 = vunpack.c.l.b16 %v570
        %v1871 = vunpack.c.h.b16 %v570
        %v1872 = vunpack.c.l.b16 %v571
        %v1873 = vunpack.c.h.b16 %v571
        %v1874 = vunpack.c.l.b16 %v572
        %v1875 = vunpack.c.h.b16 %v572
        %v1876 = vunpack.c.l.b16 %v573
        %v1877 = vunpack.c.h.b16 %v573
        %v1878 = vunpack.c.l.b16 %v574
        %v1879 = vunpack.c.h.b16 %v574
        %v1880 = vunpack.c.l.b16 %v575
        %v1881 = vunpack.c.h.b16 %v575
        %v1882 = vunpack.c.l.b16 %v576
        %v1883 = vunpack.c.h.b16 %v576
        %v1884 = vunpack.c.l.b16 %v577
        %v1885 = vunpack.c.h.b16 %v577
        %v1886 = vunpack.c.l.b16 %v578
        %v1887 = vunpack.c.h.b16 %v578
        %v1888 = vunpack.c.l.b16 %v579
        %v1889 = vunpack.c.h.b16 %v579
        %v1890 = vunpack.c.l.b16 %v580
        %v1891 = vunpack.c.h.b16 %v580
        %v1892 = vunpack.c.l.b16 %v581
        %v1893 = vunpack.c.h.b16 %v581
        %v1894 = vunpack.c.l.b16 %v582
        %v1895 = vunpack.c.h.b16 %v582
        %v1896 = vunpack.c.l.b16 %v583
        %v1897 = vunpack.c.h.b16 %v583
        %v1898 = vunpack.c.l.b16 %v584
        %v1899 = vunpack.c.h.b16 %v584
        %v1900 = vunpack.c.l.b16 %v585
        %v1901 = vunpack.c.h.b16 %v585
        %v1902 = vunpack.c.l.b16 %v586
        %v1903 = vunpack.c.h.b16 %v586
        %v1904 = vunpack.c.l.b16 %v587
        %v1905 = vunpack.c.h.b16 %v587
        %v1906 = vunpack.c.l.b16 %v588
        %v1907 = vunpack.c.h.b16 %v588
        %v1908 = vunpack.c.l.b16 %v589
        %v1909 = vunpack.c.h.b16 %v589
        %v1910 = vunpack.c.l.b16 %v590
        %v1911 = vunpack.c.h.b16 %v590
        %v1912 = vunpack.c.l.b16 %v591
        %v1913 = vunpack.c.h.b16 %v591
        %v1914 = vunpack.c.l.b16 %v592
        %v1915 = vunpack.c.h.b16 %v592
        %v1916 = vunpack.c.l.b16 %v593
        %v1917 = vunpack.c.h.b16 %v593
        %v1918 = vunpack.c.l.b16 %v594
        %v1919 = vunpack.c.h.b16 %v594
        %v1920 = vunpack.c.l.b16 %v595
        %v1921 = vunpack.c.h.b16 %v595
        %v1922 = vunpack.c.l.b16 %v596
        %v1923 = vunpack.c.h.b16 %v596
        %v1924 = vunpack.c.l.b16 %v597
        %v1925 = vunpack.c.h.b16 %v597
        %v1926 = vunpack.c.l.b16 %v598
        %v1927 = vunpack.c.h.b16 %v598
        %v1928 = vunpack.c.l.b16 %v599
        %v1929 = vunpack.c.h.b16 %v599
        %v1930 = vunpack.c.l.b16 %v600
        %v1931 = vunpack.c.h.b16 %v600
        %v1932 = vunpack.c.l.b16 %v601
        %v1933 = vunpack.c.h.b16 %v601
        %v1934 = vunpack.c.l.b16 %v602
        %v1935 = vunpack.c.h.b16 %v602
        %v1936 = vunpack.c.l.b16 %v603
        %v1937 = vunpack.c.h.b16 %v603
        %v1938 = vunpack.c.l.b16 %v604
        %v1939 = vunpack.c.h.b16 %v604
        %v1940 = vunpack.c.l.b16 %v605
        %v1941 = vunpack.c.h.b16 %v605
        %v1942 = vunpack.c.l.b16 %v606
        %v1943 = vunpack.c.h.b16 %v606
        %v1944 = vunpack.c.l.b16 %v607
        %v1945 = vunpack.c.h.b16 %v607
        %v1946 = vunpack.c.l.b16 %v608
        %v1947 = vunpack.c.h.b16 %v608
        %v1948 = vunpack.c.l.b16 %v609
        %v1949 = vunpack.c.h.b16 %v609
        %v1950 = vunpack.c.l.b16 %v610
        %v1951 = vunpack.c.h.b16 %v610
        %v1952 = vunpack.c.l.b16 %v611
        %v1953 = vunpack.c.h.b16 %v611
        %v1954 = vunpack.c.l.b16 %v612
        %v1955 = vunpack.c.h.b16 %v612
        %v1956 = vunpack.c.l.b16 %v613
        %v1957 = vunpack.c.h.b16 %v613
        %v1958 = vunpack.c.l.b16 %v614
        %v1959 = vunpack.c.h.b16 %v614
        %v1960 = vunpack.c.l.b16 %v615
        %v1961 = vunpack.c.h.b16 %v615
        %v1962 = vunpack.c.l.b16 %v616
        %v1963 = vunpack.c.h.b16 %v616
        %v1964 = vunpack.c.l.b16 %v617
        %v1965 = vunpack.c.h.b16 %v617
        %v1966 = vunpack.c.l.b16 %v618
        %v1967 = vunpack.c.h.b16 %v618
        %v1968 = vunpack.c.l.b16 %v619
        %v1969 = vunpack.c.h.b16 %v619
        %v1970 = vunpack.c.l.b16 %v620
        %v1971 = vunpack.c.h.b16 %v620
        %v1972 = vunpack.c.l.b16 %v621
        %v1973 = vunpack.c.h.b16 %v621
        %v1974 = vunpack.c.l.b16 %v622
        %v1975 = vunpack.c.h.b16 %v622
        %v1976 = vunpack.c.l.b16 %v623
        %v1977 = vunpack.c.h.b16 %v623
        %v1978 = vunpack.c.l.b16 %v624
        %v1979 = vunpack.c.h.b16 %v624
        %v1980 = vunpack.c.l.b16 %v625
        %v1981 = vunpack.c.h.b16 %v625
        %v1982 = vunpack.c.l.b16 %v626
        %v1983 = vunpack.c.h.b16 %v626
        %v1984 = vunpack.c.l.b16 %v627
        %v1985 = vunpack.c.h.b16 %v627
        %v1986 = vunpack.c.l.b16 %v628
        %v1987 = vunpack.c.h.b16 %v628
        %v1988 = vunpack.c.l.b16 %v629
        %v1989 = vunpack.c.h.b16 %v629
        %v1990 = vunpack.c.l.b16 %v630
        %v1991 = vunpack.c.h.b16 %v630
        %v1992 = vunpack.c.l.b16 %v631
        %v1993 = vunpack.c.h.b16 %v631
        %v1994 = vunpack.c.l.b16 %v632
        %v1995 = vunpack.c.h.b16 %v632
        %v1996 = vunpack.c.l.b16 %v633
        %v1997 = vunpack.c.h.b16 %v633
        %v1998 = vunpack.c.l.b16 %v634
        %v1999 = vunpack.c.h.b16 %v634
        %v2000 = vunpack.c.l.b16 %v635
        %v2001 = vunpack.c.h.b16 %v635
        %v2002 = vunpack.c.l.b16 %v636
        %v2003 = vunpack.c.h.b16 %v636
        %v2004 = vunpack.c.l.b16 %v637
        %v2005 = vunpack.c.h.b16 %v637
        %v2006 = vunpack.c.l.b16 %v638
        %v2007 = vunpack.c.h.b16 %v638
        %v2008 = vunpack.c.l.b16 %v639
        %v2009 = vunpack.c.h.b16 %v639
        %v2010 = vunpack.c.l.b16 %v640
        %v2011 = vunpack.c.h.b16 %v640
        %v2012 = vunpack.c.l.b16 %v641
        %v2013 = vunpack.c.h.b16 %v641
        %v2014 = vunpack.c.l.b16 %v642
        %v2015 = vunpack.c.h.b16 %v642
        %v2016 = vunpack.c.l.b16 %v643
        %v2017 = vunpack.c.h.b16 %v643
        %v2018 = vunpack.c.l.b16 %v644
        %v2019 = vunpack.c.h.b16 %v644
        %v2020 = vunpack.c.l.b16 %v645
        %v2021 = vunpack.c.h.b16 %v645
        %v2022 = vunpack.c.l.b16 %v646
        %v2023 = vunpack.c.h.b16 %v646
        %v2024 = vunpack.c.l.b16 %v647
        %v2025 = vunpack.c.h.b16 %v647
        %v2026 = vunpack.c.l.b16 %v648
        %v2027 = vunpack.c.h.b16 %v648
        %v2028 = vunpack.c.l.b16 %v649
        %v2029 = vunpack.c.h.b16 %v649
        %v2030 = vunpack.c.l.b16 %v650
        %v2031 = vunpack.c.h.b16 %v650
        %v2032 = vunpack.c.l.b16 %v651
        %v2033 = vunpack.c.h.b16 %v651
        %v2034 = vunpack.c.l.b16 %v652
        %v2035 = vunpack.c.h.b16 %v652
        %v2036 = vunpack.c.l.b16 %v653
        %v2037 = vunpack.c.h.b16 %v653
        %v2038 = vunpack.c.l.b16 %v654
        %v2039 = vunpack.c.h.b16 %v654
        %v2040 = vunpack.c.l.b16 %v655
        %v2041 = vunpack.c.h.b16 %v655
        %v2042 = vunpack.c.l.b16 %v656
        %v2043 = vunpack.c.h.b16 %v656
        %v2044 = vunpack.c.l.b16 %v657
        %v2045 = vunpack.c.h.b16 %v657
        %v2046 = vunpack.c.l.b16 %v658
        %v2047 = vunpack.c.h.b16 %v658
        %v2048 = vunpack.c.l.b16 %v659
        %v2049 = vunpack.c.h.b16 %v659
        %v2050 = vunpack.c.l.b16 %v660
        %v2051 = vunpack.c.h.b16 %v660
        %v2052 = vunpack.c.l.b16 %v661
        %v2053 = vunpack.c.h.b16 %v661
        %v2054 = vunpack.c.l.b16 %v662
        %v2055 = vunpack.c.h.b16 %v662
        %v2056 = vunpack.c.l.b16 %v663
        %v2057 = vunpack.c.h.b16 %v663
        %v2058 = vunpack.c.l.b16 %v664
        %v2059 = vunpack.c.h.b16 %v664
        %v2060 = vunpack.c.l.b16 %v665
        %v2061 = vunpack.c.h.b16 %v665
        %v2062 = vunpack.c.l.b16 %v666
        %v2063 = vunpack.c.h.b16 %v666
        %v2064 = vunpack.c.l.b16 %v667
        %v2065 = vunpack.c.h.b16 %v667
        %v2066 = vunpack.c.l.b16 %v668
        %v2067 = vunpack.c.h.b16 %v668
        %v2068 = vunpack.c.l.b16 %v669
        %v2069 = vunpack.c.h.b16 %v669
        %v2070 = vunpack.c.l.b16 %v670
        %v2071 = vunpack.c.h.b16 %v670
        %v2072 = vunpack.c.l.b16 %v671
        %v2073 = vunpack.c.h.b16 %v671
        %v2074 = vunpack.c.l.b16 %v672
        %v2075 = vunpack.c.h.b16 %v672
        %v2076 = vunpack.c.l.b16 %v673
        %v2077 = vunpack.c.h.b16 %v673
        %v2078 = vunpack.c.l.b16 %v674
        %v2079 = vunpack.c.h.b16 %v674
        %v2080 = vunpack.c.l.b16 %v675
        %v2081 = vunpack.c.h.b16 %v675
        %v2082 = vunpack.c.l.b16 %v676
        %v2083 = vunpack.c.h.b16 %v676
        %v2084 = vunpack.c.l.b16 %v677
        %v2085 = vunpack.c.h.b16 %v677
        %v2086 = vunpack.c.l.b16 %v678
        %v2087 = vunpack.c.h.b16 %v678
        %v2088 = vunpack.c.l.b16 %v679
        %v2089 = vunpack.c.h.b16 %v679
        %v2090 = vunpack.c.l.b16 %v680
        %v2091 = vunpack.c.h.b16 %v680
        %v2092 = vunpack.c.l.b16 %v681
        %v2093 = vunpack.c.h.b16 %v681
        %v2094 = vunpack.c.l.b16 %v682
        %v2095 = vunpack.c.h.b16 %v682
        %v2096 = vunpack.c.l.b16 %v683
        %v2097 = vunpack.c.h.b16 %v683
        %v2098 = vunpack.c.l.b16 %v684
        %v2099 = vunpack.c.h.b16 %v684
        %v2100 = vunpack.c.l.b16 %v685
        %v2101 = vunpack.c.h.b16 %v685
        %v2102 = vunpack.c.l.b16 %v686
        %v2103 = vunpack.c.h.b16 %v686
        %v2104 = vunpack.c.l.b16 %v687
        %v2105 = vunpack.c.h.b16 %v687
        %v2106 = vunpack.c.l.b16 %v688
        %v2107 = vunpack.c.h.b16 %v688
        %v2108 = vunpack.c.l.b16 %v689
        %v2109 = vunpack.c.h.b16 %v689
        %v2110 = vunpack.c.l.b16 %v690
        %v2111 = vunpack.c.h.b16 %v690
        %v2112 = vunpack.c.l.b16 %v691
        %v2113 = vunpack.c.h.b16 %v691
        %v2114 = vunpack.c.l.b16 %v692
        %v2115 = vunpack.c.h.b16 %v692
        %v2116 = vunpack.c.l.b16 %v693
        %v2117 = vunpack.c.h.b16 %v693
        %v2118 = vunpack.c.l.b16 %v694
        %v2119 = vunpack.c.h.b16 %v694
        %v2120 = vunpack.c.l.b16 %v695
        %v2121 = vunpack.c.h.b16 %v695
        %v2122 = vunpack.c.l.b16 %v696
        %v2123 = vunpack.c.h.b16 %v696
        %v2124 = vunpack.c.l.b16 %v697
        %v2125 = vunpack.c.h.b16 %v697
        %v2126 = vunpack.c.l.b16 %v698
        %v2127 = vunpack.c.h.b16 %v698
        %v2128 = vunpack.c.l.b16 %v699
        %v2129 = vunpack.c.h.b16 %v699
        %v2130 = vunpack.c.l.b16 %v700
        %v2131 = vunpack.c.h.b16 %v700
        %v2132 = vunpack.c.l.b16 %v701
        %v2133 = vunpack.c.h.b16 %v701
        %v2134 = vunpack.c.l.b16 %v702
        %v2135 = vunpack.c.h.b16 %v702
        %v2136 = vunpack.c.l.b16 %v703
        %v2137 = vunpack.c.h.b16 %v703
        %v2138 = vunpack.c.l.b16 %v704
        %v2139 = vunpack.c.h.b16 %v704
        %v2140 = vunpack.c.l.b16 %v705
        %v2141 = vunpack.c.h.b16 %v705
        %v2142 = vunpack.c.l.b16 %v706
        %v2143 = vunpack.c.h.b16 %v706
        %v2144 = vunpack.c.l.b16 %v707
        %v2145 = vunpack.c.h.b16 %v707
        %v2146 = vunpack.c.l.b16 %v708
        %v2147 = vunpack.c.h.b16 %v708
        %v2148 = vunpack.c.l.b16 %v709
        %v2149 = vunpack.c.h.b16 %v709
        %v2150 = vunpack.c.l.b16 %v710
        %v2151 = vunpack.c.h.b16 %v710
        %v2152 = vunpack.c.l.b16 %v711
        %v2153 = vunpack.c.h.b16 %v711
        %v2154 = vunpack.c.l.b16 %v712
        %v2155 = vunpack.c.h.b16 %v712
        %v2156 = vunpack.c.l.b16 %v713
        %v2157 = vunpack.c.h.b16 %v713
        %v2158 = vunpack.c.l.b16 %v714
        %v2159 = vunpack.c.h.b16 %v714
        %v2160 = vunpack.c.l.b16 %v715
        %v2161 = vunpack.c.h.b16 %v715
        %v2162 = vunpack.c.l.b16 %v716
        %v2163 = vunpack.c.h.b16 %v716
        %v2164 = vunpack.c.l.b16 %v717
        %v2165 = vunpack.c.h.b16 %v717
        %v2166 = vunpack.c.l.b16 %v718
        %v2167 = vunpack.c.h.b16 %v718
        %v2168 = vunpack.c.l.b16 %v719
        %v2169 = vunpack.c.h.b16 %v719
        %v2170 = vunpack.c.l.b16 %v720
        %v2171 = vunpack.c.h.b16 %v720
        %v2172 = vunpack.c.l.b16 %v721
        %v2173 = vunpack.c.h.b16 %v721
        %v2174 = vunpack.c.l.b16 %v722
        %v2175 = vunpack.c.h.b16 %v722
        %v2176 = vunpack.c.l.b16 %v723
        %v2177 = vunpack.c.h.b16 %v723
        %v2178 = vunpack.c.l.b16 %v724
        %v2179 = vunpack.c.h.b16 %v724
        %v2180 = vunpack.c.l.b16 %v725
        %v2181 = vunpack.c.h.b16 %v725
        %v2182 = vunpack.c.l.b16 %v726
        %v2183 = vunpack.c.h.b16 %v726
        %v2184 = vunpack.c.l.b16 %v727
        %v2185 = vunpack.c.h.b16 %v727
        %v2186 = vunpack.c.l.b16 %v728
        %v2187 = vunpack.c.h.b16 %v728
        %v2188 = vunpack.c.l.b16 %v729
        %v2189 = vunpack.c.h.b16 %v729
        %v2190 = vunpack.c.l.b16 %v730
        %v2191 = vunpack.c.h.b16 %v730
        %v2192 = vunpack.c.l.b16 %v731
        %v2193 = vunpack.c.h.b16 %v731
        %v2194 = vunpack.c.l.b16 %v732
        %v2195 = vunpack.c.h.b16 %v732
        %v2196 = vunpack.c.l.b16 %v733
        %v2197 = vunpack.c.h.b16 %v733
        %v2198 = vunpack.c.l.b16 %v734
        %v2199 = vunpack.c.h.b16 %v734
        %v2200 = vunpack.c.l.b16 %v735
        %v2201 = vunpack.c.h.b16 %v735
        %v2202 = vunpack.c.l.b16 %v736
        %v2203 = vunpack.c.h.b16 %v736
        %v2204 = vunpack.c.l.b16 %v737
        %v2205 = vunpack.c.h.b16 %v737
        %v2206 = vunpack.c.l.b16 %v738
        %v2207 = vunpack.c.h.b16 %v738
        %v2208 = vunpack.c.l.b16 %v739
        %v2209 = vunpack.c.h.b16 %v739
        %v2210 = vunpack.c.l.b16 %v740
        %v2211 = vunpack.c.h.b16 %v740
        %v2212 = vunpack.c.l.b16 %v741
        %v2213 = vunpack.c.h.b16 %v741
        %v2214 = vunpack.c.l.b16 %v742
        %v2215 = vunpack.c.h.b16 %v742
        %v2216 = vunpack.c.l.b16 %v743
        %v2217 = vunpack.c.h.b16 %v743
        %v2218 = vunpack.c.l.b16 %v744
        %v2219 = vunpack.c.h.b16 %v744
        %v2220 = vunpack.c.l.b16 %v745
        %v2221 = vunpack.c.h.b16 %v745
        %v2222 = vunpack.c.l.b16 %v746
        %v2223 = vunpack.c.h.b16 %v746
        %v2224 = vunpack.c.l.b16 %v747
        %v2225 = vunpack.c.h.b16 %v747
        %v2226 = vunpack.c.l.b16 %v748
        %v2227 = vunpack.c.h.b16 %v748
        %v2228 = vunpack.c.l.b16 %v749
        %v2229 = vunpack.c.h.b16 %v749
        %v2230 = vunpack.c.l.b16 %v750
        %v2231 = vunpack.c.h.b16 %v750
        %v2232 = vunpack.c.l.b16 %v751
        %v2233 = vunpack.c.h.b16 %v751
        %v2234 = vunpack.c.l.b16 %v752
        %v2235 = vunpack.c.h.b16 %v752
        %v2236 = vunpack.c.l.b16 %v753
        %v2237 = vunpack.c.h.b16 %v753
        %v2238 = vunpack.c.l.b16 %v754
        %v2239 = vunpack.c.h.b16 %v754
        %v2240 = vunpack.c.l.b16 %v755
        %v2241 = vunpack.c.h.b16 %v755
        %v2242 = vunpack.c.l.b16 %v756
        %v2243 = vunpack.c.h.b16 %v756
        %v2244 = vunpack.c.l.b16 %v757
        %v2245 = vunpack.c.h.b16 %v757
        %v2246 = vunpack.c.l.b16 %v758
        %v2247 = vunpack.c.h.b16 %v758
        %v2248 = vunpack.c.l.b16 %v759
        %v2249 = vunpack.c.h.b16 %v759
        %v2250 = vunpack.c.l.b16 %v760
        %v2251 = vunpack.c.h.b16 %v760
        %v2252 = vunpack.c.l.b16 %v761
        %v2253 = vunpack.c.h.b16 %v761
        %v2254 = vunpack.c.l.b16 %v762
        %v2255 = vunpack.c.h.b16 %v762
        %v2256 = vunpack.c.l.b16 %v763
        %v2257 = vunpack.c.h.b16 %v763
        %v2258 = vunpack.c.l.b16 %v764
        %v2259 = vunpack.c.h.b16 %v764
        %v2260 = vunpack.c.l.b16 %v765
        %v2261 = vunpack.c.h.b16 %v765
        %v2262 = vunpack.c.l.b16 %v766
        %v2263 = vunpack.c.h.b16 %v766
        %v2264 = vunpack.c.l.b16 %v767
        %v2265 = vunpack.c.h.b16 %v767
        %v2266 = vunpack.c.l.b16 %v768
        %v2267 = vunpack.c.h.b16 %v768
        %v2268 = vunpack.c.l.b16 %v769
        %v2269 = vunpack.c.h.b16 %v769
        %v2270 = vunpack.c.l.b16 %v770
        %v2271 = vunpack.c.h.b16 %v770
        %v2272 = vunpack.c.l.b16 %v771
        %v2273 = vunpack.c.h.b16 %v771
        %v2274 = vunpack.c.l.b16 %v772
        %v2275 = vunpack.c.h.b16 %v772
        %v2276 = vunpack.c.l.b16 %v773
        %v2277 = vunpack.c.h.b16 %v773
        %v2278 = vunpack.c.l.b16 %v774
        %v2279 = vunpack.c.h.b16 %v774
        %v2280 = vunpack.c.l.b16 %v775
        %v2281 = vunpack.c.h.b16 %v775
        %v2282 = vunpack.c.l.b16 %v776
        %v2283 = vunpack.c.h.b16 %v776
        %v2284 = vunpack.c.l.b16 %v777
        %v2285 = vunpack.c.h.b16 %v777
        %v2286 = vunpack.c.l.b16 %v778
        %v2287 = vunpack.c.h.b16 %v778
        %v2288 = vunpack.c.l.b16 %v779
        %v2289 = vunpack.c.h.b16 %v779
        %v2290 = vunpack.c.l.b16 %v780
        %v2291 = vunpack.c.h.b16 %v780
        %v2292 = vunpack.c.l.b16 %v781
        %v2293 = vunpack.c.h.b16 %v781
        %v2294 = vunpack.c.l.b16 %v782
        %v2295 = vunpack.c.h.b16 %v782
        %v2296 = vunpack.c.l.b16 %v783
        %v2297 = vunpack.c.h.b16 %v783
        %v2298 = vunpack.c.l.b16 %v784
        %v2299 = vunpack.c.h.b16 %v784
        %v2300 = vunpack.c.l.b16 %v785
        %v2301 = vunpack.c.h.b16 %v785
        %v2302 = vunpack.c.l.b16 %v786
        %v2303 = vunpack.c.h.b16 %v786
        %v2304 = vunpack.c.l.b16 %v787
        %v2305 = vunpack.c.h.b16 %v787
        %v2306 = vunpack.c.l.b16 %v788
        %v2307 = vunpack.c.h.b16 %v788
        %v2308 = vunpack.c.l.b16 %v789
        %v2309 = vunpack.c.h.b16 %v789
        %v2310 = vunpack.c.l.b16 %v790
        %v2311 = vunpack.c.h.b16 %v790
        %v2312 = vunpack.c.l.b16 %v791
        %v2313 = vunpack.c.h.b16 %v791
        %v2314 = vunpack.c.l.b16 %v792
        %v2315 = vunpack.c.h.b16 %v792
        %v2316 = vunpack.c.l.b16 %v793
        %v2317 = vunpack.c.h.b16 %v793
        %v2318 = vunpack.c.l.b16 %v794
        %v2319 = vunpack.c.h.b16 %v794
        %v2320 = vunpack.c.l.b16 %v795
        %v2321 = vunpack.c.h.b16 %v795
        %v2322 = vunpack.c.l.b16 %v796
        %v2323 = vunpack.c.h.b16 %v796
        %v2324 = vunpack.c.l.b16 %v797
        %v2325 = vunpack.c.h.b16 %v797
        %v2326 = vunpack.c.l.b16 %v798
        %v2327 = vunpack.c.h.b16 %v798
        %v2328 = vunpack.c.l.b16 %v799
        %v2329 = vunpack.c.h.b16 %v799
        %v2330 = vunpack.c.l.b16 %v800
        %v2331 = vunpack.c.h.b16 %v800
        %v2332 = vunpack.c.l.b16 %v801
        %v2333 = vunpack.c.h.b16 %v801
        %v2334 = vunpack.c.l.b16 %v802
        %v2335 = vunpack.c.h.b16 %v802
        %v2336 = vunpack.c.l.b16 %v803
        %v2337 = vunpack.c.h.b16 %v803
        %v2338 = vunpack.c.l.b16 %v804
        %v2339 = vunpack.c.h.b16 %v804
        %v2340 = vunpack.c.l.b16 %v805
        %v2341 = vunpack.c.h.b16 %v805
        %v2342 = vunpack.c.l.b16 %v806
        %v2343 = vunpack.c.h.b16 %v806
        %v2344 = vunpack.c.l.b16 %v807
        %v2345 = vunpack.c.h.b16 %v807
        %v2346 = vunpack.c.l.b16 %v808
        %v2347 = vunpack.c.h.b16 %v808
        %v2348 = vunpack.c.l.b16 %v809
        %v2349 = vunpack.c.h.b16 %v809
        %v2350 = vunpack.c.l.b16 %v810
        %v2351 = vunpack.c.h.b16 %v810
        %v2352 = vunpack.c.l.b16 %v811
        %v2353 = vunpack.c.h.b16 %v811
        %v2354 = vunpack.c.l.b16 %v812
        %v2355 = vunpack.c.h.b16 %v812
        %v2356 = vunpack.c.l.b16 %v813
        %v2357 = vunpack.c.h.b16 %v813
        %v2358 = vunpack.c.l.b16 %v814
        %v2359 = vunpack.c.h.b16 %v814
        %v2360 = vunpack.c.l.b16 %v815
        %v2361 = vunpack.c.h.b16 %v815
        %v2362 = vunpack.c.l.b16 %v816
        %v2363 = vunpack.c.h.b16 %v816
        %v2364 = vunpack.c.l.b16 %v817
        %v2365 = vunpack.c.h.b16 %v817
        %v2366 = vunpack.c.l.b16 %v818
        %v2367 = vunpack.c.h.b16 %v818
        %v2368 = vunpack.c.l.b16 %v819
        %v2369 = vunpack.c.h.b16 %v819
        %v2370 = vunpack.c.l.b16 %v820
        %v2371 = vunpack.c.h.b16 %v820
        %v2372 = vunpack.c.l.b16 %v821
        %v2373 = vunpack.c.h.b16 %v821
        %v2374 = vunpack.c.l.b16 %v822
        %v2375 = vunpack.c.h.b16 %v822
        %v2376 = vunpack.c.l.b16 %v823
        %v2377 = vunpack.c.h.b16 %v823
        %v2378 = vunpack.c.l.b16 %v824
        %v2379 = vunpack.c.h.b16 %v824
        %v2380 = vunpack.c.l.b16 %v825
        %v2381 = vunpack.c.h.b16 %v825
        %v2382 = vunpack.c.l.b16 %v826
        %v2383 = vunpack.c.h.b16 %v826
        %v2384 = vunpack.c.l.b16 %v827
        %v2385 = vunpack.c.h.b16 %v827
        %v2386 = vunpack.c.l.b16 %v828
        %v2387 = vunpack.c.h.b16 %v828
        %v2388 = vunpack.c.l.b16 %v829
        %v2389 = vunpack.c.h.b16 %v829
        %v2390 = vunpack.c.l.b16 %v830
        %v2391 = vunpack.c.h.b16 %v830
        %v2392 = vunpack.c.l.b16 %v831
        %v2393 = vunpack.c.h.b16 %v831
        %v2394 = vunpack.c.l.b16 %v832
        %v2395 = vunpack.c.h.b16 %v832
        %v2396 = vunpack.c.l.b16 %v833
        %v2397 = vunpack.c.h.b16 %v833
        %v2398 = vunpack.c.l.b16 %v834
        %v2399 = vunpack.c.h.b16 %v834
        %v2400 = vunpack.c.l.b16 %v835
        %v2401 = vunpack.c.h.b16 %v835
        %v2402 = vunpack.c.l.b16 %v836
        %v2403 = vunpack.c.h.b16 %v836
        %v2404 = vunpack.c.l.b16 %v837
        %v2405 = vunpack.c.h.b16 %v837
        %v2406 = vunpack.c.l.b16 %v838
        %v2407 = vunpack.c.h.b16 %v838
        %v2408 = vunpack.c.l.b16 %v839
        %v2409 = vunpack.c.h.b16 %v839
        %v2410 = vunpack.c.l.b16 %v840
        %v2411 = vunpack.c.h.b16 %v840
        %v2412 = vunpack.c.l.b16 %v841
        %v2413 = vunpack.c.h.b16 %v841
        %v2414 = vunpack.c.l.b16 %v842
        %v2415 = vunpack.c.h.b16 %v842
        %v2416 = vunpack.c.l.b16 %v843
        %v2417 = vunpack.c.h.b16 %v843
        %v2418 = vunpack.c.l.b16 %v844
        %v2419 = vunpack.c.h.b16 %v844
        %v2420 = vunpack.c.l.b16 %v845
        %v2421 = vunpack.c.h.b16 %v845
        %v2422 = vunpack.c.l.b16 %v846
        %v2423 = vunpack.c.h.b16 %v846
        %v2424 = vunpack.c.l.b16 %v847
        %v2425 = vunpack.c.h.b16 %v847
        %v2426 = vunpack.c.l.b16 %v848
        %v2427 = vunpack.c.h.b16 %v848
        %v2428 = vunpack.c.l.b16 %v849
        %v2429 = vunpack.c.h.b16 %v849
        %v2430 = vunpack.c.l.b16 %v850
        %v2431 = vunpack.c.h.b16 %v850
        %v2432 = vunpack.c.l.b16 %v851
        %v2433 = vunpack.c.h.b16 %v851
        %v2434 = vunpack.c.l.b16 %v852
        %v2435 = vunpack.c.h.b16 %v852
        %v2436 = vunpack.c.l.b16 %v853
        %v2437 = vunpack.c.h.b16 %v853
        %v2438 = vunpack.c.l.b16 %v854
        %v2439 = vunpack.c.h.b16 %v854
        %v2440 = vunpack.c.l.b16 %v855
        %v2441 = vunpack.c.h.b16 %v855
        %v2442 = vunpack.c.l.b16 %v856
        %v2443 = vunpack.c.h.b16 %v856
        %v2444 = vunpack.c.l.b16 %v857
        %v2445 = vunpack.c.h.b16 %v857
        %v2446 = vunpack.c.l.b16 %v858
        %v2447 = vunpack.c.h.b16 %v858
        %v2448 = vunpack.c.l.b16 %v859
        %v2449 = vunpack.c.h.b16 %v859
        %v2450 = vunpack.c.l.b16 %v860
        %v2451 = vunpack.c.h.b16 %v860
        %v2452 = vunpack.c.l.b16 %v861
        %v2453 = vunpack.c.h.b16 %v861
        %v2454 = vunpack.c.l.b16 %v862
        %v2455 = vunpack.c.h.b16 %v862
        %v2456 = vunpack.c.l.b16 %v863
        %v2457 = vunpack.c.h.b16 %v863
        %v2458 = vunpack.c.l.b16 %v864
        %v2459 = vunpack.c.h.b16 %v864
        %v2460 = vunpack.c.l.b16 %v865
        %v2461 = vunpack.c.h.b16 %v865
        %v2462 = vunpack.c.l.b16 %v866
        %v2463 = vunpack.c.h.b16 %v866
        %v2464 = vunpack.c.l.b16 %v867
        %v2465 = vunpack.c.h.b16 %v867
        %v2466 = vunpack.c.l.b16 %v868
        %v2467 = vunpack.c.h.b16 %v868
        %v2468 = vunpack.c.l.b16 %v869
        %v2469 = vunpack.c.h.b16 %v869
        %v2470 = vunpack.c.l.b16 %v870
        %v2471 = vunpack.c.h.b16 %v870
        %v2472 = vunpack.c.l.b16 %v871
        %v2473 = vunpack.c.h.b16 %v871
        %v2474 = vunpack.c.l.b16 %v872
        %v2475 = vunpack.c.h.b16 %v872
        %v2476 = vunpack.c.l.b16 %v873
        %v2477 = vunpack.c.h.b16 %v873
        %v2478 = vunpack.c.l.b16 %v874
        %v2479 = vunpack.c.h.b16 %v874
        %v2480 = vunpack.c.l.b16 %v875
        %v2481 = vunpack.c.h.b16 %v875
        %v2482 = vunpack.c.l.b16 %v876
        %v2483 = vunpack.c.h.b16 %v876
        %v2484 = vunpack.c.l.b16 %v877
        %v2485 = vunpack.c.h.b16 %v877
        %v2486 = vunpack.c.l.b16 %v878
        %v2487 = vunpack.c.h.b16 %v878
        %v2488 = vunpack.c.l.b16 %v879
        %v2489 = vunpack.c.h.b16 %v879
        %v2490 = vunpack.c.l.b16 %v880
        %v2491 = vunpack.c.h.b16 %v880
        %v2492 = vunpack.c.l.b16 %v881
        %v2493 = vunpack.c.h.b16 %v881
        %v2494 = vunpack.c.l.b16 %v882
        %v2495 = vunpack.c.h.b16 %v882
        %v2496 = vunpack.c.l.b16 %v883
        %v2497 = vunpack.c.h.b16 %v883
        %v2498 = vunpack.c.l.b16 %v884
        %v2499 = vunpack.c.h.b16 %v884
        %v2500 = vunpack.c.l.b16 %v885
        %v2501 = vunpack.c.h.b16 %v885
        %v2502 = vunpack.c.l.b16 %v886
        %v2503 = vunpack.c.h.b16 %v886
        %v2504 = vunpack.c.l.b16 %v887
        %v2505 = vunpack.c.h.b16 %v887
        %v2506 = vunpack.c.l.b16 %v888
        %v2507 = vunpack.c.h.b16 %v888
        %v2508 = vunpack.c.l.b16 %v889
        %v2509 = vunpack.c.h.b16 %v889
        %v2510 = vunpack.c.l.b16 %v890
        %v2511 = vunpack.c.h.b16 %v890
        %v2512 = vunpack.c.l.b16 %v891
        %v2513 = vunpack.c.h.b16 %v891
        %v2514 = vunpack.c.l.b16 %v892
        %v2515 = vunpack.c.h.b16 %v892
        %v2516 = vunpack.c.l.b16 %v893
        %v2517 = vunpack.c.h.b16 %v893
        %v2518 = vunpack.c.l.b16 %v894
        %v2519 = vunpack.c.h.b16 %v894
        %v2520 = vunpack.c.l.b16 %v895
        %v2521 = vunpack.c.h.b16 %v895
        %v2522 = vunpack.c.l.b16 %v896
        %v2523 = vunpack.c.h.b16 %v896
        %v2524 = vunpack.c.l.b16 %v897
        %v2525 = vunpack.c.h.b16 %v897
        %v2526 = vunpack.c.l.b16 %v898
        %v2527 = vunpack.c.h.b16 %v898
        %v2528 = vunpack.c.l.b16 %v899
        %v2529 = vunpack.c.h.b16 %v899
        %v2530 = vunpack.c.l.b16 %v900
        %v2531 = vunpack.c.h.b16 %v900
        %v2532 = vunpack.c.l.b16 %v901
        %v2533 = vunpack.c.h.b16 %v901
        %v2534 = vunpack.c.l.b16 %v902
        %v2535 = vunpack.c.h.b16 %v902
        %v2536 = vunpack.c.l.b16 %v903
        %v2537 = vunpack.c.h.b16 %v903
        %v2538 = vunpack.c.l.b16 %v904
        %v2539 = vunpack.c.h.b16 %v904
        %v2540 = vunpack.c.l.b16 %v905
        %v2541 = vunpack.c.h.b16 %v905
        %v2542 = vunpack.c.l.b16 %v906
        %v2543 = vunpack.c.h.b16 %v906
        %v2544 = vunpack.c.l.b16 %v907
        %v2545 = vunpack.c.h.b16 %v907
        %v2546 = vunpack.c.l.b16 %v908
        %v2547 = vunpack.c.h.b16 %v908
        %v2548 = vunpack.c.l.b16 %v909
        %v2549 = vunpack.c.h.b16 %v909
        %v2550 = vunpack.c.l.b16 %v910
        %v2551 = vunpack.c.h.b16 %v910
        %v2552 = vunpack.c.l.b16 %v911
        %v2553 = vunpack.c.h.b16 %v911
        %v2554 = vunpack.c.l.b16 %v912
        %v2555 = vunpack.c.h.b16 %v912
        %v2556 = vunpack.c.l.b16 %v913
        %v2557 = vunpack.c.h.b16 %v913
        %v2558 = vunpack.c.l.b16 %v914
        %v2559 = vunpack.c.h.b16 %v914
        %v2560 = vunpack.c.l.b16 %v915
        %v2561 = vunpack.c.h.b16 %v915
        %v2562 = vunpack.c.l.b16 %v916
        %v2563 = vunpack.c.h.b16 %v916
        %v2564 = vunpack.c.l.b16 %v917
        %v2565 = vunpack.c.h.b16 %v917
        %v2566 = vunpack.c.l.b16 %v918
        %v2567 = vunpack.c.h.b16 %v918
        %v2568 = vunpack.c.l.b16 %v919
        %v2569 = vunpack.c.h.b16 %v919
        %v2570 = vunpack.c.l.b16 %v920
        %v2571 = vunpack.c.h.b16 %v920
        %v2572 = vunpack.c.l.b16 %v921
        %v2573 = vunpack.c.h.b16 %v921
        %v2574 = vunpack.c.l.b16 %v922
        %v2575 = vunpack.c.h.b16 %v922
        %v2576 = vunpack.c.l.b16 %v923
        %v2577 = vunpack.c.h.b16 %v923
        %v2578 = vunpack.c.l.b16 %v924
        %v2579 = vunpack.c.h.b16 %v924
        %v2580 = vunpack.c.l.b16 %v925
        %v2581 = vunpack.c.h.b16 %v925
        %v2582 = vunpack.c.l.b16 %v926
        %v2583 = vunpack.c.h.b16 %v926
        %v2584 = vunpack.c.l.b16 %v927
        %v2585 = vunpack.c.h.b16 %v927
        %v2586 = vunpack.c.l.b16 %v928
        %v2587 = vunpack.c.h.b16 %v928
        %v2588 = vunpack.c.l.b16 %v929
        %v2589 = vunpack.c.h.b16 %v929
        %v2590 = vunpack.c.l.b16 %v930
        %v2591 = vunpack.c.h.b16 %v930
        %v2592 = vunpack.c.l.b16 %v931
        %v2593 = vunpack.c.h.b16 %v931
        %v2594 = vunpack.c.l.b16 %v932
        %v2595 = vunpack.c.h.b16 %v932
        %v2596 = vunpack.c.l.b16 %v933
        %v2597 = vunpack.c.h.b16 %v933
        %v2598 = vunpack.c.l.b16 %v934
        %v2599 = vunpack.c.h.b16 %v934
        %v2600 = vunpack.c.l.b16 %v935
        %v2601 = vunpack.c.h.b16 %v935
        %v2602 = vunpack.c.l.b16 %v936
        %v2603 = vunpack.c.h.b16 %v936
        %v2604 = vunpack.c.l.b16 %v937
        %v2605 = vunpack.c.h.b16 %v937
        %v2606 = vunpack.c.l.b16 %v938
        %v2607 = vunpack.c.h.b16 %v938
        %v2608 = vunpack.c.l.b16 %v939
        %v2609 = vunpack.c.h.b16 %v939
        %v2610 = vunpack.c.l.b16 %v940
        %v2611 = vunpack.c.h.b16 %v940
        %v2612 = vunpack.c.l.b16 %v941
        %v2613 = vunpack.c.h.b16 %v941
        %v2614 = vunpack.c.l.b16 %v942
        %v2615 = vunpack.c.h.b16 %v942
        %v2616 = vunpack.c.l.b16 %v943
        %v2617 = vunpack.c.h.b16 %v943
        %v2618 = vunpack.c.l.b16 %v944
        %v2619 = vunpack.c.h.b16 %v944
        %v2620 = vunpack.c.l.b16 %v945
        %v2621 = vunpack.c.h.b16 %v945
        %v2622 = vunpack.c.l.b16 %v946
        %v2623 = vunpack.c.h.b16 %v946
        %v2624 = vunpack.c.l.b16 %v947
        %v2625 = vunpack.c.h.b16 %v947
        %v2626 = vunpack.c.l.b16 %v948
        %v2627 = vunpack.c.h.b16 %v948
        %v2628 = vunpack.c.l.b16 %v949
        %v2629 = vunpack.c.h.b16 %v949
        %v2630 = vunpack.c.l.b16 %v950
        %v2631 = vunpack.c.h.b16 %v950
        %v2632 = vunpack.c.l.b16 %v951
        %v2633 = vunpack.c.h.b16 %v951
        %v2634 = vunpack.c.l.b16 %v952
        %v2635 = vunpack.c.h.b16 %v952
        %v2636 = vunpack.c.l.b16 %v953
        %v2637 = vunpack.c.h.b16 %v953
        %v2638 = vunpack.c.l.b16 %v954
        %v2639 = vunpack.c.h.b16 %v954
        %v2640 = vunpack.c.l.b16 %v955
        %v2641 = vunpack.c.h.b16 %v955
        %v2642 = vunpack.c.l.b16 %v956
        %v2643 = vunpack.c.h.b16 %v956
        %v2644 = vunpack.c.l.b16 %v957
        %v2645 = vunpack.c.h.b16 %v957
        %v2646 = vunpack.c.l.b16 %v958
        %v2647 = vunpack.c.h.b16 %v958
        %v2648 = vunpack.c.l.b16 %v959
        %v2649 = vunpack.c.h.b16 %v959
        %v2650 = vunpack.c.l.b16 %v960
        %v2651 = vunpack.c.h.b16 %v960
        %v2652 = vunpack.c.l.b16 %v961
        %v2653 = vunpack.c.h.b16 %v961
        %v2654 = vunpack.c.l.b16 %v962
        %v2655 = vunpack.c.h.b16 %v962
        %v2656 = vunpack.c.l.b16 %v963
        %v2657 = vunpack.c.h.b16 %v963
        %v2658 = vunpack.c.l.b16 %v964
        %v2659 = vunpack.c.h.b16 %v964
        %v2660 = vunpack.c.l.b16 %v965
        %v2661 = vunpack.c.h.b16 %v965
        %v2662 = vpack.c.b16 %v1640, %v1638
        %v2663 = vpack.c.b16 %v1641, %v1639
        %v2664 = vpack.c.b16 %v1644, %v1642
        %v2665 = vpack.c.b16 %v1645, %v1643
        %v2666 = vpack.c.b16 %v1648, %v1646
        %v2667 = vpack.c.b16 %v1649, %v1647
        %v2668 = vpack.c.b16 %v1652, %v1650
        %v2669 = vpack.c.b16 %v1653, %v1651
        %v2670 = vpack.c.b16 %v1656, %v1654
        %v2671 = vpack.c.b16 %v1657, %v1655
        %v2672 = vpack.c.b16 %v1660, %v1658
        %v2673 = vpack.c.b16 %v1661, %v1659
        %v2674 = vpack.c.b16 %v1664, %v1662
        %v2675 = vpack.c.b16 %v1665, %v1663
        %v2676 = vpack.c.b16 %v1668, %v1666
        %v2677 = vpack.c.b16 %v1669, %v1667
        %v2678 = vpack.c.b16 %v1672, %v1670
        %v2679 = vpack.c.b16 %v1673, %v1671
        %v2680 = vpack.c.b16 %v1676, %v1674
        %v2681 = vpack.c.b16 %v1677, %v1675
        %v2682 = vpack.c.b16 %v1680, %v1678
        %v2683 = vpack.c.b16 %v1681, %v1679
        %v2684 = vpack.c.b16 %v1684, %v1682
        %v2685 = vpack.c.b16 %v1685, %v1683
        %v2686 = vpack.c.b16 %v1688, %v1686
        %v2687 = vpack.c.b16 %v1689, %v1687
        %v2688 = vpack.c.b16 %v1692, %v1690
        %v2689 = vpack.c.b16 %v1693, %v1691
        %v2690 = vpack.c.b16 %v1696, %v1694
        %v2691 = vpack.c.b16 %v1697, %v1695
        %v2692 = vpack.c.b16 %v1700, %v1698
        %v2693 = vpack.c.b16 %v1701, %v1699
        %v2694 = vpack.c.b16 %v1704, %v1702
        %v2695 = vpack.c.b16 %v1705, %v1703
        %v2696 = vpack.c.b16 %v1708, %v1706
        %v2697 = vpack.c.b16 %v1709, %v1707
        %v2698 = vpack.c.b16 %v1712, %v1710
        %v2699 = vpack.c.b16 %v1713, %v1711
        %v2700 = vpack.c.b16 %v1716, %v1714
        %v2701 = vpack.c.b16 %v1717, %v1715
        %v2702 = vpack.c.b16 %v1720, %v1718
        %v2703 = vpack.c.b16 %v1721, %v1719
        %v2704 = vpack.c.b16 %v1724, %v1722
        %v2705 = vpack.c.b16 %v1725, %v1723
        %v2706 = vpack.c.b16 %v1728, %v1726
        %v2707 = vpack.c.b16 %v1729, %v1727
        %v2708 = vpack.c.b16 %v1732, %v1730
        %v2709 = vpack.c.b16 %v1733, %v1731
        %v2710 = vpack.c.b16 %v1736, %v1734
        %v2711 = vpack.c.b16 %v1737, %v1735
        %v2712 = vpack.c.b16 %v1740, %v1738
        %v2713 = vpack.c.b16 %v1741, %v1739
        %v2714 = vpack.c.b16 %v1744, %v1742
        %v2715 = vpack.c.b16 %v1745, %v1743
        %v2716 = vpack.c.b16 %v1748, %v1746
        %v2717 = vpack.c.b16 %v1749, %v1747
        %v2718 = vpack.c.b16 %v1752, %v1750
        %v2719 = vpack.c.b16 %v1753, %v1751
        %v2720 = vpack.c.b16 %v1756, %v1754
        %v2721 = vpack.c.b16 %v1757, %v1755
        %v2722 = vpack.c.b16 %v1760, %v1758
        %v2723 = vpack.c.b16 %v1761, %v1759
        %v2724 = vpack.c.b16 %v1764, %v1762
        %v2725 = vpack.c.b16 %v1765, %v1763
        %v2726 = vpack.c.b16 %v1768, %v1766
        %v2727 = vpack.c.b16 %v1769, %v1767
        %v2728 = vpack.c.b16 %v1772, %v1770
        %v2729 = vpack.c.b16 %v1773, %v1771
        %v2730 = vpack.c.b16 %v1776, %v1774
        %v2731 = vpack.c.b16 %v1777, %v1775
        %v2732 = vpack.c.b16 %v1780, %v1778
        %v2733 = vpack.c.b16 %v1781, %v1779
        %v2734 = vpack.c.b16 %v1784, %v1782
        %v2735 = vpack.c.b16 %v1785, %v1783
        %v2736 = vpack.c.b16 %v1788, %v1786
        %v2737 = vpack.c.b16 %v1789, %v1787
        %v2738 = vpack.c.b16 %v1792, %v1790
        %v2739 = vpack.c.b16 %v1793, %v1791
        %v2740 = vpack.c.b16 %v1796, %v1794
        %v2741 = vpack.c.b16 %v1797, %v1795
        %v2742 = vpack.c.b16 %v1800, %v1798
        %v2743 = vpack.c.b16 %v1801, %v1799
        %v2744 = vpack.c.b16 %v1804, %v1802
        %v2745 = vpack.c.b16 %v1805, %v1803
        %v2746 = vpack.c.b16 %v1808, %v1806
        %v2747 = vpack.c.b16 %v1809, %v1807
        %v2748 = vpack.c.b16 %v1812, %v1810
        %v2749 = vpack.c.b16 %v1813, %v1811
        %v2750 = vpack.c.b16 %v1816, %v1814
        %v2751 = vpack.c.b16 %v1817, %v1815
        %v2752 = vpack.c.b16 %v1820, %v1818
        %v2753 = vpack.c.b16 %v1821, %v1819
        %v2754 = vpack.c.b16 %v1824, %v1822
        %v2755 = vpack.c.b16 %v1825, %v1823
        %v2756 = vpack.c.b16 %v1828, %v1826
        %v2757 = vpack.c.b16 %v1829, %v1827
        %v2758 = vpack.c.b16 %v1832, %v1830
        %v2759 = vpack.c.b16 %v1833, %v1831
        %v2760 = vpack.c.b16 %v1836, %v1834
        %v2761 = vpack.c.b16 %v1837, %v1835
        %v2762 = vpack.c.b16 %v1840, %v1838
        %v2763 = vpack.c.b16 %v1841, %v1839
        %v2764 = vpack.c.b16 %v1844, %v1842
        %v2765 = vpack.c.b16 %v1845, %v1843
        %v2766 = vpack.c.b16 %v1848, %v1846
        %v2767 = vpack.c.b16 %v1849, %v1847
        %v2768 = vpack.c.b16 %v1852, %v1850
        %v2769 = vpack.c.b16 %v1853, %v1851
        %v2770 = vpack.c.b16 %v1856, %v1854
        %v2771 = vpack.c.b16 %v1857, %v1855
        %v2772 = vpack.c.b16 %v1860, %v1858
        %v2773 = vpack.c.b16 %v1861, %v1859
        %v2774 = vpack.c.b16 %v1864, %v1862
        %v2775 = vpack.c.b16 %v1865, %v1863
        %v2776 = vpack.c.b16 %v1868, %v1866
        %v2777 = vpack.c.b16 %v1869, %v1867
        %v2778 = vpack.c.b16 %v1872, %v1870
        %v2779 = vpack.c.b16 %v1873, %v1871
        %v2780 = vpack.c.b16 %v1876, %v1874
        %v2781 = vpack.c.b16 %v1877, %v1875
        %v2782 = vpack.c.b16 %v1880, %v1878
        %v2783 = vpack.c.b16 %v1881, %v1879
        %v2784 = vpack.c.b16 %v1884, %v1882
        %v2785 = vpack.c.b16 %v1885, %v1883
        %v2786 = vpack.c.b16 %v1888, %v1886
        %v2787 = vpack.c.b16 %v1889, %v1887
        %v2788 = vpack.c.b16 %v1892, %v1890
        %v2789 = vpack.c.b16 %v1893, %v1891
        %v2790 = vpack.c.b16 %v1896, %v1894
        %v2791 = vpack.c.b16 %v1897, %v1895
        %v2792 = vpack.c.b16 %v1900, %v1898
        %v2793 = vpack.c.b16 %v1901, %v1899
        %v2794 = vpack.c.b16 %v1904, %v1902
        %v2795 = vpack.c.b16 %v1905, %v1903
        %v2796 = vpack.c.b16 %v1908, %v1906
        %v2797 = vpack.c.b16 %v1909, %v1907
        %v2798 = vpack.c.b16 %v1912, %v1910
        %v2799 = vpack.c.b16 %v1913, %v1911
        %v2800 = vpack.c.b16 %v1916, %v1914
        %v2801 = vpack.c.b16 %v1917, %v1915
        %v2802 = vpack.c.b16 %v1920, %v1918
        %v2803 = vpack.c.b16 %v1921, %v1919
        %v2804 = vpack.c.b16 %v1924, %v1922
        %v2805 = vpack.c.b16 %v1925, %v1923
        %v2806 = vpack.c.b16 %v1928, %v1926
        %v2807 = vpack.c.b16 %v1929, %v1927
        %v2808 = vpack.c.b16 %v1932, %v1930
        %v2809 = vpack.c.b16 %v1933, %v1931
        %v2810 = vpack.c.b16 %v1936, %v1934
        %v2811 = vpack.c.b16 %v1937, %v1935
        %v2812 = vpack.c.b16 %v1940, %v1938
        %v2813 = vpack.c.b16 %v1941, %v1939
        %v2814 = vpack.c.b16 %v1944, %v1942
        %v2815 = vpack.c.b16 %v1945, %v1943
        %v2816 = vpack.c.b16 %v1948, %v1946
        %v2817 = vpack.c.b16 %v1949, %v1947
        %v2818 = vpack.c.b16 %v1952, %v1950
        %v2819 = vpack.c.b16 %v1953, %v1951
        %v2820 = vpack.c.b16 %v1956, %v1954
        %v2821 = vpack.c.b16 %v1957, %v1955
        %v2822 = vpack.c.b16 %v1960, %v1958
        %v2823 = vpack.c.b16 %v1961, %v1959
        %v2824 = vpack.c.b16 %v1964, %v1962
        %v2825 = vpack.c.b16 %v1965, %v1963
        %v2826 = vpack.c.b16 %v1968, %v1966
        %v2827 = vpack.c.b16 %v1969, %v1967
        %v2828 = vpack.c.b16 %v1972, %v1970
        %v2829 = vpack.c.b16 %v1973, %v1971
        %v2830 = vpack.c.b16 %v1976, %v1974
        %v2831 = vpack.c.b16 %v1977, %v1975
        %v2832 = vpack.c.b16 %v1980, %v1978
        %v2833 = vpack.c.b16 %v1981, %v1979
        %v2834 = vpack.c.b16 %v1984, %v1982
        %v2835 = vpack.c.b16 %v1985, %v1983
        %v2836 = vpack.c.b16 %v1988, %v1986
        %v2837 = vpack.c.b16 %v1989, %v1987
        %v2838 = vpack.c.b16 %v1992, %v1990
        %v2839 = vpack.c.b16 %v1993, %v1991
        %v2840 = vpack.c.b16 %v1996, %v1994
        %v2841 = vpack.c.b16 %v1997, %v1995
        %v2842 = vpack.c.b16 %v2000, %v1998
        %v2843 = vpack.c.b16 %v2001, %v1999
        %v2844 = vpack.c.b16 %v2004, %v2002
        %v2845 = vpack.c.b16 %v2005, %v2003
        %v2846 = vpack.c.b16 %v2008, %v2006
        %v2847 = vpack.c.b16 %v2009, %v2007
        %v2848 = vpack.c.b16 %v2012, %v2010
        %v2849 = vpack.c.b16 %v2013, %v2011
        %v2850 = vpack.c.b16 %v2016, %v2014
        %v2851 = vpack.c.b16 %v2017, %v2015
        %v2852 = vpack.c.b16 %v2020, %v2018
        %v2853 = vpack.c.b16 %v2021, %v2019
        %v2854 = vpack.c.b16 %v2024, %v2022
        %v2855 = vpack.c.b16 %v2025, %v2023
        %v2856 = vpack.c.b16 %v2028, %v2026
        %v2857 = vpack.c.b16 %v2029, %v2027
        %v2858 = vpack.c.b16 %v2032, %v2030
        %v2859 = vpack.c.b16 %v2033, %v2031
        %v2860 = vpack.c.b16 %v2036, %v2034
        %v2861 = vpack.c.b16 %v2037, %v2035
        %v2862 = vpack.c.b16 %v2040, %v2038
        %v2863 = vpack.c.b16 %v2041, %v2039
        %v2864 = vpack.c.b16 %v2044, %v2042
        %v2865 = vpack.c.b16 %v2045, %v2043
        %v2866 = vpack.c.b16 %v2048, %v2046
        %v2867 = vpack.c.b16 %v2049, %v2047
        %v2868 = vpack.c.b16 %v2052, %v2050
        %v2869 = vpack.c.b16 %v2053, %v2051
        %v2870 = vpack.c.b16 %v2056, %v2054
        %v2871 = vpack.c.b16 %v2057, %v2055
        %v2872 = vpack.c.b16 %v2060, %v2058
        %v2873 = vpack.c.b16 %v2061, %v2059
        %v2874 = vpack.c.b16 %v2064, %v2062
        %v2875 = vpack.c.b16 %v2065, %v2063
        %v2876 = vpack.c.b16 %v2068, %v2066
        %v2877 = vpack.c.b16 %v2069, %v2067
        %v2878 = vpack.c.b16 %v2072, %v2070
        %v2879 = vpack.c.b16 %v2073, %v2071
        %v2880 = vpack.c.b16 %v2076, %v2074
        %v2881 = vpack.c.b16 %v2077, %v2075
        %v2882 = vpack.c.b16 %v2080, %v2078
        %v2883 = vpack.c.b16 %v2081, %v2079
        %v2884 = vpack.c.b16 %v2084, %v2082
        %v2885 = vpack.c.b16 %v2085, %v2083
        %v2886 = vpack.c.b16 %v2088, %v2086
        %v2887 = vpack.c.b16 %v2089, %v2087
        %v2888 = vpack.c.b16 %v2092, %v2090
        %v2889 = vpack.c.b16 %v2093, %v2091
        %v2890 = vpack.c.b16 %v2096, %v2094
        %v2891 = vpack.c.b16 %v2097, %v2095
        %v2892 = vpack.c.b16 %v2100, %v2098
        %v2893 = vpack.c.b16 %v2101, %v2099
        %v2894 = vpack.c.b16 %v2104, %v2102
        %v2895 = vpack.c.b16 %v2105, %v2103
        %v2896 = vpack.c.b16 %v2108, %v2106
        %v2897 = vpack.c.b16 %v2109, %v2107
        %v2898 = vpack.c.b16 %v2112, %v2110
        %v2899 = vpack.c.b16 %v2113, %v2111
        %v2900 = vpack.c.b16 %v2116, %v2114
        %v2901 = vpack.c.b16 %v2117, %v2115
        %v2902 = vpack.c.b16 %v2120, %v2118
        %v2903 = vpack.c.b16 %v2121, %v2119
        %v2904 = vpack.c.b16 %v2124, %v2122
        %v2905 = vpack.c.b16 %v2125, %v2123
        %v2906 = vpack.c.b16 %v2128, %v2126
        %v2907 = vpack.c.b16 %v2129, %v2127
        %v2908 = vpack.c.b16 %v2132, %v2130
        %v2909 = vpack.c.b16 %v2133, %v2131
        %v2910 = vpack.c.b16 %v2136, %v2134
        %v2911 = vpack.c.b16 %v2137, %v2135
        %v2912 = vpack.c.b16 %v2140, %v2138
        %v2913 = vpack.c.b16 %v2141, %v2139
        %v2914 = vpack.c.b16 %v2144, %v2142
        %v2915 = vpack.c.b16 %v2145, %v2143
        %v2916 = vpack.c.b16 %v2148, %v2146
        %v2917 = vpack.c.b16 %v2149, %v2147
        %v2918 = vpack.c.b16 %v2152, %v2150
        %v2919 = vpack.c.b16 %v2153, %v2151
        %v2920 = vpack.c.b16 %v2156, %v2154
        %v2921 = vpack.c.b16 %v2157, %v2155
        %v2922 = vpack.c.b16 %v2160, %v2158
        %v2923 = vpack.c.b16 %v2161, %v2159
        %v2924 = vpack.c.b16 %v2164, %v2162
        %v2925 = vpack.c.b16 %v2165, %v2163
        %v2926 = vpack.c.b16 %v2168, %v2166
        %v2927 = vpack.c.b16 %v2169, %v2167
        %v2928 = vpack.c.b16 %v2172, %v2170
        %v2929 = vpack.c.b16 %v2173, %v2171
        %v2930 = vpack.c.b16 %v2176, %v2174
        %v2931 = vpack.c.b16 %v2177, %v2175
        %v2932 = vpack.c.b16 %v2180, %v2178
        %v2933 = vpack.c.b16 %v2181, %v2179
        %v2934 = vpack.c.b16 %v2184, %v2182
        %v2935 = vpack.c.b16 %v2185, %v2183
        %v2936 = vpack.c.b16 %v2188, %v2186
        %v2937 = vpack.c.b16 %v2189, %v2187
        %v2938 = vpack.c.b16 %v2192, %v2190
        %v2939 = vpack.c.b16 %v2193, %v2191
        %v2940 = vpack.c.b16 %v2196, %v2194
        %v2941 = vpack.c.b16 %v2197, %v2195
        %v2942 = vpack.c.b16 %v2200, %v2198
        %v2943 = vpack.c.b16 %v2201, %v2199
        %v2944 = vpack.c.b16 %v2204, %v2202
        %v2945 = vpack.c.b16 %v2205, %v2203
        %v2946 = vpack.c.b16 %v2208, %v2206
        %v2947 = vpack.c.b16 %v2209, %v2207
        %v2948 = vpack.c.b16 %v2212, %v2210
        %v2949 = vpack.c.b16 %v2213, %v2211
        %v2950 = vpack.c.b16 %v2216, %v2214
        %v2951 = vpack.c.b16 %v2217, %v2215
        %v2952 = vpack.c.b16 %v2220, %v2218
        %v2953 = vpack.c.b16 %v2221, %v2219
        %v2954 = vpack.c.b16 %v2224, %v2222
        %v2955 = vpack.c.b16 %v2225, %v2223
        %v2956 = vpack.c.b16 %v2228, %v2226
        %v2957 = vpack.c.b16 %v2229, %v2227
        %v2958 = vpack.c.b16 %v2232, %v2230
        %v2959 = vpack.c.b16 %v2233, %v2231
        %v2960 = vpack.c.b16 %v2236, %v2234
        %v2961 = vpack.c.b16 %v2237, %v2235
        %v2962 = vpack.c.b16 %v2240, %v2238
        %v2963 = vpack.c.b16 %v2241, %v2239
        %v2964 = vpack.c.b16 %v2244, %v2242
        %v2965 = vpack.c.b16 %v2245, %v2243
        %v2966 = vpack.c.b16 %v2248, %v2246
        %v2967 = vpack.c.b16 %v2249, %v2247
        %v2968 = vpack.c.b16 %v2252, %v2250
        %v2969 = vpack.c.b16 %v2253, %v2251
        %v2970 = vpack.c.b16 %v2256, %v2254
        %v2971 = vpack.c.b16 %v2257, %v2255
        %v2972 = vpack.c.b16 %v2260, %v2258
        %v2973 = vpack.c.b16 %v2261, %v2259
        %v2974 = vpack.c.b16 %v2264, %v2262
        %v2975 = vpack.c.b16 %v2265, %v2263
        %v2976 = vpack.c.b16 %v2268, %v2266
        %v2977 = vpack.c.b16 %v2269, %v2267
        %v2978 = vpack.c.b16 %v2272, %v2270
        %v2979 = vpack.c.b16 %v2273, %v2271
        %v2980 = vpack.c.b16 %v2276, %v2274
        %v2981 = vpack.c.b16 %v2277, %v2275
        %v2982 = vpack.c.b16 %v2280, %v2278
        %v2983 = vpack.c.b16 %v2281, %v2279
        %v2984 = vpack.c.b16 %v2284, %v2282
        %v2985 = vpack.c.b16 %v2285, %v2283
        %v2986 = vpack.c.b16 %v2288, %v2286
        %v2987 = vpack.c.b16 %v2289, %v2287
        %v2988 = vpack.c.b16 %v2292, %v2290
        %v2989 = vpack.c.b16 %v2293, %v2291
        %v2990 = vpack.c.b16 %v2296, %v2294
        %v2991 = vpack.c.b16 %v2297, %v2295
        %v2992 = vpack.c.b16 %v2300, %v2298
        %v2993 = vpack.c.b16 %v2301, %v2299
        %v2994 = vpack.c.b16 %v2304, %v2302
        %v2995 = vpack.c.b16 %v2305, %v2303
        %v2996 = vpack.c.b16 %v2308, %v2306
        %v2997 = vpack.c.b16 %v2309, %v2307
        %v2998 = vpack.c.b16 %v2312, %v2310
        %v2999 = vpack.c.b16 %v2313, %v2311
        %v3000 = vpack.c.b16 %v2316, %v2314
        %v3001 = vpack.c.b16 %v2317, %v2315
        %v3002 = vpack.c.b16 %v2320, %v2318
        %v3003 = vpack.c.b16 %v2321, %v2319
        %v3004 = vpack.c.b16 %v2324, %v2322
        %v3005 = vpack.c.b16 %v2325, %v2323
        %v3006 = vpack.c.b16 %v2328, %v2326
        %v3007 = vpack.c.b16 %v2329, %v2327
        %v3008 = vpack.c.b16 %v2332, %v2330
        %v3009 = vpack.c.b16 %v2333, %v2331
        %v3010 = vpack.c.b16 %v2336, %v2334
        %v3011 = vpack.c.b16 %v2337, %v2335
        %v3012 = vpack.c.b16 %v2340, %v2338
        %v3013 = vpack.c.b16 %v2341, %v2339
        %v3014 = vpack.c.b16 %v2344, %v2342
        %v3015 = vpack.c.b16 %v2345, %v2343
        %v3016 = vpack.c.b16 %v2348, %v2346
        %v3017 = vpack.c.b16 %v2349, %v2347
        %v3018 = vpack.c.b16 %v2352, %v2350
        %v3019 = vpack.c.b16 %v2353, %v2351
        %v3020 = vpack.c.b16 %v2356, %v2354
        %v3021 = vpack.c.b16 %v2357, %v2355
        %v3022 = vpack.c.b16 %v2360, %v2358
        %v3023 = vpack.c.b16 %v2361, %v2359
        %v3024 = vpack.c.b16 %v2364, %v2362
        %v3025 = vpack.c.b16 %v2365, %v2363
        %v3026 = vpack.c.b16 %v2368, %v2366
        %v3027 = vpack.c.b16 %v2369, %v2367
        %v3028 = vpack.c.b16 %v2372, %v2370
        %v3029 = vpack.c.b16 %v2373, %v2371
        %v3030 = vpack.c.b16 %v2376, %v2374
        %v3031 = vpack.c.b16 %v2377, %v2375
        %v3032 = vpack.c.b16 %v2380, %v2378
        %v3033 = vpack.c.b16 %v2381, %v2379
        %v3034 = vpack.c.b16 %v2384, %v2382
        %v3035 = vpack.c.b16 %v2385, %v2383
        %v3036 = vpack.c.b16 %v2388, %v2386
        %v3037 = vpack.c.b16 %v2389, %v2387
        %v3038 = vpack.c.b16 %v2392, %v2390
        %v3039 = vpack.c.b16 %v2393, %v2391
        %v3040 = vpack.c.b16 %v2396, %v2394
        %v3041 = vpack.c.b16 %v2397, %v2395
        %v3042 = vpack.c.b16 %v2400, %v2398
        %v3043 = vpack.c.b16 %v2401, %v2399
        %v3044 = vpack.c.b16 %v2404, %v2402
        %v3045 = vpack.c.b16 %v2405, %v2403
        %v3046 = vpack.c.b16 %v2408, %v2406
        %v3047 = vpack.c.b16 %v2409, %v2407
        %v3048 = vpack.c.b16 %v2412, %v2410
        %v3049 = vpack.c.b16 %v2413, %v2411
        %v3050 = vpack.c.b16 %v2416, %v2414
        %v3051 = vpack.c.b16 %v2417, %v2415
        %v3052 = vpack.c.b16 %v2420, %v2418
        %v3053 = vpack.c.b16 %v2421, %v2419
        %v3054 = vpack.c.b16 %v2424, %v2422
        %v3055 = vpack.c.b16 %v2425, %v2423
        %v3056 = vpack.c.b16 %v2428, %v2426
        %v3057 = vpack.c.b16 %v2429, %v2427
        %v3058 = vpack.c.b16 %v2432, %v2430
        %v3059 = vpack.c.b16 %v2433, %v2431
        %v3060 = vpack.c.b16 %v2436, %v2434
        %v3061 = vpack.c.b16 %v2437, %v2435
        %v3062 = vpack.c.b16 %v2440, %v2438
        %v3063 = vpack.c.b16 %v2441, %v2439
        %v3064 = vpack.c.b16 %v2444, %v2442
        %v3065 = vpack.c.b16 %v2445, %v2443
        %v3066 = vpack.c.b16 %v2448, %v2446
        %v3067 = vpack.c.b16 %v2449, %v2447
        %v3068 = vpack.c.b16 %v2452, %v2450
        %v3069 = vpack.c.b16 %v2453, %v2451
        %v3070 = vpack.c.b16 %v2456, %v2454
        %v3071 = vpack.c.b16 %v2457, %v2455
        %v3072 = vpack.c.b16 %v2460, %v2458
        %v3073 = vpack.c.b16 %v2461, %v2459
        %v3074 = vpack.c.b16 %v2464, %v2462
        %v3075 = vpack.c.b16 %v2465, %v2463
        %v3076 = vpack.c.b16 %v2468, %v2466
        %v3077 = vpack.c.b16 %v2469, %v2467
        %v3078 = vpack.c.b16 %v2472, %v2470
        %v3079 = vpack.c.b16 %v2473, %v2471
        %v3080 = vpack.c.b16 %v2476, %v2474
        %v3081 = vpack.c.b16 %v2477, %v2475
        %v3082 = vpack.c.b16 %v2480, %v2478
        %v3083 = vpack.c.b16 %v2481, %v2479
        %v3084 = vpack.c.b16 %v2484, %v2482
        %v3085 = vpack.c.b16 %v2485, %v2483
        %v3086 = vpack.c.b16 %v2488, %v2486
        %v3087 = vpack.c.b16 %v2489, %v2487
        %v3088 = vpack.c.b16 %v2492, %v2490
        %v3089 = vpack.c.b16 %v2493, %v2491
        %v3090 = vpack.c.b16 %v2496, %v2494
        %v3091 = vpack.c.b16 %v2497, %v2495
        %v3092 = vpack.c.b16 %v2500, %v2498
        %v3093 = vpack.c.b16 %v2501, %v2499
        %v3094 = vpack.c.b16 %v2504, %v2502
        %v3095 = vpack.c.b16 %v2505, %v2503
        %v3096 = vpack.c.b16 %v2508, %v2506
        %v3097 = vpack.c.b16 %v2509, %v2507
        %v3098 = vpack.c.b16 %v2512, %v2510
        %v3099 = vpack.c.b16 %v2513, %v2511
        %v3100 = vpack.c.b16 %v2516, %v2514
        %v3101 = vpack.c.b16 %v2517, %v2515
        %v3102 = vpack.c.b16 %v2520, %v2518
        %v3103 = vpack.c.b16 %v2521, %v2519
        %v3104 = vpack.c.b16 %v2524, %v2522
        %v3105 = vpack.c.b16 %v2525, %v2523
        %v3106 = vpack.c.b16 %v2528, %v2526
        %v3107 = vpack.c.b16 %v2529, %v2527
        %v3108 = vpack.c.b16 %v2532, %v2530
        %v3109 = vpack.c.b16 %v2533, %v2531
        %v3110 = vpack.c.b16 %v2536, %v2534
        %v3111 = vpack.c.b16 %v2537, %v2535
        %v3112 = vpack.c.b16 %v2540, %v2538
        %v3113 = vpack.c.b16 %v2541, %v2539
        %v3114 = vpack.c.b16 %v2544, %v2542
        %v3115 = vpack.c.b16 %v2545, %v2543
        %v3116 = vpack.c.b16 %v2548, %v2546
        %v3117 = vpack.c.b16 %v2549, %v2547
        %v3118 = vpack.c.b16 %v2552, %v2550
        %v3119 = vpack.c.b16 %v2553, %v2551
        %v3120 = vpack.c.b16 %v2556, %v2554
        %v3121 = vpack.c.b16 %v2557, %v2555
        %v3122 = vpack.c.b16 %v2560, %v2558
        %v3123 = vpack.c.b16 %v2561, %v2559
        %v3124 = vpack.c.b16 %v2564, %v2562
        %v3125 = vpack.c.b16 %v2565, %v2563
        %v3126 = vpack.c.b16 %v2568, %v2566
        %v3127 = vpack.c.b16 %v2569, %v2567
        %v3128 = vpack.c.b16 %v2572, %v2570
        %v3129 = vpack.c.b16 %v2573, %v2571
        %v3130 = vpack.c.b16 %v2576, %v2574
        %v3131 = vpack.c.b16 %v2577, %v2575
        %v3132 = vpack.c.b16 %v2580, %v2578
        %v3133 = vpack.c.b16 %v2581, %v2579
        %v3134 = vpack.c.b16 %v2584, %v2582
        %v3135 = vpack.c.b16 %v2585, %v2583
        %v3136 = vpack.c.b16 %v2588, %v2586
        %v3137 = vpack.c.b16 %v2589, %v2587
        %v3138 = vpack.c.b16 %v2592, %v2590
        %v3139 = vpack.c.b16 %v2593, %v2591
        %v3140 = vpack.c.b16 %v2596, %v2594
        %v3141 = vpack.c.b16 %v2597, %v2595
        %v3142 = vpack.c.b16 %v2600, %v2598
        %v3143 = vpack.c.b16 %v2601, %v2599
        %v3144 = vpack.c.b16 %v2604, %v2602
        %v3145 = vpack.c.b16 %v2605, %v2603
        %v3146 = vpack.c.b16 %v2608, %v2606
        %v3147 = vpack.c.b16 %v2609, %v2607
        %v3148 = vpack.c.b16 %v2612, %v2610
        %v3149 = vpack.c.b16 %v2613, %v2611
        %v3150 = vpack.c.b16 %v2616, %v2614
        %v3151 = vpack.c.b16 %v2617, %v2615
        %v3152 = vpack.c.b16 %v2620, %v2618
        %v3153 = vpack.c.b16 %v2621, %v2619
        %v3154 = vpack.c.b16 %v2624, %v2622
        %v3155 = vpack.c.b16 %v2625, %v2623
        %v3156 = vpack.c.b16 %v2628, %v2626
        %v3157 = vpack.c.b16 %v2629, %v2627
        %v3158 = vpack.c.b16 %v2632, %v2630
        %v3159 = vpack.c.b16 %v2633, %v2631
        %v3160 = vpack.c.b16 %v2636, %v2634
        %v3161 = vpack.c.b16 %v2637, %v2635
        %v3162 = vpack.c.b16 %v2640, %v2638
        %v3163 = vpack.c.b16 %v2641, %v2639
        %v3164 = vpack.c.b16 %v2644, %v2642
        %v3165 = vpack.c.b16 %v2645, %v2643
        %v3166 = vpack.c.b16 %v2648, %v2646
        %v3167 = vpack.c.b16 %v2649, %v2647
        %v3168 = vpack.c.b16 %v2652, %v2650
        %v3169 = vpack.c.b16 %v2653, %v2651
        %v3170 = vpack.c.b16 %v2656, %v2654
        %v3171 = vpack.c.b16 %v2657, %v2655
        %v3172 = vpack.c.b16 %v2660, %v2658
        %v3173 = vpack.c.b16 %v2661, %v2659
        %3686 = vmatprep.subr.bf16.mxu0 %v2663
        %3687 = vmatpush1.bf16.msra.mxu0 %v2662
        %3688 = vmatprep.subr.bf16.mxu0 %v2665
        %3689 = vmatpush1.bf16.msra.mxu0 %v2664
        %3690 = vmatprep.subr.bf16.mxu0 %v2667
        %3691 = vmatpush1.bf16.msra.mxu0 %v2666
        %3692 = vmatprep.subr.bf16.mxu0 %v2669
        %3693 = vmatpush1.bf16.msra.mxu0 %v2668
        %3694 = vmatprep.subr.bf16.mxu0 %v2671
        %3695 = vmatpush1.bf16.msra.mxu0 %v2670
        %3696 = vmatprep.subr.bf16.mxu0 %v2673
        %3697 = vmatpush1.bf16.msra.mxu0 %v2672
        %3698 = vmatprep.subr.bf16.mxu0 %v2675
        %3699 = vmatpush1.bf16.msra.mxu0 %v2674
        %3700 = vmatprep.subr.bf16.mxu0 %v2677
        %3701 = vmatpush1.bf16.msra.mxu0 %v2676
        %3702 = vmatprep.subr.bf16.mxu0 %v2679
        %3703 = vmatpush1.bf16.msra.mxu0 %v2678
        %3704 = vmatprep.subr.bf16.mxu0 %v2681
        %3705 = vmatpush1.bf16.msra.mxu0 %v2680
        %3706 = vmatprep.subr.bf16.mxu0 %v2683
        %3707 = vmatpush1.bf16.msra.mxu0 %v2682
        %3708 = vmatprep.subr.bf16.mxu0 %v2685
        %3709 = vmatpush1.bf16.msra.mxu0 %v2684
        %3710 = vmatprep.subr.bf16.mxu0 %v2687
        %3711 = vmatpush1.bf16.msra.mxu0 %v2686
        %3712 = vmatprep.subr.bf16.mxu0 %v2689
        %3713 = vmatpush1.bf16.msra.mxu0 %v2688
        %3714 = vmatprep.subr.bf16.mxu0 %v2691
        %3715 = vmatpush1.bf16.msra.mxu0 %v2690
        %3716 = vmatprep.subr.bf16.mxu0 %v2693
        %3717 = vmatpush1.bf16.msra.mxu0 %v2692
        %3718 = vmatprep.mubr.bf16.mxu0 %v1063
        %3719 = vmatmul.mubr.bf16.gmra.mrb[0].mxu0 %v1062
        %v3720 = vpop.f32.mrb[0].mxu0
        %v3721 = vadd.f32 0.0, %v3720
        %v3722 = vpop.f32.mrb[0].mxu0
        %v3723 = vadd.f32 0.0, %v3722
        %v3724 = vpop.f32.mrb[0].mxu0
        %v3725 = vadd.f32 0.0, %v3724
        %v3726 = vpop.f32.mrb[0].mxu0
        %v3727 = vadd.f32 0.0, %v3726
        %3728 = vdwg.mxu0
        %3729 = vmatprep.subr.bf16.mxu0 %v2695
        %3730 = vmatpush1.bf16.msra.mxu0 %v2694
        %3731 = vmatprep.subr.bf16.mxu0 %v2697
        %3732 = vmatpush1.bf16.msra.mxu0 %v2696
        %3733 = vmatprep.subr.bf16.mxu0 %v2699
        %3734 = vmatpush1.bf16.msra.mxu0 %v2698
        %3735 = vmatprep.subr.bf16.mxu0 %v2701
        %3736 = vmatpush1.bf16.msra.mxu0 %v2700
        %3737 = vmatprep.subr.bf16.mxu0 %v2703
        %3738 = vmatpush1.bf16.msra.mxu0 %v2702
        %3739 = vmatprep.subr.bf16.mxu0 %v2705
        %3740 = vmatpush1.bf16.msra.mxu0 %v2704
        %3741 = vmatprep.subr.bf16.mxu0 %v2707
        %3742 = vmatpush1.bf16.msra.mxu0 %v2706
        %3743 = vmatprep.subr.bf16.mxu0 %v2709
        %3744 = vmatpush1.bf16.msra.mxu0 %v2708
        %3745 = vmatprep.subr.bf16.mxu0 %v2711
        %3746 = vmatpush1.bf16.msra.mxu0 %v2710
        %3747 = vmatprep.subr.bf16.mxu0 %v2713
        %3748 = vmatpush1.bf16.msra.mxu0 %v2712
        %3749 = vmatprep.subr.bf16.mxu0 %v2715
        %3750 = vmatpush1.bf16.msra.mxu0 %v2714
        %3751 = vmatprep.subr.bf16.mxu0 %v2717
        %3752 = vmatpush1.bf16.msra.mxu0 %v2716
        %3753 = vmatprep.subr.bf16.mxu0 %v2719
        %3754 = vmatpush1.bf16.msra.mxu0 %v2718
        %3755 = vmatprep.subr.bf16.mxu0 %v2721
        %3756 = vmatpush1.bf16.msra.mxu0 %v2720
        %3757 = vmatprep.subr.bf16.mxu0 %v2723
        %3758 = vmatpush1.bf16.msra.mxu0 %v2722
        %3759 = vmatprep.subr.bf16.mxu0 %v2725
        %3760 = vmatpush1.bf16.msra.mxu0 %v2724
        %3761 = vmatprep.mubr.bf16.mxu0 %v1065
        %3762 = vmatmul.mubr.bf16.gmra.mrb[0].mxu0 %v1064
        %v3763 = vpop.f32.mrb[0].mxu0
        %v3764 = vadd.f32 %v3721, %v3763
        %v3765 = vpop.f32.mrb[0].mxu0
        %v3766 = vadd.f32 %v3723, %v3765
        %v3767 = vpop.f32.mrb[0].mxu0
        %v3768 = vadd.f32 %v3725, %v3767
        %v3769 = vpop.f32.mrb[0].mxu0
        %v3770 = vadd.f32 %v3727, %v3769
        %3771 = vdwg.mxu0
        %3772 = vmatprep.subr.bf16.mxu0 %v2727
        %3773 = vmatpush1.bf16.msra.mxu0 %v2726
        %3774 = vmatprep.subr.bf16.mxu0 %v2729
        %3775 = vmatpush1.bf16.msra.mxu0 %v2728
        %3776 = vmatprep.subr.bf16.mxu0 %v2731
        %3777 = vmatpush1.bf16.msra.mxu0 %v2730
        %3778 = vmatprep.subr.bf16.mxu0 %v2733
        %3779 = vmatpush1.bf16.msra.mxu0 %v2732
        %3780 = vmatprep.subr.bf16.mxu0 %v2735
        %3781 = vmatpush1.bf16.msra.mxu0 %v2734
        %3782 = vmatprep.subr.bf16.mxu0 %v2737
        %3783 = vmatpush1.bf16.msra.mxu0 %v2736
        %3784 = vmatprep.subr.bf16.mxu0 %v2739
        %3785 = vmatpush1.bf16.msra.mxu0 %v2738
        %3786 = vmatprep.subr.bf16.mxu0 %v2741
        %3787 = vmatpush1.bf16.msra.mxu0 %v2740
        %3788 = vmatprep.subr.bf16.mxu0 %v2743
        %3789 = vmatpush1.bf16.msra.mxu0 %v2742
        %3790 = vmatprep.subr.bf16.mxu0 %v2745
        %3791 = vmatpush1.bf16.msra.mxu0 %v2744
        %3792 = vmatprep.subr.bf16.mxu0 %v2747
        %3793 = vmatpush1.bf16.msra.mxu0 %v2746
        %3794 = vmatprep.subr.bf16.mxu0 %v2749
        %3795 = vmatpush1.bf16.msra.mxu0 %v2748
        %3796 = vmatprep.subr.bf16.mxu0 %v2751
        %3797 = vmatpush1.bf16.msra.mxu0 %v2750
        %3798 = vmatprep.subr.bf16.mxu0 %v2753
        %3799 = vmatpush1.bf16.msra.mxu0 %v2752
        %3800 = vmatprep.subr.bf16.mxu0 %v2755
        %3801 = vmatpush1.bf16.msra.mxu0 %v2754
        %3802 = vmatprep.subr.bf16.mxu0 %v2757
        %3803 = vmatpush1.bf16.msra.mxu0 %v2756
        %3804 = vmatprep.mubr.bf16.mxu0 %v1067
        %3805 = vmatmul.mubr.bf16.gmra.mrb[0].mxu0 %v1066
        %v3806 = vpop.f32.mrb[0].mxu0
        %v3807 = vadd.f32 %v3764, %v3806
        %v3808 = vpop.f32.mrb[0].mxu0
        %v3809 = vadd.f32 %v3766, %v3808
        %v3810 = vpop.f32.mrb[0].mxu0
        %v3811 = vadd.f32 %v3768, %v3810
        %v3812 = vpop.f32.mrb[0].mxu0
        %v3813 = vadd.f32 %v3770, %v3812
        %3814 = vdwg.mxu0
        %3815 = vmatprep.subr.bf16.mxu0 %v2759
        %3816 = vmatpush1.bf16.msra.mxu0 %v2758
        %3817 = vmatprep.subr.bf16.mxu0 %v2761
        %3818 = vmatpush1.bf16.msra.mxu0 %v2760
        %3819 = vmatprep.subr.bf16.mxu0 %v2763
        %3820 = vmatpush1.bf16.msra.mxu0 %v2762
        %3821 = vmatprep.subr.bf16.mxu0 %v2765
        %3822 = vmatpush1.bf16.msra.mxu0 %v2764
        %3823 = vmatprep.subr.bf16.mxu0 %v2767
        %3824 = vmatpush1.bf16.msra.mxu0 %v2766
        %3825 = vmatprep.subr.bf16.mxu0 %v2769
        %3826 = vmatpush1.bf16.msra.mxu0 %v2768
        %3827 = vmatprep.subr.bf16.mxu0 %v2771
        %3828 = vmatpush1.bf16.msra.mxu0 %v2770
        %3829 = vmatprep.subr.bf16.mxu0 %v2773
        %3830 = vmatpush1.bf16.msra.mxu0 %v2772
        %3831 = vmatprep.subr.bf16.mxu0 %v2775
        %3832 = vmatpush1.bf16.msra.mxu0 %v2774
        %3833 = vmatprep.subr.bf16.mxu0 %v2777
        %3834 = vmatpush1.bf16.msra.mxu0 %v2776
        %3835 = vmatprep.subr.bf16.mxu0 %v2779
        %3836 = vmatpush1.bf16.msra.mxu0 %v2778
        %3837 = vmatprep.subr.bf16.mxu0 %v2781
        %3838 = vmatpush1.bf16.msra.mxu0 %v2780
        %3839 = vmatprep.subr.bf16.mxu0 %v2783
        %3840 = vmatpush1.bf16.msra.mxu0 %v2782
        %3841 = vmatprep.subr.bf16.mxu0 %v2785
        %3842 = vmatpush1.bf16.msra.mxu0 %v2784
        %3843 = vmatprep.subr.bf16.mxu0 %v2787
        %3844 = vmatpush1.bf16.msra.mxu0 %v2786
        %3845 = vmatprep.subr.bf16.mxu0 %v2789
        %3846 = vmatpush1.bf16.msra.mxu0 %v2788
        %3847 = vmatprep.mubr.bf16.mxu0 %v1069
        %3848 = vmatmul.mubr.bf16.gmra.mrb[0].mxu0 %v1068
        %v3849 = vpop.f32.mrb[0].mxu0
        %v3850 = vadd.f32 %v3807, %v3849
        %v3851 = vpop.f32.mrb[0].mxu0
        %v3852 = vadd.f32 %v3809, %v3851
        %v3853 = vpop.f32.mrb[0].mxu0
        %v3854 = vadd.f32 %v3811, %v3853
        %v3855 = vpop.f32.mrb[0].mxu0
        %v3856 = vadd.f32 %v3813, %v3855
        %3857 = vdwg.mxu0
        %3858 = vmatprep.subr.bf16.mxu0 %v2791
        %3859 = vmatpush1.bf16.msra.mxu0 %v2790
        %3860 = vmatprep.subr.bf16.mxu0 %v2793
        %3861 = vmatpush1.bf16.msra.mxu0 %v2792
        %3862 = vmatprep.subr.bf16.mxu0 %v2795
        %3863 = vmatpush1.bf16.msra.mxu0 %v2794
        %3864 = vmatprep.subr.bf16.mxu0 %v2797
        %3865 = vmatpush1.bf16.msra.mxu0 %v2796
        %3866 = vmatprep.subr.bf16.mxu0 %v2799
        %3867 = vmatpush1.bf16.msra.mxu0 %v2798
        %3868 = vmatprep.subr.bf16.mxu0 %v2801
        %3869 = vmatpush1.bf16.msra.mxu0 %v2800
        %3870 = vmatprep.subr.bf16.mxu0 %v2803
        %3871 = vmatpush1.bf16.msra.mxu0 %v2802
        %3872 = vmatprep.subr.bf16.mxu0 %v2805
        %3873 = vmatpush1.bf16.msra.mxu0 %v2804
        %3874 = vmatprep.subr.bf16.mxu0 %v2807
        %3875 = vmatpush1.bf16.msra.mxu0 %v2806
        %3876 = vmatprep.subr.bf16.mxu0 %v2809
        %3877 = vmatpush1.bf16.msra.mxu0 %v2808
        %3878 = vmatprep.subr.bf16.mxu0 %v2811
        %3879 = vmatpush1.bf16.msra.mxu0 %v2810
        %3880 = vmatprep.subr.bf16.mxu0 %v2813
        %3881 = vmatpush1.bf16.msra.mxu0 %v2812
        %3882 = vmatprep.subr.bf16.mxu0 %v2815
        %3883 = vmatpush1.bf16.msra.mxu0 %v2814
        %3884 = vmatprep.subr.bf16.mxu0 %v2817
        %3885 = vmatpush1.bf16.msra.mxu0 %v2816
        %3886 = vmatprep.subr.bf16.mxu0 %v2819
        %3887 = vmatpush1.bf16.msra.mxu0 %v2818
        %3888 = vmatprep.subr.bf16.mxu0 %v2821
        %3889 = vmatpush1.bf16.msra.mxu0 %v2820
        %3890 = vmatprep.mubr.bf16.mxu0 %v1071
        %3891 = vmatmul.mubr.bf16.gmra.mrb[0].mxu0 %v1070
        %v3892 = vpop.f32.mrb[0].mxu0
        %v3893 = vadd.f32 %v3850, %v3892
        %v3894 = vpop.f32.mrb[0].mxu0
        %v3895 = vadd.f32 %v3852, %v3894
        %v3896 = vpop.f32.mrb[0].mxu0
        %v3897 = vadd.f32 %v3854, %v3896
        %v3898 = vpop.f32.mrb[0].mxu0
        %v3899 = vadd.f32 %v3856, %v3898
        %3900 = vdwg.mxu0
        %3901 = vmatprep.subr.bf16.mxu0 %v2823
        %3902 = vmatpush1.bf16.msra.mxu0 %v2822
        %3903 = vmatprep.subr.bf16.mxu0 %v2825
        %3904 = vmatpush1.bf16.msra.mxu0 %v2824
        %3905 = vmatprep.subr.bf16.mxu0 %v2827
        %3906 = vmatpush1.bf16.msra.mxu0 %v2826
        %3907 = vmatprep.subr.bf16.mxu0 %v2829
        %3908 = vmatpush1.bf16.msra.mxu0 %v2828
        %3909 = vmatprep.subr.bf16.mxu0 %v2831
        %3910 = vmatpush1.bf16.msra.mxu0 %v2830
        %3911 = vmatprep.subr.bf16.mxu0 %v2833
        %3912 = vmatpush1.bf16.msra.mxu0 %v2832
        %3913 = vmatprep.subr.bf16.mxu0 %v2835
        %3914 = vmatpush1.bf16.msra.mxu0 %v2834
        %3915 = vmatprep.subr.bf16.mxu0 %v2837
        %3916 = vmatpush1.bf16.msra.mxu0 %v2836
        %3917 = vmatprep.subr.bf16.mxu0 %v2839
        %3918 = vmatpush1.bf16.msra.mxu0 %v2838
        %3919 = vmatprep.subr.bf16.mxu0 %v2841
        %3920 = vmatpush1.bf16.msra.mxu0 %v2840
        %3921 = vmatprep.subr.bf16.mxu0 %v2843
        %3922 = vmatpush1.bf16.msra.mxu0 %v2842
        %3923 = vmatprep.subr.bf16.mxu0 %v2845
        %3924 = vmatpush1.bf16.msra.mxu0 %v2844
        %3925 = vmatprep.subr.bf16.mxu0 %v2847
        %3926 = vmatpush1.bf16.msra.mxu0 %v2846
        %3927 = vmatprep.subr.bf16.mxu0 %v2849
        %3928 = vmatpush1.bf16.msra.mxu0 %v2848
        %3929 = vmatprep.subr.bf16.mxu0 %v2851
        %3930 = vmatpush1.bf16.msra.mxu0 %v2850
        %3931 = vmatprep.subr.bf16.mxu0 %v2853
        %3932 = vmatpush1.bf16.msra.mxu0 %v2852
        %3933 = vmatprep.mubr.bf16.mxu0 %v1073
        %3934 = vmatmul.mubr.bf16.gmra.mrb[0].mxu0 %v1072
        %v3935 = vpop.f32.mrb[0].mxu0
        %v3936 = vadd.f32 %v3893, %v3935
        %v3937 = vpop.f32.mrb[0].mxu0
        %v3938 = vadd.f32 %v3895, %v3937
        %v3939 = vpop.f32.mrb[0].mxu0
        %v3940 = vadd.f32 %v3897, %v3939
        %v3941 = vpop.f32.mrb[0].mxu0
        %v3942 = vadd.f32 %v3899, %v3941
        %3943 = vdwg.mxu0
        %3944 = vmatprep.subr.bf16.mxu0 %v2855
        %3945 = vmatpush1.bf16.msra.mxu0 %v2854
        %3946 = vmatprep.subr.bf16.mxu0 %v2857
        %3947 = vmatpush1.bf16.msra.mxu0 %v2856
        %3948 = vmatprep.subr.bf16.mxu0 %v2859
        %3949 = vmatpush1.bf16.msra.mxu0 %v2858
        %3950 = vmatprep.subr.bf16.mxu0 %v2861
        %3951 = vmatpush1.bf16.msra.mxu0 %v2860
        %3952 = vmatprep.subr.bf16.mxu0 %v2863
        %3953 = vmatpush1.bf16.msra.mxu0 %v2862
        %3954 = vmatprep.subr.bf16.mxu0 %v2865
        %3955 = vmatpush1.bf16.msra.mxu0 %v2864
        %3956 = vmatprep.subr.bf16.mxu0 %v2867
        %3957 = vmatpush1.bf16.msra.mxu0 %v2866
        %3958 = vmatprep.subr.bf16.mxu0 %v2869
        %3959 = vmatpush1.bf16.msra.mxu0 %v2868
        %3960 = vmatprep.subr.bf16.mxu0 %v2871
        %3961 = vmatpush1.bf16.msra.mxu0 %v2870
        %3962 = vmatprep.subr.bf16.mxu0 %v2873
        %3963 = vmatpush1.bf16.msra.mxu0 %v2872
        %3964 = vmatprep.subr.bf16.mxu0 %v2875
        %3965 = vmatpush1.bf16.msra.mxu0 %v2874
        %3966 = vmatprep.subr.bf16.mxu0 %v2877
        %3967 = vmatpush1.bf16.msra.mxu0 %v2876
        %3968 = vmatprep.subr.bf16.mxu0 %v2879
        %3969 = vmatpush1.bf16.msra.mxu0 %v2878
        %3970 = vmatprep.subr.bf16.mxu0 %v2881
        %3971 = vmatpush1.bf16.msra.mxu0 %v2880
        %3972 = vmatprep.subr.bf16.mxu0 %v2883
        %3973 = vmatpush1.bf16.msra.mxu0 %v2882
        %3974 = vmatprep.subr.bf16.mxu0 %v2885
        %3975 = vmatpush1.bf16.msra.mxu0 %v2884
        %3976 = vmatprep.mubr.bf16.mxu0 %v1075
        %3977 = vmatmul.mubr.bf16.gmra.mrb[0].mxu0 %v1074
        %v3978 = vpop.f32.mrb[0].mxu0
        %v3979 = vadd.f32 %v3936, %v3978
        %v3980 = vpop.f32.mrb[0].mxu0
        %v3981 = vadd.f32 %v3938, %v3980
        %v3982 = vpop.f32.mrb[0].mxu0
        %v3983 = vadd.f32 %v3940, %v3982
        %v3984 = vpop.f32.mrb[0].mxu0
        %v3985 = vadd.f32 %v3942, %v3984
        %3986 = vdwg.mxu0
        %3987 = vmatprep.subr.bf16.mxu0 %v2887
        %3988 = vmatpush1.bf16.msra.mxu0 %v2886
        %3989 = vmatprep.subr.bf16.mxu0 %v2889
        %3990 = vmatpush1.bf16.msra.mxu0 %v2888
        %3991 = vmatprep.subr.bf16.mxu0 %v2891
        %3992 = vmatpush1.bf16.msra.mxu0 %v2890
        %3993 = vmatprep.subr.bf16.mxu0 %v2893
        %3994 = vmatpush1.bf16.msra.mxu0 %v2892
        %3995 = vmatprep.subr.bf16.mxu0 %v2895
        %3996 = vmatpush1.bf16.msra.mxu0 %v2894
        %3997 = vmatprep.subr.bf16.mxu0 %v2897
        %3998 = vmatpush1.bf16.msra.mxu0 %v2896
        %3999 = vmatprep.subr.bf16.mxu0 %v2899
        %4000 = vmatpush1.bf16.msra.mxu0 %v2898
        %4001 = vmatprep.subr.bf16.mxu0 %v2901
        %4002 = vmatpush1.bf16.msra.mxu0 %v2900
        %4003 = vmatprep.subr.bf16.mxu0 %v2903
        %4004 = vmatpush1.bf16.msra.mxu0 %v2902
        %4005 = vmatprep.subr.bf16.mxu0 %v2905
        %4006 = vmatpush1.bf16.msra.mxu0 %v2904
        %4007 = vmatprep.subr.bf16.mxu0 %v2907
        %4008 = vmatpush1.bf16.msra.mxu0 %v2906
        %4009 = vmatprep.subr.bf16.mxu0 %v2909
        %4010 = vmatpush1.bf16.msra.mxu0 %v2908
        %4011 = vmatprep.subr.bf16.mxu0 %v2911
        %4012 = vmatpush1.bf16.msra.mxu0 %v2910
        %4013 = vmatprep.subr.bf16.mxu0 %v2913
        %4014 = vmatpush1.bf16.msra.mxu0 %v2912
        %4015 = vmatprep.subr.bf16.mxu0 %v2915
        %4016 = vmatpush1.bf16.msra.mxu0 %v2914
        %4017 = vmatprep.subr.bf16.mxu0 %v2917
        %4018 = vmatpush1.bf16.msra.mxu0 %v2916
        %4019 = vmatprep.mubr.bf16.mxu0 %v1077
        %4020 = vmatmul.mubr.bf16.gmra.mrb[0].mxu0 %v1076
        %v4021 = vpop.f32.mrb[0].mxu0
        %v4022 = vadd.f32 %v3979, %v4021
        %v4023 = vpop.f32.mrb[0].mxu0
        %v4024 = vadd.f32 %v3981, %v4023
        %v4025 = vpop.f32.mrb[0].mxu0
        %v4026 = vadd.f32 %v3983, %v4025
        %v4027 = vpop.f32.mrb[0].mxu0
        %v4028 = vadd.f32 %v3985, %v4027
        %4029 = vdwg.mxu0
        %4030 = vmatprep.subr.bf16.mxu0 %v2919
        %4031 = vmatpush1.bf16.msra.mxu0 %v2918
        %4032 = vmatprep.subr.bf16.mxu0 %v2921
        %4033 = vmatpush1.bf16.msra.mxu0 %v2920
        %4034 = vmatprep.subr.bf16.mxu0 %v2923
        %4035 = vmatpush1.bf16.msra.mxu0 %v2922
        %4036 = vmatprep.subr.bf16.mxu0 %v2925
        %4037 = vmatpush1.bf16.msra.mxu0 %v2924
        %4038 = vmatprep.subr.bf16.mxu0 %v2927
        %4039 = vmatpush1.bf16.msra.mxu0 %v2926
        %4040 = vmatprep.subr.bf16.mxu0 %v2929
        %4041 = vmatpush1.bf16.msra.mxu0 %v2928
        %4042 = vmatprep.subr.bf16.mxu0 %v2931
        %4043 = vmatpush1.bf16.msra.mxu0 %v2930
        %4044 = vmatprep.subr.bf16.mxu0 %v2933
        %4045 = vmatpush1.bf16.msra.mxu0 %v2932
        %4046 = vmatprep.subr.bf16.mxu0 %v2935
        %4047 = vmatpush1.bf16.msra.mxu0 %v2934
        %4048 = vmatprep.subr.bf16.mxu0 %v2937
        %4049 = vmatpush1.bf16.msra.mxu0 %v2936
        %4050 = vmatprep.subr.bf16.mxu0 %v2939
        %4051 = vmatpush1.bf16.msra.mxu0 %v2938
        %4052 = vmatprep.subr.bf16.mxu0 %v2941
        %4053 = vmatpush1.bf16.msra.mxu0 %v2940
        %4054 = vmatprep.subr.bf16.mxu0 %v2943
        %4055 = vmatpush1.bf16.msra.mxu0 %v2942
        %4056 = vmatprep.subr.bf16.mxu0 %v2945
        %4057 = vmatpush1.bf16.msra.mxu0 %v2944
        %4058 = vmatprep.subr.bf16.mxu0 %v2947
        %4059 = vmatpush1.bf16.msra.mxu0 %v2946
        %4060 = vmatprep.subr.bf16.mxu0 %v2949
        %4061 = vmatpush1.bf16.msra.mxu0 %v2948
        %4062 = vmatprep.mubr.bf16.mxu0 %v1079
        %4063 = vmatmul.mubr.bf16.gmra.mrb[0].mxu0 %v1078
        %v4064 = vpop.f32.mrb[0].mxu0
        %v4065 = vadd.f32 %v4022, %v4064
        %v4066 = vpop.f32.mrb[0].mxu0
        %v4067 = vadd.f32 %v4024, %v4066
        %v4068 = vpop.f32.mrb[0].mxu0
        %v4069 = vadd.f32 %v4026, %v4068
        %v4070 = vpop.f32.mrb[0].mxu0
        %v4071 = vadd.f32 %v4028, %v4070
        %4072 = vdwg.mxu0
        %4073 = vmatprep.subr.bf16.mxu0 %v2951
        %4074 = vmatpush1.bf16.msra.mxu0 %v2950
        %4075 = vmatprep.subr.bf16.mxu0 %v2953
        %4076 = vmatpush1.bf16.msra.mxu0 %v2952
        %4077 = vmatprep.subr.bf16.mxu0 %v2955
        %4078 = vmatpush1.bf16.msra.mxu0 %v2954
        %4079 = vmatprep.subr.bf16.mxu0 %v2957
        %4080 = vmatpush1.bf16.msra.mxu0 %v2956
        %4081 = vmatprep.subr.bf16.mxu0 %v2959
        %4082 = vmatpush1.bf16.msra.mxu0 %v2958
        %4083 = vmatprep.subr.bf16.mxu0 %v2961
        %4084 = vmatpush1.bf16.msra.mxu0 %v2960
        %4085 = vmatprep.subr.bf16.mxu0 %v2963
        %4086 = vmatpush1.bf16.msra.mxu0 %v2962
        %4087 = vmatprep.subr.bf16.mxu0 %v2965
        %4088 = vmatpush1.bf16.msra.mxu0 %v2964
        %4089 = vmatprep.subr.bf16.mxu0 %v2967
        %4090 = vmatpush1.bf16.msra.mxu0 %v2966
        %4091 = vmatprep.subr.bf16.mxu0 %v2969
        %4092 = vmatpush1.bf16.msra.mxu0 %v2968
        %4093 = vmatprep.subr.bf16.mxu0 %v2971
        %4094 = vmatpush1.bf16.msra.mxu0 %v2970
        %4095 = vmatprep.subr.bf16.mxu0 %v2973
        %4096 = vmatpush1.bf16.msra.mxu0 %v2972
        %4097 = vmatprep.subr.bf16.mxu0 %v2975
        %4098 = vmatpush1.bf16.msra.mxu0 %v2974
        %4099 = vmatprep.subr.bf16.mxu0 %v2977
        %4100 = vmatpush1.bf16.msra.mxu0 %v2976
        %4101 = vmatprep.subr.bf16.mxu0 %v2979
        %4102 = vmatpush1.bf16.msra.mxu0 %v2978
        %4103 = vmatprep.subr.bf16.mxu0 %v2981
        %4104 = vmatpush1.bf16.msra.mxu0 %v2980
        %4105 = vmatprep.mubr.bf16.mxu0 %v1081
        %4106 = vmatmul.mubr.bf16.gmra.mrb[0].mxu0 %v1080
        %v4107 = vpop.f32.mrb[0].mxu0
        %v4108 = vadd.f32 %v4065, %v4107
        %v4109 = vpop.f32.mrb[0].mxu0
        %v4110 = vadd.f32 %v4067, %v4109
        %v4111 = vpop.f32.mrb[0].mxu0
        %v4112 = vadd.f32 %v4069, %v4111
        %v4113 = vpop.f32.mrb[0].mxu0
        %v4114 = vadd.f32 %v4071, %v4113
        %4115 = vdwg.mxu0
        %4116 = vmatprep.subr.bf16.mxu0 %v2983
        %4117 = vmatpush1.bf16.msra.mxu0 %v2982
        %4118 = vmatprep.subr.bf16.mxu0 %v2985
        %4119 = vmatpush1.bf16.msra.mxu0 %v2984
        %4120 = vmatprep.subr.bf16.mxu0 %v2987
        %4121 = vmatpush1.bf16.msra.mxu0 %v2986
        %4122 = vmatprep.subr.bf16.mxu0 %v2989
        %4123 = vmatpush1.bf16.msra.mxu0 %v2988
        %4124 = vmatprep.subr.bf16.mxu0 %v2991
        %4125 = vmatpush1.bf16.msra.mxu0 %v2990
        %4126 = vmatprep.subr.bf16.mxu0 %v2993
        %4127 = vmatpush1.bf16.msra.mxu0 %v2992
        %4128 = vmatprep.subr.bf16.mxu0 %v2995
        %4129 = vmatpush1.bf16.msra.mxu0 %v2994
        %4130 = vmatprep.subr.bf16.mxu0 %v2997
        %4131 = vmatpush1.bf16.msra.mxu0 %v2996
        %4132 = vmatprep.subr.bf16.mxu0 %v2999
        %4133 = vmatpush1.bf16.msra.mxu0 %v2998
        %4134 = vmatprep.subr.bf16.mxu0 %v3001
        %4135 = vmatpush1.bf16.msra.mxu0 %v3000
        %4136 = vmatprep.subr.bf16.mxu0 %v3003
        %4137 = vmatpush1.bf16.msra.mxu0 %v3002
        %4138 = vmatprep.subr.bf16.mxu0 %v3005
        %4139 = vmatpush1.bf16.msra.mxu0 %v3004
        %4140 = vmatprep.subr.bf16.mxu0 %v3007
        %4141 = vmatpush1.bf16.msra.mxu0 %v3006
        %4142 = vmatprep.subr.bf16.mxu0 %v3009
        %4143 = vmatpush1.bf16.msra.mxu0 %v3008
        %4144 = vmatprep.subr.bf16.mxu0 %v3011
        %4145 = vmatpush1.bf16.msra.mxu0 %v3010
        %4146 = vmatprep.subr.bf16.mxu0 %v3013
        %4147 = vmatpush1.bf16.msra.mxu0 %v3012
        %4148 = vmatprep.mubr.bf16.mxu0 %v1083
        %4149 = vmatmul.mubr.bf16.gmra.mrb[0].mxu0 %v1082
        %v4150 = vpop.f32.mrb[0].mxu0
        %v4151 = vadd.f32 %v4108, %v4150
        %v4152 = vpop.f32.mrb[0].mxu0
        %v4153 = vadd.f32 %v4110, %v4152
        %v4154 = vpop.f32.mrb[0].mxu0
        %v4155 = vadd.f32 %v4112, %v4154
        %v4156 = vpop.f32.mrb[0].mxu0
        %v4157 = vadd.f32 %v4114, %v4156
        %4158 = vdwg.mxu0
        %4159 = vmatprep.subr.bf16.mxu0 %v3015
        %4160 = vmatpush1.bf16.msra.mxu0 %v3014
        %4161 = vmatprep.subr.bf16.mxu0 %v3017
        %4162 = vmatpush1.bf16.msra.mxu0 %v3016
        %4163 = vmatprep.subr.bf16.mxu0 %v3019
        %4164 = vmatpush1.bf16.msra.mxu0 %v3018
        %4165 = vmatprep.subr.bf16.mxu0 %v3021
        %4166 = vmatpush1.bf16.msra.mxu0 %v3020
        %4167 = vmatprep.subr.bf16.mxu0 %v3023
        %4168 = vmatpush1.bf16.msra.mxu0 %v3022
        %4169 = vmatprep.subr.bf16.mxu0 %v3025
        %4170 = vmatpush1.bf16.msra.mxu0 %v3024
        %4171 = vmatprep.subr.bf16.mxu0 %v3027
        %4172 = vmatpush1.bf16.msra.mxu0 %v3026
        %4173 = vmatprep.subr.bf16.mxu0 %v3029
        %4174 = vmatpush1.bf16.msra.mxu0 %v3028
        %4175 = vmatprep.subr.bf16.mxu0 %v3031
        %4176 = vmatpush1.bf16.msra.mxu0 %v3030
        %4177 = vmatprep.subr.bf16.mxu0 %v3033
        %4178 = vmatpush1.bf16.msra.mxu0 %v3032
        %4179 = vmatprep.subr.bf16.mxu0 %v3035
        %4180 = vmatpush1.bf16.msra.mxu0 %v3034
        %4181 = vmatprep.subr.bf16.mxu0 %v3037
        %4182 = vmatpush1.bf16.msra.mxu0 %v3036
        %4183 = vmatprep.subr.bf16.mxu0 %v3039
        %4184 = vmatpush1.bf16.msra.mxu0 %v3038
        %4185 = vmatprep.subr.bf16.mxu0 %v3041
        %4186 = vmatpush1.bf16.msra.mxu0 %v3040
        %4187 = vmatprep.subr.bf16.mxu0 %v3043
        %4188 = vmatpush1.bf16.msra.mxu0 %v3042
        %4189 = vmatprep.subr.bf16.mxu0 %v3045
        %4190 = vmatpush1.bf16.msra.mxu0 %v3044
        %4191 = vmatprep.mubr.bf16.mxu0 %v1085
        %4192 = vmatmul.mubr.bf16.gmra.mrb[0].mxu0 %v1084
        %v4193 = vpop.f32.mrb[0].mxu0
        %v4194 = vadd.f32 %v4151, %v4193
        %v4195 = vpop.f32.mrb[0].mxu0
        %v4196 = vadd.f32 %v4153, %v4195
        %v4197 = vpop.f32.mrb[0].mxu0
        %v4198 = vadd.f32 %v4155, %v4197
        %v4199 = vpop.f32.mrb[0].mxu0
        %v4200 = vadd.f32 %v4157, %v4199
        %4201 = vdwg.mxu0
        %4202 = vmatprep.subr.bf16.mxu0 %v3047
        %4203 = vmatpush1.bf16.msra.mxu0 %v3046
        %4204 = vmatprep.subr.bf16.mxu0 %v3049
        %4205 = vmatpush1.bf16.msra.mxu0 %v3048
        %4206 = vmatprep.subr.bf16.mxu0 %v3051
        %4207 = vmatpush1.bf16.msra.mxu0 %v3050
        %4208 = vmatprep.subr.bf16.mxu0 %v3053
        %4209 = vmatpush1.bf16.msra.mxu0 %v3052
        %4210 = vmatprep.subr.bf16.mxu0 %v3055
        %4211 = vmatpush1.bf16.msra.mxu0 %v3054
        %4212 = vmatprep.subr.bf16.mxu0 %v3057
        %4213 = vmatpush1.bf16.msra.mxu0 %v3056
        %4214 = vmatprep.subr.bf16.mxu0 %v3059
        %4215 = vmatpush1.bf16.msra.mxu0 %v3058
        %4216 = vmatprep.subr.bf16.mxu0 %v3061
        %4217 = vmatpush1.bf16.msra.mxu0 %v3060
        %4218 = vmatprep.subr.bf16.mxu0 %v3063
        %4219 = vmatpush1.bf16.msra.mxu0 %v3062
        %4220 = vmatprep.subr.bf16.mxu0 %v3065
        %4221 = vmatpush1.bf16.msra.mxu0 %v3064
        %4222 = vmatprep.subr.bf16.mxu0 %v3067
        %4223 = vmatpush1.bf16.msra.mxu0 %v3066
        %4224 = vmatprep.subr.bf16.mxu0 %v3069
        %4225 = vmatpush1.bf16.msra.mxu0 %v3068
        %4226 = vmatprep.subr.bf16.mxu0 %v3071
        %4227 = vmatpush1.bf16.msra.mxu0 %v3070
        %4228 = vmatprep.subr.bf16.mxu0 %v3073
        %4229 = vmatpush1.bf16.msra.mxu0 %v3072
        %4230 = vmatprep.subr.bf16.mxu0 %v3075
        %4231 = vmatpush1.bf16.msra.mxu0 %v3074
        %4232 = vmatprep.subr.bf16.mxu0 %v3077
        %4233 = vmatpush1.bf16.msra.mxu0 %v3076
        %4234 = vmatprep.mubr.bf16.mxu0 %v1087
        %4235 = vmatmul.mubr.bf16.gmra.mrb[0].mxu0 %v1086
        %v4236 = vpop.f32.mrb[0].mxu0
        %v4237 = vadd.f32 %v4194, %v4236
        %v4238 = vpop.f32.mrb[0].mxu0
        %v4239 = vadd.f32 %v4196, %v4238
        %v4240 = vpop.f32.mrb[0].mxu0
        %v4241 = vadd.f32 %v4198, %v4240
        %v4242 = vpop.f32.mrb[0].mxu0
        %v4243 = vadd.f32 %v4200, %v4242
        %4244 = vdwg.mxu0
        %4245 = vmatprep.subr.bf16.mxu0 %v3079
        %4246 = vmatpush1.bf16.msra.mxu0 %v3078
        %4247 = vmatprep.subr.bf16.mxu0 %v3081
        %4248 = vmatpush1.bf16.msra.mxu0 %v3080
        %4249 = vmatprep.subr.bf16.mxu0 %v3083
        %4250 = vmatpush1.bf16.msra.mxu0 %v3082
        %4251 = vmatprep.subr.bf16.mxu0 %v3085
        %4252 = vmatpush1.bf16.msra.mxu0 %v3084
        %4253 = vmatprep.subr.bf16.mxu0 %v3087
        %4254 = vmatpush1.bf16.msra.mxu0 %v3086
        %4255 = vmatprep.subr.bf16.mxu0 %v3089
        %4256 = vmatpush1.bf16.msra.mxu0 %v3088
        %4257 = vmatprep.subr.bf16.mxu0 %v3091
        %4258 = vmatpush1.bf16.msra.mxu0 %v3090
        %4259 = vmatprep.subr.bf16.mxu0 %v3093
        %4260 = vmatpush1.bf16.msra.mxu0 %v3092
        %4261 = vmatprep.subr.bf16.mxu0 %v3095
        %4262 = vmatpush1.bf16.msra.mxu0 %v3094
        %4263 = vmatprep.subr.bf16.mxu0 %v3097
        %4264 = vmatpush1.bf16.msra.mxu0 %v3096
        %4265 = vmatprep.subr.bf16.mxu0 %v3099
        %4266 = vmatpush1.bf16.msra.mxu0 %v3098
        %4267 = vmatprep.subr.bf16.mxu0 %v3101
        %4268 = vmatpush1.bf16.msra.mxu0 %v3100
        %4269 = vmatprep.subr.bf16.mxu0 %v3103
        %4270 = vmatpush1.bf16.msra.mxu0 %v3102
        %4271 = vmatprep.subr.bf16.mxu0 %v3105
        %4272 = vmatpush1.bf16.msra.mxu0 %v3104
        %4273 = vmatprep.subr.bf16.mxu0 %v3107
        %4274 = vmatpush1.bf16.msra.mxu0 %v3106
        %4275 = vmatprep.subr.bf16.mxu0 %v3109
        %4276 = vmatpush1.bf16.msra.mxu0 %v3108
        %4277 = vmatprep.mubr.bf16.mxu0 %v1089
        %4278 = vmatmul.mubr.bf16.gmra.mrb[0].mxu0 %v1088
        %v4279 = vpop.f32.mrb[0].mxu0
        %v4280 = vadd.f32 %v4237, %v4279
        %v4281 = vpop.f32.mrb[0].mxu0
        %v4282 = vadd.f32 %v4239, %v4281
        %v4283 = vpop.f32.mrb[0].mxu0
        %v4284 = vadd.f32 %v4241, %v4283
        %v4285 = vpop.f32.mrb[0].mxu0
        %v4286 = vadd.f32 %v4243, %v4285
        %4287 = vdwg.mxu0
        %4288 = vmatprep.subr.bf16.mxu0 %v3111
        %4289 = vmatpush1.bf16.msra.mxu0 %v3110
        %4290 = vmatprep.subr.bf16.mxu0 %v3113
        %4291 = vmatpush1.bf16.msra.mxu0 %v3112
        %4292 = vmatprep.subr.bf16.mxu0 %v3115
        %4293 = vmatpush1.bf16.msra.mxu0 %v3114
        %4294 = vmatprep.subr.bf16.mxu0 %v3117
        %4295 = vmatpush1.bf16.msra.mxu0 %v3116
        %4296 = vmatprep.subr.bf16.mxu0 %v3119
        %4297 = vmatpush1.bf16.msra.mxu0 %v3118
        %4298 = vmatprep.subr.bf16.mxu0 %v3121
        %4299 = vmatpush1.bf16.msra.mxu0 %v3120
        %4300 = vmatprep.subr.bf16.mxu0 %v3123
        %4301 = vmatpush1.bf16.msra.mxu0 %v3122
        %4302 = vmatprep.subr.bf16.mxu0 %v3125
        %4303 = vmatpush1.bf16.msra.mxu0 %v3124
        %4304 = vmatprep.subr.bf16.mxu0 %v3127
        %4305 = vmatpush1.bf16.msra.mxu0 %v3126
        %4306 = vmatprep.subr.bf16.mxu0 %v3129
        %4307 = vmatpush1.bf16.msra.mxu0 %v3128
        %4308 = vmatprep.subr.bf16.mxu0 %v3131
        %4309 = vmatpush1.bf16.msra.mxu0 %v3130
        %4310 = vmatprep.subr.bf16.mxu0 %v3133
        %4311 = vmatpush1.bf16.msra.mxu0 %v3132
        %4312 = vmatprep.subr.bf16.mxu0 %v3135
        %4313 = vmatpush1.bf16.msra.mxu0 %v3134
        %4314 = vmatprep.subr.bf16.mxu0 %v3137
        %4315 = vmatpush1.bf16.msra.mxu0 %v3136
        %4316 = vmatprep.subr.bf16.mxu0 %v3139
        %4317 = vmatpush1.bf16.msra.mxu0 %v3138
        %4318 = vmatprep.subr.bf16.mxu0 %v3141
        %4319 = vmatpush1.bf16.msra.mxu0 %v3140
        %4320 = vmatprep.mubr.bf16.mxu0 %v1091
        %4321 = vmatmul.mubr.bf16.gmra.mrb[0].mxu0 %v1090
        %v4322 = vpop.f32.mrb[0].mxu0
        %v4323 = vadd.f32 %v4280, %v4322
        %v4324 = vpop.f32.mrb[0].mxu0
        %v4325 = vadd.f32 %v4282, %v4324
        %v4326 = vpop.f32.mrb[0].mxu0
        %v4327 = vadd.f32 %v4284, %v4326
        %v4328 = vpop.f32.mrb[0].mxu0
        %v4329 = vadd.f32 %v4286, %v4328
        %4330 = vdwg.mxu0
        %4331 = vmatprep.subr.bf16.mxu0 %v3143
        %4332 = vmatpush1.bf16.msra.mxu0 %v3142
        %4333 = vmatprep.subr.bf16.mxu0 %v3145
        %4334 = vmatpush1.bf16.msra.mxu0 %v3144
        %4335 = vmatprep.subr.bf16.mxu0 %v3147
        %4336 = vmatpush1.bf16.msra.mxu0 %v3146
        %4337 = vmatprep.subr.bf16.mxu0 %v3149
        %4338 = vmatpush1.bf16.msra.mxu0 %v3148
        %4339 = vmatprep.subr.bf16.mxu0 %v3151
        %4340 = vmatpush1.bf16.msra.mxu0 %v3150
        %4341 = vmatprep.subr.bf16.mxu0 %v3153
        %4342 = vmatpush1.bf16.msra.mxu0 %v3152
        %4343 = vmatprep.subr.bf16.mxu0 %v3155
        %4344 = vmatpush1.bf16.msra.mxu0 %v3154
        %4345 = vmatprep.subr.bf16.mxu0 %v3157
        %4346 = vmatpush1.bf16.msra.mxu0 %v3156
        %4347 = vmatprep.subr.bf16.mxu0 %v3159
        %4348 = vmatpush1.bf16.msra.mxu0 %v3158
        %4349 = vmatprep.subr.bf16.mxu0 %v3161
        %4350 = vmatpush1.bf16.msra.mxu0 %v3160
        %4351 = vmatprep.subr.bf16.mxu0 %v3163
        %4352 = vmatpush1.bf16.msra.mxu0 %v3162
        %4353 = vmatprep.subr.bf16.mxu0 %v3165
        %4354 = vmatpush1.bf16.msra.mxu0 %v3164
        %4355 = vmatprep.subr.bf16.mxu0 %v3167
        %4356 = vmatpush1.bf16.msra.mxu0 %v3166
        %4357 = vmatprep.subr.bf16.mxu0 %v3169
        %4358 = vmatpush1.bf16.msra.mxu0 %v3168
        %4359 = vmatprep.subr.bf16.mxu0 %v3171
        %4360 = vmatpush1.bf16.msra.mxu0 %v3170
        %4361 = vmatprep.subr.bf16.mxu0 %v3173
        %4362 = vmatpush1.bf16.msra.mxu0 %v3172
        %4363 = vmatprep.mubr.bf16.mxu0 %v1093
        %4364 = vmatmul.mubr.bf16.gmra.mrb[0].mxu0 %v1092
        %v4365 = vpop.f32.mrb[0].mxu0
        %v4366 = vadd.f32 %v4323, %v4365
        %v4367 = vpop.f32.mrb[0].mxu0
        %v4368 = vadd.f32 %v4325, %v4367
        %v4369 = vpop.f32.mrb[0].mxu0
        %v4370 = vadd.f32 %v4327, %v4369
        %v4371 = vpop.f32.mrb[0].mxu0
        %v4372 = vadd.f32 %v4329, %v4371
        %4373 = vdwg.mxu0
        %v4374 = vadd.f32 %v418, %v4366
        %v4375 = vadd.f32 %v419, %v4368
        %v4376 = vadd.f32 %v420, %v4370
        %v4377 = vadd.f32 %v421, %v4372
        %4378 = vst [vmem:[%s403] sm:$0xff] %v4374
        %4379 = vst [vmem:[%s403 + $0x8] sm:$0xff] %v4375
        %4380 = vst [vmem:[%s403 + $0x10] sm:$0xff] %v4376
        %4381 = vst [vmem:[%s403 + $0x18] sm:$0xff] %v4377
        %p4382 = scmp.eq.s32.totalorder %s26, 1
        // Predicated region
        $region76: #{latent_discriminator_forward.2} parent=54 // pred_check
          %p4383 = pneg %p4382
        $region77: #{latent_discriminator_forward.2} parent=54 // pred_check_branch
          %4385 = sbr.rel (%p4383) target = $region79
        $region78: #{latent_discriminator_forward.2} parent=54 // pred_region
          %v4386 = vld [vmem:[%s403] sm:$0xff]
          %v4387 = vld [vmem:[%s403 + $0x8] sm:$0xff]
          %v4388 = vld [vmem:[%s403 + $0x10] sm:$0xff]
          %v4389 = vld [vmem:[%s403 + $0x18] sm:$0xff]
          %v4390 = vld [vmem:[%s357] sm:$0x3]
          %v4392 = vlaneseq
          %v4393 = vshrl.u32 %v4392, 7
          %v4394 = vsub.s32 0, %v4393
          %v4395 = vrot.slane %v4390, %v4394
          %v4396 = vlaneseq
          %v4397 = vshrl.u32 %v4396, 7
          %v4398 = vsub.s32 1, %v4397
          %v4399 = vrot.slane %v4390, %v4398
          %v4402 = vmul.f32 %v4386, %v4395
          %v4403 = vmul.f32 %v4387, %v4399
          %v4404 = vmul.f32 %v4388, %v4395
          %v4405 = vmul.f32 %v4389, %v4399
          %v4406 = vld [vmem:[%s366] sm:$0x3]
          %v4408 = vlaneseq
          %v4409 = vshrl.u32 %v4408, 7
          %v4410 = vsub.s32 0, %v4409
          %v4411 = vrot.slane %v4406, %v4410
          %v4412 = vlaneseq
          %v4413 = vshrl.u32 %v4412, 7
          %v4414 = vsub.s32 1, %v4413
          %v4415 = vrot.slane %v4406, %v4414
          %v4418 = vadd.f32 %v4402, %v4411
          %v4419 = vadd.f32 %v4403, %v4415
          %v4420 = vadd.f32 %v4404, %v4411
          %v4421 = vadd.f32 %v4405, %v4415
          %vm4422 = vcmp.gt.f32.partialorder %v4418, 0.0
          %vm4423 = vcmp.gt.f32.partialorder %v4419, 0.0
          %vm4424 = vcmp.gt.f32.partialorder %v4420, 0.0
          %vm4425 = vcmp.gt.f32.partialorder %v4421, 0.0
          %v4426 = vmul.f32 %v4418, 0.2
          %v4427 = vmul.f32 %v4419, 0.2
          %v4428 = vmul.f32 %v4420, 0.2
          %v4429 = vmul.f32 %v4421, 0.2
          %v4430 = vsel %vm4422, %v4418, %v4426
          %v4431 = vsel %vm4423, %v4419, %v4427
          %v4432 = vsel %vm4424, %v4420, %v4428
          %v4433 = vsel %vm4425, %v4421, %v4429
          %4434 = vst [vmem:[%s403] sm:$0xff] %v4430
          %4435 = vst [vmem:[%s403 + $0x8] sm:$0xff] %v4431
          %4436 = vst [vmem:[%s403 + $0x10] sm:$0xff] %v4432
          %4437 = vst [vmem:[%s403 + $0x18] sm:$0xff] %v4433
        $region79: #{latent_discriminator_forward.2} parent=54 // pred_fallthru
          _
        %s4438 = sand.u32 %s147, 1
        %s4439 = sand.u32 %s147, 1
        %s4440 = smul.addr %s4439, 32
        %s4441 = scalar_lea.vmem [#allocation8], %s4440
        // Predicated region
        $region80: #{latent_discriminator_forward.2} parent=54 // pred_check
          %p4442 = pneg %p157
        $region81: #{latent_discriminator_forward.2} parent=54 // pred_check_branch
          %4444 = sbr.rel (%p4442) target = $region83
        $region82: #{latent_discriminator_forward.2} parent=54 // pred_region
          %s4445 = smul.u32 2, %s25
          %s4446 = smul.addr %s4445, 8
          %s4447 = scalar_lea.vmem %s4, %s4446
          // Predicated region
          $region84: #{latent_discriminator_forward.2} parent=82 // pred_check
            _
          $region85: #{latent_discriminator_forward.2} parent=82 // pred_check_branch
            %4449 = sbr.rel (0) target = $region87
          $region86: #{latent_discriminator_forward.2} parent=82 // pred_region
            // Predicated region
            $region88: #{latent_discriminator_forward.2} parent=86 // pred_check
              _
            $region89: #{latent_discriminator_forward.2} parent=86 // pred_check_branch
              %4451 = sbr.rel (0) target = $region91
            $region90: #{latent_discriminator_forward.2} parent=86 // pred_region
              loop: start=0, step=1, limit=1
              $region92: #{latent_discriminator_forward.2} parent=90 // loop_pre_header
                _
              $region93: #{latent_discriminator_forward.2} parent=90 // loop_header
                %s4453 = sphi 0, %s4457
                %p4454 = scmp.ge.s32.totalorder %s4453, 1
                %s4458 = sphi %s4441, %s4441
                %s4459 = sphi %s4447, %s4447
              $region94: #{latent_discriminator_forward.2} parent=90 // loop_header_branch
                %4456 = sbr.rel (%p4454) target = $region98
              $region95: #{latent_discriminator_forward.2} parent=90 // loop_body
                %v4460 = vld [vmem:[%s4458] sm:$0xff]
                %4461 = vst [vmem:[%s4459] sm:$0xff] %v4460
                %v4462 = vld [vmem:[%s4458 + $0x8] sm:$0xff]
                %4463 = vst [vmem:[%s4459 + $0x8] sm:$0xff] %v4462
                %v4464 = vld [vmem:[%s4458 + $0x10] sm:$0xff]
                %4465 = vst [vmem:[%s4459 + $0x20] sm:$0xff] %v4464
                %v4466 = vld [vmem:[%s4458 + $0x18] sm:$0xff]
                %4467 = vst [vmem:[%s4459 + $0x28] sm:$0xff] %v4466
              $region96: #{latent_discriminator_forward.2} parent=90 // loop_footer
                %s4457 = sadd.s32 1, %s4453
              $region97: #{latent_discriminator_forward.2} parent=90 // loop_footer_branch
                %4452 = sbr.rel target = $region93
              $region98: #{latent_discriminator_forward.2} parent=90 // loop_exit
                _
            $region91: #{latent_discriminator_forward.2} parent=86 // pred_fallthru
              _
            // Predicated region
            $region99: #{latent_discriminator_forward.2} parent=86 // pred_check
              _
            $region100: #{latent_discriminator_forward.2} parent=86 // pred_check_branch
              %4469 = sbr.rel target = $region102
            $region101: #{latent_discriminator_forward.2} parent=86 // pred_region
              _
            $region102: #{latent_discriminator_forward.2} parent=86 // pred_fallthru
              _
          $region87: #{latent_discriminator_forward.2} parent=82 // pred_fallthru
            _
          %4470 = vnop
        $region83: #{latent_discriminator_forward.2} parent=54 // pred_fallthru
          _
      $region55: #{latent_discriminator_forward.2} parent=5 // pred_fallthru
        _
      %p4471 = scmp.le.s32.totalorder 2, %s16
      // Predicated region
      $region103: #{latent_discriminator_forward.2} parent=5 // pred_check
        %p4472 = pneg %p4471
      $region104: #{latent_discriminator_forward.2} parent=5 // pred_check_branch
        %4474 = sbr.rel (%p4472) target = $region106
      $region105: #{latent_discriminator_forward.2} parent=5 // pred_region
        %s4475 = ssub.s32 %s16, 2
        // Predicated region
        $region107: #{latent_discriminator_forward.2} parent=105 // pred_check
          %p4476 = pneg %p163
        $region108: #{latent_discriminator_forward.2} parent=105 // pred_check_branch
          %4478 = sbr.rel (%p4476) target = $region110
        $region109: #{latent_discriminator_forward.2} parent=105 // pred_region
          %s4479 = sand.u32 %s148, 1
          %s4480 = sand.u32 %s148, 1
          %s4481 = smul.addr %s4480, 32
          %s4482 = scalar_lea.vmem [#allocation8], %s4481
        $region110: #{latent_discriminator_forward.2} parent=105 // pred_fallthru
          _
      $region106: #{latent_discriminator_forward.2} parent=5 // pred_fallthru
        _
    $region6: #{latent_discriminator_forward.2} parent=1 // loop_footer
      %s20 = sadd.s32 1, %s16
    $region7: #{latent_discriminator_forward.2} parent=1 // loop_footer_branch
      %15 = sbr.rel target = $region3
    $region8: #{latent_discriminator_forward.2} parent=1 // loop_exit
      _
    %4483 = vsyncpa [#allocation4], 1
    %s4484 = scalar_lea.sflag [#allocation4], 1
    %4485 = vsyncpa %s4484, 1
    %4486 = vsyncpa [#allocation6], 1
    %s4487 = scalar_lea.sflag [#allocation6], 1
    %4488 = vsyncpa %s4487, 1

// kernel: latent_discriminator_forward.3
$region0: #{latent_discriminator_forward.3}
  #allocation0 [shape = 'u32[]', space=smem, size = 0x4, offset = 0x4, fixed_abs, tag = 'smem constant byte address 0x4 - core index']
  #allocation1 [shape = 'u32[144,128]{1,0:T(1,128)}', space=vmem, size = 0x12000, scoped, tag = 'internal scratch']
  #allocation2 [shape = 'f32[16,512]{1,0:T(8,128)}', space=vmem, size = 0x8000, scoped, tag = 'scratch operand']
  %s0 = inlined_call_operand.vmem [shape: bf16[16,8192], index: 0, kind: input, shape index: {}]
  %s1 = inlined_call_operand.vmem [shape: bf16[8192,512], index: 1, kind: input, shape index: {}]
  %s2 = inlined_call_operand.vmem [shape: f32[1,512], index: 2, kind: input, shape index: {}]
  %s3 = inlined_call_operand.vmem [shape: f32[1,512], index: 3, kind: input, shape index: {}]
  %s4 = inlined_call_operand.vmem [shape: bf16[512,512], index: 4, kind: input, shape index: {}]
  %s5 = inlined_call_operand.vmem [shape: f32[1,512], index: 5, kind: input, shape index: {}]
  %s6 = inlined_call_operand.vmem [shape: bf16[512,128], index: 6, kind: input, shape index: {}]
  %s7 = inlined_call_operand.vmem [shape: f32[1,128], index: 7, kind: input, shape index: {}]
  %s8 = inlined_call_operand.vmem [shape: f32[16,128], index: 8, kind: output, shape index: {}]
  %s9 = sld [smem:[#allocation0]]
  $region96: #{latent_discriminator_forward.3} parent=0
    _
  %s11 = ssub.s32 1, %s9
  %s12 = scalar_select 0, %s11, %s9
  $region1: #{latent_discriminator_forward.3} parent=0
    #allocation3 [shape = 'u8[131072]{0}', space=vmem, size = 0x20000, scoped, tag = 'input window, operand 0']
    loop: start=0, step=1, limit=6
    $region2: #{latent_discriminator_forward.3} parent=1 // loop_pre_header
      _
    $region3: #{latent_discriminator_forward.3} parent=1 // loop_header
      %s14 = sphi 0, %s18
      %p15 = scmp.ge.s32.totalorder %s14, 6
      %s24 = sphi 0, %s26
      %s27 = sphi 0, %s24
      %s28 = sphi 0, %s27
      %s44 = sphi 0, %s28
      %s50 = sphi 0, %s52
      %s53 = sphi 0, %s50
      %s54 = sphi 0, %s53
      %s70 = sphi 0, %s54
      %s74 = sphi 0, %s74
      %s76 = sphi 0, %s74
      %s77 = sphi 0, %s76
      %s91 = sphi 0, %s77
      %s95 = sphi 0, %s95
      %s97 = sphi 0, %s95
      %s98 = sphi 0, %s97
      %s112 = sphi 0, %s98
      %s116 = sphi 0, %s116
      %s118 = sphi 0, %s116
      %s119 = sphi 0, %s118
      %s133 = sphi 0, %s119
      %s137 = sphi 0, %s137
      %s139 = sphi 0, %s137
      %s140 = sphi 0, %s139
      %s154 = sphi 0, %s140
      %s158 = sphi 0, %s158
      %s160 = sphi 0, %s158
      %s161 = sphi 0, %s160
      %s175 = sphi 0, %s161
      %s179 = sphi 0, %s179
      %s181 = sphi 0, %s179
      %s182 = sphi 0, %s181
      %s196 = sphi 0, %s182
      %s200 = sphi 0, %s200
      %s202 = sphi 0, %s200
      %s203 = sphi 0, %s202
      %s217 = sphi 0, %s203
    $region4: #{latent_discriminator_forward.3} parent=1 // loop_header_branch
      %17 = sbr.rel (%p15) target = $region8
    $region5: #{latent_discriminator_forward.3} parent=1 // loop_body
      %s19 = ssub.s32 %s14, 1
      %s20 = ssub.s32 %s14, 2
      %s21 = sadd.s32 %s14, 1
      %s22 = ssub.s32 %s14, %s21
      %p23 = scmp.eq.s32.totalorder %s22, 0
      %s25 = sadd.s32 %s24, 1
      %s26 = scalar_select %p23, %s24, %s25
      %p29 = pneg %p23
      %p30 = scmp.eq.s32.totalorder %s14, 3
      %p31 = por %p29, %p30
      %p32 = scmp.ne.s32.totalorder %s24, %s27
      %p33 = scmp.eq.s32.totalorder %s14, 0
      %p34 = por %p32, %p33
      %p35 = scmp.ne.s32.totalorder %s24, %s27
      %p36 = scmp.eq.s32.totalorder %s19, 3
      %p37 = por %p35, %p36
      %p38 = scmp.ne.s32.totalorder %s27, %s28
      %p39 = scmp.eq.s32.totalorder %s19, 0
      %p40 = por %p38, %p39
      %p41 = scmp.ne.s32.totalorder %s27, %s28
      %p42 = scmp.eq.s32.totalorder %s20, 3
      %p43 = por %p41, %p42
      %p45 = scmp.ne.s32.totalorder %s28, %s44
      %p46 = scmp.eq.s32.totalorder %s20, 0
      %p47 = por %p45, %p46
      %s48 = ssub.s32 %s14, %s21
      %p49 = scmp.eq.s32.totalorder %s48, 0
      %s51 = sadd.s32 %s50, 1
      %s52 = scalar_select %p49, %s50, %s51
      %p55 = pneg %p49
      %p56 = scmp.eq.s32.totalorder %s14, 3
      %p57 = por %p55, %p56
      %p58 = scmp.ne.s32.totalorder %s50, %s53
      %p59 = scmp.eq.s32.totalorder %s14, 0
      %p60 = por %p58, %p59
      %p61 = scmp.ne.s32.totalorder %s50, %s53
      %p62 = scmp.eq.s32.totalorder %s19, 3
      %p63 = por %p61, %p62
      %p64 = scmp.ne.s32.totalorder %s53, %s54
      %p65 = scmp.eq.s32.totalorder %s19, 0
      %p66 = por %p64, %p65
      %p67 = scmp.ne.s32.totalorder %s53, %s54
      %p68 = scmp.eq.s32.totalorder %s20, 3
      %p69 = por %p67, %p68
      %p71 = scmp.ne.s32.totalorder %s54, %s70
      %p72 = scmp.eq.s32.totalorder %s20, 0
      %p73 = por %p71, %p72
      %s75 = sadd.s32 %s74, 1
      %p78 = scmp.eq.s32.totalorder %s14, 3
      %p79 = scmp.ne.s32.totalorder %s74, %s76
      %p80 = scmp.eq.s32.totalorder %s14, 0
      %p81 = por %p79, %p80
      %p82 = scmp.ne.s32.totalorder %s74, %s76
      %p83 = scmp.eq.s32.totalorder %s19, 3
      %p84 = por %p82, %p83
      %p85 = scmp.ne.s32.totalorder %s76, %s77
      %p86 = scmp.eq.s32.totalorder %s19, 0
      %p87 = por %p85, %p86
      %p88 = scmp.ne.s32.totalorder %s76, %s77
      %p89 = scmp.eq.s32.totalorder %s20, 3
      %p90 = por %p88, %p89
      %p92 = scmp.ne.s32.totalorder %s77, %s91
      %p93 = scmp.eq.s32.totalorder %s20, 0
      %p94 = por %p92, %p93
      %s96 = sadd.s32 %s95, 1
      %p99 = scmp.eq.s32.totalorder %s14, 3
      %p100 = scmp.ne.s32.totalorder %s95, %s97
      %p101 = scmp.eq.s32.totalorder %s14, 0
      %p102 = por %p100, %p101
      %p103 = scmp.ne.s32.totalorder %s95, %s97
      %p104 = scmp.eq.s32.totalorder %s19, 3
      %p105 = por %p103, %p104
      %p106 = scmp.ne.s32.totalorder %s97, %s98
      %p107 = scmp.eq.s32.totalorder %s19, 0
      %p108 = por %p106, %p107
      %p109 = scmp.ne.s32.totalorder %s97, %s98
      %p110 = scmp.eq.s32.totalorder %s20, 3
      %p111 = por %p109, %p110
      %p113 = scmp.ne.s32.totalorder %s98, %s112
      %p114 = scmp.eq.s32.totalorder %s20, 0
      %p115 = por %p113, %p114
      %s117 = sadd.s32 %s116, 1
      %p120 = scmp.eq.s32.totalorder %s14, 3
      %p121 = scmp.ne.s32.totalorder %s116, %s118
      %p122 = scmp.eq.s32.totalorder %s14, 0
      %p123 = por %p121, %p122
      %p124 = scmp.ne.s32.totalorder %s116, %s118
      %p125 = scmp.eq.s32.totalorder %s19, 3
      %p126 = por %p124, %p125
      %p127 = scmp.ne.s32.totalorder %s118, %s119
      %p128 = scmp.eq.s32.totalorder %s19, 0
      %p129 = por %p127, %p128
      %p130 = scmp.ne.s32.totalorder %s118, %s119
      %p131 = scmp.eq.s32.totalorder %s20, 3
      %p132 = por %p130, %p131
      %p134 = scmp.ne.s32.totalorder %s119, %s133
      %p135 = scmp.eq.s32.totalorder %s20, 0
      %p136 = por %p134, %p135
      %s138 = sadd.s32 %s137, 1
      %p141 = scmp.eq.s32.totalorder %s14, 3
      %p142 = scmp.ne.s32.totalorder %s137, %s139
      %p143 = scmp.eq.s32.totalorder %s14, 0
      %p144 = por %p142, %p143
      %p145 = scmp.ne.s32.totalorder %s137, %s139
      %p146 = scmp.eq.s32.totalorder %s19, 3
      %p147 = por %p145, %p146
      %p148 = scmp.ne.s32.totalorder %s139, %s140
      %p149 = scmp.eq.s32.totalorder %s19, 0
      %p150 = por %p148, %p149
      %p151 = scmp.ne.s32.totalorder %s139, %s140
      %p152 = scmp.eq.s32.totalorder %s20, 3
      %p153 = por %p151, %p152
      %p155 = scmp.ne.s32.totalorder %s140, %s154
      %p156 = scmp.eq.s32.totalorder %s20, 0
      %p157 = por %p155, %p156
      %s159 = sadd.s32 %s158, 1
      %p162 = scmp.eq.s32.totalorder %s14, 3
      %p163 = scmp.ne.s32.totalorder %s158, %s160
      %p164 = scmp.eq.s32.totalorder %s14, 0
      %p165 = por %p163, %p164
      %p166 = scmp.ne.s32.totalorder %s158, %s160
      %p167 = scmp.eq.s32.totalorder %s19, 3
      %p168 = por %p166, %p167
      %p169 = scmp.ne.s32.totalorder %s160, %s161
      %p170 = scmp.eq.s32.totalorder %s19, 0
      %p171 = por %p169, %p170
      %p172 = scmp.ne.s32.totalorder %s160, %s161
      %p173 = scmp.eq.s32.totalorder %s20, 3
      %p174 = por %p172, %p173
      %p176 = scmp.ne.s32.totalorder %s161, %s175
      %p177 = scmp.eq.s32.totalorder %s20, 0
      %p178 = por %p176, %p177
      %s180 = sadd.s32 %s179, 1
      %p183 = scmp.eq.s32.totalorder %s14, 3
      %p184 = scmp.ne.s32.totalorder %s179, %s181
      %p185 = scmp.eq.s32.totalorder %s14, 0
      %p186 = por %p184, %p185
      %p187 = scmp.ne.s32.totalorder %s179, %s181
      %p188 = scmp.eq.s32.totalorder %s19, 3
      %p189 = por %p187, %p188
      %p190 = scmp.ne.s32.totalorder %s181, %s182
      %p191 = scmp.eq.s32.totalorder %s19, 0
      %p192 = por %p190, %p191
      %p193 = scmp.ne.s32.totalorder %s181, %s182
      %p194 = scmp.eq.s32.totalorder %s20, 3
      %p195 = por %p193, %p194
      %p197 = scmp.ne.s32.totalorder %s182, %s196
      %p198 = scmp.eq.s32.totalorder %s20, 0
      %p199 = por %p197, %p198
      %s201 = sadd.s32 %s200, 1
      %p204 = scmp.eq.s32.totalorder %s14, 3
      %p205 = scmp.ne.s32.totalorder %s200, %s202
      %p206 = scmp.eq.s32.totalorder %s14, 0
      %p207 = por %p205, %p206
      %p208 = scmp.ne.s32.totalorder %s200, %s202
      %p209 = scmp.eq.s32.totalorder %s19, 3
      %p210 = por %p208, %p209
      %p211 = scmp.ne.s32.totalorder %s202, %s203
      %p212 = scmp.eq.s32.totalorder %s19, 0
      %p213 = por %p211, %p212
      %p214 = scmp.ne.s32.totalorder %s202, %s203
      %p215 = scmp.eq.s32.totalorder %s20, 3
      %p216 = por %p214, %p215
      %p218 = scmp.ne.s32.totalorder %s203, %s217
      %p219 = scmp.eq.s32.totalorder %s20, 0
      %p220 = por %p218, %p219
      %p221 = scmp.le.s32.totalorder 1, %s14
      %p222 = scmp.lt.s32.totalorder %s14, 5
      %p223 = pnand %p221, %p222
      %p224 = pneg %p223
      // Predicated region
      $region9: #{latent_discriminator_forward.3} parent=5 // pred_check
        _
      $region10: #{latent_discriminator_forward.3} parent=5 // pred_check_branch
        %226 = sbr.rel (%p223) target = $region12
      $region11: #{latent_discriminator_forward.3} parent=5 // pred_region
        %s227 = ssub.s32 %s14, 1
        // Predicated region
        $region13: #{latent_discriminator_forward.3} parent=11 // pred_check
          %p228 = pneg %p87
        $region14: #{latent_discriminator_forward.3} parent=11 // pred_check_branch
          %230 = sbr.rel (%p228) target = $region16
        $region15: #{latent_discriminator_forward.3} parent=11 // pred_region
          _
        $region16: #{latent_discriminator_forward.3} parent=11 // pred_fallthru
          _
        // Predicated region
        $region17: #{latent_discriminator_forward.3} parent=11 // pred_check
          %p231 = pneg %p108
        $region18: #{latent_discriminator_forward.3} parent=11 // pred_check_branch
          %233 = sbr.rel (%p231) target = $region20
        $region19: #{latent_discriminator_forward.3} parent=11 // pred_region
          _
        $region20: #{latent_discriminator_forward.3} parent=11 // pred_fallthru
          _
        // Predicated region
        $region21: #{latent_discriminator_forward.3} parent=11 // pred_check
          %p234 = pneg %p129
        $region22: #{latent_discriminator_forward.3} parent=11 // pred_check_branch
          %236 = sbr.rel (%p234) target = $region24
        $region23: #{latent_discriminator_forward.3} parent=11 // pred_region
          _
        $region24: #{latent_discriminator_forward.3} parent=11 // pred_fallthru
          _
        // Predicated region
        $region25: #{latent_discriminator_forward.3} parent=11 // pred_check
          %p237 = pneg %p150
        $region26: #{latent_discriminator_forward.3} parent=11 // pred_check_branch
          %239 = sbr.rel (%p237) target = $region28
        $region27: #{latent_discriminator_forward.3} parent=11 // pred_region
          _
        $region28: #{latent_discriminator_forward.3} parent=11 // pred_fallthru
          _
        // Predicated region
        $region29: #{latent_discriminator_forward.3} parent=11 // pred_check
          %p240 = pneg %p171
        $region30: #{latent_discriminator_forward.3} parent=11 // pred_check_branch
          %242 = sbr.rel (%p240) target = $region32
        $region31: #{latent_discriminator_forward.3} parent=11 // pred_region
          _
        $region32: #{latent_discriminator_forward.3} parent=11 // pred_fallthru
          _
        // Predicated region
        $region33: #{latent_discriminator_forward.3} parent=11 // pred_check
          %p243 = pneg %p192
        $region34: #{latent_discriminator_forward.3} parent=11 // pred_check_branch
          %245 = sbr.rel (%p243) target = $region36
        $region35: #{latent_discriminator_forward.3} parent=11 // pred_region
          _
        $region36: #{latent_discriminator_forward.3} parent=11 // pred_fallthru
          _
      $region12: #{latent_discriminator_forward.3} parent=5 // pred_fallthru
        _
      %p246 = scmp.lt.s32.totalorder %s14, 4
      // Predicated region
      $region37: #{latent_discriminator_forward.3} parent=5 // pred_check
        %p247 = pneg %p246
      $region38: #{latent_discriminator_forward.3} parent=5 // pred_check_branch
        %249 = sbr.rel (%p247) target = $region40
      $region39: #{latent_discriminator_forward.3} parent=5 // pred_region
        // Predicated region
        $region41: #{latent_discriminator_forward.3} parent=39 // pred_check
          %p250 = pneg %p34
        $region42: #{latent_discriminator_forward.3} parent=39 // pred_check_branch
          %252 = sbr.rel (%p250) target = $region44
        $region43: #{latent_discriminator_forward.3} parent=39 // pred_region
          %s253 = sand.u32 %s24, 1
          %s254 = sand.u32 %s24, 1
          %s255 = smul.addr %s254, 128
          %s256 = scalar_lea.vmem [#allocation3], %s255
          %s257 = smul.u32 16, %s14
          %s258 = smul.addr %s257, 4
          %s259 = scalar_lea.vmem %s0, %s258
          // Predicated region
          $region45: #{latent_discriminator_forward.3} parent=43 // pred_check
            _
          $region46: #{latent_discriminator_forward.3} parent=43 // pred_check_branch
            %261 = sbr.rel (0) target = $region48
          $region47: #{latent_discriminator_forward.3} parent=43 // pred_region
            // Predicated region
            $region49: #{latent_discriminator_forward.3} parent=47 // pred_check
              _
            $region50: #{latent_discriminator_forward.3} parent=47 // pred_check_branch
              %263 = sbr.rel (0) target = $region52
            $region51: #{latent_discriminator_forward.3} parent=47 // pred_region
              loop: start=0, step=1, limit=1
              $region53: #{latent_discriminator_forward.3} parent=51 // loop_pre_header
                _
              $region54: #{latent_discriminator_forward.3} parent=51 // loop_header
                %s265 = sphi 0, %s269
                %p266 = scmp.ge.s32.totalorder %s265, 1
                %s270 = sphi %s259, %s259
                %s271 = sphi %s256, %s256
              $region55: #{latent_discriminator_forward.3} parent=51 // loop_header_branch
                %268 = sbr.rel (%p266) target = $region59
              $region56: #{latent_discriminator_forward.3} parent=51 // loop_body
                %v272 = vld [vmem:[%s270] sm:$0xff]
                %273 = vst [vmem:[%s271] sm:$0xff] %v272
                %v274 = vld [vmem:[%s270 + $0x8] sm:$0xff]
                %275 = vst [vmem:[%s271 + $0x8] sm:$0xff] %v274
                %v276 = vld [vmem:[%s270 + $0x10] sm:$0xff]
                %277 = vst [vmem:[%s271 + $0x10] sm:$0xff] %v276
                %v278 = vld [vmem:[%s270 + $0x18] sm:$0xff]
                %279 = vst [vmem:[%s271 + $0x18] sm:$0xff] %v278
                %v280 = vld [vmem:[%s270 + $0x20] sm:$0xff]
                %281 = vst [vmem:[%s271 + $0x20] sm:$0xff] %v280
                %v282 = vld [vmem:[%s270 + $0x28] sm:$0xff]
                %283 = vst [vmem:[%s271 + $0x28] sm:$0xff] %v282
                %v284 = vld [vmem:[%s270 + $0x30] sm:$0xff]
                %285 = vst [vmem:[%s271 + $0x30] sm:$0xff] %v284
                %v286 = vld [vmem:[%s270 + $0x38] sm:$0xff]
                %287 = vst [vmem:[%s271 + $0x38] sm:$0xff] %v286
                %v288 = vld [vmem:[%s270 + $0x100] sm:$0xff]
                %289 = vst [vmem:[%s271 + $0x40] sm:$0xff] %v288
                %v290 = vld [vmem:[%s270 + $0x108] sm:$0xff]
                %291 = vst [vmem:[%s271 + $0x48] sm:$0xff] %v290
                %v292 = vld [vmem:[%s270 + $0x110] sm:$0xff]
                %293 = vst [vmem:[%s271 + $0x50] sm:$0xff] %v292
                %v294 = vld [vmem:[%s270 + $0x118] sm:$0xff]
                %295 = vst [vmem:[%s271 + $0x58] sm:$0xff] %v294
                %v296 = vld [vmem:[%s270 + $0x120] sm:$0xff]
                %297 = vst [vmem:[%s271 + $0x60] sm:$0xff] %v296
                %v298 = vld [vmem:[%s270 + $0x128] sm:$0xff]
                %299 = vst [vmem:[%s271 + $0x68] sm:$0xff] %v298
                %v300 = vld [vmem:[%s270 + $0x130] sm:$0xff]
                %301 = vst [vmem:[%s271 + $0x70] sm:$0xff] %v300
                %v302 = vld [vmem:[%s270 + $0x138] sm:$0xff]
                %303 = vst [vmem:[%s271 + $0x78] sm:$0xff] %v302
              $region57: #{latent_discriminator_forward.3} parent=51 // loop_footer
                %s269 = sadd.s32 1, %s265
              $region58: #{latent_discriminator_forward.3} parent=51 // loop_footer_branch
                %264 = sbr.rel target = $region54
              $region59: #{latent_discriminator_forward.3} parent=51 // loop_exit
                _
            $region52: #{latent_discriminator_forward.3} parent=47 // pred_fallthru
              _
            // Predicated region
            $region60: #{latent_discriminator_forward.3} parent=47 // pred_check
              _
            $region61: #{latent_discriminator_forward.3} parent=47 // pred_check_branch
              %305 = sbr.rel target = $region63
            $region62: #{latent_discriminator_forward.3} parent=47 // pred_region
              _
            $region63: #{latent_discriminator_forward.3} parent=47 // pred_fallthru
              _
          $region48: #{latent_discriminator_forward.3} parent=43 // pred_fallthru
            _
          %306 = vnop
        $region44: #{latent_discriminator_forward.3} parent=39 // pred_fallthru
          _
        // Predicated region
        $region64: #{latent_discriminator_forward.3} parent=39 // pred_check
          %p307 = pneg %p60
        $region65: #{latent_discriminator_forward.3} parent=39 // pred_check_branch
          %309 = sbr.rel (%p307) target = $region67
        $region66: #{latent_discriminator_forward.3} parent=39 // pred_region
          %s310 = smul.u32 256, %s14
          %p311 = scmp.lt.s32.totalorder %s310, 1023
          %s312 = scalar_select %p311, %s310, 1023
          %s313 = smul.addr %s312, 4
          %s314 = smul.addr %s313, 4
          %s315 = scalar_lea.vmem %s1, %s314
          %s316 = smul.u32 256, %s14
        $region67: #{latent_discriminator_forward.3} parent=39 // pred_fallthru
          _
      $region40: #{latent_discriminator_forward.3} parent=5 // pred_fallthru
        _
      %p317 = scmp.le.s32.totalorder 1, %s14
      %p318 = scmp.lt.s32.totalorder %s14, 5
      %p319 = pnand %p317, %p318
      %p320 = pneg %p319
      // Predicated region
      $region68: #{latent_discriminator_forward.3} parent=5 // pred_check
        _
      $region69: #{latent_discriminator_forward.3} parent=5 // pred_check_branch
        %322 = sbr.rel (%p319) target = $region71
      $region70: #{latent_discriminator_forward.3} parent=5 // pred_region
        %s323 = ssub.s32 %s14, 1
        %s324 = sand.u32 %s27, 1
        %s325 = sand.u32 %s27, 1
        %s326 = smul.addr %s325, 128
        %s327 = scalar_lea.vmem [#allocation3], %s326
        // Predicated region
        $region72: #{latent_discriminator_forward.3} parent=70 // pred_check
          %p328 = pneg %p40
        $region73: #{latent_discriminator_forward.3} parent=70 // pred_check_branch
          %330 = sbr.rel (%p328) target = $region75
        $region74: #{latent_discriminator_forward.3} parent=70 // pred_region
          _
        $region75: #{latent_discriminator_forward.3} parent=70 // pred_fallthru
          _
        %s331 = sand.u32 %s27, 1
        %s332 = sand.u32 %s27, 1
        %s333 = smul.addr %s332, 128
        %s334 = scalar_lea.vmem [#allocation3], %s333
        %p335 = pneg %p40
        %p336 = pneg %p37
        %s337 = smul.u32 256, %s19
        %p338 = scmp.lt.s32.totalorder %s337, 1023
        %s339 = scalar_select %p338, %s337, 1023
        %s340 = smul.addr %s339, 4
        %s341 = smul.addr %s340, 4
        %s342 = scalar_lea.vmem %s1, %s341
        %p343 = pneg %p66
        %p344 = pneg %p63
        %p345 = pneg %p87
        %p346 = pneg %p84
        %p347 = pneg %p108
        %p348 = pneg %p105
        %p349 = pneg %p129
        %p350 = pneg %p126
        %p351 = pneg %p150
        %p352 = pneg %p147
        %p353 = pneg %p171
        %p354 = pneg %p168
        %p355 = pneg %p192
        %p356 = pneg %p189
        %p357 = pneg %p213
        %p358 = pneg %p210
        %s359 = smul.u32 16, %s19
        %s360 = smul.u32 256, %s19
        %p361 = scmp.lt.s32.totalorder %s360, 1023
        %s362 = scalar_select %p361, %s360, 1023
        %s363 = smul.addr %s362, 4
        %s364 = smul.addr %s363, 4
        %s365 = scalar_lea.vmem %s1, %s364
        %s366 = smul.u32 256, %s19
        %p368 = scmp.eq.s32.totalorder %s19, 0
        // Predicated region
        $region76: #{latent_discriminator_forward.3} parent=70 // pred_check
          %p369 = pneg %p368
        $region77: #{latent_discriminator_forward.3} parent=70 // pred_check_branch
          %371 = sbr.rel (%p369) target = $region79
        $region78: #{latent_discriminator_forward.3} parent=70 // pred_region
          %372 = vst [vmem:[#allocation2] sm:$0xff] 0.0
          %373 = vst [vmem:[#allocation2 + $0x8] sm:$0xff] 0.0
          %374 = vst [vmem:[#allocation2 + $0x10] sm:$0xff] 0.0
          %375 = vst [vmem:[#allocation2 + $0x18] sm:$0xff] 0.0
          %376 = vst [vmem:[#allocation2 + $0x20] sm:$0xff] 0.0
          %377 = vst [vmem:[#allocation2 + $0x28] sm:$0xff] 0.0
          %378 = vst [vmem:[#allocation2 + $0x30] sm:$0xff] 0.0
          %379 = vst [vmem:[#allocation2 + $0x38] sm:$0xff] 0.0
        $region79: #{latent_discriminator_forward.3} parent=70 // pred_fallthru
          _
        %v380 = vld [vmem:[#allocation2] sm:$0xff]
        %v381 = vld [vmem:[#allocation2 + $0x8] sm:$0xff]
        %v382 = vld [vmem:[#allocation2 + $0x10] sm:$0xff]
        %v383 = vld [vmem:[#allocation2 + $0x18] sm:$0xff]
        %v384 = vld [vmem:[#allocation2 + $0x20] sm:$0xff]
        %v385 = vld [vmem:[#allocation2 + $0x28] sm:$0xff]
        %v386 = vld [vmem:[#allocation2 + $0x30] sm:$0xff]
        %v387 = vld [vmem:[#allocation2 + $0x38] sm:$0xff]
        %v388 = vld [vmem:[%s327] sm:$0xff]
        %v389 = vld [vmem:[%s327 + $0x8] sm:$0xff]
        %v390 = vld [vmem:[%s327 + $0x10] sm:$0xff]
        %v391 = vld [vmem:[%s327 + $0x18] sm:$0xff]
        %v392 = vld [vmem:[%s327 + $0x20] sm:$0xff]
        %v393 = vld [vmem:[%s327 + $0x28] sm:$0xff]
        %v394 = vld [vmem:[%s327 + $0x30] sm:$0xff]
        %v395 = vld [vmem:[%s327 + $0x38] sm:$0xff]
        %v396 = vld [vmem:[%s327 + $0x40] sm:$0xff]
        %v397 = vld [vmem:[%s327 + $0x48] sm:$0xff]
        %v398 = vld [vmem:[%s327 + $0x50] sm:$0xff]
        %v399 = vld [vmem:[%s327 + $0x58] sm:$0xff]
        %v400 = vld [vmem:[%s327 + $0x60] sm:$0xff]
        %v401 = vld [vmem:[%s327 + $0x68] sm:$0xff]
        %v402 = vld [vmem:[%s327 + $0x70] sm:$0xff]
        %v403 = vld [vmem:[%s327 + $0x78] sm:$0xff]
        %v404 = vld [vmem:[%s365] sm:$0xff]
        %v405 = vld [vmem:[%s365 + $0x8] sm:$0xff]
        %v406 = vld [vmem:[%s365 + $0x10] sm:$0xff]
        %v407 = vld [vmem:[%s365 + $0x18] sm:$0xff]
        %v408 = vld [vmem:[%s365 + $0x20] sm:$0xff]
        %v409 = vld [vmem:[%s365 + $0x28] sm:$0xff]
        %v410 = vld [vmem:[%s365 + $0x30] sm:$0xff]
        %v411 = vld [vmem:[%s365 + $0x38] sm:$0xff]
        %v412 = vld [vmem:[%s365 + $0x40] sm:$0xff]
        %v413 = vld [vmem:[%s365 + $0x48] sm:$0xff]
        %v414 = vld [vmem:[%s365 + $0x50] sm:$0xff]
        %v415 = vld [vmem:[%s365 + $0x58] sm:$0xff]
        %v416 = vld [vmem:[%s365 + $0x60] sm:$0xff]
        %v417 = vld [vmem:[%s365 + $0x68] sm:$0xff]
        %v418 = vld [vmem:[%s365 + $0x70] sm:$0xff]
        %v419 = vld [vmem:[%s365 + $0x78] sm:$0xff]
        %v420 = vld [vmem:[%s365 + $0x80] sm:$0xff]
        %v421 = vld [vmem:[%s365 + $0x88] sm:$0xff]
        %v422 = vld [vmem:[%s365 + $0x90] sm:$0xff]
        %v423 = vld [vmem:[%s365 + $0x98] sm:$0xff]
        %v424 = vld [vmem:[%s365 + $0xa0] sm:$0xff]
        %v425 = vld [vmem:[%s365 + $0xa8] sm:$0xff]
        %v426 = vld [vmem:[%s365 + $0xb0] sm:$0xff]
        %v427 = vld [vmem:[%s365 + $0xb8] sm:$0xff]
        %v428 = vld [vmem:[%s365 + $0xc0] sm:$0xff]
        %v429 = vld [vmem:[%s365 + $0xc8] sm:$0xff]
        %v430 = vld [vmem:[%s365 + $0xd0] sm:$0xff]
        %v431 = vld [vmem:[%s365 + $0xd8] sm:$0xff]
        %v432 = vld [vmem:[%s365 + $0xe0] sm:$0xff]
        %v433 = vld [vmem:[%s365 + $0xe8] sm:$0xff]
        %v434 = vld [vmem:[%s365 + $0xf0] sm:$0xff]
        %v435 = vld [vmem:[%s365 + $0xf8] sm:$0xff]
        %v436 = vld [vmem:[%s365 + $0x100] sm:$0xff]
        %v437 = vld [vmem:[%s365 + $0x108] sm:$0xff]
        %v438 = vld [vmem:[%s365 + $0x110] sm:$0xff]
        %v439 = vld [vmem:[%s365 + $0x118] sm:$0xff]
        %v440 = vld [vmem:[%s365 + $0x120] sm:$0xff]
        %v441 = vld [vmem:[%s365 + $0x128] sm:$0xff]
        %v442 = vld [vmem:[%s365 + $0x130] sm:$0xff]
        %v443 = vld [vmem:[%s365 + $0x138] sm:$0xff]
        %v444 = vld [vmem:[%s365 + $0x140] sm:$0xff]
        %v445 = vld [vmem:[%s365 + $0x148] sm:$0xff]
        %v446 = vld [vmem:[%s365 + $0x150] sm:$0xff]
        %v447 = vld [vmem:[%s365 + $0x158] sm:$0xff]
        %v448 = vld [vmem:[%s365 + $0x160] sm:$0xff]
        %v449 = vld [vmem:[%s365 + $0x168] sm:$0xff]
        %v450 = vld [vmem:[%s365 + $0x170] sm:$0xff]
        %v451 = vld [vmem:[%s365 + $0x178] sm:$0xff]
        %v452 = vld [vmem:[%s365 + $0x180] sm:$0xff]
        %v453 = vld [vmem:[%s365 + $0x188] sm:$0xff]
        %v454 = vld [vmem:[%s365 + $0x190] sm:$0xff]
        %v455 = vld [vmem:[%s365 + $0x198] sm:$0xff]
        %v456 = vld [vmem:[%s365 + $0x1a0] sm:$0xff]
        %v457 = vld [vmem:[%s365 + $0x1a8] sm:$0xff]
        %v458 = vld [vmem:[%s365 + $0x1b0] sm:$0xff]
        %v459 = vld [vmem:[%s365 + $0x1b8] sm:$0xff]
        %v460 = vld [vmem:[%s365 + $0x1c0] sm:$0xff]
        %v461 = vld [vmem:[%s365 + $0x1c8] sm:$0xff]
        %v462 = vld [vmem:[%s365 + $0x1d0] sm:$0xff]
        %v463 = vld [vmem:[%s365 + $0x1d8] sm:$0xff]
        %v464 = vld [vmem:[%s365 + $0x1e0] sm:$0xff]
        %v465 = vld [vmem:[%s365 + $0x1e8] sm:$0xff]
        %v466 = vld [vmem:[%s365 + $0x1f0] sm:$0xff]
        %v467 = vld [vmem:[%s365 + $0x1f8] sm:$0xff]
        %v468 = vld [vmem:[%s365 + $0x200] sm:$0xff]
        %v469 = vld [vmem:[%s365 + $0x208] sm:$0xff]
        %v470 = vld [vmem:[%s365 + $0x210] sm:$0xff]
        %v471 = vld [vmem:[%s365 + $0x218] sm:$0xff]
        %v472 = vld [vmem:[%s365 + $0x220] sm:$0xff]
        %v473 = vld [vmem:[%s365 + $0x228] sm:$0xff]
        %v474 = vld [vmem:[%s365 + $0x230] sm:$0xff]
        %v475 = vld [vmem:[%s365 + $0x238] sm:$0xff]
        %v476 = vld [vmem:[%s365 + $0x240] sm:$0xff]
        %v477 = vld [vmem:[%s365 + $0x248] sm:$0xff]
        %v478 = vld [vmem:[%s365 + $0x250] sm:$0xff]
        %v479 = vld [vmem:[%s365 + $0x258] sm:$0xff]
        %v480 = vld [vmem:[%s365 + $0x260] sm:$0xff]
        %v481 = vld [vmem:[%s365 + $0x268] sm:$0xff]
        %v482 = vld [vmem:[%s365 + $0x270] sm:$0xff]
        %v483 = vld [vmem:[%s365 + $0x278] sm:$0xff]
        %v484 = vld [vmem:[%s365 + $0x280] sm:$0xff]
        %v485 = vld [vmem:[%s365 + $0x288] sm:$0xff]
        %v486 = vld [vmem:[%s365 + $0x290] sm:$0xff]
        %v487 = vld [vmem:[%s365 + $0x298] sm:$0xff]
        %v488 = vld [vmem:[%s365 + $0x2a0] sm:$0xff]
        %v489 = vld [vmem:[%s365 + $0x2a8] sm:$0xff]
        %v490 = vld [vmem:[%s365 + $0x2b0] sm:$0xff]
        %v491 = vld [vmem:[%s365 + $0x2b8] sm:$0xff]
        %v492 = vld [vmem:[%s365 + $0x2c0] sm:$0xff]
        %v493 = vld [vmem:[%s365 + $0x2c8] sm:$0xff]
        %v494 = vld [vmem:[%s365 + $0x2d0] sm:$0xff]
        %v495 = vld [vmem:[%s365 + $0x2d8] sm:$0xff]
        %v496 = vld [vmem:[%s365 + $0x2e0] sm:$0xff]
        %v497 = vld [vmem:[%s365 + $0x2e8] sm:$0xff]
        %v498 = vld [vmem:[%s365 + $0x2f0] sm:$0xff]
        %v499 = vld [vmem:[%s365 + $0x2f8] sm:$0xff]
        %v500 = vld [vmem:[%s365 + $0x300] sm:$0xff]
        %v501 = vld [vmem:[%s365 + $0x308] sm:$0xff]
        %v502 = vld [vmem:[%s365 + $0x310] sm:$0xff]
        %v503 = vld [vmem:[%s365 + $0x318] sm:$0xff]
        %v504 = vld [vmem:[%s365 + $0x320] sm:$0xff]
        %v505 = vld [vmem:[%s365 + $0x328] sm:$0xff]
        %v506 = vld [vmem:[%s365 + $0x330] sm:$0xff]
        %v507 = vld [vmem:[%s365 + $0x338] sm:$0xff]
        %v508 = vld [vmem:[%s365 + $0x340] sm:$0xff]
        %v509 = vld [vmem:[%s365 + $0x348] sm:$0xff]
        %v510 = vld [vmem:[%s365 + $0x350] sm:$0xff]
        %v511 = vld [vmem:[%s365 + $0x358] sm:$0xff]
        %v512 = vld [vmem:[%s365 + $0x360] sm:$0xff]
        %v513 = vld [vmem:[%s365 + $0x368] sm:$0xff]
        %v514 = vld [vmem:[%s365 + $0x370] sm:$0xff]
        %v515 = vld [vmem:[%s365 + $0x378] sm:$0xff]
        %v516 = vld [vmem:[%s365 + $0x380] sm:$0xff]
        %v517 = vld [vmem:[%s365 + $0x388] sm:$0xff]
        %v518 = vld [vmem:[%s365 + $0x390] sm:$0xff]
        %v519 = vld [vmem:[%s365 + $0x398] sm:$0xff]
        %v520 = vld [vmem:[%s365 + $0x3a0] sm:$0xff]
        %v521 = vld [vmem:[%s365 + $0x3a8] sm:$0xff]
        %v522 = vld [vmem:[%s365 + $0x3b0] sm:$0xff]
        %v523 = vld [vmem:[%s365 + $0x3b8] sm:$0xff]
        %v524 = vld [vmem:[%s365 + $0x3c0] sm:$0xff]
        %v525 = vld [vmem:[%s365 + $0x3c8] sm:$0xff]
        %v526 = vld [vmem:[%s365 + $0x3d0] sm:$0xff]
        %v527 = vld [vmem:[%s365 + $0x3d8] sm:$0xff]
        %v528 = vld [vmem:[%s365 + $0x3e0] sm:$0xff]
        %v529 = vld [vmem:[%s365 + $0x3e8] sm:$0xff]
        %v530 = vld [vmem:[%s365 + $0x3f0] sm:$0xff]
        %v531 = vld [vmem:[%s365 + $0x3f8] sm:$0xff]
        %v532 = vld [vmem:[%s365 + $0x400] sm:$0xff]
        %v533 = vld [vmem:[%s365 + $0x408] sm:$0xff]
        %v534 = vld [vmem:[%s365 + $0x410] sm:$0xff]
        %v535 = vld [vmem:[%s365 + $0x418] sm:$0xff]
        %v536 = vld [vmem:[%s365 + $0x420] sm:$0xff]
        %v537 = vld [vmem:[%s365 + $0x428] sm:$0xff]
        %v538 = vld [vmem:[%s365 + $0x430] sm:$0xff]
        %v539 = vld [vmem:[%s365 + $0x438] sm:$0xff]
        %v540 = vld [vmem:[%s365 + $0x440] sm:$0xff]
        %v541 = vld [vmem:[%s365 + $0x448] sm:$0xff]
        %v542 = vld [vmem:[%s365 + $0x450] sm:$0xff]
        %v543 = vld [vmem:[%s365 + $0x458] sm:$0xff]
        %v544 = vld [vmem:[%s365 + $0x460] sm:$0xff]
        %v545 = vld [vmem:[%s365 + $0x468] sm:$0xff]
        %v546 = vld [vmem:[%s365 + $0x470] sm:$0xff]
        %v547 = vld [vmem:[%s365 + $0x478] sm:$0xff]
        %v548 = vld [vmem:[%s365 + $0x480] sm:$0xff]
        %v549 = vld [vmem:[%s365 + $0x488] sm:$0xff]
        %v550 = vld [vmem:[%s365 + $0x490] sm:$0xff]
        %v551 = vld [vmem:[%s365 + $0x498] sm:$0xff]
        %v552 = vld [vmem:[%s365 + $0x4a0] sm:$0xff]
        %v553 = vld [vmem:[%s365 + $0x4a8] sm:$0xff]
        %v554 = vld [vmem:[%s365 + $0x4b0] sm:$0xff]
        %v555 = vld [vmem:[%s365 + $0x4b8] sm:$0xff]
        %v556 = vld [vmem:[%s365 + $0x4c0] sm:$0xff]
        %v557 = vld [vmem:[%s365 + $0x4c8] sm:$0xff]
        %v558 = vld [vmem:[%s365 + $0x4d0] sm:$0xff]
        %v559 = vld [vmem:[%s365 + $0x4d8] sm:$0xff]
        %v560 = vld [vmem:[%s365 + $0x4e0] sm:$0xff]
        %v561 = vld [vmem:[%s365 + $0x4e8] sm:$0xff]
        %v562 = vld [vmem:[%s365 + $0x4f0] sm:$0xff]
        %v563 = vld [vmem:[%s365 + $0x4f8] sm:$0xff]
        %v564 = vld [vmem:[%s365 + $0x500] sm:$0xff]
        %v565 = vld [vmem:[%s365 + $0x508] sm:$0xff]
        %v566 = vld [vmem:[%s365 + $0x510] sm:$0xff]
        %v567 = vld [vmem:[%s365 + $0x518] sm:$0xff]
        %v568 = vld [vmem:[%s365 + $0x520] sm:$0xff]
        %v569 = vld [vmem:[%s365 + $0x528] sm:$0xff]
        %v570 = vld [vmem:[%s365 + $0x530] sm:$0xff]
        %v571 = vld [vmem:[%s365 + $0x538] sm:$0xff]
        %v572 = vld [vmem:[%s365 + $0x540] sm:$0xff]
        %v573 = vld [vmem:[%s365 + $0x548] sm:$0xff]
        %v574 = vld [vmem:[%s365 + $0x550] sm:$0xff]
        %v575 = vld [vmem:[%s365 + $0x558] sm:$0xff]
        %v576 = vld [vmem:[%s365 + $0x560] sm:$0xff]
        %v577 = vld [vmem:[%s365 + $0x568] sm:$0xff]
        %v578 = vld [vmem:[%s365 + $0x570] sm:$0xff]
        %v579 = vld [vmem:[%s365 + $0x578] sm:$0xff]
        %v580 = vld [vmem:[%s365 + $0x580] sm:$0xff]
        %v581 = vld [vmem:[%s365 + $0x588] sm:$0xff]
        %v582 = vld [vmem:[%s365 + $0x590] sm:$0xff]
        %v583 = vld [vmem:[%s365 + $0x598] sm:$0xff]
        %v584 = vld [vmem:[%s365 + $0x5a0] sm:$0xff]
        %v585 = vld [vmem:[%s365 + $0x5a8] sm:$0xff]
        %v586 = vld [vmem:[%s365 + $0x5b0] sm:$0xff]
        %v587 = vld [vmem:[%s365 + $0x5b8] sm:$0xff]
        %v588 = vld [vmem:[%s365 + $0x5c0] sm:$0xff]
        %v589 = vld [vmem:[%s365 + $0x5c8] sm:$0xff]
        %v590 = vld [vmem:[%s365 + $0x5d0] sm:$0xff]
        %v591 = vld [vmem:[%s365 + $0x5d8] sm:$0xff]
        %v592 = vld [vmem:[%s365 + $0x5e0] sm:$0xff]
        %v593 = vld [vmem:[%s365 + $0x5e8] sm:$0xff]
        %v594 = vld [vmem:[%s365 + $0x5f0] sm:$0xff]
        %v595 = vld [vmem:[%s365 + $0x5f8] sm:$0xff]
        %v596 = vld [vmem:[%s365 + $0x600] sm:$0xff]
        %v597 = vld [vmem:[%s365 + $0x608] sm:$0xff]
        %v598 = vld [vmem:[%s365 + $0x610] sm:$0xff]
        %v599 = vld [vmem:[%s365 + $0x618] sm:$0xff]
        %v600 = vld [vmem:[%s365 + $0x620] sm:$0xff]
        %v601 = vld [vmem:[%s365 + $0x628] sm:$0xff]
        %v602 = vld [vmem:[%s365 + $0x630] sm:$0xff]
        %v603 = vld [vmem:[%s365 + $0x638] sm:$0xff]
        %v604 = vld [vmem:[%s365 + $0x640] sm:$0xff]
        %v605 = vld [vmem:[%s365 + $0x648] sm:$0xff]
        %v606 = vld [vmem:[%s365 + $0x650] sm:$0xff]
        %v607 = vld [vmem:[%s365 + $0x658] sm:$0xff]
        %v608 = vld [vmem:[%s365 + $0x660] sm:$0xff]
        %v609 = vld [vmem:[%s365 + $0x668] sm:$0xff]
        %v610 = vld [vmem:[%s365 + $0x670] sm:$0xff]
        %v611 = vld [vmem:[%s365 + $0x678] sm:$0xff]
        %v612 = vld [vmem:[%s365 + $0x680] sm:$0xff]
        %v613 = vld [vmem:[%s365 + $0x688] sm:$0xff]
        %v614 = vld [vmem:[%s365 + $0x690] sm:$0xff]
        %v615 = vld [vmem:[%s365 + $0x698] sm:$0xff]
        %v616 = vld [vmem:[%s365 + $0x6a0] sm:$0xff]
        %v617 = vld [vmem:[%s365 + $0x6a8] sm:$0xff]
        %v618 = vld [vmem:[%s365 + $0x6b0] sm:$0xff]
        %v619 = vld [vmem:[%s365 + $0x6b8] sm:$0xff]
        %v620 = vld [vmem:[%s365 + $0x6c0] sm:$0xff]
        %v621 = vld [vmem:[%s365 + $0x6c8] sm:$0xff]
        %v622 = vld [vmem:[%s365 + $0x6d0] sm:$0xff]
        %v623 = vld [vmem:[%s365 + $0x6d8] sm:$0xff]
        %v624 = vld [vmem:[%s365 + $0x6e0] sm:$0xff]
        %v625 = vld [vmem:[%s365 + $0x6e8] sm:$0xff]
        %v626 = vld [vmem:[%s365 + $0x6f0] sm:$0xff]
        %v627 = vld [vmem:[%s365 + $0x6f8] sm:$0xff]
        %v628 = vld [vmem:[%s365 + $0x700] sm:$0xff]
        %v629 = vld [vmem:[%s365 + $0x708] sm:$0xff]
        %v630 = vld [vmem:[%s365 + $0x710] sm:$0xff]
        %v631 = vld [vmem:[%s365 + $0x718] sm:$0xff]
        %v632 = vld [vmem:[%s365 + $0x720] sm:$0xff]
        %v633 = vld [vmem:[%s365 + $0x728] sm:$0xff]
        %v634 = vld [vmem:[%s365 + $0x730] sm:$0xff]
        %v635 = vld [vmem:[%s365 + $0x738] sm:$0xff]
        %v636 = vld [vmem:[%s365 + $0x740] sm:$0xff]
        %v637 = vld [vmem:[%s365 + $0x748] sm:$0xff]
        %v638 = vld [vmem:[%s365 + $0x750] sm:$0xff]
        %v639 = vld [vmem:[%s365 + $0x758] sm:$0xff]
        %v640 = vld [vmem:[%s365 + $0x760] sm:$0xff]
        %v641 = vld [vmem:[%s365 + $0x768] sm:$0xff]
        %v642 = vld [vmem:[%s365 + $0x770] sm:$0xff]
        %v643 = vld [vmem:[%s365 + $0x778] sm:$0xff]
        %v644 = vld [vmem:[%s365 + $0x780] sm:$0xff]
        %v645 = vld [vmem:[%s365 + $0x788] sm:$0xff]
        %v646 = vld [vmem:[%s365 + $0x790] sm:$0xff]
        %v647 = vld [vmem:[%s365 + $0x798] sm:$0xff]
        %v648 = vld [vmem:[%s365 + $0x7a0] sm:$0xff]
        %v649 = vld [vmem:[%s365 + $0x7a8] sm:$0xff]
        %v650 = vld [vmem:[%s365 + $0x7b0] sm:$0xff]
        %v651 = vld [vmem:[%s365 + $0x7b8] sm:$0xff]
        %v652 = vld [vmem:[%s365 + $0x7c0] sm:$0xff]
        %v653 = vld [vmem:[%s365 + $0x7c8] sm:$0xff]
        %v654 = vld [vmem:[%s365 + $0x7d0] sm:$0xff]
        %v655 = vld [vmem:[%s365 + $0x7d8] sm:$0xff]
        %v656 = vld [vmem:[%s365 + $0x7e0] sm:$0xff]
        %v657 = vld [vmem:[%s365 + $0x7e8] sm:$0xff]
        %v658 = vld [vmem:[%s365 + $0x7f0] sm:$0xff]
        %v659 = vld [vmem:[%s365 + $0x7f8] sm:$0xff]
        %v660 = vld [vmem:[%s365 + $0x800] sm:$0xff]
        %v661 = vld [vmem:[%s365 + $0x808] sm:$0xff]
        %v662 = vld [vmem:[%s365 + $0x810] sm:$0xff]
        %v663 = vld [vmem:[%s365 + $0x818] sm:$0xff]
        %v664 = vld [vmem:[%s365 + $0x820] sm:$0xff]
        %v665 = vld [vmem:[%s365 + $0x828] sm:$0xff]
        %v666 = vld [vmem:[%s365 + $0x830] sm:$0xff]
        %v667 = vld [vmem:[%s365 + $0x838] sm:$0xff]
        %v668 = vld [vmem:[%s365 + $0x840] sm:$0xff]
        %v669 = vld [vmem:[%s365 + $0x848] sm:$0xff]
        %v670 = vld [vmem:[%s365 + $0x850] sm:$0xff]
        %v671 = vld [vmem:[%s365 + $0x858] sm:$0xff]
        %v672 = vld [vmem:[%s365 + $0x860] sm:$0xff]
        %v673 = vld [vmem:[%s365 + $0x868] sm:$0xff]
        %v674 = vld [vmem:[%s365 + $0x870] sm:$0xff]
        %v675 = vld [vmem:[%s365 + $0x878] sm:$0xff]
        %v676 = vld [vmem:[%s365 + $0x880] sm:$0xff]
        %v677 = vld [vmem:[%s365 + $0x888] sm:$0xff]
        %v678 = vld [vmem:[%s365 + $0x890] sm:$0xff]
        %v679 = vld [vmem:[%s365 + $0x898] sm:$0xff]
        %v680 = vld [vmem:[%s365 + $0x8a0] sm:$0xff]
        %v681 = vld [vmem:[%s365 + $0x8a8] sm:$0xff]
        %v682 = vld [vmem:[%s365 + $0x8b0] sm:$0xff]
        %v683 = vld [vmem:[%s365 + $0x8b8] sm:$0xff]
        %v684 = vld [vmem:[%s365 + $0x8c0] sm:$0xff]
        %v685 = vld [vmem:[%s365 + $0x8c8] sm:$0xff]
        %v686 = vld [vmem:[%s365 + $0x8d0] sm:$0xff]
        %v687 = vld [vmem:[%s365 + $0x8d8] sm:$0xff]
        %v688 = vld [vmem:[%s365 + $0x8e0] sm:$0xff]
        %v689 = vld [vmem:[%s365 + $0x8e8] sm:$0xff]
        %v690 = vld [vmem:[%s365 + $0x8f0] sm:$0xff]
        %v691 = vld [vmem:[%s365 + $0x8f8] sm:$0xff]
        %v692 = vld [vmem:[%s365 + $0x900] sm:$0xff]
        %v693 = vld [vmem:[%s365 + $0x908] sm:$0xff]
        %v694 = vld [vmem:[%s365 + $0x910] sm:$0xff]
        %v695 = vld [vmem:[%s365 + $0x918] sm:$0xff]
        %v696 = vld [vmem:[%s365 + $0x920] sm:$0xff]
        %v697 = vld [vmem:[%s365 + $0x928] sm:$0xff]
        %v698 = vld [vmem:[%s365 + $0x930] sm:$0xff]
        %v699 = vld [vmem:[%s365 + $0x938] sm:$0xff]
        %v700 = vld [vmem:[%s365 + $0x940] sm:$0xff]
        %v701 = vld [vmem:[%s365 + $0x948] sm:$0xff]
        %v702 = vld [vmem:[%s365 + $0x950] sm:$0xff]
        %v703 = vld [vmem:[%s365 + $0x958] sm:$0xff]
        %v704 = vld [vmem:[%s365 + $0x960] sm:$0xff]
        %v705 = vld [vmem:[%s365 + $0x968] sm:$0xff]
        %v706 = vld [vmem:[%s365 + $0x970] sm:$0xff]
        %v707 = vld [vmem:[%s365 + $0x978] sm:$0xff]
        %v708 = vld [vmem:[%s365 + $0x980] sm:$0xff]
        %v709 = vld [vmem:[%s365 + $0x988] sm:$0xff]
        %v710 = vld [vmem:[%s365 + $0x990] sm:$0xff]
        %v711 = vld [vmem:[%s365 + $0x998] sm:$0xff]
        %v712 = vld [vmem:[%s365 + $0x9a0] sm:$0xff]
        %v713 = vld [vmem:[%s365 + $0x9a8] sm:$0xff]
        %v714 = vld [vmem:[%s365 + $0x9b0] sm:$0xff]
        %v715 = vld [vmem:[%s365 + $0x9b8] sm:$0xff]
        %v716 = vld [vmem:[%s365 + $0x9c0] sm:$0xff]
        %v717 = vld [vmem:[%s365 + $0x9c8] sm:$0xff]
        %v718 = vld [vmem:[%s365 + $0x9d0] sm:$0xff]
        %v719 = vld [vmem:[%s365 + $0x9d8] sm:$0xff]
        %v720 = vld [vmem:[%s365 + $0x9e0] sm:$0xff]
        %v721 = vld [vmem:[%s365 + $0x9e8] sm:$0xff]
        %v722 = vld [vmem:[%s365 + $0x9f0] sm:$0xff]
        %v723 = vld [vmem:[%s365 + $0x9f8] sm:$0xff]
        %v724 = vld [vmem:[%s365 + $0xa00] sm:$0xff]
        %v725 = vld [vmem:[%s365 + $0xa08] sm:$0xff]
        %v726 = vld [vmem:[%s365 + $0xa10] sm:$0xff]
        %v727 = vld [vmem:[%s365 + $0xa18] sm:$0xff]
        %v728 = vld [vmem:[%s365 + $0xa20] sm:$0xff]
        %v729 = vld [vmem:[%s365 + $0xa28] sm:$0xff]
        %v730 = vld [vmem:[%s365 + $0xa30] sm:$0xff]
        %v731 = vld [vmem:[%s365 + $0xa38] sm:$0xff]
        %v732 = vld [vmem:[%s365 + $0xa40] sm:$0xff]
        %v733 = vld [vmem:[%s365 + $0xa48] sm:$0xff]
        %v734 = vld [vmem:[%s365 + $0xa50] sm:$0xff]
        %v735 = vld [vmem:[%s365 + $0xa58] sm:$0xff]
        %v736 = vld [vmem:[%s365 + $0xa60] sm:$0xff]
        %v737 = vld [vmem:[%s365 + $0xa68] sm:$0xff]
        %v738 = vld [vmem:[%s365 + $0xa70] sm:$0xff]
        %v739 = vld [vmem:[%s365 + $0xa78] sm:$0xff]
        %v740 = vld [vmem:[%s365 + $0xa80] sm:$0xff]
        %v741 = vld [vmem:[%s365 + $0xa88] sm:$0xff]
        %v742 = vld [vmem:[%s365 + $0xa90] sm:$0xff]
        %v743 = vld [vmem:[%s365 + $0xa98] sm:$0xff]
        %v744 = vld [vmem:[%s365 + $0xaa0] sm:$0xff]
        %v745 = vld [vmem:[%s365 + $0xaa8] sm:$0xff]
        %v746 = vld [vmem:[%s365 + $0xab0] sm:$0xff]
        %v747 = vld [vmem:[%s365 + $0xab8] sm:$0xff]
        %v748 = vld [vmem:[%s365 + $0xac0] sm:$0xff]
        %v749 = vld [vmem:[%s365 + $0xac8] sm:$0xff]
        %v750 = vld [vmem:[%s365 + $0xad0] sm:$0xff]
        %v751 = vld [vmem:[%s365 + $0xad8] sm:$0xff]
        %v752 = vld [vmem:[%s365 + $0xae0] sm:$0xff]
        %v753 = vld [vmem:[%s365 + $0xae8] sm:$0xff]
        %v754 = vld [vmem:[%s365 + $0xaf0] sm:$0xff]
        %v755 = vld [vmem:[%s365 + $0xaf8] sm:$0xff]
        %v756 = vld [vmem:[%s365 + $0xb00] sm:$0xff]
        %v757 = vld [vmem:[%s365 + $0xb08] sm:$0xff]
        %v758 = vld [vmem:[%s365 + $0xb10] sm:$0xff]
        %v759 = vld [vmem:[%s365 + $0xb18] sm:$0xff]
        %v760 = vld [vmem:[%s365 + $0xb20] sm:$0xff]
        %v761 = vld [vmem:[%s365 + $0xb28] sm:$0xff]
        %v762 = vld [vmem:[%s365 + $0xb30] sm:$0xff]
        %v763 = vld [vmem:[%s365 + $0xb38] sm:$0xff]
        %v764 = vld [vmem:[%s365 + $0xb40] sm:$0xff]
        %v765 = vld [vmem:[%s365 + $0xb48] sm:$0xff]
        %v766 = vld [vmem:[%s365 + $0xb50] sm:$0xff]
        %v767 = vld [vmem:[%s365 + $0xb58] sm:$0xff]
        %v768 = vld [vmem:[%s365 + $0xb60] sm:$0xff]
        %v769 = vld [vmem:[%s365 + $0xb68] sm:$0xff]
        %v770 = vld [vmem:[%s365 + $0xb70] sm:$0xff]
        %v771 = vld [vmem:[%s365 + $0xb78] sm:$0xff]
        %v772 = vld [vmem:[%s365 + $0xb80] sm:$0xff]
        %v773 = vld [vmem:[%s365 + $0xb88] sm:$0xff]
        %v774 = vld [vmem:[%s365 + $0xb90] sm:$0xff]
        %v775 = vld [vmem:[%s365 + $0xb98] sm:$0xff]
        %v776 = vld [vmem:[%s365 + $0xba0] sm:$0xff]
        %v777 = vld [vmem:[%s365 + $0xba8] sm:$0xff]
        %v778 = vld [vmem:[%s365 + $0xbb0] sm:$0xff]
        %v779 = vld [vmem:[%s365 + $0xbb8] sm:$0xff]
        %v780 = vld [vmem:[%s365 + $0xbc0] sm:$0xff]
        %v781 = vld [vmem:[%s365 + $0xbc8] sm:$0xff]
        %v782 = vld [vmem:[%s365 + $0xbd0] sm:$0xff]
        %v783 = vld [vmem:[%s365 + $0xbd8] sm:$0xff]
        %v784 = vld [vmem:[%s365 + $0xbe0] sm:$0xff]
        %v785 = vld [vmem:[%s365 + $0xbe8] sm:$0xff]
        %v786 = vld [vmem:[%s365 + $0xbf0] sm:$0xff]
        %v787 = vld [vmem:[%s365 + $0xbf8] sm:$0xff]
        %v788 = vld [vmem:[%s365 + $0xc00] sm:$0xff]
        %v789 = vld [vmem:[%s365 + $0xc08] sm:$0xff]
        %v790 = vld [vmem:[%s365 + $0xc10] sm:$0xff]
        %v791 = vld [vmem:[%s365 + $0xc18] sm:$0xff]
        %v792 = vld [vmem:[%s365 + $0xc20] sm:$0xff]
        %v793 = vld [vmem:[%s365 + $0xc28] sm:$0xff]
        %v794 = vld [vmem:[%s365 + $0xc30] sm:$0xff]
        %v795 = vld [vmem:[%s365 + $0xc38] sm:$0xff]
        %v796 = vld [vmem:[%s365 + $0xc40] sm:$0xff]
        %v797 = vld [vmem:[%s365 + $0xc48] sm:$0xff]
        %v798 = vld [vmem:[%s365 + $0xc50] sm:$0xff]
        %v799 = vld [vmem:[%s365 + $0xc58] sm:$0xff]
        %v800 = vld [vmem:[%s365 + $0xc60] sm:$0xff]
        %v801 = vld [vmem:[%s365 + $0xc68] sm:$0xff]
        %v802 = vld [vmem:[%s365 + $0xc70] sm:$0xff]
        %v803 = vld [vmem:[%s365 + $0xc78] sm:$0xff]
        %v804 = vld [vmem:[%s365 + $0xc80] sm:$0xff]
        %v805 = vld [vmem:[%s365 + $0xc88] sm:$0xff]
        %v806 = vld [vmem:[%s365 + $0xc90] sm:$0xff]
        %v807 = vld [vmem:[%s365 + $0xc98] sm:$0xff]
        %v808 = vld [vmem:[%s365 + $0xca0] sm:$0xff]
        %v809 = vld [vmem:[%s365 + $0xca8] sm:$0xff]
        %v810 = vld [vmem:[%s365 + $0xcb0] sm:$0xff]
        %v811 = vld [vmem:[%s365 + $0xcb8] sm:$0xff]
        %v812 = vld [vmem:[%s365 + $0xcc0] sm:$0xff]
        %v813 = vld [vmem:[%s365 + $0xcc8] sm:$0xff]
        %v814 = vld [vmem:[%s365 + $0xcd0] sm:$0xff]
        %v815 = vld [vmem:[%s365 + $0xcd8] sm:$0xff]
        %v816 = vld [vmem:[%s365 + $0xce0] sm:$0xff]
        %v817 = vld [vmem:[%s365 + $0xce8] sm:$0xff]
        %v818 = vld [vmem:[%s365 + $0xcf0] sm:$0xff]
        %v819 = vld [vmem:[%s365 + $0xcf8] sm:$0xff]
        %v820 = vld [vmem:[%s365 + $0xd00] sm:$0xff]
        %v821 = vld [vmem:[%s365 + $0xd08] sm:$0xff]
        %v822 = vld [vmem:[%s365 + $0xd10] sm:$0xff]
        %v823 = vld [vmem:[%s365 + $0xd18] sm:$0xff]
        %v824 = vld [vmem:[%s365 + $0xd20] sm:$0xff]
        %v825 = vld [vmem:[%s365 + $0xd28] sm:$0xff]
        %v826 = vld [vmem:[%s365 + $0xd30] sm:$0xff]
        %v827 = vld [vmem:[%s365 + $0xd38] sm:$0xff]
        %v828 = vld [vmem:[%s365 + $0xd40] sm:$0xff]
        %v829 = vld [vmem:[%s365 + $0xd48] sm:$0xff]
        %v830 = vld [vmem:[%s365 + $0xd50] sm:$0xff]
        %v831 = vld [vmem:[%s365 + $0xd58] sm:$0xff]
        %v832 = vld [vmem:[%s365 + $0xd60] sm:$0xff]
        %v833 = vld [vmem:[%s365 + $0xd68] sm:$0xff]
        %v834 = vld [vmem:[%s365 + $0xd70] sm:$0xff]
        %v835 = vld [vmem:[%s365 + $0xd78] sm:$0xff]
        %v836 = vld [vmem:[%s365 + $0xd80] sm:$0xff]
        %v837 = vld [vmem:[%s365 + $0xd88] sm:$0xff]
        %v838 = vld [vmem:[%s365 + $0xd90] sm:$0xff]
        %v839 = vld [vmem:[%s365 + $0xd98] sm:$0xff]
        %v840 = vld [vmem:[%s365 + $0xda0] sm:$0xff]
        %v841 = vld [vmem:[%s365 + $0xda8] sm:$0xff]
        %v842 = vld [vmem:[%s365 + $0xdb0] sm:$0xff]
        %v843 = vld [vmem:[%s365 + $0xdb8] sm:$0xff]
        %v844 = vld [vmem:[%s365 + $0xdc0] sm:$0xff]
        %v845 = vld [vmem:[%s365 + $0xdc8] sm:$0xff]
        %v846 = vld [vmem:[%s365 + $0xdd0] sm:$0xff]
        %v847 = vld [vmem:[%s365 + $0xdd8] sm:$0xff]
        %v848 = vld [vmem:[%s365 + $0xde0] sm:$0xff]
        %v849 = vld [vmem:[%s365 + $0xde8] sm:$0xff]
        %v850 = vld [vmem:[%s365 + $0xdf0] sm:$0xff]
        %v851 = vld [vmem:[%s365 + $0xdf8] sm:$0xff]
        %v852 = vld [vmem:[%s365 + $0xe00] sm:$0xff]
        %v853 = vld [vmem:[%s365 + $0xe08] sm:$0xff]
        %v854 = vld [vmem:[%s365 + $0xe10] sm:$0xff]
        %v855 = vld [vmem:[%s365 + $0xe18] sm:$0xff]
        %v856 = vld [vmem:[%s365 + $0xe20] sm:$0xff]
        %v857 = vld [vmem:[%s365 + $0xe28] sm:$0xff]
        %v858 = vld [vmem:[%s365 + $0xe30] sm:$0xff]
        %v859 = vld [vmem:[%s365 + $0xe38] sm:$0xff]
        %v860 = vld [vmem:[%s365 + $0xe40] sm:$0xff]
        %v861 = vld [vmem:[%s365 + $0xe48] sm:$0xff]
        %v862 = vld [vmem:[%s365 + $0xe50] sm:$0xff]
        %v863 = vld [vmem:[%s365 + $0xe58] sm:$0xff]
        %v864 = vld [vmem:[%s365 + $0xe60] sm:$0xff]
        %v865 = vld [vmem:[%s365 + $0xe68] sm:$0xff]
        %v866 = vld [vmem:[%s365 + $0xe70] sm:$0xff]
        %v867 = vld [vmem:[%s365 + $0xe78] sm:$0xff]
        %v868 = vld [vmem:[%s365 + $0xe80] sm:$0xff]
        %v869 = vld [vmem:[%s365 + $0xe88] sm:$0xff]
        %v870 = vld [vmem:[%s365 + $0xe90] sm:$0xff]
        %v871 = vld [vmem:[%s365 + $0xe98] sm:$0xff]
        %v872 = vld [vmem:[%s365 + $0xea0] sm:$0xff]
        %v873 = vld [vmem:[%s365 + $0xea8] sm:$0xff]
        %v874 = vld [vmem:[%s365 + $0xeb0] sm:$0xff]
        %v875 = vld [vmem:[%s365 + $0xeb8] sm:$0xff]
        %v876 = vld [vmem:[%s365 + $0xec0] sm:$0xff]
        %v877 = vld [vmem:[%s365 + $0xec8] sm:$0xff]
        %v878 = vld [vmem:[%s365 + $0xed0] sm:$0xff]
        %v879 = vld [vmem:[%s365 + $0xed8] sm:$0xff]
        %v880 = vld [vmem:[%s365 + $0xee0] sm:$0xff]
        %v881 = vld [vmem:[%s365 + $0xee8] sm:$0xff]
        %v882 = vld [vmem:[%s365 + $0xef0] sm:$0xff]
        %v883 = vld [vmem:[%s365 + $0xef8] sm:$0xff]
        %v884 = vld [vmem:[%s365 + $0xf00] sm:$0xff]
        %v885 = vld [vmem:[%s365 + $0xf08] sm:$0xff]
        %v886 = vld [vmem:[%s365 + $0xf10] sm:$0xff]
        %v887 = vld [vmem:[%s365 + $0xf18] sm:$0xff]
        %v888 = vld [vmem:[%s365 + $0xf20] sm:$0xff]
        %v889 = vld [vmem:[%s365 + $0xf28] sm:$0xff]
        %v890 = vld [vmem:[%s365 + $0xf30] sm:$0xff]
        %v891 = vld [vmem:[%s365 + $0xf38] sm:$0xff]
        %v892 = vld [vmem:[%s365 + $0xf40] sm:$0xff]
        %v893 = vld [vmem:[%s365 + $0xf48] sm:$0xff]
        %v894 = vld [vmem:[%s365 + $0xf50] sm:$0xff]
        %v895 = vld [vmem:[%s365 + $0xf58] sm:$0xff]
        %v896 = vld [vmem:[%s365 + $0xf60] sm:$0xff]
        %v897 = vld [vmem:[%s365 + $0xf68] sm:$0xff]
        %v898 = vld [vmem:[%s365 + $0xf70] sm:$0xff]
        %v899 = vld [vmem:[%s365 + $0xf78] sm:$0xff]
        %v900 = vld [vmem:[%s365 + $0xf80] sm:$0xff]
        %v901 = vld [vmem:[%s365 + $0xf88] sm:$0xff]
        %v902 = vld [vmem:[%s365 + $0xf90] sm:$0xff]
        %v903 = vld [vmem:[%s365 + $0xf98] sm:$0xff]
        %v904 = vld [vmem:[%s365 + $0xfa0] sm:$0xff]
        %v905 = vld [vmem:[%s365 + $0xfa8] sm:$0xff]
        %v906 = vld [vmem:[%s365 + $0xfb0] sm:$0xff]
        %v907 = vld [vmem:[%s365 + $0xfb8] sm:$0xff]
        %v908 = vld [vmem:[%s365 + $0xfc0] sm:$0xff]
        %v909 = vld [vmem:[%s365 + $0xfc8] sm:$0xff]
        %v910 = vld [vmem:[%s365 + $0xfd0] sm:$0xff]
        %v911 = vld [vmem:[%s365 + $0xfd8] sm:$0xff]
        %v912 = vld [vmem:[%s365 + $0xfe0] sm:$0xff]
        %v913 = vld [vmem:[%s365 + $0xfe8] sm:$0xff]
        %v914 = vld [vmem:[%s365 + $0xff0] sm:$0xff]
        %v915 = vld [vmem:[%s365 + $0xff8] sm:$0xff]
        %v932 = vunpack.c.l.b16 %v388
        %v933 = vunpack.c.h.b16 %v388
        %v934 = vunpack.c.l.b16 %v389
        %v935 = vunpack.c.h.b16 %v389
        %v936 = vunpack.c.l.b16 %v390
        %v937 = vunpack.c.h.b16 %v390
        %v938 = vunpack.c.l.b16 %v391
        %v939 = vunpack.c.h.b16 %v391
        %v940 = vunpack.c.l.b16 %v392
        %v941 = vunpack.c.h.b16 %v392
        %v942 = vunpack.c.l.b16 %v393
        %v943 = vunpack.c.h.b16 %v393
        %v944 = vunpack.c.l.b16 %v394
        %v945 = vunpack.c.h.b16 %v394
        %v946 = vunpack.c.l.b16 %v395
        %v947 = vunpack.c.h.b16 %v395
        %v948 = vunpack.c.l.b16 %v396
        %v949 = vunpack.c.h.b16 %v396
        %v950 = vunpack.c.l.b16 %v397
        %v951 = vunpack.c.h.b16 %v397
        %v952 = vunpack.c.l.b16 %v398
        %v953 = vunpack.c.h.b16 %v398
        %v954 = vunpack.c.l.b16 %v399
        %v955 = vunpack.c.h.b16 %v399
        %v956 = vunpack.c.l.b16 %v400
        %v957 = vunpack.c.h.b16 %v400
        %v958 = vunpack.c.l.b16 %v401
        %v959 = vunpack.c.h.b16 %v401
        %v960 = vunpack.c.l.b16 %v402
        %v961 = vunpack.c.h.b16 %v402
        %v962 = vunpack.c.l.b16 %v403
        %v963 = vunpack.c.h.b16 %v403
        %v964 = vpack.c.b16 %v948, %v932
        %v965 = vpack.c.b16 %v949, %v933
        %v966 = vpack.c.b16 %v950, %v934
        %v967 = vpack.c.b16 %v951, %v935
        %v968 = vpack.c.b16 %v952, %v936
        %v969 = vpack.c.b16 %v953, %v937
        %v970 = vpack.c.b16 %v954, %v938
        %v971 = vpack.c.b16 %v955, %v939
        %v972 = vpack.c.b16 %v956, %v940
        %v973 = vpack.c.b16 %v957, %v941
        %v974 = vpack.c.b16 %v958, %v942
        %v975 = vpack.c.b16 %v959, %v943
        %v976 = vpack.c.b16 %v960, %v944
        %v977 = vpack.c.b16 %v961, %v945
        %v978 = vpack.c.b16 %v962, %v946
        %v979 = vpack.c.b16 %v963, %v947
        %v1508 = vunpack.c.l.b16 %v404
        %v1509 = vunpack.c.h.b16 %v404
        %v1510 = vunpack.c.l.b16 %v405
        %v1511 = vunpack.c.h.b16 %v405
        %v1512 = vunpack.c.l.b16 %v406
        %v1513 = vunpack.c.h.b16 %v406
        %v1514 = vunpack.c.l.b16 %v407
        %v1515 = vunpack.c.h.b16 %v407
        %v1516 = vunpack.c.l.b16 %v408
        %v1517 = vunpack.c.h.b16 %v408
        %v1518 = vunpack.c.l.b16 %v409
        %v1519 = vunpack.c.h.b16 %v409
        %v1520 = vunpack.c.l.b16 %v410
        %v1521 = vunpack.c.h.b16 %v410
        %v1522 = vunpack.c.l.b16 %v411
        %v1523 = vunpack.c.h.b16 %v411
        %v1524 = vunpack.c.l.b16 %v412
        %v1525 = vunpack.c.h.b16 %v412
        %v1526 = vunpack.c.l.b16 %v413
        %v1527 = vunpack.c.h.b16 %v413
        %v1528 = vunpack.c.l.b16 %v414
        %v1529 = vunpack.c.h.b16 %v414
        %v1530 = vunpack.c.l.b16 %v415
        %v1531 = vunpack.c.h.b16 %v415
        %v1532 = vunpack.c.l.b16 %v416
        %v1533 = vunpack.c.h.b16 %v416
        %v1534 = vunpack.c.l.b16 %v417
        %v1535 = vunpack.c.h.b16 %v417
        %v1536 = vunpack.c.l.b16 %v418
        %v1537 = vunpack.c.h.b16 %v418
        %v1538 = vunpack.c.l.b16 %v419
        %v1539 = vunpack.c.h.b16 %v419
        %v1540 = vunpack.c.l.b16 %v420
        %v1541 = vunpack.c.h.b16 %v420
        %v1542 = vunpack.c.l.b16 %v421
        %v1543 = vunpack.c.h.b16 %v421
        %v1544 = vunpack.c.l.b16 %v422
        %v1545 = vunpack.c.h.b16 %v422
        %v1546 = vunpack.c.l.b16 %v423
        %v1547 = vunpack.c.h.b16 %v423
        %v1548 = vunpack.c.l.b16 %v424
        %v1549 = vunpack.c.h.b16 %v424
        %v1550 = vunpack.c.l.b16 %v425
        %v1551 = vunpack.c.h.b16 %v425
        %v1552 = vunpack.c.l.b16 %v426
        %v1553 = vunpack.c.h.b16 %v426
        %v1554 = vunpack.c.l.b16 %v427
        %v1555 = vunpack.c.h.b16 %v427
        %v1556 = vunpack.c.l.b16 %v428
        %v1557 = vunpack.c.h.b16 %v428
        %v1558 = vunpack.c.l.b16 %v429
        %v1559 = vunpack.c.h.b16 %v429
        %v1560 = vunpack.c.l.b16 %v430
        %v1561 = vunpack.c.h.b16 %v430
        %v1562 = vunpack.c.l.b16 %v431
        %v1563 = vunpack.c.h.b16 %v431
        %v1564 = vunpack.c.l.b16 %v432
        %v1565 = vunpack.c.h.b16 %v432
        %v1566 = vunpack.c.l.b16 %v433
        %v1567 = vunpack.c.h.b16 %v433
        %v1568 = vunpack.c.l.b16 %v434
        %v1569 = vunpack.c.h.b16 %v434
        %v1570 = vunpack.c.l.b16 %v435
        %v1571 = vunpack.c.h.b16 %v435
        %v1572 = vunpack.c.l.b16 %v436
        %v1573 = vunpack.c.h.b16 %v436
        %v1574 = vunpack.c.l.b16 %v437
        %v1575 = vunpack.c.h.b16 %v437
        %v1576 = vunpack.c.l.b16 %v438
        %v1577 = vunpack.c.h.b16 %v438
        %v1578 = vunpack.c.l.b16 %v439
        %v1579 = vunpack.c.h.b16 %v439
        %v1580 = vunpack.c.l.b16 %v440
        %v1581 = vunpack.c.h.b16 %v440
        %v1582 = vunpack.c.l.b16 %v441
        %v1583 = vunpack.c.h.b16 %v441
        %v1584 = vunpack.c.l.b16 %v442
        %v1585 = vunpack.c.h.b16 %v442
        %v1586 = vunpack.c.l.b16 %v443
        %v1587 = vunpack.c.h.b16 %v443
        %v1588 = vunpack.c.l.b16 %v444
        %v1589 = vunpack.c.h.b16 %v444
        %v1590 = vunpack.c.l.b16 %v445
        %v1591 = vunpack.c.h.b16 %v445
        %v1592 = vunpack.c.l.b16 %v446
        %v1593 = vunpack.c.h.b16 %v446
        %v1594 = vunpack.c.l.b16 %v447
        %v1595 = vunpack.c.h.b16 %v447
        %v1596 = vunpack.c.l.b16 %v448
        %v1597 = vunpack.c.h.b16 %v448
        %v1598 = vunpack.c.l.b16 %v449
        %v1599 = vunpack.c.h.b16 %v449
        %v1600 = vunpack.c.l.b16 %v450
        %v1601 = vunpack.c.h.b16 %v450
        %v1602 = vunpack.c.l.b16 %v451
        %v1603 = vunpack.c.h.b16 %v451
        %v1604 = vunpack.c.l.b16 %v452
        %v1605 = vunpack.c.h.b16 %v452
        %v1606 = vunpack.c.l.b16 %v453
        %v1607 = vunpack.c.h.b16 %v453
        %v1608 = vunpack.c.l.b16 %v454
        %v1609 = vunpack.c.h.b16 %v454
        %v1610 = vunpack.c.l.b16 %v455
        %v1611 = vunpack.c.h.b16 %v455
        %v1612 = vunpack.c.l.b16 %v456
        %v1613 = vunpack.c.h.b16 %v456
        %v1614 = vunpack.c.l.b16 %v457
        %v1615 = vunpack.c.h.b16 %v457
        %v1616 = vunpack.c.l.b16 %v458
        %v1617 = vunpack.c.h.b16 %v458
        %v1618 = vunpack.c.l.b16 %v459
        %v1619 = vunpack.c.h.b16 %v459
        %v1620 = vunpack.c.l.b16 %v460
        %v1621 = vunpack.c.h.b16 %v460
        %v1622 = vunpack.c.l.b16 %v461
        %v1623 = vunpack.c.h.b16 %v461
        %v1624 = vunpack.c.l.b16 %v462
        %v1625 = vunpack.c.h.b16 %v462
        %v1626 = vunpack.c.l.b16 %v463
        %v1627 = vunpack.c.h.b16 %v463
        %v1628 = vunpack.c.l.b16 %v464
        %v1629 = vunpack.c.h.b16 %v464
        %v1630 = vunpack.c.l.b16 %v465
        %v1631 = vunpack.c.h.b16 %v465
        %v1632 = vunpack.c.l.b16 %v466
        %v1633 = vunpack.c.h.b16 %v466
        %v1634 = vunpack.c.l.b16 %v467
        %v1635 = vunpack.c.h.b16 %v467
        %v1636 = vunpack.c.l.b16 %v468
        %v1637 = vunpack.c.h.b16 %v468
        %v1638 = vunpack.c.l.b16 %v469
        %v1639 = vunpack.c.h.b16 %v469
        %v1640 = vunpack.c.l.b16 %v470
        %v1641 = vunpack.c.h.b16 %v470
        %v1642 = vunpack.c.l.b16 %v471
        %v1643 = vunpack.c.h.b16 %v471
        %v1644 = vunpack.c.l.b16 %v472
        %v1645 = vunpack.c.h.b16 %v472
        %v1646 = vunpack.c.l.b16 %v473
        %v1647 = vunpack.c.h.b16 %v473
        %v1648 = vunpack.c.l.b16 %v474
        %v1649 = vunpack.c.h.b16 %v474
        %v1650 = vunpack.c.l.b16 %v475
        %v1651 = vunpack.c.h.b16 %v475
        %v1652 = vunpack.c.l.b16 %v476
        %v1653 = vunpack.c.h.b16 %v476
        %v1654 = vunpack.c.l.b16 %v477
        %v1655 = vunpack.c.h.b16 %v477
        %v1656 = vunpack.c.l.b16 %v478
        %v1657 = vunpack.c.h.b16 %v478
        %v1658 = vunpack.c.l.b16 %v479
        %v1659 = vunpack.c.h.b16 %v479
        %v1660 = vunpack.c.l.b16 %v480
        %v1661 = vunpack.c.h.b16 %v480
        %v1662 = vunpack.c.l.b16 %v481
        %v1663 = vunpack.c.h.b16 %v481
        %v1664 = vunpack.c.l.b16 %v482
        %v1665 = vunpack.c.h.b16 %v482
        %v1666 = vunpack.c.l.b16 %v483
        %v1667 = vunpack.c.h.b16 %v483
        %v1668 = vunpack.c.l.b16 %v484
        %v1669 = vunpack.c.h.b16 %v484
        %v1670 = vunpack.c.l.b16 %v485
        %v1671 = vunpack.c.h.b16 %v485
        %v1672 = vunpack.c.l.b16 %v486
        %v1673 = vunpack.c.h.b16 %v486
        %v1674 = vunpack.c.l.b16 %v487
        %v1675 = vunpack.c.h.b16 %v487
        %v1676 = vunpack.c.l.b16 %v488
        %v1677 = vunpack.c.h.b16 %v488
        %v1678 = vunpack.c.l.b16 %v489
        %v1679 = vunpack.c.h.b16 %v489
        %v1680 = vunpack.c.l.b16 %v490
        %v1681 = vunpack.c.h.b16 %v490
        %v1682 = vunpack.c.l.b16 %v491
        %v1683 = vunpack.c.h.b16 %v491
        %v1684 = vunpack.c.l.b16 %v492
        %v1685 = vunpack.c.h.b16 %v492
        %v1686 = vunpack.c.l.b16 %v493
        %v1687 = vunpack.c.h.b16 %v493
        %v1688 = vunpack.c.l.b16 %v494
        %v1689 = vunpack.c.h.b16 %v494
        %v1690 = vunpack.c.l.b16 %v495
        %v1691 = vunpack.c.h.b16 %v495
        %v1692 = vunpack.c.l.b16 %v496
        %v1693 = vunpack.c.h.b16 %v496
        %v1694 = vunpack.c.l.b16 %v497
        %v1695 = vunpack.c.h.b16 %v497
        %v1696 = vunpack.c.l.b16 %v498
        %v1697 = vunpack.c.h.b16 %v498
        %v1698 = vunpack.c.l.b16 %v499
        %v1699 = vunpack.c.h.b16 %v499
        %v1700 = vunpack.c.l.b16 %v500
        %v1701 = vunpack.c.h.b16 %v500
        %v1702 = vunpack.c.l.b16 %v501
        %v1703 = vunpack.c.h.b16 %v501
        %v1704 = vunpack.c.l.b16 %v502
        %v1705 = vunpack.c.h.b16 %v502
        %v1706 = vunpack.c.l.b16 %v503
        %v1707 = vunpack.c.h.b16 %v503
        %v1708 = vunpack.c.l.b16 %v504
        %v1709 = vunpack.c.h.b16 %v504
        %v1710 = vunpack.c.l.b16 %v505
        %v1711 = vunpack.c.h.b16 %v505
        %v1712 = vunpack.c.l.b16 %v506
        %v1713 = vunpack.c.h.b16 %v506
        %v1714 = vunpack.c.l.b16 %v507
        %v1715 = vunpack.c.h.b16 %v507
        %v1716 = vunpack.c.l.b16 %v508
        %v1717 = vunpack.c.h.b16 %v508
        %v1718 = vunpack.c.l.b16 %v509
        %v1719 = vunpack.c.h.b16 %v509
        %v1720 = vunpack.c.l.b16 %v510
        %v1721 = vunpack.c.h.b16 %v510
        %v1722 = vunpack.c.l.b16 %v511
        %v1723 = vunpack.c.h.b16 %v511
        %v1724 = vunpack.c.l.b16 %v512
        %v1725 = vunpack.c.h.b16 %v512
        %v1726 = vunpack.c.l.b16 %v513
        %v1727 = vunpack.c.h.b16 %v513
        %v1728 = vunpack.c.l.b16 %v514
        %v1729 = vunpack.c.h.b16 %v514
        %v1730 = vunpack.c.l.b16 %v515
        %v1731 = vunpack.c.h.b16 %v515
        %v1732 = vunpack.c.l.b16 %v516
        %v1733 = vunpack.c.h.b16 %v516
        %v1734 = vunpack.c.l.b16 %v517
        %v1735 = vunpack.c.h.b16 %v517
        %v1736 = vunpack.c.l.b16 %v518
        %v1737 = vunpack.c.h.b16 %v518
        %v1738 = vunpack.c.l.b16 %v519
        %v1739 = vunpack.c.h.b16 %v519
        %v1740 = vunpack.c.l.b16 %v520
        %v1741 = vunpack.c.h.b16 %v520
        %v1742 = vunpack.c.l.b16 %v521
        %v1743 = vunpack.c.h.b16 %v521
        %v1744 = vunpack.c.l.b16 %v522
        %v1745 = vunpack.c.h.b16 %v522
        %v1746 = vunpack.c.l.b16 %v523
        %v1747 = vunpack.c.h.b16 %v523
        %v1748 = vunpack.c.l.b16 %v524
        %v1749 = vunpack.c.h.b16 %v524
        %v1750 = vunpack.c.l.b16 %v525
        %v1751 = vunpack.c.h.b16 %v525
        %v1752 = vunpack.c.l.b16 %v526
        %v1753 = vunpack.c.h.b16 %v526
        %v1754 = vunpack.c.l.b16 %v527
        %v1755 = vunpack.c.h.b16 %v527
        %v1756 = vunpack.c.l.b16 %v528
        %v1757 = vunpack.c.h.b16 %v528
        %v1758 = vunpack.c.l.b16 %v529
        %v1759 = vunpack.c.h.b16 %v529
        %v1760 = vunpack.c.l.b16 %v530
        %v1761 = vunpack.c.h.b16 %v530
        %v1762 = vunpack.c.l.b16 %v531
        %v1763 = vunpack.c.h.b16 %v531
        %v1764 = vunpack.c.l.b16 %v532
        %v1765 = vunpack.c.h.b16 %v532
        %v1766 = vunpack.c.l.b16 %v533
        %v1767 = vunpack.c.h.b16 %v533
        %v1768 = vunpack.c.l.b16 %v534
        %v1769 = vunpack.c.h.b16 %v534
        %v1770 = vunpack.c.l.b16 %v535
        %v1771 = vunpack.c.h.b16 %v535
        %v1772 = vunpack.c.l.b16 %v536
        %v1773 = vunpack.c.h.b16 %v536
        %v1774 = vunpack.c.l.b16 %v537
        %v1775 = vunpack.c.h.b16 %v537
        %v1776 = vunpack.c.l.b16 %v538
        %v1777 = vunpack.c.h.b16 %v538
        %v1778 = vunpack.c.l.b16 %v539
        %v1779 = vunpack.c.h.b16 %v539
        %v1780 = vunpack.c.l.b16 %v540
        %v1781 = vunpack.c.h.b16 %v540
        %v1782 = vunpack.c.l.b16 %v541
        %v1783 = vunpack.c.h.b16 %v541
        %v1784 = vunpack.c.l.b16 %v542
        %v1785 = vunpack.c.h.b16 %v542
        %v1786 = vunpack.c.l.b16 %v543
        %v1787 = vunpack.c.h.b16 %v543
        %v1788 = vunpack.c.l.b16 %v544
        %v1789 = vunpack.c.h.b16 %v544
        %v1790 = vunpack.c.l.b16 %v545
        %v1791 = vunpack.c.h.b16 %v545
        %v1792 = vunpack.c.l.b16 %v546
        %v1793 = vunpack.c.h.b16 %v546
        %v1794 = vunpack.c.l.b16 %v547
        %v1795 = vunpack.c.h.b16 %v547
        %v1796 = vunpack.c.l.b16 %v548
        %v1797 = vunpack.c.h.b16 %v548
        %v1798 = vunpack.c.l.b16 %v549
        %v1799 = vunpack.c.h.b16 %v549
        %v1800 = vunpack.c.l.b16 %v550
        %v1801 = vunpack.c.h.b16 %v550
        %v1802 = vunpack.c.l.b16 %v551
        %v1803 = vunpack.c.h.b16 %v551
        %v1804 = vunpack.c.l.b16 %v552
        %v1805 = vunpack.c.h.b16 %v552
        %v1806 = vunpack.c.l.b16 %v553
        %v1807 = vunpack.c.h.b16 %v553
        %v1808 = vunpack.c.l.b16 %v554
        %v1809 = vunpack.c.h.b16 %v554
        %v1810 = vunpack.c.l.b16 %v555
        %v1811 = vunpack.c.h.b16 %v555
        %v1812 = vunpack.c.l.b16 %v556
        %v1813 = vunpack.c.h.b16 %v556
        %v1814 = vunpack.c.l.b16 %v557
        %v1815 = vunpack.c.h.b16 %v557
        %v1816 = vunpack.c.l.b16 %v558
        %v1817 = vunpack.c.h.b16 %v558
        %v1818 = vunpack.c.l.b16 %v559
        %v1819 = vunpack.c.h.b16 %v559
        %v1820 = vunpack.c.l.b16 %v560
        %v1821 = vunpack.c.h.b16 %v560
        %v1822 = vunpack.c.l.b16 %v561
        %v1823 = vunpack.c.h.b16 %v561
        %v1824 = vunpack.c.l.b16 %v562
        %v1825 = vunpack.c.h.b16 %v562
        %v1826 = vunpack.c.l.b16 %v563
        %v1827 = vunpack.c.h.b16 %v563
        %v1828 = vunpack.c.l.b16 %v564
        %v1829 = vunpack.c.h.b16 %v564
        %v1830 = vunpack.c.l.b16 %v565
        %v1831 = vunpack.c.h.b16 %v565
        %v1832 = vunpack.c.l.b16 %v566
        %v1833 = vunpack.c.h.b16 %v566
        %v1834 = vunpack.c.l.b16 %v567
        %v1835 = vunpack.c.h.b16 %v567
        %v1836 = vunpack.c.l.b16 %v568
        %v1837 = vunpack.c.h.b16 %v568
        %v1838 = vunpack.c.l.b16 %v569
        %v1839 = vunpack.c.h.b16 %v569
        %v1840 = vunpack.c.l.b16 %v570
        %v1841 = vunpack.c.h.b16 %v570
        %v1842 = vunpack.c.l.b16 %v571
        %v1843 = vunpack.c.h.b16 %v571
        %v1844 = vunpack.c.l.b16 %v572
        %v1845 = vunpack.c.h.b16 %v572
        %v1846 = vunpack.c.l.b16 %v573
        %v1847 = vunpack.c.h.b16 %v573
        %v1848 = vunpack.c.l.b16 %v574
        %v1849 = vunpack.c.h.b16 %v574
        %v1850 = vunpack.c.l.b16 %v575
        %v1851 = vunpack.c.h.b16 %v575
        %v1852 = vunpack.c.l.b16 %v576
        %v1853 = vunpack.c.h.b16 %v576
        %v1854 = vunpack.c.l.b16 %v577
        %v1855 = vunpack.c.h.b16 %v577
        %v1856 = vunpack.c.l.b16 %v578
        %v1857 = vunpack.c.h.b16 %v578
        %v1858 = vunpack.c.l.b16 %v579
        %v1859 = vunpack.c.h.b16 %v579
        %v1860 = vunpack.c.l.b16 %v580
        %v1861 = vunpack.c.h.b16 %v580
        %v1862 = vunpack.c.l.b16 %v581
        %v1863 = vunpack.c.h.b16 %v581
        %v1864 = vunpack.c.l.b16 %v582
        %v1865 = vunpack.c.h.b16 %v582
        %v1866 = vunpack.c.l.b16 %v583
        %v1867 = vunpack.c.h.b16 %v583
        %v1868 = vunpack.c.l.b16 %v584
        %v1869 = vunpack.c.h.b16 %v584
        %v1870 = vunpack.c.l.b16 %v585
        %v1871 = vunpack.c.h.b16 %v585
        %v1872 = vunpack.c.l.b16 %v586
        %v1873 = vunpack.c.h.b16 %v586
        %v1874 = vunpack.c.l.b16 %v587
        %v1875 = vunpack.c.h.b16 %v587
        %v1876 = vunpack.c.l.b16 %v588
        %v1877 = vunpack.c.h.b16 %v588
        %v1878 = vunpack.c.l.b16 %v589
        %v1879 = vunpack.c.h.b16 %v589
        %v1880 = vunpack.c.l.b16 %v590
        %v1881 = vunpack.c.h.b16 %v590
        %v1882 = vunpack.c.l.b16 %v591
        %v1883 = vunpack.c.h.b16 %v591
        %v1884 = vunpack.c.l.b16 %v592
        %v1885 = vunpack.c.h.b16 %v592
        %v1886 = vunpack.c.l.b16 %v593
        %v1887 = vunpack.c.h.b16 %v593
        %v1888 = vunpack.c.l.b16 %v594
        %v1889 = vunpack.c.h.b16 %v594
        %v1890 = vunpack.c.l.b16 %v595
        %v1891 = vunpack.c.h.b16 %v595
        %v1892 = vunpack.c.l.b16 %v596
        %v1893 = vunpack.c.h.b16 %v596
        %v1894 = vunpack.c.l.b16 %v597
        %v1895 = vunpack.c.h.b16 %v597
        %v1896 = vunpack.c.l.b16 %v598
        %v1897 = vunpack.c.h.b16 %v598
        %v1898 = vunpack.c.l.b16 %v599
        %v1899 = vunpack.c.h.b16 %v599
        %v1900 = vunpack.c.l.b16 %v600
        %v1901 = vunpack.c.h.b16 %v600
        %v1902 = vunpack.c.l.b16 %v601
        %v1903 = vunpack.c.h.b16 %v601
        %v1904 = vunpack.c.l.b16 %v602
        %v1905 = vunpack.c.h.b16 %v602
        %v1906 = vunpack.c.l.b16 %v603
        %v1907 = vunpack.c.h.b16 %v603
        %v1908 = vunpack.c.l.b16 %v604
        %v1909 = vunpack.c.h.b16 %v604
        %v1910 = vunpack.c.l.b16 %v605
        %v1911 = vunpack.c.h.b16 %v605
        %v1912 = vunpack.c.l.b16 %v606
        %v1913 = vunpack.c.h.b16 %v606
        %v1914 = vunpack.c.l.b16 %v607
        %v1915 = vunpack.c.h.b16 %v607
        %v1916 = vunpack.c.l.b16 %v608
        %v1917 = vunpack.c.h.b16 %v608
        %v1918 = vunpack.c.l.b16 %v609
        %v1919 = vunpack.c.h.b16 %v609
        %v1920 = vunpack.c.l.b16 %v610
        %v1921 = vunpack.c.h.b16 %v610
        %v1922 = vunpack.c.l.b16 %v611
        %v1923 = vunpack.c.h.b16 %v611
        %v1924 = vunpack.c.l.b16 %v612
        %v1925 = vunpack.c.h.b16 %v612
        %v1926 = vunpack.c.l.b16 %v613
        %v1927 = vunpack.c.h.b16 %v613
        %v1928 = vunpack.c.l.b16 %v614
        %v1929 = vunpack.c.h.b16 %v614
        %v1930 = vunpack.c.l.b16 %v615
        %v1931 = vunpack.c.h.b16 %v615
        %v1932 = vunpack.c.l.b16 %v616
        %v1933 = vunpack.c.h.b16 %v616
        %v1934 = vunpack.c.l.b16 %v617
        %v1935 = vunpack.c.h.b16 %v617
        %v1936 = vunpack.c.l.b16 %v618
        %v1937 = vunpack.c.h.b16 %v618
        %v1938 = vunpack.c.l.b16 %v619
        %v1939 = vunpack.c.h.b16 %v619
        %v1940 = vunpack.c.l.b16 %v620
        %v1941 = vunpack.c.h.b16 %v620
        %v1942 = vunpack.c.l.b16 %v621
        %v1943 = vunpack.c.h.b16 %v621
        %v1944 = vunpack.c.l.b16 %v622
        %v1945 = vunpack.c.h.b16 %v622
        %v1946 = vunpack.c.l.b16 %v623
        %v1947 = vunpack.c.h.b16 %v623
        %v1948 = vunpack.c.l.b16 %v624
        %v1949 = vunpack.c.h.b16 %v624
        %v1950 = vunpack.c.l.b16 %v625
        %v1951 = vunpack.c.h.b16 %v625
        %v1952 = vunpack.c.l.b16 %v626
        %v1953 = vunpack.c.h.b16 %v626
        %v1954 = vunpack.c.l.b16 %v627
        %v1955 = vunpack.c.h.b16 %v627
        %v1956 = vunpack.c.l.b16 %v628
        %v1957 = vunpack.c.h.b16 %v628
        %v1958 = vunpack.c.l.b16 %v629
        %v1959 = vunpack.c.h.b16 %v629
        %v1960 = vunpack.c.l.b16 %v630
        %v1961 = vunpack.c.h.b16 %v630
        %v1962 = vunpack.c.l.b16 %v631
        %v1963 = vunpack.c.h.b16 %v631
        %v1964 = vunpack.c.l.b16 %v632
        %v1965 = vunpack.c.h.b16 %v632
        %v1966 = vunpack.c.l.b16 %v633
        %v1967 = vunpack.c.h.b16 %v633
        %v1968 = vunpack.c.l.b16 %v634
        %v1969 = vunpack.c.h.b16 %v634
        %v1970 = vunpack.c.l.b16 %v635
        %v1971 = vunpack.c.h.b16 %v635
        %v1972 = vunpack.c.l.b16 %v636
        %v1973 = vunpack.c.h.b16 %v636
        %v1974 = vunpack.c.l.b16 %v637
        %v1975 = vunpack.c.h.b16 %v637
        %v1976 = vunpack.c.l.b16 %v638
        %v1977 = vunpack.c.h.b16 %v638
        %v1978 = vunpack.c.l.b16 %v639
        %v1979 = vunpack.c.h.b16 %v639
        %v1980 = vunpack.c.l.b16 %v640
        %v1981 = vunpack.c.h.b16 %v640
        %v1982 = vunpack.c.l.b16 %v641
        %v1983 = vunpack.c.h.b16 %v641
        %v1984 = vunpack.c.l.b16 %v642
        %v1985 = vunpack.c.h.b16 %v642
        %v1986 = vunpack.c.l.b16 %v643
        %v1987 = vunpack.c.h.b16 %v643
        %v1988 = vunpack.c.l.b16 %v644
        %v1989 = vunpack.c.h.b16 %v644
        %v1990 = vunpack.c.l.b16 %v645
        %v1991 = vunpack.c.h.b16 %v645
        %v1992 = vunpack.c.l.b16 %v646
        %v1993 = vunpack.c.h.b16 %v646
        %v1994 = vunpack.c.l.b16 %v647
        %v1995 = vunpack.c.h.b16 %v647
        %v1996 = vunpack.c.l.b16 %v648
        %v1997 = vunpack.c.h.b16 %v648
        %v1998 = vunpack.c.l.b16 %v649
        %v1999 = vunpack.c.h.b16 %v649
        %v2000 = vunpack.c.l.b16 %v650
        %v2001 = vunpack.c.h.b16 %v650
        %v2002 = vunpack.c.l.b16 %v651
        %v2003 = vunpack.c.h.b16 %v651
        %v2004 = vunpack.c.l.b16 %v652
        %v2005 = vunpack.c.h.b16 %v652
        %v2006 = vunpack.c.l.b16 %v653
        %v2007 = vunpack.c.h.b16 %v653
        %v2008 = vunpack.c.l.b16 %v654
        %v2009 = vunpack.c.h.b16 %v654
        %v2010 = vunpack.c.l.b16 %v655
        %v2011 = vunpack.c.h.b16 %v655
        %v2012 = vunpack.c.l.b16 %v656
        %v2013 = vunpack.c.h.b16 %v656
        %v2014 = vunpack.c.l.b16 %v657
        %v2015 = vunpack.c.h.b16 %v657
        %v2016 = vunpack.c.l.b16 %v658
        %v2017 = vunpack.c.h.b16 %v658
        %v2018 = vunpack.c.l.b16 %v659
        %v2019 = vunpack.c.h.b16 %v659
        %v2020 = vunpack.c.l.b16 %v660
        %v2021 = vunpack.c.h.b16 %v660
        %v2022 = vunpack.c.l.b16 %v661
        %v2023 = vunpack.c.h.b16 %v661
        %v2024 = vunpack.c.l.b16 %v662
        %v2025 = vunpack.c.h.b16 %v662
        %v2026 = vunpack.c.l.b16 %v663
        %v2027 = vunpack.c.h.b16 %v663
        %v2028 = vunpack.c.l.b16 %v664
        %v2029 = vunpack.c.h.b16 %v664
        %v2030 = vunpack.c.l.b16 %v665
        %v2031 = vunpack.c.h.b16 %v665
        %v2032 = vunpack.c.l.b16 %v666
        %v2033 = vunpack.c.h.b16 %v666
        %v2034 = vunpack.c.l.b16 %v667
        %v2035 = vunpack.c.h.b16 %v667
        %v2036 = vunpack.c.l.b16 %v668
        %v2037 = vunpack.c.h.b16 %v668
        %v2038 = vunpack.c.l.b16 %v669
        %v2039 = vunpack.c.h.b16 %v669
        %v2040 = vunpack.c.l.b16 %v670
        %v2041 = vunpack.c.h.b16 %v670
        %v2042 = vunpack.c.l.b16 %v671
        %v2043 = vunpack.c.h.b16 %v671
        %v2044 = vunpack.c.l.b16 %v672
        %v2045 = vunpack.c.h.b16 %v672
        %v2046 = vunpack.c.l.b16 %v673
        %v2047 = vunpack.c.h.b16 %v673
        %v2048 = vunpack.c.l.b16 %v674
        %v2049 = vunpack.c.h.b16 %v674
        %v2050 = vunpack.c.l.b16 %v675
        %v2051 = vunpack.c.h.b16 %v675
        %v2052 = vunpack.c.l.b16 %v676
        %v2053 = vunpack.c.h.b16 %v676
        %v2054 = vunpack.c.l.b16 %v677
        %v2055 = vunpack.c.h.b16 %v677
        %v2056 = vunpack.c.l.b16 %v678
        %v2057 = vunpack.c.h.b16 %v678
        %v2058 = vunpack.c.l.b16 %v679
        %v2059 = vunpack.c.h.b16 %v679
        %v2060 = vunpack.c.l.b16 %v680
        %v2061 = vunpack.c.h.b16 %v680
        %v2062 = vunpack.c.l.b16 %v681
        %v2063 = vunpack.c.h.b16 %v681
        %v2064 = vunpack.c.l.b16 %v682
        %v2065 = vunpack.c.h.b16 %v682
        %v2066 = vunpack.c.l.b16 %v683
        %v2067 = vunpack.c.h.b16 %v683
        %v2068 = vunpack.c.l.b16 %v684
        %v2069 = vunpack.c.h.b16 %v684
        %v2070 = vunpack.c.l.b16 %v685
        %v2071 = vunpack.c.h.b16 %v685
        %v2072 = vunpack.c.l.b16 %v686
        %v2073 = vunpack.c.h.b16 %v686
        %v2074 = vunpack.c.l.b16 %v687
        %v2075 = vunpack.c.h.b16 %v687
        %v2076 = vunpack.c.l.b16 %v688
        %v2077 = vunpack.c.h.b16 %v688
        %v2078 = vunpack.c.l.b16 %v689
        %v2079 = vunpack.c.h.b16 %v689
        %v2080 = vunpack.c.l.b16 %v690
        %v2081 = vunpack.c.h.b16 %v690
        %v2082 = vunpack.c.l.b16 %v691
        %v2083 = vunpack.c.h.b16 %v691
        %v2084 = vunpack.c.l.b16 %v692
        %v2085 = vunpack.c.h.b16 %v692
        %v2086 = vunpack.c.l.b16 %v693
        %v2087 = vunpack.c.h.b16 %v693
        %v2088 = vunpack.c.l.b16 %v694
        %v2089 = vunpack.c.h.b16 %v694
        %v2090 = vunpack.c.l.b16 %v695
        %v2091 = vunpack.c.h.b16 %v695
        %v2092 = vunpack.c.l.b16 %v696
        %v2093 = vunpack.c.h.b16 %v696
        %v2094 = vunpack.c.l.b16 %v697
        %v2095 = vunpack.c.h.b16 %v697
        %v2096 = vunpack.c.l.b16 %v698
        %v2097 = vunpack.c.h.b16 %v698
        %v2098 = vunpack.c.l.b16 %v699
        %v2099 = vunpack.c.h.b16 %v699
        %v2100 = vunpack.c.l.b16 %v700
        %v2101 = vunpack.c.h.b16 %v700
        %v2102 = vunpack.c.l.b16 %v701
        %v2103 = vunpack.c.h.b16 %v701
        %v2104 = vunpack.c.l.b16 %v702
        %v2105 = vunpack.c.h.b16 %v702
        %v2106 = vunpack.c.l.b16 %v703
        %v2107 = vunpack.c.h.b16 %v703
        %v2108 = vunpack.c.l.b16 %v704
        %v2109 = vunpack.c.h.b16 %v704
        %v2110 = vunpack.c.l.b16 %v705
        %v2111 = vunpack.c.h.b16 %v705
        %v2112 = vunpack.c.l.b16 %v706
        %v2113 = vunpack.c.h.b16 %v706
        %v2114 = vunpack.c.l.b16 %v707
        %v2115 = vunpack.c.h.b16 %v707
        %v2116 = vunpack.c.l.b16 %v708
        %v2117 = vunpack.c.h.b16 %v708
        %v2118 = vunpack.c.l.b16 %v709
        %v2119 = vunpack.c.h.b16 %v709
        %v2120 = vunpack.c.l.b16 %v710
        %v2121 = vunpack.c.h.b16 %v710
        %v2122 = vunpack.c.l.b16 %v711
        %v2123 = vunpack.c.h.b16 %v711
        %v2124 = vunpack.c.l.b16 %v712
        %v2125 = vunpack.c.h.b16 %v712
        %v2126 = vunpack.c.l.b16 %v713
        %v2127 = vunpack.c.h.b16 %v713
        %v2128 = vunpack.c.l.b16 %v714
        %v2129 = vunpack.c.h.b16 %v714
        %v2130 = vunpack.c.l.b16 %v715
        %v2131 = vunpack.c.h.b16 %v715
        %v2132 = vunpack.c.l.b16 %v716
        %v2133 = vunpack.c.h.b16 %v716
        %v2134 = vunpack.c.l.b16 %v717
        %v2135 = vunpack.c.h.b16 %v717
        %v2136 = vunpack.c.l.b16 %v718
        %v2137 = vunpack.c.h.b16 %v718
        %v2138 = vunpack.c.l.b16 %v719
        %v2139 = vunpack.c.h.b16 %v719
        %v2140 = vunpack.c.l.b16 %v720
        %v2141 = vunpack.c.h.b16 %v720
        %v2142 = vunpack.c.l.b16 %v721
        %v2143 = vunpack.c.h.b16 %v721
        %v2144 = vunpack.c.l.b16 %v722
        %v2145 = vunpack.c.h.b16 %v722
        %v2146 = vunpack.c.l.b16 %v723
        %v2147 = vunpack.c.h.b16 %v723
        %v2148 = vunpack.c.l.b16 %v724
        %v2149 = vunpack.c.h.b16 %v724
        %v2150 = vunpack.c.l.b16 %v725
        %v2151 = vunpack.c.h.b16 %v725
        %v2152 = vunpack.c.l.b16 %v726
        %v2153 = vunpack.c.h.b16 %v726
        %v2154 = vunpack.c.l.b16 %v727
        %v2155 = vunpack.c.h.b16 %v727
        %v2156 = vunpack.c.l.b16 %v728
        %v2157 = vunpack.c.h.b16 %v728
        %v2158 = vunpack.c.l.b16 %v729
        %v2159 = vunpack.c.h.b16 %v729
        %v2160 = vunpack.c.l.b16 %v730
        %v2161 = vunpack.c.h.b16 %v730
        %v2162 = vunpack.c.l.b16 %v731
        %v2163 = vunpack.c.h.b16 %v731
        %v2164 = vunpack.c.l.b16 %v732
        %v2165 = vunpack.c.h.b16 %v732
        %v2166 = vunpack.c.l.b16 %v733
        %v2167 = vunpack.c.h.b16 %v733
        %v2168 = vunpack.c.l.b16 %v734
        %v2169 = vunpack.c.h.b16 %v734
        %v2170 = vunpack.c.l.b16 %v735
        %v2171 = vunpack.c.h.b16 %v735
        %v2172 = vunpack.c.l.b16 %v736
        %v2173 = vunpack.c.h.b16 %v736
        %v2174 = vunpack.c.l.b16 %v737
        %v2175 = vunpack.c.h.b16 %v737
        %v2176 = vunpack.c.l.b16 %v738
        %v2177 = vunpack.c.h.b16 %v738
        %v2178 = vunpack.c.l.b16 %v739
        %v2179 = vunpack.c.h.b16 %v739
        %v2180 = vunpack.c.l.b16 %v740
        %v2181 = vunpack.c.h.b16 %v740
        %v2182 = vunpack.c.l.b16 %v741
        %v2183 = vunpack.c.h.b16 %v741
        %v2184 = vunpack.c.l.b16 %v742
        %v2185 = vunpack.c.h.b16 %v742
        %v2186 = vunpack.c.l.b16 %v743
        %v2187 = vunpack.c.h.b16 %v743
        %v2188 = vunpack.c.l.b16 %v744
        %v2189 = vunpack.c.h.b16 %v744
        %v2190 = vunpack.c.l.b16 %v745
        %v2191 = vunpack.c.h.b16 %v745
        %v2192 = vunpack.c.l.b16 %v746
        %v2193 = vunpack.c.h.b16 %v746
        %v2194 = vunpack.c.l.b16 %v747
        %v2195 = vunpack.c.h.b16 %v747
        %v2196 = vunpack.c.l.b16 %v748
        %v2197 = vunpack.c.h.b16 %v748
        %v2198 = vunpack.c.l.b16 %v749
        %v2199 = vunpack.c.h.b16 %v749
        %v2200 = vunpack.c.l.b16 %v750
        %v2201 = vunpack.c.h.b16 %v750
        %v2202 = vunpack.c.l.b16 %v751
        %v2203 = vunpack.c.h.b16 %v751
        %v2204 = vunpack.c.l.b16 %v752
        %v2205 = vunpack.c.h.b16 %v752
        %v2206 = vunpack.c.l.b16 %v753
        %v2207 = vunpack.c.h.b16 %v753
        %v2208 = vunpack.c.l.b16 %v754
        %v2209 = vunpack.c.h.b16 %v754
        %v2210 = vunpack.c.l.b16 %v755
        %v2211 = vunpack.c.h.b16 %v755
        %v2212 = vunpack.c.l.b16 %v756
        %v2213 = vunpack.c.h.b16 %v756
        %v2214 = vunpack.c.l.b16 %v757
        %v2215 = vunpack.c.h.b16 %v757
        %v2216 = vunpack.c.l.b16 %v758
        %v2217 = vunpack.c.h.b16 %v758
        %v2218 = vunpack.c.l.b16 %v759
        %v2219 = vunpack.c.h.b16 %v759
        %v2220 = vunpack.c.l.b16 %v760
        %v2221 = vunpack.c.h.b16 %v760
        %v2222 = vunpack.c.l.b16 %v761
        %v2223 = vunpack.c.h.b16 %v761
        %v2224 = vunpack.c.l.b16 %v762
        %v2225 = vunpack.c.h.b16 %v762
        %v2226 = vunpack.c.l.b16 %v763
        %v2227 = vunpack.c.h.b16 %v763
        %v2228 = vunpack.c.l.b16 %v764
        %v2229 = vunpack.c.h.b16 %v764
        %v2230 = vunpack.c.l.b16 %v765
        %v2231 = vunpack.c.h.b16 %v765
        %v2232 = vunpack.c.l.b16 %v766
        %v2233 = vunpack.c.h.b16 %v766
        %v2234 = vunpack.c.l.b16 %v767
        %v2235 = vunpack.c.h.b16 %v767
        %v2236 = vunpack.c.l.b16 %v768
        %v2237 = vunpack.c.h.b16 %v768
        %v2238 = vunpack.c.l.b16 %v769
        %v2239 = vunpack.c.h.b16 %v769
        %v2240 = vunpack.c.l.b16 %v770
        %v2241 = vunpack.c.h.b16 %v770
        %v2242 = vunpack.c.l.b16 %v771
        %v2243 = vunpack.c.h.b16 %v771
        %v2244 = vunpack.c.l.b16 %v772
        %v2245 = vunpack.c.h.b16 %v772
        %v2246 = vunpack.c.l.b16 %v773
        %v2247 = vunpack.c.h.b16 %v773
        %v2248 = vunpack.c.l.b16 %v774
        %v2249 = vunpack.c.h.b16 %v774
        %v2250 = vunpack.c.l.b16 %v775
        %v2251 = vunpack.c.h.b16 %v775
        %v2252 = vunpack.c.l.b16 %v776
        %v2253 = vunpack.c.h.b16 %v776
        %v2254 = vunpack.c.l.b16 %v777
        %v2255 = vunpack.c.h.b16 %v777
        %v2256 = vunpack.c.l.b16 %v778
        %v2257 = vunpack.c.h.b16 %v778
        %v2258 = vunpack.c.l.b16 %v779
        %v2259 = vunpack.c.h.b16 %v779
        %v2260 = vunpack.c.l.b16 %v780
        %v2261 = vunpack.c.h.b16 %v780
        %v2262 = vunpack.c.l.b16 %v781
        %v2263 = vunpack.c.h.b16 %v781
        %v2264 = vunpack.c.l.b16 %v782
        %v2265 = vunpack.c.h.b16 %v782
        %v2266 = vunpack.c.l.b16 %v783
        %v2267 = vunpack.c.h.b16 %v783
        %v2268 = vunpack.c.l.b16 %v784
        %v2269 = vunpack.c.h.b16 %v784
        %v2270 = vunpack.c.l.b16 %v785
        %v2271 = vunpack.c.h.b16 %v785
        %v2272 = vunpack.c.l.b16 %v786
        %v2273 = vunpack.c.h.b16 %v786
        %v2274 = vunpack.c.l.b16 %v787
        %v2275 = vunpack.c.h.b16 %v787
        %v2276 = vunpack.c.l.b16 %v788
        %v2277 = vunpack.c.h.b16 %v788
        %v2278 = vunpack.c.l.b16 %v789
        %v2279 = vunpack.c.h.b16 %v789
        %v2280 = vunpack.c.l.b16 %v790
        %v2281 = vunpack.c.h.b16 %v790
        %v2282 = vunpack.c.l.b16 %v791
        %v2283 = vunpack.c.h.b16 %v791
        %v2284 = vunpack.c.l.b16 %v792
        %v2285 = vunpack.c.h.b16 %v792
        %v2286 = vunpack.c.l.b16 %v793
        %v2287 = vunpack.c.h.b16 %v793
        %v2288 = vunpack.c.l.b16 %v794
        %v2289 = vunpack.c.h.b16 %v794
        %v2290 = vunpack.c.l.b16 %v795
        %v2291 = vunpack.c.h.b16 %v795
        %v2292 = vunpack.c.l.b16 %v796
        %v2293 = vunpack.c.h.b16 %v796
        %v2294 = vunpack.c.l.b16 %v797
        %v2295 = vunpack.c.h.b16 %v797
        %v2296 = vunpack.c.l.b16 %v798
        %v2297 = vunpack.c.h.b16 %v798
        %v2298 = vunpack.c.l.b16 %v799
        %v2299 = vunpack.c.h.b16 %v799
        %v2300 = vunpack.c.l.b16 %v800
        %v2301 = vunpack.c.h.b16 %v800
        %v2302 = vunpack.c.l.b16 %v801
        %v2303 = vunpack.c.h.b16 %v801
        %v2304 = vunpack.c.l.b16 %v802
        %v2305 = vunpack.c.h.b16 %v802
        %v2306 = vunpack.c.l.b16 %v803
        %v2307 = vunpack.c.h.b16 %v803
        %v2308 = vunpack.c.l.b16 %v804
        %v2309 = vunpack.c.h.b16 %v804
        %v2310 = vunpack.c.l.b16 %v805
        %v2311 = vunpack.c.h.b16 %v805
        %v2312 = vunpack.c.l.b16 %v806
        %v2313 = vunpack.c.h.b16 %v806
        %v2314 = vunpack.c.l.b16 %v807
        %v2315 = vunpack.c.h.b16 %v807
        %v2316 = vunpack.c.l.b16 %v808
        %v2317 = vunpack.c.h.b16 %v808
        %v2318 = vunpack.c.l.b16 %v809
        %v2319 = vunpack.c.h.b16 %v809
        %v2320 = vunpack.c.l.b16 %v810
        %v2321 = vunpack.c.h.b16 %v810
        %v2322 = vunpack.c.l.b16 %v811
        %v2323 = vunpack.c.h.b16 %v811
        %v2324 = vunpack.c.l.b16 %v812
        %v2325 = vunpack.c.h.b16 %v812
        %v2326 = vunpack.c.l.b16 %v813
        %v2327 = vunpack.c.h.b16 %v813
        %v2328 = vunpack.c.l.b16 %v814
        %v2329 = vunpack.c.h.b16 %v814
        %v2330 = vunpack.c.l.b16 %v815
        %v2331 = vunpack.c.h.b16 %v815
        %v2332 = vunpack.c.l.b16 %v816
        %v2333 = vunpack.c.h.b16 %v816
        %v2334 = vunpack.c.l.b16 %v817
        %v2335 = vunpack.c.h.b16 %v817
        %v2336 = vunpack.c.l.b16 %v818
        %v2337 = vunpack.c.h.b16 %v818
        %v2338 = vunpack.c.l.b16 %v819
        %v2339 = vunpack.c.h.b16 %v819
        %v2340 = vunpack.c.l.b16 %v820
        %v2341 = vunpack.c.h.b16 %v820
        %v2342 = vunpack.c.l.b16 %v821
        %v2343 = vunpack.c.h.b16 %v821
        %v2344 = vunpack.c.l.b16 %v822
        %v2345 = vunpack.c.h.b16 %v822
        %v2346 = vunpack.c.l.b16 %v823
        %v2347 = vunpack.c.h.b16 %v823
        %v2348 = vunpack.c.l.b16 %v824
        %v2349 = vunpack.c.h.b16 %v824
        %v2350 = vunpack.c.l.b16 %v825
        %v2351 = vunpack.c.h.b16 %v825
        %v2352 = vunpack.c.l.b16 %v826
        %v2353 = vunpack.c.h.b16 %v826
        %v2354 = vunpack.c.l.b16 %v827
        %v2355 = vunpack.c.h.b16 %v827
        %v2356 = vunpack.c.l.b16 %v828
        %v2357 = vunpack.c.h.b16 %v828
        %v2358 = vunpack.c.l.b16 %v829
        %v2359 = vunpack.c.h.b16 %v829
        %v2360 = vunpack.c.l.b16 %v830
        %v2361 = vunpack.c.h.b16 %v830
        %v2362 = vunpack.c.l.b16 %v831
        %v2363 = vunpack.c.h.b16 %v831
        %v2364 = vunpack.c.l.b16 %v832
        %v2365 = vunpack.c.h.b16 %v832
        %v2366 = vunpack.c.l.b16 %v833
        %v2367 = vunpack.c.h.b16 %v833
        %v2368 = vunpack.c.l.b16 %v834
        %v2369 = vunpack.c.h.b16 %v834
        %v2370 = vunpack.c.l.b16 %v835
        %v2371 = vunpack.c.h.b16 %v835
        %v2372 = vunpack.c.l.b16 %v836
        %v2373 = vunpack.c.h.b16 %v836
        %v2374 = vunpack.c.l.b16 %v837
        %v2375 = vunpack.c.h.b16 %v837
        %v2376 = vunpack.c.l.b16 %v838
        %v2377 = vunpack.c.h.b16 %v838
        %v2378 = vunpack.c.l.b16 %v839
        %v2379 = vunpack.c.h.b16 %v839
        %v2380 = vunpack.c.l.b16 %v840
        %v2381 = vunpack.c.h.b16 %v840
        %v2382 = vunpack.c.l.b16 %v841
        %v2383 = vunpack.c.h.b16 %v841
        %v2384 = vunpack.c.l.b16 %v842
        %v2385 = vunpack.c.h.b16 %v842
        %v2386 = vunpack.c.l.b16 %v843
        %v2387 = vunpack.c.h.b16 %v843
        %v2388 = vunpack.c.l.b16 %v844
        %v2389 = vunpack.c.h.b16 %v844
        %v2390 = vunpack.c.l.b16 %v845
        %v2391 = vunpack.c.h.b16 %v845
        %v2392 = vunpack.c.l.b16 %v846
        %v2393 = vunpack.c.h.b16 %v846
        %v2394 = vunpack.c.l.b16 %v847
        %v2395 = vunpack.c.h.b16 %v847
        %v2396 = vunpack.c.l.b16 %v848
        %v2397 = vunpack.c.h.b16 %v848
        %v2398 = vunpack.c.l.b16 %v849
        %v2399 = vunpack.c.h.b16 %v849
        %v2400 = vunpack.c.l.b16 %v850
        %v2401 = vunpack.c.h.b16 %v850
        %v2402 = vunpack.c.l.b16 %v851
        %v2403 = vunpack.c.h.b16 %v851
        %v2404 = vunpack.c.l.b16 %v852
        %v2405 = vunpack.c.h.b16 %v852
        %v2406 = vunpack.c.l.b16 %v853
        %v2407 = vunpack.c.h.b16 %v853
        %v2408 = vunpack.c.l.b16 %v854
        %v2409 = vunpack.c.h.b16 %v854
        %v2410 = vunpack.c.l.b16 %v855
        %v2411 = vunpack.c.h.b16 %v855
        %v2412 = vunpack.c.l.b16 %v856
        %v2413 = vunpack.c.h.b16 %v856
        %v2414 = vunpack.c.l.b16 %v857
        %v2415 = vunpack.c.h.b16 %v857
        %v2416 = vunpack.c.l.b16 %v858
        %v2417 = vunpack.c.h.b16 %v858
        %v2418 = vunpack.c.l.b16 %v859
        %v2419 = vunpack.c.h.b16 %v859
        %v2420 = vunpack.c.l.b16 %v860
        %v2421 = vunpack.c.h.b16 %v860
        %v2422 = vunpack.c.l.b16 %v861
        %v2423 = vunpack.c.h.b16 %v861
        %v2424 = vunpack.c.l.b16 %v862
        %v2425 = vunpack.c.h.b16 %v862
        %v2426 = vunpack.c.l.b16 %v863
        %v2427 = vunpack.c.h.b16 %v863
        %v2428 = vunpack.c.l.b16 %v864
        %v2429 = vunpack.c.h.b16 %v864
        %v2430 = vunpack.c.l.b16 %v865
        %v2431 = vunpack.c.h.b16 %v865
        %v2432 = vunpack.c.l.b16 %v866
        %v2433 = vunpack.c.h.b16 %v866
        %v2434 = vunpack.c.l.b16 %v867
        %v2435 = vunpack.c.h.b16 %v867
        %v2436 = vunpack.c.l.b16 %v868
        %v2437 = vunpack.c.h.b16 %v868
        %v2438 = vunpack.c.l.b16 %v869
        %v2439 = vunpack.c.h.b16 %v869
        %v2440 = vunpack.c.l.b16 %v870
        %v2441 = vunpack.c.h.b16 %v870
        %v2442 = vunpack.c.l.b16 %v871
        %v2443 = vunpack.c.h.b16 %v871
        %v2444 = vunpack.c.l.b16 %v872
        %v2445 = vunpack.c.h.b16 %v872
        %v2446 = vunpack.c.l.b16 %v873
        %v2447 = vunpack.c.h.b16 %v873
        %v2448 = vunpack.c.l.b16 %v874
        %v2449 = vunpack.c.h.b16 %v874
        %v2450 = vunpack.c.l.b16 %v875
        %v2451 = vunpack.c.h.b16 %v875
        %v2452 = vunpack.c.l.b16 %v876
        %v2453 = vunpack.c.h.b16 %v876
        %v2454 = vunpack.c.l.b16 %v877
        %v2455 = vunpack.c.h.b16 %v877
        %v2456 = vunpack.c.l.b16 %v878
        %v2457 = vunpack.c.h.b16 %v878
        %v2458 = vunpack.c.l.b16 %v879
        %v2459 = vunpack.c.h.b16 %v879
        %v2460 = vunpack.c.l.b16 %v880
        %v2461 = vunpack.c.h.b16 %v880
        %v2462 = vunpack.c.l.b16 %v881
        %v2463 = vunpack.c.h.b16 %v881
        %v2464 = vunpack.c.l.b16 %v882
        %v2465 = vunpack.c.h.b16 %v882
        %v2466 = vunpack.c.l.b16 %v883
        %v2467 = vunpack.c.h.b16 %v883
        %v2468 = vunpack.c.l.b16 %v884
        %v2469 = vunpack.c.h.b16 %v884
        %v2470 = vunpack.c.l.b16 %v885
        %v2471 = vunpack.c.h.b16 %v885
        %v2472 = vunpack.c.l.b16 %v886
        %v2473 = vunpack.c.h.b16 %v886
        %v2474 = vunpack.c.l.b16 %v887
        %v2475 = vunpack.c.h.b16 %v887
        %v2476 = vunpack.c.l.b16 %v888
        %v2477 = vunpack.c.h.b16 %v888
        %v2478 = vunpack.c.l.b16 %v889
        %v2479 = vunpack.c.h.b16 %v889
        %v2480 = vunpack.c.l.b16 %v890
        %v2481 = vunpack.c.h.b16 %v890
        %v2482 = vunpack.c.l.b16 %v891
        %v2483 = vunpack.c.h.b16 %v891
        %v2484 = vunpack.c.l.b16 %v892
        %v2485 = vunpack.c.h.b16 %v892
        %v2486 = vunpack.c.l.b16 %v893
        %v2487 = vunpack.c.h.b16 %v893
        %v2488 = vunpack.c.l.b16 %v894
        %v2489 = vunpack.c.h.b16 %v894
        %v2490 = vunpack.c.l.b16 %v895
        %v2491 = vunpack.c.h.b16 %v895
        %v2492 = vunpack.c.l.b16 %v896
        %v2493 = vunpack.c.h.b16 %v896
        %v2494 = vunpack.c.l.b16 %v897
        %v2495 = vunpack.c.h.b16 %v897
        %v2496 = vunpack.c.l.b16 %v898
        %v2497 = vunpack.c.h.b16 %v898
        %v2498 = vunpack.c.l.b16 %v899
        %v2499 = vunpack.c.h.b16 %v899
        %v2500 = vunpack.c.l.b16 %v900
        %v2501 = vunpack.c.h.b16 %v900
        %v2502 = vunpack.c.l.b16 %v901
        %v2503 = vunpack.c.h.b16 %v901
        %v2504 = vunpack.c.l.b16 %v902
        %v2505 = vunpack.c.h.b16 %v902
        %v2506 = vunpack.c.l.b16 %v903
        %v2507 = vunpack.c.h.b16 %v903
        %v2508 = vunpack.c.l.b16 %v904
        %v2509 = vunpack.c.h.b16 %v904
        %v2510 = vunpack.c.l.b16 %v905
        %v2511 = vunpack.c.h.b16 %v905
        %v2512 = vunpack.c.l.b16 %v906
        %v2513 = vunpack.c.h.b16 %v906
        %v2514 = vunpack.c.l.b16 %v907
        %v2515 = vunpack.c.h.b16 %v907
        %v2516 = vunpack.c.l.b16 %v908
        %v2517 = vunpack.c.h.b16 %v908
        %v2518 = vunpack.c.l.b16 %v909
        %v2519 = vunpack.c.h.b16 %v909
        %v2520 = vunpack.c.l.b16 %v910
        %v2521 = vunpack.c.h.b16 %v910
        %v2522 = vunpack.c.l.b16 %v911
        %v2523 = vunpack.c.h.b16 %v911
        %v2524 = vunpack.c.l.b16 %v912
        %v2525 = vunpack.c.h.b16 %v912
        %v2526 = vunpack.c.l.b16 %v913
        %v2527 = vunpack.c.h.b16 %v913
        %v2528 = vunpack.c.l.b16 %v914
        %v2529 = vunpack.c.h.b16 %v914
        %v2530 = vunpack.c.l.b16 %v915
        %v2531 = vunpack.c.h.b16 %v915
        %v2532 = vpack.c.b16 %v1512, %v1508
        %v2533 = vpack.c.b16 %v1513, %v1509
        %v2534 = vpack.c.b16 %v1514, %v1510
        %v2535 = vpack.c.b16 %v1515, %v1511
        %v2536 = vpack.c.b16 %v1520, %v1516
        %v2537 = vpack.c.b16 %v1521, %v1517
        %v2538 = vpack.c.b16 %v1522, %v1518
        %v2539 = vpack.c.b16 %v1523, %v1519
        %v2540 = vpack.c.b16 %v1528, %v1524
        %v2541 = vpack.c.b16 %v1529, %v1525
        %v2542 = vpack.c.b16 %v1530, %v1526
        %v2543 = vpack.c.b16 %v1531, %v1527
        %v2544 = vpack.c.b16 %v1536, %v1532
        %v2545 = vpack.c.b16 %v1537, %v1533
        %v2546 = vpack.c.b16 %v1538, %v1534
        %v2547 = vpack.c.b16 %v1539, %v1535
        %v2548 = vpack.c.b16 %v1544, %v1540
        %v2549 = vpack.c.b16 %v1545, %v1541
        %v2550 = vpack.c.b16 %v1546, %v1542
        %v2551 = vpack.c.b16 %v1547, %v1543
        %v2552 = vpack.c.b16 %v1552, %v1548
        %v2553 = vpack.c.b16 %v1553, %v1549
        %v2554 = vpack.c.b16 %v1554, %v1550
        %v2555 = vpack.c.b16 %v1555, %v1551
        %v2556 = vpack.c.b16 %v1560, %v1556
        %v2557 = vpack.c.b16 %v1561, %v1557
        %v2558 = vpack.c.b16 %v1562, %v1558
        %v2559 = vpack.c.b16 %v1563, %v1559
        %v2560 = vpack.c.b16 %v1568, %v1564
        %v2561 = vpack.c.b16 %v1569, %v1565
        %v2562 = vpack.c.b16 %v1570, %v1566
        %v2563 = vpack.c.b16 %v1571, %v1567
        %v2564 = vpack.c.b16 %v1576, %v1572
        %v2565 = vpack.c.b16 %v1577, %v1573
        %v2566 = vpack.c.b16 %v1578, %v1574
        %v2567 = vpack.c.b16 %v1579, %v1575
        %v2568 = vpack.c.b16 %v1584, %v1580
        %v2569 = vpack.c.b16 %v1585, %v1581
        %v2570 = vpack.c.b16 %v1586, %v1582
        %v2571 = vpack.c.b16 %v1587, %v1583
        %v2572 = vpack.c.b16 %v1592, %v1588
        %v2573 = vpack.c.b16 %v1593, %v1589
        %v2574 = vpack.c.b16 %v1594, %v1590
        %v2575 = vpack.c.b16 %v1595, %v1591
        %v2576 = vpack.c.b16 %v1600, %v1596
        %v2577 = vpack.c.b16 %v1601, %v1597
        %v2578 = vpack.c.b16 %v1602, %v1598
        %v2579 = vpack.c.b16 %v1603, %v1599
        %v2580 = vpack.c.b16 %v1608, %v1604
        %v2581 = vpack.c.b16 %v1609, %v1605
        %v2582 = vpack.c.b16 %v1610, %v1606
        %v2583 = vpack.c.b16 %v1611, %v1607
        %v2584 = vpack.c.b16 %v1616, %v1612
        %v2585 = vpack.c.b16 %v1617, %v1613
        %v2586 = vpack.c.b16 %v1618, %v1614
        %v2587 = vpack.c.b16 %v1619, %v1615
        %v2588 = vpack.c.b16 %v1624, %v1620
        %v2589 = vpack.c.b16 %v1625, %v1621
        %v2590 = vpack.c.b16 %v1626, %v1622
        %v2591 = vpack.c.b16 %v1627, %v1623
        %v2592 = vpack.c.b16 %v1632, %v1628
        %v2593 = vpack.c.b16 %v1633, %v1629
        %v2594 = vpack.c.b16 %v1634, %v1630
        %v2595 = vpack.c.b16 %v1635, %v1631
        %v2596 = vpack.c.b16 %v1640, %v1636
        %v2597 = vpack.c.b16 %v1641, %v1637
        %v2598 = vpack.c.b16 %v1642, %v1638
        %v2599 = vpack.c.b16 %v1643, %v1639
        %v2600 = vpack.c.b16 %v1648, %v1644
        %v2601 = vpack.c.b16 %v1649, %v1645
        %v2602 = vpack.c.b16 %v1650, %v1646
        %v2603 = vpack.c.b16 %v1651, %v1647
        %v2604 = vpack.c.b16 %v1656, %v1652
        %v2605 = vpack.c.b16 %v1657, %v1653
        %v2606 = vpack.c.b16 %v1658, %v1654
        %v2607 = vpack.c.b16 %v1659, %v1655
        %v2608 = vpack.c.b16 %v1664, %v1660
        %v2609 = vpack.c.b16 %v1665, %v1661
        %v2610 = vpack.c.b16 %v1666, %v1662
        %v2611 = vpack.c.b16 %v1667, %v1663
        %v2612 = vpack.c.b16 %v1672, %v1668
        %v2613 = vpack.c.b16 %v1673, %v1669
        %v2614 = vpack.c.b16 %v1674, %v1670
        %v2615 = vpack.c.b16 %v1675, %v1671
        %v2616 = vpack.c.b16 %v1680, %v1676
        %v2617 = vpack.c.b16 %v1681, %v1677
        %v2618 = vpack.c.b16 %v1682, %v1678
        %v2619 = vpack.c.b16 %v1683, %v1679
        %v2620 = vpack.c.b16 %v1688, %v1684
        %v2621 = vpack.c.b16 %v1689, %v1685
        %v2622 = vpack.c.b16 %v1690, %v1686
        %v2623 = vpack.c.b16 %v1691, %v1687
        %v2624 = vpack.c.b16 %v1696, %v1692
        %v2625 = vpack.c.b16 %v1697, %v1693
        %v2626 = vpack.c.b16 %v1698, %v1694
        %v2627 = vpack.c.b16 %v1699, %v1695
        %v2628 = vpack.c.b16 %v1704, %v1700
        %v2629 = vpack.c.b16 %v1705, %v1701
        %v2630 = vpack.c.b16 %v1706, %v1702
        %v2631 = vpack.c.b16 %v1707, %v1703
        %v2632 = vpack.c.b16 %v1712, %v1708
        %v2633 = vpack.c.b16 %v1713, %v1709
        %v2634 = vpack.c.b16 %v1714, %v1710
        %v2635 = vpack.c.b16 %v1715, %v1711
        %v2636 = vpack.c.b16 %v1720, %v1716
        %v2637 = vpack.c.b16 %v1721, %v1717
        %v2638 = vpack.c.b16 %v1722, %v1718
        %v2639 = vpack.c.b16 %v1723, %v1719
        %v2640 = vpack.c.b16 %v1728, %v1724
        %v2641 = vpack.c.b16 %v1729, %v1725
        %v2642 = vpack.c.b16 %v1730, %v1726
        %v2643 = vpack.c.b16 %v1731, %v1727
        %v2644 = vpack.c.b16 %v1736, %v1732
        %v2645 = vpack.c.b16 %v1737, %v1733
        %v2646 = vpack.c.b16 %v1738, %v1734
        %v2647 = vpack.c.b16 %v1739, %v1735
        %v2648 = vpack.c.b16 %v1744, %v1740
        %v2649 = vpack.c.b16 %v1745, %v1741
        %v2650 = vpack.c.b16 %v1746, %v1742
        %v2651 = vpack.c.b16 %v1747, %v1743
        %v2652 = vpack.c.b16 %v1752, %v1748
        %v2653 = vpack.c.b16 %v1753, %v1749
        %v2654 = vpack.c.b16 %v1754, %v1750
        %v2655 = vpack.c.b16 %v1755, %v1751
        %v2656 = vpack.c.b16 %v1760, %v1756
        %v2657 = vpack.c.b16 %v1761, %v1757
        %v2658 = vpack.c.b16 %v1762, %v1758
        %v2659 = vpack.c.b16 %v1763, %v1759
        %v2660 = vpack.c.b16 %v1768, %v1764
        %v2661 = vpack.c.b16 %v1769, %v1765
        %v2662 = vpack.c.b16 %v1770, %v1766
        %v2663 = vpack.c.b16 %v1771, %v1767
        %v2664 = vpack.c.b16 %v1776, %v1772
        %v2665 = vpack.c.b16 %v1777, %v1773
        %v2666 = vpack.c.b16 %v1778, %v1774
        %v2667 = vpack.c.b16 %v1779, %v1775
        %v2668 = vpack.c.b16 %v1784, %v1780
        %v2669 = vpack.c.b16 %v1785, %v1781
        %v2670 = vpack.c.b16 %v1786, %v1782
        %v2671 = vpack.c.b16 %v1787, %v1783
        %v2672 = vpack.c.b16 %v1792, %v1788
        %v2673 = vpack.c.b16 %v1793, %v1789
        %v2674 = vpack.c.b16 %v1794, %v1790
        %v2675 = vpack.c.b16 %v1795, %v1791
        %v2676 = vpack.c.b16 %v1800, %v1796
        %v2677 = vpack.c.b16 %v1801, %v1797
        %v2678 = vpack.c.b16 %v1802, %v1798
        %v2679 = vpack.c.b16 %v1803, %v1799
        %v2680 = vpack.c.b16 %v1808, %v1804
        %v2681 = vpack.c.b16 %v1809, %v1805
        %v2682 = vpack.c.b16 %v1810, %v1806
        %v2683 = vpack.c.b16 %v1811, %v1807
        %v2684 = vpack.c.b16 %v1816, %v1812
        %v2685 = vpack.c.b16 %v1817, %v1813
        %v2686 = vpack.c.b16 %v1818, %v1814
        %v2687 = vpack.c.b16 %v1819, %v1815
        %v2688 = vpack.c.b16 %v1824, %v1820
        %v2689 = vpack.c.b16 %v1825, %v1821
        %v2690 = vpack.c.b16 %v1826, %v1822
        %v2691 = vpack.c.b16 %v1827, %v1823
        %v2692 = vpack.c.b16 %v1832, %v1828
        %v2693 = vpack.c.b16 %v1833, %v1829
        %v2694 = vpack.c.b16 %v1834, %v1830
        %v2695 = vpack.c.b16 %v1835, %v1831
        %v2696 = vpack.c.b16 %v1840, %v1836
        %v2697 = vpack.c.b16 %v1841, %v1837
        %v2698 = vpack.c.b16 %v1842, %v1838
        %v2699 = vpack.c.b16 %v1843, %v1839
        %v2700 = vpack.c.b16 %v1848, %v1844
        %v2701 = vpack.c.b16 %v1849, %v1845
        %v2702 = vpack.c.b16 %v1850, %v1846
        %v2703 = vpack.c.b16 %v1851, %v1847
        %v2704 = vpack.c.b16 %v1856, %v1852
        %v2705 = vpack.c.b16 %v1857, %v1853
        %v2706 = vpack.c.b16 %v1858, %v1854
        %v2707 = vpack.c.b16 %v1859, %v1855
        %v2708 = vpack.c.b16 %v1864, %v1860
        %v2709 = vpack.c.b16 %v1865, %v1861
        %v2710 = vpack.c.b16 %v1866, %v1862
        %v2711 = vpack.c.b16 %v1867, %v1863
        %v2712 = vpack.c.b16 %v1872, %v1868
        %v2713 = vpack.c.b16 %v1873, %v1869
        %v2714 = vpack.c.b16 %v1874, %v1870
        %v2715 = vpack.c.b16 %v1875, %v1871
        %v2716 = vpack.c.b16 %v1880, %v1876
        %v2717 = vpack.c.b16 %v1881, %v1877
        %v2718 = vpack.c.b16 %v1882, %v1878
        %v2719 = vpack.c.b16 %v1883, %v1879
        %v2720 = vpack.c.b16 %v1888, %v1884
        %v2721 = vpack.c.b16 %v1889, %v1885
        %v2722 = vpack.c.b16 %v1890, %v1886
        %v2723 = vpack.c.b16 %v1891, %v1887
        %v2724 = vpack.c.b16 %v1896, %v1892
        %v2725 = vpack.c.b16 %v1897, %v1893
        %v2726 = vpack.c.b16 %v1898, %v1894
        %v2727 = vpack.c.b16 %v1899, %v1895
        %v2728 = vpack.c.b16 %v1904, %v1900
        %v2729 = vpack.c.b16 %v1905, %v1901
        %v2730 = vpack.c.b16 %v1906, %v1902
        %v2731 = vpack.c.b16 %v1907, %v1903
        %v2732 = vpack.c.b16 %v1912, %v1908
        %v2733 = vpack.c.b16 %v1913, %v1909
        %v2734 = vpack.c.b16 %v1914, %v1910
        %v2735 = vpack.c.b16 %v1915, %v1911
        %v2736 = vpack.c.b16 %v1920, %v1916
        %v2737 = vpack.c.b16 %v1921, %v1917
        %v2738 = vpack.c.b16 %v1922, %v1918
        %v2739 = vpack.c.b16 %v1923, %v1919
        %v2740 = vpack.c.b16 %v1928, %v1924
        %v2741 = vpack.c.b16 %v1929, %v1925
        %v2742 = vpack.c.b16 %v1930, %v1926
        %v2743 = vpack.c.b16 %v1931, %v1927
        %v2744 = vpack.c.b16 %v1936, %v1932
        %v2745 = vpack.c.b16 %v1937, %v1933
        %v2746 = vpack.c.b16 %v1938, %v1934
        %v2747 = vpack.c.b16 %v1939, %v1935
        %v2748 = vpack.c.b16 %v1944, %v1940
        %v2749 = vpack.c.b16 %v1945, %v1941
        %v2750 = vpack.c.b16 %v1946, %v1942
        %v2751 = vpack.c.b16 %v1947, %v1943
        %v2752 = vpack.c.b16 %v1952, %v1948
        %v2753 = vpack.c.b16 %v1953, %v1949
        %v2754 = vpack.c.b16 %v1954, %v1950
        %v2755 = vpack.c.b16 %v1955, %v1951
        %v2756 = vpack.c.b16 %v1960, %v1956
        %v2757 = vpack.c.b16 %v1961, %v1957
        %v2758 = vpack.c.b16 %v1962, %v1958
        %v2759 = vpack.c.b16 %v1963, %v1959
        %v2760 = vpack.c.b16 %v1968, %v1964
        %v2761 = vpack.c.b16 %v1969, %v1965
        %v2762 = vpack.c.b16 %v1970, %v1966
        %v2763 = vpack.c.b16 %v1971, %v1967
        %v2764 = vpack.c.b16 %v1976, %v1972
        %v2765 = vpack.c.b16 %v1977, %v1973
        %v2766 = vpack.c.b16 %v1978, %v1974
        %v2767 = vpack.c.b16 %v1979, %v1975
        %v2768 = vpack.c.b16 %v1984, %v1980
        %v2769 = vpack.c.b16 %v1985, %v1981
        %v2770 = vpack.c.b16 %v1986, %v1982
        %v2771 = vpack.c.b16 %v1987, %v1983
        %v2772 = vpack.c.b16 %v1992, %v1988
        %v2773 = vpack.c.b16 %v1993, %v1989
        %v2774 = vpack.c.b16 %v1994, %v1990
        %v2775 = vpack.c.b16 %v1995, %v1991
        %v2776 = vpack.c.b16 %v2000, %v1996
        %v2777 = vpack.c.b16 %v2001, %v1997
        %v2778 = vpack.c.b16 %v2002, %v1998
        %v2779 = vpack.c.b16 %v2003, %v1999
        %v2780 = vpack.c.b16 %v2008, %v2004
        %v2781 = vpack.c.b16 %v2009, %v2005
        %v2782 = vpack.c.b16 %v2010, %v2006
        %v2783 = vpack.c.b16 %v2011, %v2007
        %v2784 = vpack.c.b16 %v2016, %v2012
        %v2785 = vpack.c.b16 %v2017, %v2013
        %v2786 = vpack.c.b16 %v2018, %v2014
        %v2787 = vpack.c.b16 %v2019, %v2015
        %v2788 = vpack.c.b16 %v2024, %v2020
        %v2789 = vpack.c.b16 %v2025, %v2021
        %v2790 = vpack.c.b16 %v2026, %v2022
        %v2791 = vpack.c.b16 %v2027, %v2023
        %v2792 = vpack.c.b16 %v2032, %v2028
        %v2793 = vpack.c.b16 %v2033, %v2029
        %v2794 = vpack.c.b16 %v2034, %v2030
        %v2795 = vpack.c.b16 %v2035, %v2031
        %v2796 = vpack.c.b16 %v2040, %v2036
        %v2797 = vpack.c.b16 %v2041, %v2037
        %v2798 = vpack.c.b16 %v2042, %v2038
        %v2799 = vpack.c.b16 %v2043, %v2039
        %v2800 = vpack.c.b16 %v2048, %v2044
        %v2801 = vpack.c.b16 %v2049, %v2045
        %v2802 = vpack.c.b16 %v2050, %v2046
        %v2803 = vpack.c.b16 %v2051, %v2047
        %v2804 = vpack.c.b16 %v2056, %v2052
        %v2805 = vpack.c.b16 %v2057, %v2053
        %v2806 = vpack.c.b16 %v2058, %v2054
        %v2807 = vpack.c.b16 %v2059, %v2055
        %v2808 = vpack.c.b16 %v2064, %v2060
        %v2809 = vpack.c.b16 %v2065, %v2061
        %v2810 = vpack.c.b16 %v2066, %v2062
        %v2811 = vpack.c.b16 %v2067, %v2063
        %v2812 = vpack.c.b16 %v2072, %v2068
        %v2813 = vpack.c.b16 %v2073, %v2069
        %v2814 = vpack.c.b16 %v2074, %v2070
        %v2815 = vpack.c.b16 %v2075, %v2071
        %v2816 = vpack.c.b16 %v2080, %v2076
        %v2817 = vpack.c.b16 %v2081, %v2077
        %v2818 = vpack.c.b16 %v2082, %v2078
        %v2819 = vpack.c.b16 %v2083, %v2079
        %v2820 = vpack.c.b16 %v2088, %v2084
        %v2821 = vpack.c.b16 %v2089, %v2085
        %v2822 = vpack.c.b16 %v2090, %v2086
        %v2823 = vpack.c.b16 %v2091, %v2087
        %v2824 = vpack.c.b16 %v2096, %v2092
        %v2825 = vpack.c.b16 %v2097, %v2093
        %v2826 = vpack.c.b16 %v2098, %v2094
        %v2827 = vpack.c.b16 %v2099, %v2095
        %v2828 = vpack.c.b16 %v2104, %v2100
        %v2829 = vpack.c.b16 %v2105, %v2101
        %v2830 = vpack.c.b16 %v2106, %v2102
        %v2831 = vpack.c.b16 %v2107, %v2103
        %v2832 = vpack.c.b16 %v2112, %v2108
        %v2833 = vpack.c.b16 %v2113, %v2109
        %v2834 = vpack.c.b16 %v2114, %v2110
        %v2835 = vpack.c.b16 %v2115, %v2111
        %v2836 = vpack.c.b16 %v2120, %v2116
        %v2837 = vpack.c.b16 %v2121, %v2117
        %v2838 = vpack.c.b16 %v2122, %v2118
        %v2839 = vpack.c.b16 %v2123, %v2119
        %v2840 = vpack.c.b16 %v2128, %v2124
        %v2841 = vpack.c.b16 %v2129, %v2125
        %v2842 = vpack.c.b16 %v2130, %v2126
        %v2843 = vpack.c.b16 %v2131, %v2127
        %v2844 = vpack.c.b16 %v2136, %v2132
        %v2845 = vpack.c.b16 %v2137, %v2133
        %v2846 = vpack.c.b16 %v2138, %v2134
        %v2847 = vpack.c.b16 %v2139, %v2135
        %v2848 = vpack.c.b16 %v2144, %v2140
        %v2849 = vpack.c.b16 %v2145, %v2141
        %v2850 = vpack.c.b16 %v2146, %v2142
        %v2851 = vpack.c.b16 %v2147, %v2143
        %v2852 = vpack.c.b16 %v2152, %v2148
        %v2853 = vpack.c.b16 %v2153, %v2149
        %v2854 = vpack.c.b16 %v2154, %v2150
        %v2855 = vpack.c.b16 %v2155, %v2151
        %v2856 = vpack.c.b16 %v2160, %v2156
        %v2857 = vpack.c.b16 %v2161, %v2157
        %v2858 = vpack.c.b16 %v2162, %v2158
        %v2859 = vpack.c.b16 %v2163, %v2159
        %v2860 = vpack.c.b16 %v2168, %v2164
        %v2861 = vpack.c.b16 %v2169, %v2165
        %v2862 = vpack.c.b16 %v2170, %v2166
        %v2863 = vpack.c.b16 %v2171, %v2167
        %v2864 = vpack.c.b16 %v2176, %v2172
        %v2865 = vpack.c.b16 %v2177, %v2173
        %v2866 = vpack.c.b16 %v2178, %v2174
        %v2867 = vpack.c.b16 %v2179, %v2175
        %v2868 = vpack.c.b16 %v2184, %v2180
        %v2869 = vpack.c.b16 %v2185, %v2181
        %v2870 = vpack.c.b16 %v2186, %v2182
        %v2871 = vpack.c.b16 %v2187, %v2183
        %v2872 = vpack.c.b16 %v2192, %v2188
        %v2873 = vpack.c.b16 %v2193, %v2189
        %v2874 = vpack.c.b16 %v2194, %v2190
        %v2875 = vpack.c.b16 %v2195, %v2191
        %v2876 = vpack.c.b16 %v2200, %v2196
        %v2877 = vpack.c.b16 %v2201, %v2197
        %v2878 = vpack.c.b16 %v2202, %v2198
        %v2879 = vpack.c.b16 %v2203, %v2199
        %v2880 = vpack.c.b16 %v2208, %v2204
        %v2881 = vpack.c.b16 %v2209, %v2205
        %v2882 = vpack.c.b16 %v2210, %v2206
        %v2883 = vpack.c.b16 %v2211, %v2207
        %v2884 = vpack.c.b16 %v2216, %v2212
        %v2885 = vpack.c.b16 %v2217, %v2213
        %v2886 = vpack.c.b16 %v2218, %v2214
        %v2887 = vpack.c.b16 %v2219, %v2215
        %v2888 = vpack.c.b16 %v2224, %v2220
        %v2889 = vpack.c.b16 %v2225, %v2221
        %v2890 = vpack.c.b16 %v2226, %v2222
        %v2891 = vpack.c.b16 %v2227, %v2223
        %v2892 = vpack.c.b16 %v2232, %v2228
        %v2893 = vpack.c.b16 %v2233, %v2229
        %v2894 = vpack.c.b16 %v2234, %v2230
        %v2895 = vpack.c.b16 %v2235, %v2231
        %v2896 = vpack.c.b16 %v2240, %v2236
        %v2897 = vpack.c.b16 %v2241, %v2237
        %v2898 = vpack.c.b16 %v2242, %v2238
        %v2899 = vpack.c.b16 %v2243, %v2239
        %v2900 = vpack.c.b16 %v2248, %v2244
        %v2901 = vpack.c.b16 %v2249, %v2245
        %v2902 = vpack.c.b16 %v2250, %v2246
        %v2903 = vpack.c.b16 %v2251, %v2247
        %v2904 = vpack.c.b16 %v2256, %v2252
        %v2905 = vpack.c.b16 %v2257, %v2253
        %v2906 = vpack.c.b16 %v2258, %v2254
        %v2907 = vpack.c.b16 %v2259, %v2255
        %v2908 = vpack.c.b16 %v2264, %v2260
        %v2909 = vpack.c.b16 %v2265, %v2261
        %v2910 = vpack.c.b16 %v2266, %v2262
        %v2911 = vpack.c.b16 %v2267, %v2263
        %v2912 = vpack.c.b16 %v2272, %v2268
        %v2913 = vpack.c.b16 %v2273, %v2269
        %v2914 = vpack.c.b16 %v2274, %v2270
        %v2915 = vpack.c.b16 %v2275, %v2271
        %v2916 = vpack.c.b16 %v2280, %v2276
        %v2917 = vpack.c.b16 %v2281, %v2277
        %v2918 = vpack.c.b16 %v2282, %v2278
        %v2919 = vpack.c.b16 %v2283, %v2279
        %v2920 = vpack.c.b16 %v2288, %v2284
        %v2921 = vpack.c.b16 %v2289, %v2285
        %v2922 = vpack.c.b16 %v2290, %v2286
        %v2923 = vpack.c.b16 %v2291, %v2287
        %v2924 = vpack.c.b16 %v2296, %v2292
        %v2925 = vpack.c.b16 %v2297, %v2293
        %v2926 = vpack.c.b16 %v2298, %v2294
        %v2927 = vpack.c.b16 %v2299, %v2295
        %v2928 = vpack.c.b16 %v2304, %v2300
        %v2929 = vpack.c.b16 %v2305, %v2301
        %v2930 = vpack.c.b16 %v2306, %v2302
        %v2931 = vpack.c.b16 %v2307, %v2303
        %v2932 = vpack.c.b16 %v2312, %v2308
        %v2933 = vpack.c.b16 %v2313, %v2309
        %v2934 = vpack.c.b16 %v2314, %v2310
        %v2935 = vpack.c.b16 %v2315, %v2311
        %v2936 = vpack.c.b16 %v2320, %v2316
        %v2937 = vpack.c.b16 %v2321, %v2317
        %v2938 = vpack.c.b16 %v2322, %v2318
        %v2939 = vpack.c.b16 %v2323, %v2319
        %v2940 = vpack.c.b16 %v2328, %v2324
        %v2941 = vpack.c.b16 %v2329, %v2325
        %v2942 = vpack.c.b16 %v2330, %v2326
        %v2943 = vpack.c.b16 %v2331, %v2327
        %v2944 = vpack.c.b16 %v2336, %v2332
        %v2945 = vpack.c.b16 %v2337, %v2333
        %v2946 = vpack.c.b16 %v2338, %v2334
        %v2947 = vpack.c.b16 %v2339, %v2335
        %v2948 = vpack.c.b16 %v2344, %v2340
        %v2949 = vpack.c.b16 %v2345, %v2341
        %v2950 = vpack.c.b16 %v2346, %v2342
        %v2951 = vpack.c.b16 %v2347, %v2343
        %v2952 = vpack.c.b16 %v2352, %v2348
        %v2953 = vpack.c.b16 %v2353, %v2349
        %v2954 = vpack.c.b16 %v2354, %v2350
        %v2955 = vpack.c.b16 %v2355, %v2351
        %v2956 = vpack.c.b16 %v2360, %v2356
        %v2957 = vpack.c.b16 %v2361, %v2357
        %v2958 = vpack.c.b16 %v2362, %v2358
        %v2959 = vpack.c.b16 %v2363, %v2359
        %v2960 = vpack.c.b16 %v2368, %v2364
        %v2961 = vpack.c.b16 %v2369, %v2365
        %v2962 = vpack.c.b16 %v2370, %v2366
        %v2963 = vpack.c.b16 %v2371, %v2367
        %v2964 = vpack.c.b16 %v2376, %v2372
        %v2965 = vpack.c.b16 %v2377, %v2373
        %v2966 = vpack.c.b16 %v2378, %v2374
        %v2967 = vpack.c.b16 %v2379, %v2375
        %v2968 = vpack.c.b16 %v2384, %v2380
        %v2969 = vpack.c.b16 %v2385, %v2381
        %v2970 = vpack.c.b16 %v2386, %v2382
        %v2971 = vpack.c.b16 %v2387, %v2383
        %v2972 = vpack.c.b16 %v2392, %v2388
        %v2973 = vpack.c.b16 %v2393, %v2389
        %v2974 = vpack.c.b16 %v2394, %v2390
        %v2975 = vpack.c.b16 %v2395, %v2391
        %v2976 = vpack.c.b16 %v2400, %v2396
        %v2977 = vpack.c.b16 %v2401, %v2397
        %v2978 = vpack.c.b16 %v2402, %v2398
        %v2979 = vpack.c.b16 %v2403, %v2399
        %v2980 = vpack.c.b16 %v2408, %v2404
        %v2981 = vpack.c.b16 %v2409, %v2405
        %v2982 = vpack.c.b16 %v2410, %v2406
        %v2983 = vpack.c.b16 %v2411, %v2407
        %v2984 = vpack.c.b16 %v2416, %v2412
        %v2985 = vpack.c.b16 %v2417, %v2413
        %v2986 = vpack.c.b16 %v2418, %v2414
        %v2987 = vpack.c.b16 %v2419, %v2415
        %v2988 = vpack.c.b16 %v2424, %v2420
        %v2989 = vpack.c.b16 %v2425, %v2421
        %v2990 = vpack.c.b16 %v2426, %v2422
        %v2991 = vpack.c.b16 %v2427, %v2423
        %v2992 = vpack.c.b16 %v2432, %v2428
        %v2993 = vpack.c.b16 %v2433, %v2429
        %v2994 = vpack.c.b16 %v2434, %v2430
        %v2995 = vpack.c.b16 %v2435, %v2431
        %v2996 = vpack.c.b16 %v2440, %v2436
        %v2997 = vpack.c.b16 %v2441, %v2437
        %v2998 = vpack.c.b16 %v2442, %v2438
        %v2999 = vpack.c.b16 %v2443, %v2439
        %v3000 = vpack.c.b16 %v2448, %v2444
        %v3001 = vpack.c.b16 %v2449, %v2445
        %v3002 = vpack.c.b16 %v2450, %v2446
        %v3003 = vpack.c.b16 %v2451, %v2447
        %v3004 = vpack.c.b16 %v2456, %v2452
        %v3005 = vpack.c.b16 %v2457, %v2453
        %v3006 = vpack.c.b16 %v2458, %v2454
        %v3007 = vpack.c.b16 %v2459, %v2455
        %v3008 = vpack.c.b16 %v2464, %v2460
        %v3009 = vpack.c.b16 %v2465, %v2461
        %v3010 = vpack.c.b16 %v2466, %v2462
        %v3011 = vpack.c.b16 %v2467, %v2463
        %v3012 = vpack.c.b16 %v2472, %v2468
        %v3013 = vpack.c.b16 %v2473, %v2469
        %v3014 = vpack.c.b16 %v2474, %v2470
        %v3015 = vpack.c.b16 %v2475, %v2471
        %v3016 = vpack.c.b16 %v2480, %v2476
        %v3017 = vpack.c.b16 %v2481, %v2477
        %v3018 = vpack.c.b16 %v2482, %v2478
        %v3019 = vpack.c.b16 %v2483, %v2479
        %v3020 = vpack.c.b16 %v2488, %v2484
        %v3021 = vpack.c.b16 %v2489, %v2485
        %v3022 = vpack.c.b16 %v2490, %v2486
        %v3023 = vpack.c.b16 %v2491, %v2487
        %v3024 = vpack.c.b16 %v2496, %v2492
        %v3025 = vpack.c.b16 %v2497, %v2493
        %v3026 = vpack.c.b16 %v2498, %v2494
        %v3027 = vpack.c.b16 %v2499, %v2495
        %v3028 = vpack.c.b16 %v2504, %v2500
        %v3029 = vpack.c.b16 %v2505, %v2501
        %v3030 = vpack.c.b16 %v2506, %v2502
        %v3031 = vpack.c.b16 %v2507, %v2503
        %v3032 = vpack.c.b16 %v2512, %v2508
        %v3033 = vpack.c.b16 %v2513, %v2509
        %v3034 = vpack.c.b16 %v2514, %v2510
        %v3035 = vpack.c.b16 %v2515, %v2511
        %v3036 = vpack.c.b16 %v2520, %v2516
        %v3037 = vpack.c.b16 %v2521, %v2517
        %v3038 = vpack.c.b16 %v2522, %v2518
        %v3039 = vpack.c.b16 %v2523, %v2519
        %v3040 = vpack.c.b16 %v2528, %v2524
        %v3041 = vpack.c.b16 %v2529, %v2525
        %v3042 = vpack.c.b16 %v2530, %v2526
        %v3043 = vpack.c.b16 %v2531, %v2527
        %3556 = vmatprep.subr.bf16.mxu0 %v2533
        %3557 = vmatpush1.bf16.msra.mxu0 %v2532
        %3558 = vmatprep.subr.bf16.mxu0 %v2537
        %3559 = vmatpush1.bf16.msra.mxu0 %v2536
        %3560 = vmatprep.subr.bf16.mxu0 %v2541
        %3561 = vmatpush1.bf16.msra.mxu0 %v2540
        %3562 = vmatprep.subr.bf16.mxu0 %v2545
        %3563 = vmatpush1.bf16.msra.mxu0 %v2544
        %3564 = vmatprep.subr.bf16.mxu0 %v2549
        %3565 = vmatpush1.bf16.msra.mxu0 %v2548
        %3566 = vmatprep.subr.bf16.mxu0 %v2553
        %3567 = vmatpush1.bf16.msra.mxu0 %v2552
        %3568 = vmatprep.subr.bf16.mxu0 %v2557
        %3569 = vmatpush1.bf16.msra.mxu0 %v2556
        %3570 = vmatprep.subr.bf16.mxu0 %v2561
        %3571 = vmatpush1.bf16.msra.mxu0 %v2560
        %3572 = vmatprep.subr.bf16.mxu0 %v2565
        %3573 = vmatpush1.bf16.msra.mxu0 %v2564
        %3574 = vmatprep.subr.bf16.mxu0 %v2569
        %3575 = vmatpush1.bf16.msra.mxu0 %v2568
        %3576 = vmatprep.subr.bf16.mxu0 %v2573
        %3577 = vmatpush1.bf16.msra.mxu0 %v2572
        %3578 = vmatprep.subr.bf16.mxu0 %v2577
        %3579 = vmatpush1.bf16.msra.mxu0 %v2576
        %3580 = vmatprep.subr.bf16.mxu0 %v2581
        %3581 = vmatpush1.bf16.msra.mxu0 %v2580
        %3582 = vmatprep.subr.bf16.mxu0 %v2585
        %3583 = vmatpush1.bf16.msra.mxu0 %v2584
        %3584 = vmatprep.subr.bf16.mxu0 %v2589
        %3585 = vmatpush1.bf16.msra.mxu0 %v2588
        %3586 = vmatprep.subr.bf16.mxu0 %v2593
        %3587 = vmatpush1.bf16.msra.mxu0 %v2592
        %3588 = vmatprep.mubr.bf16.mxu0 %v965
        %3589 = vmatmul.mubr.bf16.gmra.mrb[0].mxu0 %v964
        %v3590 = vpop.f32.mrb[0].mxu0
        %v3591 = vadd.f32 0.0, %v3590
        %v3592 = vpop.f32.mrb[0].mxu0
        %v3593 = vadd.f32 0.0, %v3592
        %v3594 = vpop.f32.mrb[0].mxu0
        %v3595 = vadd.f32 0.0, %v3594
        %v3596 = vpop.f32.mrb[0].mxu0
        %v3597 = vadd.f32 0.0, %v3596
        %3598 = vdwg.mxu0
        %3599 = vmatprep.subr.bf16.mxu0 %v2597
        %3600 = vmatpush1.bf16.msra.mxu0 %v2596
        %3601 = vmatprep.subr.bf16.mxu0 %v2601
        %3602 = vmatpush1.bf16.msra.mxu0 %v2600
        %3603 = vmatprep.subr.bf16.mxu0 %v2605
        %3604 = vmatpush1.bf16.msra.mxu0 %v2604
        %3605 = vmatprep.subr.bf16.mxu0 %v2609
        %3606 = vmatpush1.bf16.msra.mxu0 %v2608
        %3607 = vmatprep.subr.bf16.mxu0 %v2613
        %3608 = vmatpush1.bf16.msra.mxu0 %v2612
        %3609 = vmatprep.subr.bf16.mxu0 %v2617
        %3610 = vmatpush1.bf16.msra.mxu0 %v2616
        %3611 = vmatprep.subr.bf16.mxu0 %v2621
        %3612 = vmatpush1.bf16.msra.mxu0 %v2620
        %3613 = vmatprep.subr.bf16.mxu0 %v2625
        %3614 = vmatpush1.bf16.msra.mxu0 %v2624
        %3615 = vmatprep.subr.bf16.mxu0 %v2629
        %3616 = vmatpush1.bf16.msra.mxu0 %v2628
        %3617 = vmatprep.subr.bf16.mxu0 %v2633
        %3618 = vmatpush1.bf16.msra.mxu0 %v2632
        %3619 = vmatprep.subr.bf16.mxu0 %v2637
        %3620 = vmatpush1.bf16.msra.mxu0 %v2636
        %3621 = vmatprep.subr.bf16.mxu0 %v2641
        %3622 = vmatpush1.bf16.msra.mxu0 %v2640
        %3623 = vmatprep.subr.bf16.mxu0 %v2645
        %3624 = vmatpush1.bf16.msra.mxu0 %v2644
        %3625 = vmatprep.subr.bf16.mxu0 %v2649
        %3626 = vmatpush1.bf16.msra.mxu0 %v2648
        %3627 = vmatprep.subr.bf16.mxu0 %v2653
        %3628 = vmatpush1.bf16.msra.mxu0 %v2652
        %3629 = vmatprep.subr.bf16.mxu0 %v2657
        %3630 = vmatpush1.bf16.msra.mxu0 %v2656
        %3631 = vmatprep.mubr.bf16.mxu0 %v967
        %3632 = vmatmul.mubr.bf16.gmra.mrb[0].mxu0 %v966
        %v3633 = vpop.f32.mrb[0].mxu0
        %v3634 = vadd.f32 %v3591, %v3633
        %v3635 = vpop.f32.mrb[0].mxu0
        %v3636 = vadd.f32 %v3593, %v3635
        %v3637 = vpop.f32.mrb[0].mxu0
        %v3638 = vadd.f32 %v3595, %v3637
        %v3639 = vpop.f32.mrb[0].mxu0
        %v3640 = vadd.f32 %v3597, %v3639
        %3641 = vdwg.mxu0
        %3642 = vmatprep.subr.bf16.mxu0 %v2661
        %3643 = vmatpush1.bf16.msra.mxu0 %v2660
        %3644 = vmatprep.subr.bf16.mxu0 %v2665
        %3645 = vmatpush1.bf16.msra.mxu0 %v2664
        %3646 = vmatprep.subr.bf16.mxu0 %v2669
        %3647 = vmatpush1.bf16.msra.mxu0 %v2668
        %3648 = vmatprep.subr.bf16.mxu0 %v2673
        %3649 = vmatpush1.bf16.msra.mxu0 %v2672
        %3650 = vmatprep.subr.bf16.mxu0 %v2677
        %3651 = vmatpush1.bf16.msra.mxu0 %v2676
        %3652 = vmatprep.subr.bf16.mxu0 %v2681
        %3653 = vmatpush1.bf16.msra.mxu0 %v2680
        %3654 = vmatprep.subr.bf16.mxu0 %v2685
        %3655 = vmatpush1.bf16.msra.mxu0 %v2684
        %3656 = vmatprep.subr.bf16.mxu0 %v2689
        %3657 = vmatpush1.bf16.msra.mxu0 %v2688
        %3658 = vmatprep.subr.bf16.mxu0 %v2693
        %3659 = vmatpush1.bf16.msra.mxu0 %v2692
        %3660 = vmatprep.subr.bf16.mxu0 %v2697
        %3661 = vmatpush1.bf16.msra.mxu0 %v2696
        %3662 = vmatprep.subr.bf16.mxu0 %v2701
        %3663 = vmatpush1.bf16.msra.mxu0 %v2700
        %3664 = vmatprep.subr.bf16.mxu0 %v2705
        %3665 = vmatpush1.bf16.msra.mxu0 %v2704
        %3666 = vmatprep.subr.bf16.mxu0 %v2709
        %3667 = vmatpush1.bf16.msra.mxu0 %v2708
        %3668 = vmatprep.subr.bf16.mxu0 %v2713
        %3669 = vmatpush1.bf16.msra.mxu0 %v2712
        %3670 = vmatprep.subr.bf16.mxu0 %v2717
        %3671 = vmatpush1.bf16.msra.mxu0 %v2716
        %3672 = vmatprep.subr.bf16.mxu0 %v2721
        %3673 = vmatpush1.bf16.msra.mxu0 %v2720
        %3674 = vmatprep.mubr.bf16.mxu0 %v969
        %3675 = vmatmul.mubr.bf16.gmra.mrb[0].mxu0 %v968
        %v3676 = vpop.f32.mrb[0].mxu0
        %v3677 = vadd.f32 %v3634, %v3676
        %v3678 = vpop.f32.mrb[0].mxu0
        %v3679 = vadd.f32 %v3636, %v3678
        %v3680 = vpop.f32.mrb[0].mxu0
        %v3681 = vadd.f32 %v3638, %v3680
        %v3682 = vpop.f32.mrb[0].mxu0
        %v3683 = vadd.f32 %v3640, %v3682
        %3684 = vdwg.mxu0
        %3685 = vmatprep.subr.bf16.mxu0 %v2725
        %3686 = vmatpush1.bf16.msra.mxu0 %v2724
        %3687 = vmatprep.subr.bf16.mxu0 %v2729
        %3688 = vmatpush1.bf16.msra.mxu0 %v2728
        %3689 = vmatprep.subr.bf16.mxu0 %v2733
        %3690 = vmatpush1.bf16.msra.mxu0 %v2732
        %3691 = vmatprep.subr.bf16.mxu0 %v2737
        %3692 = vmatpush1.bf16.msra.mxu0 %v2736
        %3693 = vmatprep.subr.bf16.mxu0 %v2741
        %3694 = vmatpush1.bf16.msra.mxu0 %v2740
        %3695 = vmatprep.subr.bf16.mxu0 %v2745
        %3696 = vmatpush1.bf16.msra.mxu0 %v2744
        %3697 = vmatprep.subr.bf16.mxu0 %v2749
        %3698 = vmatpush1.bf16.msra.mxu0 %v2748
        %3699 = vmatprep.subr.bf16.mxu0 %v2753
        %3700 = vmatpush1.bf16.msra.mxu0 %v2752
        %3701 = vmatprep.subr.bf16.mxu0 %v2757
        %3702 = vmatpush1.bf16.msra.mxu0 %v2756
        %3703 = vmatprep.subr.bf16.mxu0 %v2761
        %3704 = vmatpush1.bf16.msra.mxu0 %v2760
        %3705 = vmatprep.subr.bf16.mxu0 %v2765
        %3706 = vmatpush1.bf16.msra.mxu0 %v2764
        %3707 = vmatprep.subr.bf16.mxu0 %v2769
        %3708 = vmatpush1.bf16.msra.mxu0 %v2768
        %3709 = vmatprep.subr.bf16.mxu0 %v2773
        %3710 = vmatpush1.bf16.msra.mxu0 %v2772
        %3711 = vmatprep.subr.bf16.mxu0 %v2777
        %3712 = vmatpush1.bf16.msra.mxu0 %v2776
        %3713 = vmatprep.subr.bf16.mxu0 %v2781
        %3714 = vmatpush1.bf16.msra.mxu0 %v2780
        %3715 = vmatprep.subr.bf16.mxu0 %v2785
        %3716 = vmatpush1.bf16.msra.mxu0 %v2784
        %3717 = vmatprep.mubr.bf16.mxu0 %v971
        %3718 = vmatmul.mubr.bf16.gmra.mrb[0].mxu0 %v970
        %v3719 = vpop.f32.mrb[0].mxu0
        %v3720 = vadd.f32 %v3677, %v3719
        %v3721 = vpop.f32.mrb[0].mxu0
        %v3722 = vadd.f32 %v3679, %v3721
        %v3723 = vpop.f32.mrb[0].mxu0
        %v3724 = vadd.f32 %v3681, %v3723
        %v3725 = vpop.f32.mrb[0].mxu0
        %v3726 = vadd.f32 %v3683, %v3725
        %3727 = vdwg.mxu0
        %3728 = vmatprep.subr.bf16.mxu0 %v2789
        %3729 = vmatpush1.bf16.msra.mxu0 %v2788
        %3730 = vmatprep.subr.bf16.mxu0 %v2793
        %3731 = vmatpush1.bf16.msra.mxu0 %v2792
        %3732 = vmatprep.subr.bf16.mxu0 %v2797
        %3733 = vmatpush1.bf16.msra.mxu0 %v2796
        %3734 = vmatprep.subr.bf16.mxu0 %v2801
        %3735 = vmatpush1.bf16.msra.mxu0 %v2800
        %3736 = vmatprep.subr.bf16.mxu0 %v2805
        %3737 = vmatpush1.bf16.msra.mxu0 %v2804
        %3738 = vmatprep.subr.bf16.mxu0 %v2809
        %3739 = vmatpush1.bf16.msra.mxu0 %v2808
        %3740 = vmatprep.subr.bf16.mxu0 %v2813
        %3741 = vmatpush1.bf16.msra.mxu0 %v2812
        %3742 = vmatprep.subr.bf16.mxu0 %v2817
        %3743 = vmatpush1.bf16.msra.mxu0 %v2816
        %3744 = vmatprep.subr.bf16.mxu0 %v2821
        %3745 = vmatpush1.bf16.msra.mxu0 %v2820
        %3746 = vmatprep.subr.bf16.mxu0 %v2825
        %3747 = vmatpush1.bf16.msra.mxu0 %v2824
        %3748 = vmatprep.subr.bf16.mxu0 %v2829
        %3749 = vmatpush1.bf16.msra.mxu0 %v2828
        %3750 = vmatprep.subr.bf16.mxu0 %v2833
        %3751 = vmatpush1.bf16.msra.mxu0 %v2832
        %3752 = vmatprep.subr.bf16.mxu0 %v2837
        %3753 = vmatpush1.bf16.msra.mxu0 %v2836
        %3754 = vmatprep.subr.bf16.mxu0 %v2841
        %3755 = vmatpush1.bf16.msra.mxu0 %v2840
        %3756 = vmatprep.subr.bf16.mxu0 %v2845
        %3757 = vmatpush1.bf16.msra.mxu0 %v2844
        %3758 = vmatprep.subr.bf16.mxu0 %v2849
        %3759 = vmatpush1.bf16.msra.mxu0 %v2848
        %3760 = vmatprep.mubr.bf16.mxu0 %v973
        %3761 = vmatmul.mubr.bf16.gmra.mrb[0].mxu0 %v972
        %v3762 = vpop.f32.mrb[0].mxu0
        %v3763 = vadd.f32 %v3720, %v3762
        %v3764 = vpop.f32.mrb[0].mxu0
        %v3765 = vadd.f32 %v3722, %v3764
        %v3766 = vpop.f32.mrb[0].mxu0
        %v3767 = vadd.f32 %v3724, %v3766
        %v3768 = vpop.f32.mrb[0].mxu0
        %v3769 = vadd.f32 %v3726, %v3768
        %3770 = vdwg.mxu0
        %3771 = vmatprep.subr.bf16.mxu0 %v2853
        %3772 = vmatpush1.bf16.msra.mxu0 %v2852
        %3773 = vmatprep.subr.bf16.mxu0 %v2857
        %3774 = vmatpush1.bf16.msra.mxu0 %v2856
        %3775 = vmatprep.subr.bf16.mxu0 %v2861
        %3776 = vmatpush1.bf16.msra.mxu0 %v2860
        %3777 = vmatprep.subr.bf16.mxu0 %v2865
        %3778 = vmatpush1.bf16.msra.mxu0 %v2864
        %3779 = vmatprep.subr.bf16.mxu0 %v2869
        %3780 = vmatpush1.bf16.msra.mxu0 %v2868
        %3781 = vmatprep.subr.bf16.mxu0 %v2873
        %3782 = vmatpush1.bf16.msra.mxu0 %v2872
        %3783 = vmatprep.subr.bf16.mxu0 %v2877
        %3784 = vmatpush1.bf16.msra.mxu0 %v2876
        %3785 = vmatprep.subr.bf16.mxu0 %v2881
        %3786 = vmatpush1.bf16.msra.mxu0 %v2880
        %3787 = vmatprep.subr.bf16.mxu0 %v2885
        %3788 = vmatpush1.bf16.msra.mxu0 %v2884
        %3789 = vmatprep.subr.bf16.mxu0 %v2889
        %3790 = vmatpush1.bf16.msra.mxu0 %v2888
        %3791 = vmatprep.subr.bf16.mxu0 %v2893
        %3792 = vmatpush1.bf16.msra.mxu0 %v2892
        %3793 = vmatprep.subr.bf16.mxu0 %v2897
        %3794 = vmatpush1.bf16.msra.mxu0 %v2896
        %3795 = vmatprep.subr.bf16.mxu0 %v2901
        %3796 = vmatpush1.bf16.msra.mxu0 %v2900
        %3797 = vmatprep.subr.bf16.mxu0 %v2905
        %3798 = vmatpush1.bf16.msra.mxu0 %v2904
        %3799 = vmatprep.subr.bf16.mxu0 %v2909
        %3800 = vmatpush1.bf16.msra.mxu0 %v2908
        %3801 = vmatprep.subr.bf16.mxu0 %v2913
        %3802 = vmatpush1.bf16.msra.mxu0 %v2912
        %3803 = vmatprep.mubr.bf16.mxu0 %v975
        %3804 = vmatmul.mubr.bf16.gmra.mrb[0].mxu0 %v974
        %v3805 = vpop.f32.mrb[0].mxu0
        %v3806 = vadd.f32 %v3763, %v3805
        %v3807 = vpop.f32.mrb[0].mxu0
        %v3808 = vadd.f32 %v3765, %v3807
        %v3809 = vpop.f32.mrb[0].mxu0
        %v3810 = vadd.f32 %v3767, %v3809
        %v3811 = vpop.f32.mrb[0].mxu0
        %v3812 = vadd.f32 %v3769, %v3811
        %3813 = vdwg.mxu0
        %3814 = vmatprep.subr.bf16.mxu0 %v2917
        %3815 = vmatpush1.bf16.msra.mxu0 %v2916
        %3816 = vmatprep.subr.bf16.mxu0 %v2921
        %3817 = vmatpush1.bf16.msra.mxu0 %v2920
        %3818 = vmatprep.subr.bf16.mxu0 %v2925
        %3819 = vmatpush1.bf16.msra.mxu0 %v2924
        %3820 = vmatprep.subr.bf16.mxu0 %v2929
        %3821 = vmatpush1.bf16.msra.mxu0 %v2928
        %3822 = vmatprep.subr.bf16.mxu0 %v2933
        %3823 = vmatpush1.bf16.msra.mxu0 %v2932
        %3824 = vmatprep.subr.bf16.mxu0 %v2937
        %3825 = vmatpush1.bf16.msra.mxu0 %v2936
        %3826 = vmatprep.subr.bf16.mxu0 %v2941
        %3827 = vmatpush1.bf16.msra.mxu0 %v2940
        %3828 = vmatprep.subr.bf16.mxu0 %v2945
        %3829 = vmatpush1.bf16.msra.mxu0 %v2944
        %3830 = vmatprep.subr.bf16.mxu0 %v2949
        %3831 = vmatpush1.bf16.msra.mxu0 %v2948
        %3832 = vmatprep.subr.bf16.mxu0 %v2953
        %3833 = vmatpush1.bf16.msra.mxu0 %v2952
        %3834 = vmatprep.subr.bf16.mxu0 %v2957
        %3835 = vmatpush1.bf16.msra.mxu0 %v2956
        %3836 = vmatprep.subr.bf16.mxu0 %v2961
        %3837 = vmatpush1.bf16.msra.mxu0 %v2960
        %3838 = vmatprep.subr.bf16.mxu0 %v2965
        %3839 = vmatpush1.bf16.msra.mxu0 %v2964
        %3840 = vmatprep.subr.bf16.mxu0 %v2969
        %3841 = vmatpush1.bf16.msra.mxu0 %v2968
        %3842 = vmatprep.subr.bf16.mxu0 %v2973
        %3843 = vmatpush1.bf16.msra.mxu0 %v2972
        %3844 = vmatprep.subr.bf16.mxu0 %v2977
        %3845 = vmatpush1.bf16.msra.mxu0 %v2976
        %3846 = vmatprep.mubr.bf16.mxu0 %v977
        %3847 = vmatmul.mubr.bf16.gmra.mrb[0].mxu0 %v976
        %v3848 = vpop.f32.mrb[0].mxu0
        %v3849 = vadd.f32 %v3806, %v3848
        %v3850 = vpop.f32.mrb[0].mxu0
        %v3851 = vadd.f32 %v3808, %v3850
        %v3852 = vpop.f32.mrb[0].mxu0
        %v3853 = vadd.f32 %v3810, %v3852
        %v3854 = vpop.f32.mrb[0].mxu0
        %v3855 = vadd.f32 %v3812, %v3854
        %3856 = vdwg.mxu0
        %3857 = vmatprep.subr.bf16.mxu0 %v2981
        %3858 = vmatpush1.bf16.msra.mxu0 %v2980
        %3859 = vmatprep.subr.bf16.mxu0 %v2985
        %3860 = vmatpush1.bf16.msra.mxu0 %v2984
        %3861 = vmatprep.subr.bf16.mxu0 %v2989
        %3862 = vmatpush1.bf16.msra.mxu0 %v2988
        %3863 = vmatprep.subr.bf16.mxu0 %v2993
        %3864 = vmatpush1.bf16.msra.mxu0 %v2992
        %3865 = vmatprep.subr.bf16.mxu0 %v2997
        %3866 = vmatpush1.bf16.msra.mxu0 %v2996
        %3867 = vmatprep.subr.bf16.mxu0 %v3001
        %3868 = vmatpush1.bf16.msra.mxu0 %v3000
        %3869 = vmatprep.subr.bf16.mxu0 %v3005
        %3870 = vmatpush1.bf16.msra.mxu0 %v3004
        %3871 = vmatprep.subr.bf16.mxu0 %v3009
        %3872 = vmatpush1.bf16.msra.mxu0 %v3008
        %3873 = vmatprep.subr.bf16.mxu0 %v3013
        %3874 = vmatpush1.bf16.msra.mxu0 %v3012
        %3875 = vmatprep.subr.bf16.mxu0 %v3017
        %3876 = vmatpush1.bf16.msra.mxu0 %v3016
        %3877 = vmatprep.subr.bf16.mxu0 %v3021
        %3878 = vmatpush1.bf16.msra.mxu0 %v3020
        %3879 = vmatprep.subr.bf16.mxu0 %v3025
        %3880 = vmatpush1.bf16.msra.mxu0 %v3024
        %3881 = vmatprep.subr.bf16.mxu0 %v3029
        %3882 = vmatpush1.bf16.msra.mxu0 %v3028
        %3883 = vmatprep.subr.bf16.mxu0 %v3033
        %3884 = vmatpush1.bf16.msra.mxu0 %v3032
        %3885 = vmatprep.subr.bf16.mxu0 %v3037
        %3886 = vmatpush1.bf16.msra.mxu0 %v3036
        %3887 = vmatprep.subr.bf16.mxu0 %v3041
        %3888 = vmatpush1.bf16.msra.mxu0 %v3040
        %3889 = vmatprep.mubr.bf16.mxu0 %v979
        %3890 = vmatmul.mubr.bf16.gmra.mrb[0].mxu0 %v978
        %v3891 = vpop.f32.mrb[0].mxu0
        %v3892 = vadd.f32 %v3849, %v3891
        %v3893 = vpop.f32.mrb[0].mxu0
        %v3894 = vadd.f32 %v3851, %v3893
        %v3895 = vpop.f32.mrb[0].mxu0
        %v3896 = vadd.f32 %v3853, %v3895
        %v3897 = vpop.f32.mrb[0].mxu0
        %v3898 = vadd.f32 %v3855, %v3897
        %3899 = vdwg.mxu0
        %3900 = vmatprep.subr.bf16.mxu0 %v2535
        %3901 = vmatpush1.bf16.msra.mxu0 %v2534
        %3902 = vmatprep.subr.bf16.mxu0 %v2539
        %3903 = vmatpush1.bf16.msra.mxu0 %v2538
        %3904 = vmatprep.subr.bf16.mxu0 %v2543
        %3905 = vmatpush1.bf16.msra.mxu0 %v2542
        %3906 = vmatprep.subr.bf16.mxu0 %v2547
        %3907 = vmatpush1.bf16.msra.mxu0 %v2546
        %3908 = vmatprep.subr.bf16.mxu0 %v2551
        %3909 = vmatpush1.bf16.msra.mxu0 %v2550
        %3910 = vmatprep.subr.bf16.mxu0 %v2555
        %3911 = vmatpush1.bf16.msra.mxu0 %v2554
        %3912 = vmatprep.subr.bf16.mxu0 %v2559
        %3913 = vmatpush1.bf16.msra.mxu0 %v2558
        %3914 = vmatprep.subr.bf16.mxu0 %v2563
        %3915 = vmatpush1.bf16.msra.mxu0 %v2562
        %3916 = vmatprep.subr.bf16.mxu0 %v2567
        %3917 = vmatpush1.bf16.msra.mxu0 %v2566
        %3918 = vmatprep.subr.bf16.mxu0 %v2571
        %3919 = vmatpush1.bf16.msra.mxu0 %v2570
        %3920 = vmatprep.subr.bf16.mxu0 %v2575
        %3921 = vmatpush1.bf16.msra.mxu0 %v2574
        %3922 = vmatprep.subr.bf16.mxu0 %v2579
        %3923 = vmatpush1.bf16.msra.mxu0 %v2578
        %3924 = vmatprep.subr.bf16.mxu0 %v2583
        %3925 = vmatpush1.bf16.msra.mxu0 %v2582
        %3926 = vmatprep.subr.bf16.mxu0 %v2587
        %3927 = vmatpush1.bf16.msra.mxu0 %v2586
        %3928 = vmatprep.subr.bf16.mxu0 %v2591
        %3929 = vmatpush1.bf16.msra.mxu0 %v2590
        %3930 = vmatprep.subr.bf16.mxu0 %v2595
        %3931 = vmatpush1.bf16.msra.mxu0 %v2594
        %3932 = vmatprep.mubr.bf16.mxu0 %v965
        %3933 = vmatmul.mubr.bf16.gmra.mrb[0].mxu0 %v964
        %v3934 = vpop.f32.mrb[0].mxu0
        %v3935 = vadd.f32 0.0, %v3934
        %v3936 = vpop.f32.mrb[0].mxu0
        %v3937 = vadd.f32 0.0, %v3936
        %v3938 = vpop.f32.mrb[0].mxu0
        %v3939 = vadd.f32 0.0, %v3938
        %v3940 = vpop.f32.mrb[0].mxu0
        %v3941 = vadd.f32 0.0, %v3940
        %3942 = vdwg.mxu0
        %3943 = vmatprep.subr.bf16.mxu0 %v2599
        %3944 = vmatpush1.bf16.msra.mxu0 %v2598
        %3945 = vmatprep.subr.bf16.mxu0 %v2603
        %3946 = vmatpush1.bf16.msra.mxu0 %v2602
        %3947 = vmatprep.subr.bf16.mxu0 %v2607
        %3948 = vmatpush1.bf16.msra.mxu0 %v2606
        %3949 = vmatprep.subr.bf16.mxu0 %v2611
        %3950 = vmatpush1.bf16.msra.mxu0 %v2610
        %3951 = vmatprep.subr.bf16.mxu0 %v2615
        %3952 = vmatpush1.bf16.msra.mxu0 %v2614
        %3953 = vmatprep.subr.bf16.mxu0 %v2619
        %3954 = vmatpush1.bf16.msra.mxu0 %v2618
        %3955 = vmatprep.subr.bf16.mxu0 %v2623
        %3956 = vmatpush1.bf16.msra.mxu0 %v2622
        %3957 = vmatprep.subr.bf16.mxu0 %v2627
        %3958 = vmatpush1.bf16.msra.mxu0 %v2626
        %3959 = vmatprep.subr.bf16.mxu0 %v2631
        %3960 = vmatpush1.bf16.msra.mxu0 %v2630
        %3961 = vmatprep.subr.bf16.mxu0 %v2635
        %3962 = vmatpush1.bf16.msra.mxu0 %v2634
        %3963 = vmatprep.subr.bf16.mxu0 %v2639
        %3964 = vmatpush1.bf16.msra.mxu0 %v2638
        %3965 = vmatprep.subr.bf16.mxu0 %v2643
        %3966 = vmatpush1.bf16.msra.mxu0 %v2642
        %3967 = vmatprep.subr.bf16.mxu0 %v2647
        %3968 = vmatpush1.bf16.msra.mxu0 %v2646
        %3969 = vmatprep.subr.bf16.mxu0 %v2651
        %3970 = vmatpush1.bf16.msra.mxu0 %v2650
        %3971 = vmatprep.subr.bf16.mxu0 %v2655
        %3972 = vmatpush1.bf16.msra.mxu0 %v2654
        %3973 = vmatprep.subr.bf16.mxu0 %v2659
        %3974 = vmatpush1.bf16.msra.mxu0 %v2658
        %3975 = vmatprep.mubr.bf16.mxu0 %v967
        %3976 = vmatmul.mubr.bf16.gmra.mrb[0].mxu0 %v966
        %v3977 = vpop.f32.mrb[0].mxu0
        %v3978 = vadd.f32 %v3935, %v3977
        %v3979 = vpop.f32.mrb[0].mxu0
        %v3980 = vadd.f32 %v3937, %v3979
        %v3981 = vpop.f32.mrb[0].mxu0
        %v3982 = vadd.f32 %v3939, %v3981
        %v3983 = vpop.f32.mrb[0].mxu0
        %v3984 = vadd.f32 %v3941, %v3983
        %3985 = vdwg.mxu0
        %3986 = vmatprep.subr.bf16.mxu0 %v2663
        %3987 = vmatpush1.bf16.msra.mxu0 %v2662
        %3988 = vmatprep.subr.bf16.mxu0 %v2667
        %3989 = vmatpush1.bf16.msra.mxu0 %v2666
        %3990 = vmatprep.subr.bf16.mxu0 %v2671
        %3991 = vmatpush1.bf16.msra.mxu0 %v2670
        %3992 = vmatprep.subr.bf16.mxu0 %v2675
        %3993 = vmatpush1.bf16.msra.mxu0 %v2674
        %3994 = vmatprep.subr.bf16.mxu0 %v2679
        %3995 = vmatpush1.bf16.msra.mxu0 %v2678
        %3996 = vmatprep.subr.bf16.mxu0 %v2683
        %3997 = vmatpush1.bf16.msra.mxu0 %v2682
        %3998 = vmatprep.subr.bf16.mxu0 %v2687
        %3999 = vmatpush1.bf16.msra.mxu0 %v2686
        %4000 = vmatprep.subr.bf16.mxu0 %v2691
        %4001 = vmatpush1.bf16.msra.mxu0 %v2690
        %4002 = vmatprep.subr.bf16.mxu0 %v2695
        %4003 = vmatpush1.bf16.msra.mxu0 %v2694
        %4004 = vmatprep.subr.bf16.mxu0 %v2699
        %4005 = vmatpush1.bf16.msra.mxu0 %v2698
        %4006 = vmatprep.subr.bf16.mxu0 %v2703
        %4007 = vmatpush1.bf16.msra.mxu0 %v2702
        %4008 = vmatprep.subr.bf16.mxu0 %v2707
        %4009 = vmatpush1.bf16.msra.mxu0 %v2706
        %4010 = vmatprep.subr.bf16.mxu0 %v2711
        %4011 = vmatpush1.bf16.msra.mxu0 %v2710
        %4012 = vmatprep.subr.bf16.mxu0 %v2715
        %4013 = vmatpush1.bf16.msra.mxu0 %v2714
        %4014 = vmatprep.subr.bf16.mxu0 %v2719
        %4015 = vmatpush1.bf16.msra.mxu0 %v2718
        %4016 = vmatprep.subr.bf16.mxu0 %v2723
        %4017 = vmatpush1.bf16.msra.mxu0 %v2722
        %4018 = vmatprep.mubr.bf16.mxu0 %v969
        %4019 = vmatmul.mubr.bf16.gmra.mrb[0].mxu0 %v968
        %v4020 = vpop.f32.mrb[0].mxu0
        %v4021 = vadd.f32 %v3978, %v4020
        %v4022 = vpop.f32.mrb[0].mxu0
        %v4023 = vadd.f32 %v3980, %v4022
        %v4024 = vpop.f32.mrb[0].mxu0
        %v4025 = vadd.f32 %v3982, %v4024
        %v4026 = vpop.f32.mrb[0].mxu0
        %v4027 = vadd.f32 %v3984, %v4026
        %4028 = vdwg.mxu0
        %4029 = vmatprep.subr.bf16.mxu0 %v2727
        %4030 = vmatpush1.bf16.msra.mxu0 %v2726
        %4031 = vmatprep.subr.bf16.mxu0 %v2731
        %4032 = vmatpush1.bf16.msra.mxu0 %v2730
        %4033 = vmatprep.subr.bf16.mxu0 %v2735
        %4034 = vmatpush1.bf16.msra.mxu0 %v2734
        %4035 = vmatprep.subr.bf16.mxu0 %v2739
        %4036 = vmatpush1.bf16.msra.mxu0 %v2738
        %4037 = vmatprep.subr.bf16.mxu0 %v2743
        %4038 = vmatpush1.bf16.msra.mxu0 %v2742
        %4039 = vmatprep.subr.bf16.mxu0 %v2747
        %4040 = vmatpush1.bf16.msra.mxu0 %v2746
        %4041 = vmatprep.subr.bf16.mxu0 %v2751
        %4042 = vmatpush1.bf16.msra.mxu0 %v2750
        %4043 = vmatprep.subr.bf16.mxu0 %v2755
        %4044 = vmatpush1.bf16.msra.mxu0 %v2754
        %4045 = vmatprep.subr.bf16.mxu0 %v2759
        %4046 = vmatpush1.bf16.msra.mxu0 %v2758
        %4047 = vmatprep.subr.bf16.mxu0 %v2763
        %4048 = vmatpush1.bf16.msra.mxu0 %v2762
        %4049 = vmatprep.subr.bf16.mxu0 %v2767
        %4050 = vmatpush1.bf16.msra.mxu0 %v2766
        %4051 = vmatprep.subr.bf16.mxu0 %v2771
        %4052 = vmatpush1.bf16.msra.mxu0 %v2770
        %4053 = vmatprep.subr.bf16.mxu0 %v2775
        %4054 = vmatpush1.bf16.msra.mxu0 %v2774
        %4055 = vmatprep.subr.bf16.mxu0 %v2779
        %4056 = vmatpush1.bf16.msra.mxu0 %v2778
        %4057 = vmatprep.subr.bf16.mxu0 %v2783
        %4058 = vmatpush1.bf16.msra.mxu0 %v2782
        %4059 = vmatprep.subr.bf16.mxu0 %v2787
        %4060 = vmatpush1.bf16.msra.mxu0 %v2786
        %4061 = vmatprep.mubr.bf16.mxu0 %v971
        %4062 = vmatmul.mubr.bf16.gmra.mrb[0].mxu0 %v970
        %v4063 = vpop.f32.mrb[0].mxu0
        %v4064 = vadd.f32 %v4021, %v4063
        %v4065 = vpop.f32.mrb[0].mxu0
        %v4066 = vadd.f32 %v4023, %v4065
        %v4067 = vpop.f32.mrb[0].mxu0
        %v4068 = vadd.f32 %v4025, %v4067
        %v4069 = vpop.f32.mrb[0].mxu0
        %v4070 = vadd.f32 %v4027, %v4069
        %4071 = vdwg.mxu0
        %4072 = vmatprep.subr.bf16.mxu0 %v2791
        %4073 = vmatpush1.bf16.msra.mxu0 %v2790
        %4074 = vmatprep.subr.bf16.mxu0 %v2795
        %4075 = vmatpush1.bf16.msra.mxu0 %v2794
        %4076 = vmatprep.subr.bf16.mxu0 %v2799
        %4077 = vmatpush1.bf16.msra.mxu0 %v2798
        %4078 = vmatprep.subr.bf16.mxu0 %v2803
        %4079 = vmatpush1.bf16.msra.mxu0 %v2802
        %4080 = vmatprep.subr.bf16.mxu0 %v2807
        %4081 = vmatpush1.bf16.msra.mxu0 %v2806
        %4082 = vmatprep.subr.bf16.mxu0 %v2811
        %4083 = vmatpush1.bf16.msra.mxu0 %v2810
        %4084 = vmatprep.subr.bf16.mxu0 %v2815
        %4085 = vmatpush1.bf16.msra.mxu0 %v2814
        %4086 = vmatprep.subr.bf16.mxu0 %v2819
        %4087 = vmatpush1.bf16.msra.mxu0 %v2818
        %4088 = vmatprep.subr.bf16.mxu0 %v2823
        %4089 = vmatpush1.bf16.msra.mxu0 %v2822
        %4090 = vmatprep.subr.bf16.mxu0 %v2827
        %4091 = vmatpush1.bf16.msra.mxu0 %v2826
        %4092 = vmatprep.subr.bf16.mxu0 %v2831
        %4093 = vmatpush1.bf16.msra.mxu0 %v2830
        %4094 = vmatprep.subr.bf16.mxu0 %v2835
        %4095 = vmatpush1.bf16.msra.mxu0 %v2834
        %4096 = vmatprep.subr.bf16.mxu0 %v2839
        %4097 = vmatpush1.bf16.msra.mxu0 %v2838
        %4098 = vmatprep.subr.bf16.mxu0 %v2843
        %4099 = vmatpush1.bf16.msra.mxu0 %v2842
        %4100 = vmatprep.subr.bf16.mxu0 %v2847
        %4101 = vmatpush1.bf16.msra.mxu0 %v2846
        %4102 = vmatprep.subr.bf16.mxu0 %v2851
        %4103 = vmatpush1.bf16.msra.mxu0 %v2850
        %4104 = vmatprep.mubr.bf16.mxu0 %v973
        %4105 = vmatmul.mubr.bf16.gmra.mrb[0].mxu0 %v972
        %v4106 = vpop.f32.mrb[0].mxu0
        %v4107 = vadd.f32 %v4064, %v4106
        %v4108 = vpop.f32.mrb[0].mxu0
        %v4109 = vadd.f32 %v4066, %v4108
        %v4110 = vpop.f32.mrb[0].mxu0
        %v4111 = vadd.f32 %v4068, %v4110
        %v4112 = vpop.f32.mrb[0].mxu0
        %v4113 = vadd.f32 %v4070, %v4112
        %4114 = vdwg.mxu0
        %4115 = vmatprep.subr.bf16.mxu0 %v2855
        %4116 = vmatpush1.bf16.msra.mxu0 %v2854
        %4117 = vmatprep.subr.bf16.mxu0 %v2859
        %4118 = vmatpush1.bf16.msra.mxu0 %v2858
        %4119 = vmatprep.subr.bf16.mxu0 %v2863
        %4120 = vmatpush1.bf16.msra.mxu0 %v2862
        %4121 = vmatprep.subr.bf16.mxu0 %v2867
        %4122 = vmatpush1.bf16.msra.mxu0 %v2866
        %4123 = vmatprep.subr.bf16.mxu0 %v2871
        %4124 = vmatpush1.bf16.msra.mxu0 %v2870
        %4125 = vmatprep.subr.bf16.mxu0 %v2875
        %4126 = vmatpush1.bf16.msra.mxu0 %v2874
        %4127 = vmatprep.subr.bf16.mxu0 %v2879
        %4128 = vmatpush1.bf16.msra.mxu0 %v2878
        %4129 = vmatprep.subr.bf16.mxu0 %v2883
        %4130 = vmatpush1.bf16.msra.mxu0 %v2882
        %4131 = vmatprep.subr.bf16.mxu0 %v2887
        %4132 = vmatpush1.bf16.msra.mxu0 %v2886
        %4133 = vmatprep.subr.bf16.mxu0 %v2891
        %4134 = vmatpush1.bf16.msra.mxu0 %v2890
        %4135 = vmatprep.subr.bf16.mxu0 %v2895
        %4136 = vmatpush1.bf16.msra.mxu0 %v2894
        %4137 = vmatprep.subr.bf16.mxu0 %v2899
        %4138 = vmatpush1.bf16.msra.mxu0 %v2898
        %4139 = vmatprep.subr.bf16.mxu0 %v2903
        %4140 = vmatpush1.bf16.msra.mxu0 %v2902
        %4141 = vmatprep.subr.bf16.mxu0 %v2907
        %4142 = vmatpush1.bf16.msra.mxu0 %v2906
        %4143 = vmatprep.subr.bf16.mxu0 %v2911
        %4144 = vmatpush1.bf16.msra.mxu0 %v2910
        %4145 = vmatprep.subr.bf16.mxu0 %v2915
        %4146 = vmatpush1.bf16.msra.mxu0 %v2914
        %4147 = vmatprep.mubr.bf16.mxu0 %v975
        %4148 = vmatmul.mubr.bf16.gmra.mrb[0].mxu0 %v974
        %v4149 = vpop.f32.mrb[0].mxu0
        %v4150 = vadd.f32 %v4107, %v4149
        %v4151 = vpop.f32.mrb[0].mxu0
        %v4152 = vadd.f32 %v4109, %v4151
        %v4153 = vpop.f32.mrb[0].mxu0
        %v4154 = vadd.f32 %v4111, %v4153
        %v4155 = vpop.f32.mrb[0].mxu0
        %v4156 = vadd.f32 %v4113, %v4155
        %4157 = vdwg.mxu0
        %4158 = vmatprep.subr.bf16.mxu0 %v2919
        %4159 = vmatpush1.bf16.msra.mxu0 %v2918
        %4160 = vmatprep.subr.bf16.mxu0 %v2923
        %4161 = vmatpush1.bf16.msra.mxu0 %v2922
        %4162 = vmatprep.subr.bf16.mxu0 %v2927
        %4163 = vmatpush1.bf16.msra.mxu0 %v2926
        %4164 = vmatprep.subr.bf16.mxu0 %v2931
        %4165 = vmatpush1.bf16.msra.mxu0 %v2930
        %4166 = vmatprep.subr.bf16.mxu0 %v2935
        %4167 = vmatpush1.bf16.msra.mxu0 %v2934
        %4168 = vmatprep.subr.bf16.mxu0 %v2939
        %4169 = vmatpush1.bf16.msra.mxu0 %v2938
        %4170 = vmatprep.subr.bf16.mxu0 %v2943
        %4171 = vmatpush1.bf16.msra.mxu0 %v2942
        %4172 = vmatprep.subr.bf16.mxu0 %v2947
        %4173 = vmatpush1.bf16.msra.mxu0 %v2946
        %4174 = vmatprep.subr.bf16.mxu0 %v2951
        %4175 = vmatpush1.bf16.msra.mxu0 %v2950
        %4176 = vmatprep.subr.bf16.mxu0 %v2955
        %4177 = vmatpush1.bf16.msra.mxu0 %v2954
        %4178 = vmatprep.subr.bf16.mxu0 %v2959
        %4179 = vmatpush1.bf16.msra.mxu0 %v2958
        %4180 = vmatprep.subr.bf16.mxu0 %v2963
        %4181 = vmatpush1.bf16.msra.mxu0 %v2962
        %4182 = vmatprep.subr.bf16.mxu0 %v2967
        %4183 = vmatpush1.bf16.msra.mxu0 %v2966
        %4184 = vmatprep.subr.bf16.mxu0 %v2971
        %4185 = vmatpush1.bf16.msra.mxu0 %v2970
        %4186 = vmatprep.subr.bf16.mxu0 %v2975
        %4187 = vmatpush1.bf16.msra.mxu0 %v2974
        %4188 = vmatprep.subr.bf16.mxu0 %v2979
        %4189 = vmatpush1.bf16.msra.mxu0 %v2978
        %4190 = vmatprep.mubr.bf16.mxu0 %v977
        %4191 = vmatmul.mubr.bf16.gmra.mrb[0].mxu0 %v976
        %v4192 = vpop.f32.mrb[0].mxu0
        %v4193 = vadd.f32 %v4150, %v4192
        %v4194 = vpop.f32.mrb[0].mxu0
        %v4195 = vadd.f32 %v4152, %v4194
        %v4196 = vpop.f32.mrb[0].mxu0
        %v4197 = vadd.f32 %v4154, %v4196
        %v4198 = vpop.f32.mrb[0].mxu0
        %v4199 = vadd.f32 %v4156, %v4198
        %4200 = vdwg.mxu0
        %4201 = vmatprep.subr.bf16.mxu0 %v2983
        %4202 = vmatpush1.bf16.msra.mxu0 %v2982
        %4203 = vmatprep.subr.bf16.mxu0 %v2987
        %4204 = vmatpush1.bf16.msra.mxu0 %v2986
        %4205 = vmatprep.subr.bf16.mxu0 %v2991
        %4206 = vmatpush1.bf16.msra.mxu0 %v2990
        %4207 = vmatprep.subr.bf16.mxu0 %v2995
        %4208 = vmatpush1.bf16.msra.mxu0 %v2994
        %4209 = vmatprep.subr.bf16.mxu0 %v2999
        %4210 = vmatpush1.bf16.msra.mxu0 %v2998
        %4211 = vmatprep.subr.bf16.mxu0 %v3003
        %4212 = vmatpush1.bf16.msra.mxu0 %v3002
        %4213 = vmatprep.subr.bf16.mxu0 %v3007
        %4214 = vmatpush1.bf16.msra.mxu0 %v3006
        %4215 = vmatprep.subr.bf16.mxu0 %v3011
        %4216 = vmatpush1.bf16.msra.mxu0 %v3010
        %4217 = vmatprep.subr.bf16.mxu0 %v3015
        %4218 = vmatpush1.bf16.msra.mxu0 %v3014
        %4219 = vmatprep.subr.bf16.mxu0 %v3019
        %4220 = vmatpush1.bf16.msra.mxu0 %v3018
        %4221 = vmatprep.subr.bf16.mxu0 %v3023
        %4222 = vmatpush1.bf16.msra.mxu0 %v3022
        %4223 = vmatprep.subr.bf16.mxu0 %v3027
        %4224 = vmatpush1.bf16.msra.mxu0 %v3026
        %4225 = vmatprep.subr.bf16.mxu0 %v3031
        %4226 = vmatpush1.bf16.msra.mxu0 %v3030
        %4227 = vmatprep.subr.bf16.mxu0 %v3035
        %4228 = vmatpush1.bf16.msra.mxu0 %v3034
        %4229 = vmatprep.subr.bf16.mxu0 %v3039
        %4230 = vmatpush1.bf16.msra.mxu0 %v3038
        %4231 = vmatprep.subr.bf16.mxu0 %v3043
        %4232 = vmatpush1.bf16.msra.mxu0 %v3042
        %4233 = vmatprep.mubr.bf16.mxu0 %v979
        %4234 = vmatmul.mubr.bf16.gmra.mrb[0].mxu0 %v978
        %v4235 = vpop.f32.mrb[0].mxu0
        %v4236 = vadd.f32 %v4193, %v4235
        %v4237 = vpop.f32.mrb[0].mxu0
        %v4238 = vadd.f32 %v4195, %v4237
        %v4239 = vpop.f32.mrb[0].mxu0
        %v4240 = vadd.f32 %v4197, %v4239
        %v4241 = vpop.f32.mrb[0].mxu0
        %v4242 = vadd.f32 %v4199, %v4241
        %4243 = vdwg.mxu0
        %v4244 = vadd.f32 %v380, %v3892
        %v4245 = vadd.f32 %v381, %v3894
        %v4246 = vadd.f32 %v382, %v4236
        %v4247 = vadd.f32 %v383, %v4238
        %v4248 = vadd.f32 %v384, %v3896
        %v4249 = vadd.f32 %v385, %v3898
        %v4250 = vadd.f32 %v386, %v4240
        %v4251 = vadd.f32 %v387, %v4242
        %4252 = vst [vmem:[#allocation2] sm:$0xff] %v4244
        %4253 = vst [vmem:[#allocation2 + $0x8] sm:$0xff] %v4245
        %4254 = vst [vmem:[#allocation2 + $0x10] sm:$0xff] %v4246
        %4255 = vst [vmem:[#allocation2 + $0x18] sm:$0xff] %v4247
        %4256 = vst [vmem:[#allocation2 + $0x20] sm:$0xff] %v4248
        %4257 = vst [vmem:[#allocation2 + $0x28] sm:$0xff] %v4249
        %4258 = vst [vmem:[#allocation2 + $0x30] sm:$0xff] %v4250
        %4259 = vst [vmem:[#allocation2 + $0x38] sm:$0xff] %v4251
        %p4260 = scmp.eq.s32.totalorder %s19, 3
        // Predicated region
        $region80: #{latent_discriminator_forward.3} parent=70 // pred_check
          %p4261 = pneg %p4260
        $region81: #{latent_discriminator_forward.3} parent=70 // pred_check_branch
          %4263 = sbr.rel (%p4261) target = $region83
        $region82: #{latent_discriminator_forward.3} parent=70 // pred_region
          %v4264 = vld [vmem:[#allocation2] sm:$0xff]
          %v4265 = vld [vmem:[#allocation2 + $0x8] sm:$0xff]
          %v4266 = vld [vmem:[#allocation2 + $0x10] sm:$0xff]
          %v4267 = vld [vmem:[#allocation2 + $0x18] sm:$0xff]
          %v4268 = vld [vmem:[#allocation2 + $0x20] sm:$0xff]
          %v4269 = vld [vmem:[#allocation2 + $0x28] sm:$0xff]
          %v4270 = vld [vmem:[#allocation2 + $0x30] sm:$0xff]
          %v4271 = vld [vmem:[#allocation2 + $0x38] sm:$0xff]
          %v4272 = vld [vmem:[%s2] sm:$0xf]
          %v4274 = vlaneseq
          %v4275 = vshrl.u32 %v4274, 7
          %v4276 = vsub.s32 0, %v4275
          %v4277 = vrot.slane %v4272, %v4276
          %v4278 = vlaneseq
          %v4279 = vshrl.u32 %v4278, 7
          %v4280 = vsub.s32 1, %v4279
          %v4281 = vrot.slane %v4272, %v4280
          %v4282 = vlaneseq
          %v4283 = vshrl.u32 %v4282, 7
          %v4284 = vsub.s32 2, %v4283
          %v4285 = vrot.slane %v4272, %v4284
          %v4286 = vlaneseq
          %v4287 = vshrl.u32 %v4286, 7
          %v4288 = vsub.s32 3, %v4287
          %v4289 = vrot.slane %v4272, %v4288
          %v4294 = vmul.f32 %v4264, %v4277
          %v4295 = vmul.f32 %v4265, %v4281
          %v4296 = vmul.f32 %v4266, %v4285
          %v4297 = vmul.f32 %v4267, %v4289
          %v4298 = vmul.f32 %v4268, %v4277
          %v4299 = vmul.f32 %v4269, %v4281
          %v4300 = vmul.f32 %v4270, %v4285
          %v4301 = vmul.f32 %v4271, %v4289
          %v4302 = vld [vmem:[%s3] sm:$0xf]
          %v4304 = vlaneseq
          %v4305 = vshrl.u32 %v4304, 7
          %v4306 = vsub.s32 0, %v4305
          %v4307 = vrot.slane %v4302, %v4306
          %v4308 = vlaneseq
          %v4309 = vshrl.u32 %v4308, 7
          %v4310 = vsub.s32 1, %v4309
          %v4311 = vrot.slane %v4302, %v4310
          %v4312 = vlaneseq
          %v4313 = vshrl.u32 %v4312, 7
          %v4314 = vsub.s32 2, %v4313
          %v4315 = vrot.slane %v4302, %v4314
          %v4316 = vlaneseq
          %v4317 = vshrl.u32 %v4316, 7
          %v4318 = vsub.s32 3, %v4317
          %v4319 = vrot.slane %v4302, %v4318
          %v4324 = vadd.f32 %v4294, %v4307
          %v4325 = vadd.f32 %v4295, %v4311
          %v4326 = vadd.f32 %v4296, %v4315
          %v4327 = vadd.f32 %v4297, %v4319
          %v4328 = vadd.f32 %v4298, %v4307
          %v4329 = vadd.f32 %v4299, %v4311
          %v4330 = vadd.f32 %v4300, %v4315
          %v4331 = vadd.f32 %v4301, %v4319
          %vm4332 = vcmp.gt.f32.partialorder %v4324, 0.0
          %vm4333 = vcmp.gt.f32.partialorder %v4325, 0.0
          %vm4334 = vcmp.gt.f32.partialorder %v4326, 0.0
          %vm4335 = vcmp.gt.f32.partialorder %v4327, 0.0
          %vm4336 = vcmp.gt.f32.partialorder %v4328, 0.0
          %vm4337 = vcmp.gt.f32.partialorder %v4329, 0.0
          %vm4338 = vcmp.gt.f32.partialorder %v4330, 0.0
          %vm4339 = vcmp.gt.f32.partialorder %v4331, 0.0
          %v4340 = vmul.f32 %v4324, 0.2
          %v4341 = vmul.f32 %v4325, 0.2
          %v4342 = vmul.f32 %v4326, 0.2
          %v4343 = vmul.f32 %v4327, 0.2
          %v4344 = vmul.f32 %v4328, 0.2
          %v4345 = vmul.f32 %v4329, 0.2
          %v4346 = vmul.f32 %v4330, 0.2
          %v4347 = vmul.f32 %v4331, 0.2
          %v4348 = vsel %vm4332, %v4324, %v4340
          %v4349 = vsel %vm4333, %v4325, %v4341
          %v4350 = vsel %vm4334, %v4326, %v4342
          %v4351 = vsel %vm4335, %v4327, %v4343
          %v4352 = vsel %vm4336, %v4328, %v4344
          %v4353 = vsel %vm4337, %v4329, %v4345
          %v4354 = vsel %vm4338, %v4330, %v4346
          %v4355 = vsel %vm4339, %v4331, %v4347
          %v4356 = vpack.c.bf16 %v4352, %v4348
          %v4357 = vpack.c.bf16 %v4353, %v4349
          %v4358 = vpack.c.bf16 %v4354, %v4350
          %v4359 = vpack.c.bf16 %v4355, %v4351
          %v4360 = vld [vmem:[%s4] sm:$0xff]
          %v4361 = vld [vmem:[%s4 + $0x8] sm:$0xff]
          %v4362 = vld [vmem:[%s4 + $0x10] sm:$0xff]
          %v4363 = vld [vmem:[%s4 + $0x18] sm:$0xff]
          %v4364 = vld [vmem:[%s4 + $0x20] sm:$0xff]
          %v4365 = vld [vmem:[%s4 + $0x28] sm:$0xff]
          %v4366 = vld [vmem:[%s4 + $0x30] sm:$0xff]
          %v4367 = vld [vmem:[%s4 + $0x38] sm:$0xff]
          %v4368 = vld [vmem:[%s4 + $0x40] sm:$0xff]
          %v4369 = vld [vmem:[%s4 + $0x48] sm:$0xff]
          %v4370 = vld [vmem:[%s4 + $0x50] sm:$0xff]
          %v4371 = vld [vmem:[%s4 + $0x58] sm:$0xff]
          %v4372 = vld [vmem:[%s4 + $0x60] sm:$0xff]
          %v4373 = vld [vmem:[%s4 + $0x68] sm:$0xff]
          %v4374 = vld [vmem:[%s4 + $0x70] sm:$0xff]
          %v4375 = vld [vmem:[%s4 + $0x78] sm:$0xff]
          %v4376 = vld [vmem:[%s4 + $0x80] sm:$0xff]
          %v4377 = vld [vmem:[%s4 + $0x88] sm:$0xff]
          %v4378 = vld [vmem:[%s4 + $0x90] sm:$0xff]
          %v4379 = vld [vmem:[%s4 + $0x98] sm:$0xff]
          %v4380 = vld [vmem:[%s4 + $0xa0] sm:$0xff]
          %v4381 = vld [vmem:[%s4 + $0xa8] sm:$0xff]
          %v4382 = vld [vmem:[%s4 + $0xb0] sm:$0xff]
          %v4383 = vld [vmem:[%s4 + $0xb8] sm:$0xff]
          %v4384 = vld [vmem:[%s4 + $0xc0] sm:$0xff]
          %v4385 = vld [vmem:[%s4 + $0xc8] sm:$0xff]
          %v4386 = vld [vmem:[%s4 + $0xd0] sm:$0xff]
          %v4387 = vld [vmem:[%s4 + $0xd8] sm:$0xff]
          %v4388 = vld [vmem:[%s4 + $0xe0] sm:$0xff]
          %v4389 = vld [vmem:[%s4 + $0xe8] sm:$0xff]
          %v4390 = vld [vmem:[%s4 + $0xf0] sm:$0xff]
          %v4391 = vld [vmem:[%s4 + $0xf8] sm:$0xff]
          %v4392 = vld [vmem:[%s4 + $0x100] sm:$0xff]
          %v4393 = vld [vmem:[%s4 + $0x108] sm:$0xff]
          %v4394 = vld [vmem:[%s4 + $0x110] sm:$0xff]
          %v4395 = vld [vmem:[%s4 + $0x118] sm:$0xff]
          %v4396 = vld [vmem:[%s4 + $0x120] sm:$0xff]
          %v4397 = vld [vmem:[%s4 + $0x128] sm:$0xff]
          %v4398 = vld [vmem:[%s4 + $0x130] sm:$0xff]
          %v4399 = vld [vmem:[%s4 + $0x138] sm:$0xff]
          %v4400 = vld [vmem:[%s4 + $0x140] sm:$0xff]
          %v4401 = vld [vmem:[%s4 + $0x148] sm:$0xff]
          %v4402 = vld [vmem:[%s4 + $0x150] sm:$0xff]
          %v4403 = vld [vmem:[%s4 + $0x158] sm:$0xff]
          %v4404 = vld [vmem:[%s4 + $0x160] sm:$0xff]
          %v4405 = vld [vmem:[%s4 + $0x168] sm:$0xff]
          %v4406 = vld [vmem:[%s4 + $0x170] sm:$0xff]
          %v4407 = vld [vmem:[%s4 + $0x178] sm:$0xff]
          %v4408 = vld [vmem:[%s4 + $0x180] sm:$0xff]
          %v4409 = vld [vmem:[%s4 + $0x188] sm:$0xff]
          %v4410 = vld [vmem:[%s4 + $0x190] sm:$0xff]
          %v4411 = vld [vmem:[%s4 + $0x198] sm:$0xff]
          %v4412 = vld [vmem:[%s4 + $0x1a0] sm:$0xff]
          %v4413 = vld [vmem:[%s4 + $0x1a8] sm:$0xff]
          %v4414 = vld [vmem:[%s4 + $0x1b0] sm:$0xff]
          %v4415 = vld [vmem:[%s4 + $0x1b8] sm:$0xff]
          %v4416 = vld [vmem:[%s4 + $0x1c0] sm:$0xff]
          %v4417 = vld [vmem:[%s4 + $0x1c8] sm:$0xff]
          %v4418 = vld [vmem:[%s4 + $0x1d0] sm:$0xff]
          %v4419 = vld [vmem:[%s4 + $0x1d8] sm:$0xff]
          %v4420 = vld [vmem:[%s4 + $0x1e0] sm:$0xff]
          %v4421 = vld [vmem:[%s4 + $0x1e8] sm:$0xff]
          %v4422 = vld [vmem:[%s4 + $0x1f0] sm:$0xff]
          %v4423 = vld [vmem:[%s4 + $0x1f8] sm:$0xff]
          %v4424 = vld [vmem:[%s4 + $0x200] sm:$0xff]
          %v4425 = vld [vmem:[%s4 + $0x208] sm:$0xff]
          %v4426 = vld [vmem:[%s4 + $0x210] sm:$0xff]
          %v4427 = vld [vmem:[%s4 + $0x218] sm:$0xff]
          %v4428 = vld [vmem:[%s4 + $0x220] sm:$0xff]
          %v4429 = vld [vmem:[%s4 + $0x228] sm:$0xff]
          %v4430 = vld [vmem:[%s4 + $0x230] sm:$0xff]
          %v4431 = vld [vmem:[%s4 + $0x238] sm:$0xff]
          %v4432 = vld [vmem:[%s4 + $0x240] sm:$0xff]
          %v4433 = vld [vmem:[%s4 + $0x248] sm:$0xff]
          %v4434 = vld [vmem:[%s4 + $0x250] sm:$0xff]
          %v4435 = vld [vmem:[%s4 + $0x258] sm:$0xff]
          %v4436 = vld [vmem:[%s4 + $0x260] sm:$0xff]
          %v4437 = vld [vmem:[%s4 + $0x268] sm:$0xff]
          %v4438 = vld [vmem:[%s4 + $0x270] sm:$0xff]
          %v4439 = vld [vmem:[%s4 + $0x278] sm:$0xff]
          %v4440 = vld [vmem:[%s4 + $0x280] sm:$0xff]
          %v4441 = vld [vmem:[%s4 + $0x288] sm:$0xff]
          %v4442 = vld [vmem:[%s4 + $0x290] sm:$0xff]
          %v4443 = vld [vmem:[%s4 + $0x298] sm:$0xff]
          %v4444 = vld [vmem:[%s4 + $0x2a0] sm:$0xff]
          %v4445 = vld [vmem:[%s4 + $0x2a8] sm:$0xff]
          %v4446 = vld [vmem:[%s4 + $0x2b0] sm:$0xff]
          %v4447 = vld [vmem:[%s4 + $0x2b8] sm:$0xff]
          %v4448 = vld [vmem:[%s4 + $0x2c0] sm:$0xff]
          %v4449 = vld [vmem:[%s4 + $0x2c8] sm:$0xff]
          %v4450 = vld [vmem:[%s4 + $0x2d0] sm:$0xff]
          %v4451 = vld [vmem:[%s4 + $0x2d8] sm:$0xff]
          %v4452 = vld [vmem:[%s4 + $0x2e0] sm:$0xff]
          %v4453 = vld [vmem:[%s4 + $0x2e8] sm:$0xff]
          %v4454 = vld [vmem:[%s4 + $0x2f0] sm:$0xff]
          %v4455 = vld [vmem:[%s4 + $0x2f8] sm:$0xff]
          %v4456 = vld [vmem:[%s4 + $0x300] sm:$0xff]
          %v4457 = vld [vmem:[%s4 + $0x308] sm:$0xff]
          %v4458 = vld [vmem:[%s4 + $0x310] sm:$0xff]
          %v4459 = vld [vmem:[%s4 + $0x318] sm:$0xff]
          %v4460 = vld [vmem:[%s4 + $0x320] sm:$0xff]
          %v4461 = vld [vmem:[%s4 + $0x328] sm:$0xff]
          %v4462 = vld [vmem:[%s4 + $0x330] sm:$0xff]
          %v4463 = vld [vmem:[%s4 + $0x338] sm:$0xff]
          %v4464 = vld [vmem:[%s4 + $0x340] sm:$0xff]
          %v4465 = vld [vmem:[%s4 + $0x348] sm:$0xff]
          %v4466 = vld [vmem:[%s4 + $0x350] sm:$0xff]
          %v4467 = vld [vmem:[%s4 + $0x358] sm:$0xff]
          %v4468 = vld [vmem:[%s4 + $0x360] sm:$0xff]
          %v4469 = vld [vmem:[%s4 + $0x368] sm:$0xff]
          %v4470 = vld [vmem:[%s4 + $0x370] sm:$0xff]
          %v4471 = vld [vmem:[%s4 + $0x378] sm:$0xff]
          %v4472 = vld [vmem:[%s4 + $0x380] sm:$0xff]
          %v4473 = vld [vmem:[%s4 + $0x388] sm:$0xff]
          %v4474 = vld [vmem:[%s4 + $0x390] sm:$0xff]
          %v4475 = vld [vmem:[%s4 + $0x398] sm:$0xff]
          %v4476 = vld [vmem:[%s4 + $0x3a0] sm:$0xff]
          %v4477 = vld [vmem:[%s4 + $0x3a8] sm:$0xff]
          %v4478 = vld [vmem:[%s4 + $0x3b0] sm:$0xff]
          %v4479 = vld [vmem:[%s4 + $0x3b8] sm:$0xff]
          %v4480 = vld [vmem:[%s4 + $0x3c0] sm:$0xff]
          %v4481 = vld [vmem:[%s4 + $0x3c8] sm:$0xff]
          %v4482 = vld [vmem:[%s4 + $0x3d0] sm:$0xff]
          %v4483 = vld [vmem:[%s4 + $0x3d8] sm:$0xff]
          %v4484 = vld [vmem:[%s4 + $0x3e0] sm:$0xff]
          %v4485 = vld [vmem:[%s4 + $0x3e8] sm:$0xff]
          %v4486 = vld [vmem:[%s4 + $0x3f0] sm:$0xff]
          %v4487 = vld [vmem:[%s4 + $0x3f8] sm:$0xff]
          %v4488 = vld [vmem:[%s5] sm:$0xf]
          %v4490 = vlaneseq
          %v4491 = vshrl.u32 %v4490, 7
          %v4492 = vsub.s32 0, %v4491
          %v4493 = vrot.slane %v4488, %v4492
          %v4494 = vlaneseq
          %v4495 = vshrl.u32 %v4494, 7
          %v4496 = vsub.s32 1, %v4495
          %v4497 = vrot.slane %v4488, %v4496
          %v4498 = vlaneseq
          %v4499 = vshrl.u32 %v4498, 7
          %v4500 = vsub.s32 2, %v4499
          %v4501 = vrot.slane %v4488, %v4500
          %v4502 = vlaneseq
          %v4503 = vshrl.u32 %v4502, 7
          %v4504 = vsub.s32 3, %v4503
          %v4505 = vrot.slane %v4488, %v4504
          %v4638 = vunpack.c.l.b16 %v4360
          %v4639 = vunpack.c.h.b16 %v4360
          %v4640 = vunpack.c.l.b16 %v4361
          %v4641 = vunpack.c.h.b16 %v4361
          %v4642 = vunpack.c.l.b16 %v4362
          %v4643 = vunpack.c.h.b16 %v4362
          %v4644 = vunpack.c.l.b16 %v4363
          %v4645 = vunpack.c.h.b16 %v4363
          %v4646 = vunpack.c.l.b16 %v4364
          %v4647 = vunpack.c.h.b16 %v4364
          %v4648 = vunpack.c.l.b16 %v4365
          %v4649 = vunpack.c.h.b16 %v4365
          %v4650 = vunpack.c.l.b16 %v4366
          %v4651 = vunpack.c.h.b16 %v4366
          %v4652 = vunpack.c.l.b16 %v4367
          %v4653 = vunpack.c.h.b16 %v4367
          %v4654 = vunpack.c.l.b16 %v4368
          %v4655 = vunpack.c.h.b16 %v4368
          %v4656 = vunpack.c.l.b16 %v4369
          %v4657 = vunpack.c.h.b16 %v4369
          %v4658 = vunpack.c.l.b16 %v4370
          %v4659 = vunpack.c.h.b16 %v4370
          %v4660 = vunpack.c.l.b16 %v4371
          %v4661 = vunpack.c.h.b16 %v4371
          %v4662 = vunpack.c.l.b16 %v4372
          %v4663 = vunpack.c.h.b16 %v4372
          %v4664 = vunpack.c.l.b16 %v4373
          %v4665 = vunpack.c.h.b16 %v4373
          %v4666 = vunpack.c.l.b16 %v4374
          %v4667 = vunpack.c.h.b16 %v4374
          %v4668 = vunpack.c.l.b16 %v4375
          %v4669 = vunpack.c.h.b16 %v4375
          %v4670 = vunpack.c.l.b16 %v4376
          %v4671 = vunpack.c.h.b16 %v4376
          %v4672 = vunpack.c.l.b16 %v4377
          %v4673 = vunpack.c.h.b16 %v4377
          %v4674 = vunpack.c.l.b16 %v4378
          %v4675 = vunpack.c.h.b16 %v4378
          %v4676 = vunpack.c.l.b16 %v4379
          %v4677 = vunpack.c.h.b16 %v4379
          %v4678 = vunpack.c.l.b16 %v4380
          %v4679 = vunpack.c.h.b16 %v4380
          %v4680 = vunpack.c.l.b16 %v4381
          %v4681 = vunpack.c.h.b16 %v4381
          %v4682 = vunpack.c.l.b16 %v4382
          %v4683 = vunpack.c.h.b16 %v4382
          %v4684 = vunpack.c.l.b16 %v4383
          %v4685 = vunpack.c.h.b16 %v4383
          %v4686 = vunpack.c.l.b16 %v4384
          %v4687 = vunpack.c.h.b16 %v4384
          %v4688 = vunpack.c.l.b16 %v4385
          %v4689 = vunpack.c.h.b16 %v4385
          %v4690 = vunpack.c.l.b16 %v4386
          %v4691 = vunpack.c.h.b16 %v4386
          %v4692 = vunpack.c.l.b16 %v4387
          %v4693 = vunpack.c.h.b16 %v4387
          %v4694 = vunpack.c.l.b16 %v4388
          %v4695 = vunpack.c.h.b16 %v4388
          %v4696 = vunpack.c.l.b16 %v4389
          %v4697 = vunpack.c.h.b16 %v4389
          %v4698 = vunpack.c.l.b16 %v4390
          %v4699 = vunpack.c.h.b16 %v4390
          %v4700 = vunpack.c.l.b16 %v4391
          %v4701 = vunpack.c.h.b16 %v4391
          %v4702 = vunpack.c.l.b16 %v4392
          %v4703 = vunpack.c.h.b16 %v4392
          %v4704 = vunpack.c.l.b16 %v4393
          %v4705 = vunpack.c.h.b16 %v4393
          %v4706 = vunpack.c.l.b16 %v4394
          %v4707 = vunpack.c.h.b16 %v4394
          %v4708 = vunpack.c.l.b16 %v4395
          %v4709 = vunpack.c.h.b16 %v4395
          %v4710 = vunpack.c.l.b16 %v4396
          %v4711 = vunpack.c.h.b16 %v4396
          %v4712 = vunpack.c.l.b16 %v4397
          %v4713 = vunpack.c.h.b16 %v4397
          %v4714 = vunpack.c.l.b16 %v4398
          %v4715 = vunpack.c.h.b16 %v4398
          %v4716 = vunpack.c.l.b16 %v4399
          %v4717 = vunpack.c.h.b16 %v4399
          %v4718 = vunpack.c.l.b16 %v4400
          %v4719 = vunpack.c.h.b16 %v4400
          %v4720 = vunpack.c.l.b16 %v4401
          %v4721 = vunpack.c.h.b16 %v4401
          %v4722 = vunpack.c.l.b16 %v4402
          %v4723 = vunpack.c.h.b16 %v4402
          %v4724 = vunpack.c.l.b16 %v4403
          %v4725 = vunpack.c.h.b16 %v4403
          %v4726 = vunpack.c.l.b16 %v4404
          %v4727 = vunpack.c.h.b16 %v4404
          %v4728 = vunpack.c.l.b16 %v4405
          %v4729 = vunpack.c.h.b16 %v4405
          %v4730 = vunpack.c.l.b16 %v4406
          %v4731 = vunpack.c.h.b16 %v4406
          %v4732 = vunpack.c.l.b16 %v4407
          %v4733 = vunpack.c.h.b16 %v4407
          %v4734 = vunpack.c.l.b16 %v4408
          %v4735 = vunpack.c.h.b16 %v4408
          %v4736 = vunpack.c.l.b16 %v4409
          %v4737 = vunpack.c.h.b16 %v4409
          %v4738 = vunpack.c.l.b16 %v4410
          %v4739 = vunpack.c.h.b16 %v4410
          %v4740 = vunpack.c.l.b16 %v4411
          %v4741 = vunpack.c.h.b16 %v4411
          %v4742 = vunpack.c.l.b16 %v4412
          %v4743 = vunpack.c.h.b16 %v4412
          %v4744 = vunpack.c.l.b16 %v4413
          %v4745 = vunpack.c.h.b16 %v4413
          %v4746 = vunpack.c.l.b16 %v4414
          %v4747 = vunpack.c.h.b16 %v4414
          %v4748 = vunpack.c.l.b16 %v4415
          %v4749 = vunpack.c.h.b16 %v4415
          %v4750 = vunpack.c.l.b16 %v4416
          %v4751 = vunpack.c.h.b16 %v4416
          %v4752 = vunpack.c.l.b16 %v4417
          %v4753 = vunpack.c.h.b16 %v4417
          %v4754 = vunpack.c.l.b16 %v4418
          %v4755 = vunpack.c.h.b16 %v4418
          %v4756 = vunpack.c.l.b16 %v4419
          %v4757 = vunpack.c.h.b16 %v4419
          %v4758 = vunpack.c.l.b16 %v4420
          %v4759 = vunpack.c.h.b16 %v4420
          %v4760 = vunpack.c.l.b16 %v4421
          %v4761 = vunpack.c.h.b16 %v4421
          %v4762 = vunpack.c.l.b16 %v4422
          %v4763 = vunpack.c.h.b16 %v4422
          %v4764 = vunpack.c.l.b16 %v4423
          %v4765 = vunpack.c.h.b16 %v4423
          %v4766 = vunpack.c.l.b16 %v4424
          %v4767 = vunpack.c.h.b16 %v4424
          %v4768 = vunpack.c.l.b16 %v4425
          %v4769 = vunpack.c.h.b16 %v4425
          %v4770 = vunpack.c.l.b16 %v4426
          %v4771 = vunpack.c.h.b16 %v4426
          %v4772 = vunpack.c.l.b16 %v4427
          %v4773 = vunpack.c.h.b16 %v4427
          %v4774 = vunpack.c.l.b16 %v4428
          %v4775 = vunpack.c.h.b16 %v4428
          %v4776 = vunpack.c.l.b16 %v4429
          %v4777 = vunpack.c.h.b16 %v4429
          %v4778 = vunpack.c.l.b16 %v4430
          %v4779 = vunpack.c.h.b16 %v4430
          %v4780 = vunpack.c.l.b16 %v4431
          %v4781 = vunpack.c.h.b16 %v4431
          %v4782 = vunpack.c.l.b16 %v4432
          %v4783 = vunpack.c.h.b16 %v4432
          %v4784 = vunpack.c.l.b16 %v4433
          %v4785 = vunpack.c.h.b16 %v4433
          %v4786 = vunpack.c.l.b16 %v4434
          %v4787 = vunpack.c.h.b16 %v4434
          %v4788 = vunpack.c.l.b16 %v4435
          %v4789 = vunpack.c.h.b16 %v4435
          %v4790 = vunpack.c.l.b16 %v4436
          %v4791 = vunpack.c.h.b16 %v4436
          %v4792 = vunpack.c.l.b16 %v4437
          %v4793 = vunpack.c.h.b16 %v4437
          %v4794 = vunpack.c.l.b16 %v4438
          %v4795 = vunpack.c.h.b16 %v4438
          %v4796 = vunpack.c.l.b16 %v4439
          %v4797 = vunpack.c.h.b16 %v4439
          %v4798 = vunpack.c.l.b16 %v4440
          %v4799 = vunpack.c.h.b16 %v4440
          %v4800 = vunpack.c.l.b16 %v4441
          %v4801 = vunpack.c.h.b16 %v4441
          %v4802 = vunpack.c.l.b16 %v4442
          %v4803 = vunpack.c.h.b16 %v4442
          %v4804 = vunpack.c.l.b16 %v4443
          %v4805 = vunpack.c.h.b16 %v4443
          %v4806 = vunpack.c.l.b16 %v4444
          %v4807 = vunpack.c.h.b16 %v4444
          %v4808 = vunpack.c.l.b16 %v4445
          %v4809 = vunpack.c.h.b16 %v4445
          %v4810 = vunpack.c.l.b16 %v4446
          %v4811 = vunpack.c.h.b16 %v4446
          %v4812 = vunpack.c.l.b16 %v4447
          %v4813 = vunpack.c.h.b16 %v4447
          %v4814 = vunpack.c.l.b16 %v4448
          %v4815 = vunpack.c.h.b16 %v4448
          %v4816 = vunpack.c.l.b16 %v4449
          %v4817 = vunpack.c.h.b16 %v4449
          %v4818 = vunpack.c.l.b16 %v4450
          %v4819 = vunpack.c.h.b16 %v4450
          %v4820 = vunpack.c.l.b16 %v4451
          %v4821 = vunpack.c.h.b16 %v4451
          %v4822 = vunpack.c.l.b16 %v4452
          %v4823 = vunpack.c.h.b16 %v4452
          %v4824 = vunpack.c.l.b16 %v4453
          %v4825 = vunpack.c.h.b16 %v4453
          %v4826 = vunpack.c.l.b16 %v4454
          %v4827 = vunpack.c.h.b16 %v4454
          %v4828 = vunpack.c.l.b16 %v4455
          %v4829 = vunpack.c.h.b16 %v4455
          %v4830 = vunpack.c.l.b16 %v4456
          %v4831 = vunpack.c.h.b16 %v4456
          %v4832 = vunpack.c.l.b16 %v4457
          %v4833 = vunpack.c.h.b16 %v4457
          %v4834 = vunpack.c.l.b16 %v4458
          %v4835 = vunpack.c.h.b16 %v4458
          %v4836 = vunpack.c.l.b16 %v4459
          %v4837 = vunpack.c.h.b16 %v4459
          %v4838 = vunpack.c.l.b16 %v4460
          %v4839 = vunpack.c.h.b16 %v4460
          %v4840 = vunpack.c.l.b16 %v4461
          %v4841 = vunpack.c.h.b16 %v4461
          %v4842 = vunpack.c.l.b16 %v4462
          %v4843 = vunpack.c.h.b16 %v4462
          %v4844 = vunpack.c.l.b16 %v4463
          %v4845 = vunpack.c.h.b16 %v4463
          %v4846 = vunpack.c.l.b16 %v4464
          %v4847 = vunpack.c.h.b16 %v4464
          %v4848 = vunpack.c.l.b16 %v4465
          %v4849 = vunpack.c.h.b16 %v4465
          %v4850 = vunpack.c.l.b16 %v4466
          %v4851 = vunpack.c.h.b16 %v4466
          %v4852 = vunpack.c.l.b16 %v4467
          %v4853 = vunpack.c.h.b16 %v4467
          %v4854 = vunpack.c.l.b16 %v4468
          %v4855 = vunpack.c.h.b16 %v4468
          %v4856 = vunpack.c.l.b16 %v4469
          %v4857 = vunpack.c.h.b16 %v4469
          %v4858 = vunpack.c.l.b16 %v4470
          %v4859 = vunpack.c.h.b16 %v4470
          %v4860 = vunpack.c.l.b16 %v4471
          %v4861 = vunpack.c.h.b16 %v4471
          %v4862 = vunpack.c.l.b16 %v4472
          %v4863 = vunpack.c.h.b16 %v4472
          %v4864 = vunpack.c.l.b16 %v4473
          %v4865 = vunpack.c.h.b16 %v4473
          %v4866 = vunpack.c.l.b16 %v4474
          %v4867 = vunpack.c.h.b16 %v4474
          %v4868 = vunpack.c.l.b16 %v4475
          %v4869 = vunpack.c.h.b16 %v4475
          %v4870 = vunpack.c.l.b16 %v4476
          %v4871 = vunpack.c.h.b16 %v4476
          %v4872 = vunpack.c.l.b16 %v4477
          %v4873 = vunpack.c.h.b16 %v4477
          %v4874 = vunpack.c.l.b16 %v4478
          %v4875 = vunpack.c.h.b16 %v4478
          %v4876 = vunpack.c.l.b16 %v4479
          %v4877 = vunpack.c.h.b16 %v4479
          %v4878 = vunpack.c.l.b16 %v4480
          %v4879 = vunpack.c.h.b16 %v4480
          %v4880 = vunpack.c.l.b16 %v4481
          %v4881 = vunpack.c.h.b16 %v4481
          %v4882 = vunpack.c.l.b16 %v4482
          %v4883 = vunpack.c.h.b16 %v4482
          %v4884 = vunpack.c.l.b16 %v4483
          %v4885 = vunpack.c.h.b16 %v4483
          %v4886 = vunpack.c.l.b16 %v4484
          %v4887 = vunpack.c.h.b16 %v4484
          %v4888 = vunpack.c.l.b16 %v4485
          %v4889 = vunpack.c.h.b16 %v4485
          %v4890 = vunpack.c.l.b16 %v4486
          %v4891 = vunpack.c.h.b16 %v4486
          %v4892 = vunpack.c.l.b16 %v4487
          %v4893 = vunpack.c.h.b16 %v4487
          %v4894 = vpack.c.b16 %v4642, %v4638
          %v4895 = vpack.c.b16 %v4643, %v4639
          %v4896 = vpack.c.b16 %v4644, %v4640
          %v4897 = vpack.c.b16 %v4645, %v4641
          %v4898 = vpack.c.b16 %v4650, %v4646
          %v4899 = vpack.c.b16 %v4651, %v4647
          %v4900 = vpack.c.b16 %v4652, %v4648
          %v4901 = vpack.c.b16 %v4653, %v4649
          %v4902 = vpack.c.b16 %v4658, %v4654
          %v4903 = vpack.c.b16 %v4659, %v4655
          %v4904 = vpack.c.b16 %v4660, %v4656
          %v4905 = vpack.c.b16 %v4661, %v4657
          %v4906 = vpack.c.b16 %v4666, %v4662
          %v4907 = vpack.c.b16 %v4667, %v4663
          %v4908 = vpack.c.b16 %v4668, %v4664
          %v4909 = vpack.c.b16 %v4669, %v4665
          %v4910 = vpack.c.b16 %v4674, %v4670
          %v4911 = vpack.c.b16 %v4675, %v4671
          %v4912 = vpack.c.b16 %v4676, %v4672
          %v4913 = vpack.c.b16 %v4677, %v4673
          %v4914 = vpack.c.b16 %v4682, %v4678
          %v4915 = vpack.c.b16 %v4683, %v4679
          %v4916 = vpack.c.b16 %v4684, %v4680
          %v4917 = vpack.c.b16 %v4685, %v4681
          %v4918 = vpack.c.b16 %v4690, %v4686
          %v4919 = vpack.c.b16 %v4691, %v4687
          %v4920 = vpack.c.b16 %v4692, %v4688
          %v4921 = vpack.c.b16 %v4693, %v4689
          %v4922 = vpack.c.b16 %v4698, %v4694
          %v4923 = vpack.c.b16 %v4699, %v4695
          %v4924 = vpack.c.b16 %v4700, %v4696
          %v4925 = vpack.c.b16 %v4701, %v4697
          %v4926 = vpack.c.b16 %v4706, %v4702
          %v4927 = vpack.c.b16 %v4707, %v4703
          %v4928 = vpack.c.b16 %v4708, %v4704
          %v4929 = vpack.c.b16 %v4709, %v4705
          %v4930 = vpack.c.b16 %v4714, %v4710
          %v4931 = vpack.c.b16 %v4715, %v4711
          %v4932 = vpack.c.b16 %v4716, %v4712
          %v4933 = vpack.c.b16 %v4717, %v4713
          %v4934 = vpack.c.b16 %v4722, %v4718
          %v4935 = vpack.c.b16 %v4723, %v4719
          %v4936 = vpack.c.b16 %v4724, %v4720
          %v4937 = vpack.c.b16 %v4725, %v4721
          %v4938 = vpack.c.b16 %v4730, %v4726
          %v4939 = vpack.c.b16 %v4731, %v4727
          %v4940 = vpack.c.b16 %v4732, %v4728
          %v4941 = vpack.c.b16 %v4733, %v4729
          %v4942 = vpack.c.b16 %v4738, %v4734
          %v4943 = vpack.c.b16 %v4739, %v4735
          %v4944 = vpack.c.b16 %v4740, %v4736
          %v4945 = vpack.c.b16 %v4741, %v4737
          %v4946 = vpack.c.b16 %v4746, %v4742
          %v4947 = vpack.c.b16 %v4747, %v4743
          %v4948 = vpack.c.b16 %v4748, %v4744
          %v4949 = vpack.c.b16 %v4749, %v4745
          %v4950 = vpack.c.b16 %v4754, %v4750
          %v4951 = vpack.c.b16 %v4755, %v4751
          %v4952 = vpack.c.b16 %v4756, %v4752
          %v4953 = vpack.c.b16 %v4757, %v4753
          %v4954 = vpack.c.b16 %v4762, %v4758
          %v4955 = vpack.c.b16 %v4763, %v4759
          %v4956 = vpack.c.b16 %v4764, %v4760
          %v4957 = vpack.c.b16 %v4765, %v4761
          %v4958 = vpack.c.b16 %v4770, %v4766
          %v4959 = vpack.c.b16 %v4771, %v4767
          %v4960 = vpack.c.b16 %v4772, %v4768
          %v4961 = vpack.c.b16 %v4773, %v4769
          %v4962 = vpack.c.b16 %v4778, %v4774
          %v4963 = vpack.c.b16 %v4779, %v4775
          %v4964 = vpack.c.b16 %v4780, %v4776
          %v4965 = vpack.c.b16 %v4781, %v4777
          %v4966 = vpack.c.b16 %v4786, %v4782
          %v4967 = vpack.c.b16 %v4787, %v4783
          %v4968 = vpack.c.b16 %v4788, %v4784
          %v4969 = vpack.c.b16 %v4789, %v4785
          %v4970 = vpack.c.b16 %v4794, %v4790
          %v4971 = vpack.c.b16 %v4795, %v4791
          %v4972 = vpack.c.b16 %v4796, %v4792
          %v4973 = vpack.c.b16 %v4797, %v4793
          %v4974 = vpack.c.b16 %v4802, %v4798
          %v4975 = vpack.c.b16 %v4803, %v4799
          %v4976 = vpack.c.b16 %v4804, %v4800
          %v4977 = vpack.c.b16 %v4805, %v4801
          %v4978 = vpack.c.b16 %v4810, %v4806
          %v4979 = vpack.c.b16 %v4811, %v4807
          %v4980 = vpack.c.b16 %v4812, %v4808
          %v4981 = vpack.c.b16 %v4813, %v4809
          %v4982 = vpack.c.b16 %v4818, %v4814
          %v4983 = vpack.c.b16 %v4819, %v4815
          %v4984 = vpack.c.b16 %v4820, %v4816
          %v4985 = vpack.c.b16 %v4821, %v4817
          %v4986 = vpack.c.b16 %v4826, %v4822
          %v4987 = vpack.c.b16 %v4827, %v4823
          %v4988 = vpack.c.b16 %v4828, %v4824
          %v4989 = vpack.c.b16 %v4829, %v4825
          %v4990 = vpack.c.b16 %v4834, %v4830
          %v4991 = vpack.c.b16 %v4835, %v4831
          %v4992 = vpack.c.b16 %v4836, %v4832
          %v4993 = vpack.c.b16 %v4837, %v4833
          %v4994 = vpack.c.b16 %v4842, %v4838
          %v4995 = vpack.c.b16 %v4843, %v4839
          %v4996 = vpack.c.b16 %v4844, %v4840
          %v4997 = vpack.c.b16 %v4845, %v4841
          %v4998 = vpack.c.b16 %v4850, %v4846
          %v4999 = vpack.c.b16 %v4851, %v4847
          %v5000 = vpack.c.b16 %v4852, %v4848
          %v5001 = vpack.c.b16 %v4853, %v4849
          %v5002 = vpack.c.b16 %v4858, %v4854
          %v5003 = vpack.c.b16 %v4859, %v4855
          %v5004 = vpack.c.b16 %v4860, %v4856
          %v5005 = vpack.c.b16 %v4861, %v4857
          %v5006 = vpack.c.b16 %v4866, %v4862
          %v5007 = vpack.c.b16 %v4867, %v4863
          %v5008 = vpack.c.b16 %v4868, %v4864
          %v5009 = vpack.c.b16 %v4869, %v4865
          %v5010 = vpack.c.b16 %v4874, %v4870
          %v5011 = vpack.c.b16 %v4875, %v4871
          %v5012 = vpack.c.b16 %v4876, %v4872
          %v5013 = vpack.c.b16 %v4877, %v4873
          %v5014 = vpack.c.b16 %v4882, %v4878
          %v5015 = vpack.c.b16 %v4883, %v4879
          %v5016 = vpack.c.b16 %v4884, %v4880
          %v5017 = vpack.c.b16 %v4885, %v4881
          %v5018 = vpack.c.b16 %v4890, %v4886
          %v5019 = vpack.c.b16 %v4891, %v4887
          %v5020 = vpack.c.b16 %v4892, %v4888
          %v5021 = vpack.c.b16 %v4893, %v4889
          %5150 = vmatprep.subr.bf16.mxu0 %v4895
          %5151 = vmatpush1.bf16.msra.mxu0 %v4894
          %5152 = vmatprep.subr.bf16.mxu0 %v4899
          %5153 = vmatpush1.bf16.msra.mxu0 %v4898
          %5154 = vmatprep.subr.bf16.mxu0 %v4903
          %5155 = vmatpush1.bf16.msra.mxu0 %v4902
          %5156 = vmatprep.subr.bf16.mxu0 %v4907
          %5157 = vmatpush1.bf16.msra.mxu0 %v4906
          %5158 = vmatprep.subr.bf16.mxu0 %v4911
          %5159 = vmatpush1.bf16.msra.mxu0 %v4910
          %5160 = vmatprep.subr.bf16.mxu0 %v4915
          %5161 = vmatpush1.bf16.msra.mxu0 %v4914
          %5162 = vmatprep.subr.bf16.mxu0 %v4919
          %5163 = vmatpush1.bf16.msra.mxu0 %v4918
          %5164 = vmatprep.subr.bf16.mxu0 %v4923
          %5165 = vmatpush1.bf16.msra.mxu0 %v4922
          %5166 = vmatprep.subr.bf16.mxu0 %v4927
          %5167 = vmatpush1.bf16.msra.mxu0 %v4926
          %5168 = vmatprep.subr.bf16.mxu0 %v4931
          %5169 = vmatpush1.bf16.msra.mxu0 %v4930
          %5170 = vmatprep.subr.bf16.mxu0 %v4935
          %5171 = vmatpush1.bf16.msra.mxu0 %v4934
          %5172 = vmatprep.subr.bf16.mxu0 %v4939
          %5173 = vmatpush1.bf16.msra.mxu0 %v4938
          %5174 = vmatprep.subr.bf16.mxu0 %v4943
          %5175 = vmatpush1.bf16.msra.mxu0 %v4942
          %5176 = vmatprep.subr.bf16.mxu0 %v4947
          %5177 = vmatpush1.bf16.msra.mxu0 %v4946
          %5178 = vmatprep.subr.bf16.mxu0 %v4951
          %5179 = vmatpush1.bf16.msra.mxu0 %v4950
          %5180 = vmatprep.subr.bf16.mxu0 %v4955
          %5181 = vmatpush1.bf16.msra.mxu0 %v4954
          %5182 = vmatprep.mubr.bf16.mxu0 %v4357
          %5183 = vmatmul.mubr.bf16.gmra.mrb[0].mxu0 %v4356
          %v5184 = vpop.f32.mrb[0].mxu0
          %v5185 = vadd.f32 %v4493, %v5184
          %v5186 = vpop.f32.mrb[0].mxu0
          %v5187 = vadd.f32 %v4497, %v5186
          %v5188 = vpop.f32.mrb[0].mxu0
          %v5189 = vadd.f32 %v4493, %v5188
          %v5190 = vpop.f32.mrb[0].mxu0
          %v5191 = vadd.f32 %v4497, %v5190
          %5192 = vdwg.mxu0
          %5193 = vmatprep.subr.bf16.mxu0 %v4959
          %5194 = vmatpush1.bf16.msra.mxu0 %v4958
          %5195 = vmatprep.subr.bf16.mxu0 %v4963
          %5196 = vmatpush1.bf16.msra.mxu0 %v4962
          %5197 = vmatprep.subr.bf16.mxu0 %v4967
          %5198 = vmatpush1.bf16.msra.mxu0 %v4966
          %5199 = vmatprep.subr.bf16.mxu0 %v4971
          %5200 = vmatpush1.bf16.msra.mxu0 %v4970
          %5201 = vmatprep.subr.bf16.mxu0 %v4975
          %5202 = vmatpush1.bf16.msra.mxu0 %v4974
          %5203 = vmatprep.subr.bf16.mxu0 %v4979
          %5204 = vmatpush1.bf16.msra.mxu0 %v4978
          %5205 = vmatprep.subr.bf16.mxu0 %v4983
          %5206 = vmatpush1.bf16.msra.mxu0 %v4982
          %5207 = vmatprep.subr.bf16.mxu0 %v4987
          %5208 = vmatpush1.bf16.msra.mxu0 %v4986
          %5209 = vmatprep.subr.bf16.mxu0 %v4991
          %5210 = vmatpush1.bf16.msra.mxu0 %v4990
          %5211 = vmatprep.subr.bf16.mxu0 %v4995
          %5212 = vmatpush1.bf16.msra.mxu0 %v4994
          %5213 = vmatprep.subr.bf16.mxu0 %v4999
          %5214 = vmatpush1.bf16.msra.mxu0 %v4998
          %5215 = vmatprep.subr.bf16.mxu0 %v5003
          %5216 = vmatpush1.bf16.msra.mxu0 %v5002
          %5217 = vmatprep.subr.bf16.mxu0 %v5007
          %5218 = vmatpush1.bf16.msra.mxu0 %v5006
          %5219 = vmatprep.subr.bf16.mxu0 %v5011
          %5220 = vmatpush1.bf16.msra.mxu0 %v5010
          %5221 = vmatprep.subr.bf16.mxu0 %v5015
          %5222 = vmatpush1.bf16.msra.mxu0 %v5014
          %5223 = vmatprep.subr.bf16.mxu0 %v5019
          %5224 = vmatpush1.bf16.msra.mxu0 %v5018
          %5225 = vmatprep.mubr.bf16.mxu0 %v4359
          %5226 = vmatmul.mubr.bf16.gmra.mrb[0].mxu0 %v4358
          %v5227 = vpop.f32.mrb[0].mxu0
          %v5228 = vadd.f32 %v5185, %v5227
          %v5229 = vpop.f32.mrb[0].mxu0
          %v5230 = vadd.f32 %v5187, %v5229
          %v5231 = vpop.f32.mrb[0].mxu0
          %v5232 = vadd.f32 %v5189, %v5231
          %v5233 = vpop.f32.mrb[0].mxu0
          %v5234 = vadd.f32 %v5191, %v5233
          %5235 = vdwg.mxu0
          %5236 = vmatprep.subr.bf16.mxu0 %v4897
          %5237 = vmatpush1.bf16.msra.mxu0 %v4896
          %5238 = vmatprep.subr.bf16.mxu0 %v4901
          %5239 = vmatpush1.bf16.msra.mxu0 %v4900
          %5240 = vmatprep.subr.bf16.mxu0 %v4905
          %5241 = vmatpush1.bf16.msra.mxu0 %v4904
          %5242 = vmatprep.subr.bf16.mxu0 %v4909
          %5243 = vmatpush1.bf16.msra.mxu0 %v4908
          %5244 = vmatprep.subr.bf16.mxu0 %v4913
          %5245 = vmatpush1.bf16.msra.mxu0 %v4912
          %5246 = vmatprep.subr.bf16.mxu0 %v4917
          %5247 = vmatpush1.bf16.msra.mxu0 %v4916
          %5248 = vmatprep.subr.bf16.mxu0 %v4921
          %5249 = vmatpush1.bf16.msra.mxu0 %v4920
          %5250 = vmatprep.subr.bf16.mxu0 %v4925
          %5251 = vmatpush1.bf16.msra.mxu0 %v4924
          %5252 = vmatprep.subr.bf16.mxu0 %v4929
          %5253 = vmatpush1.bf16.msra.mxu0 %v4928
          %5254 = vmatprep.subr.bf16.mxu0 %v4933
          %5255 = vmatpush1.bf16.msra.mxu0 %v4932
          %5256 = vmatprep.subr.bf16.mxu0 %v4937
          %5257 = vmatpush1.bf16.msra.mxu0 %v4936
          %5258 = vmatprep.subr.bf16.mxu0 %v4941
          %5259 = vmatpush1.bf16.msra.mxu0 %v4940
          %5260 = vmatprep.subr.bf16.mxu0 %v4945
          %5261 = vmatpush1.bf16.msra.mxu0 %v4944
          %5262 = vmatprep.subr.bf16.mxu0 %v4949
          %5263 = vmatpush1.bf16.msra.mxu0 %v4948
          %5264 = vmatprep.subr.bf16.mxu0 %v4953
          %5265 = vmatpush1.bf16.msra.mxu0 %v4952
          %5266 = vmatprep.subr.bf16.mxu0 %v4957
          %5267 = vmatpush1.bf16.msra.mxu0 %v4956
          %5268 = vmatprep.mubr.bf16.mxu0 %v4357
          %5269 = vmatmul.mubr.bf16.gmra.mrb[0].mxu0 %v4356
          %v5270 = vpop.f32.mrb[0].mxu0
          %v5271 = vadd.f32 %v4501, %v5270
          %v5272 = vpop.f32.mrb[0].mxu0
          %v5273 = vadd.f32 %v4505, %v5272
          %v5274 = vpop.f32.mrb[0].mxu0
          %v5275 = vadd.f32 %v4501, %v5274
          %v5276 = vpop.f32.mrb[0].mxu0
          %v5277 = vadd.f32 %v4505, %v5276
          %5278 = vdwg.mxu0
          %5279 = vmatprep.subr.bf16.mxu0 %v4961
          %5280 = vmatpush1.bf16.msra.mxu0 %v4960
          %5281 = vmatprep.subr.bf16.mxu0 %v4965
          %5282 = vmatpush1.bf16.msra.mxu0 %v4964
          %5283 = vmatprep.subr.bf16.mxu0 %v4969
          %5284 = vmatpush1.bf16.msra.mxu0 %v4968
          %5285 = vmatprep.subr.bf16.mxu0 %v4973
          %5286 = vmatpush1.bf16.msra.mxu0 %v4972
          %5287 = vmatprep.subr.bf16.mxu0 %v4977
          %5288 = vmatpush1.bf16.msra.mxu0 %v4976
          %5289 = vmatprep.subr.bf16.mxu0 %v4981
          %5290 = vmatpush1.bf16.msra.mxu0 %v4980
          %5291 = vmatprep.subr.bf16.mxu0 %v4985
          %5292 = vmatpush1.bf16.msra.mxu0 %v4984
          %5293 = vmatprep.subr.bf16.mxu0 %v4989
          %5294 = vmatpush1.bf16.msra.mxu0 %v4988
          %5295 = vmatprep.subr.bf16.mxu0 %v4993
          %5296 = vmatpush1.bf16.msra.mxu0 %v4992
          %5297 = vmatprep.subr.bf16.mxu0 %v4997
          %5298 = vmatpush1.bf16.msra.mxu0 %v4996
          %5299 = vmatprep.subr.bf16.mxu0 %v5001
          %5300 = vmatpush1.bf16.msra.mxu0 %v5000
          %5301 = vmatprep.subr.bf16.mxu0 %v5005
          %5302 = vmatpush1.bf16.msra.mxu0 %v5004
          %5303 = vmatprep.subr.bf16.mxu0 %v5009
          %5304 = vmatpush1.bf16.msra.mxu0 %v5008
          %5305 = vmatprep.subr.bf16.mxu0 %v5013
          %5306 = vmatpush1.bf16.msra.mxu0 %v5012
          %5307 = vmatprep.subr.bf16.mxu0 %v5017
          %5308 = vmatpush1.bf16.msra.mxu0 %v5016
          %5309 = vmatprep.subr.bf16.mxu0 %v5021
          %5310 = vmatpush1.bf16.msra.mxu0 %v5020
          %5311 = vmatprep.mubr.bf16.mxu0 %v4359
          %5312 = vmatmul.mubr.bf16.gmra.mrb[0].mxu0 %v4358
          %v5313 = vpop.f32.mrb[0].mxu0
          %v5314 = vadd.f32 %v5271, %v5313
          %v5315 = vpop.f32.mrb[0].mxu0
          %v5316 = vadd.f32 %v5273, %v5315
          %v5317 = vpop.f32.mrb[0].mxu0
          %v5318 = vadd.f32 %v5275, %v5317
          %v5319 = vpop.f32.mrb[0].mxu0
          %v5320 = vadd.f32 %v5277, %v5319
          %5321 = vdwg.mxu0
          %vm5322 = vcmp.gt.f32.partialorder %v5228, 0.0
          %vm5323 = vcmp.gt.f32.partialorder %v5230, 0.0
          %vm5324 = vcmp.gt.f32.partialorder %v5314, 0.0
          %vm5325 = vcmp.gt.f32.partialorder %v5316, 0.0
          %vm5326 = vcmp.gt.f32.partialorder %v5232, 0.0
          %vm5327 = vcmp.gt.f32.partialorder %v5234, 0.0
          %vm5328 = vcmp.gt.f32.partialorder %v5318, 0.0
          %vm5329 = vcmp.gt.f32.partialorder %v5320, 0.0
          %v5330 = vmul.f32 %v5228, 0.2
          %v5331 = vmul.f32 %v5230, 0.2
          %v5332 = vmul.f32 %v5314, 0.2
          %v5333 = vmul.f32 %v5316, 0.2
          %v5334 = vmul.f32 %v5232, 0.2
          %v5335 = vmul.f32 %v5234, 0.2
          %v5336 = vmul.f32 %v5318, 0.2
          %v5337 = vmul.f32 %v5320, 0.2
          %v5338 = vsel %vm5322, %v5228, %v5330
          %v5339 = vsel %vm5323, %v5230, %v5331
          %v5340 = vsel %vm5324, %v5314, %v5332
          %v5341 = vsel %vm5325, %v5316, %v5333
          %v5342 = vsel %vm5326, %v5232, %v5334
          %v5343 = vsel %vm5327, %v5234, %v5335
          %v5344 = vsel %vm5328, %v5318, %v5336
          %v5345 = vsel %vm5329, %v5320, %v5337
          %v5346 = vpack.c.bf16 %v5342, %v5338
          %v5347 = vpack.c.bf16 %v5343, %v5339
          %v5348 = vpack.c.bf16 %v5344, %v5340
          %v5349 = vpack.c.bf16 %v5345, %v5341
          %v5350 = vld [vmem:[%s6] sm:$0xf]
          %v5351 = vld [vmem:[%s6 + $0x4] sm:$0xf]
          %v5352 = vld [vmem:[%s6 + $0x8] sm:$0xf]
          %v5353 = vld [vmem:[%s6 + $0xc] sm:$0xf]
          %v5354 = vld [vmem:[%s6 + $0x10] sm:$0xf]
          %v5355 = vld [vmem:[%s6 + $0x14] sm:$0xf]
          %v5356 = vld [vmem:[%s6 + $0x18] sm:$0xf]
          %v5357 = vld [vmem:[%s6 + $0x1c] sm:$0xf]
          %v5358 = vld [vmem:[%s6 + $0x20] sm:$0xf]
          %v5359 = vld [vmem:[%s6 + $0x24] sm:$0xf]
          %v5360 = vld [vmem:[%s6 + $0x28] sm:$0xf]
          %v5361 = vld [vmem:[%s6 + $0x2c] sm:$0xf]
          %v5362 = vld [vmem:[%s6 + $0x30] sm:$0xf]
          %v5363 = vld [vmem:[%s6 + $0x34] sm:$0xf]
          %v5364 = vld [vmem:[%s6 + $0x38] sm:$0xf]
          %v5365 = vld [vmem:[%s6 + $0x3c] sm:$0xf]
          %v5366 = vld [vmem:[%s6 + $0x40] sm:$0xf]
          %v5367 = vld [vmem:[%s6 + $0x44] sm:$0xf]
          %v5368 = vld [vmem:[%s6 + $0x48] sm:$0xf]
          %v5369 = vld [vmem:[%s6 + $0x4c] sm:$0xf]
          %v5370 = vld [vmem:[%s6 + $0x50] sm:$0xf]
          %v5371 = vld [vmem:[%s6 + $0x54] sm:$0xf]
          %v5372 = vld [vmem:[%s6 + $0x58] sm:$0xf]
          %v5373 = vld [vmem:[%s6 + $0x5c] sm:$0xf]
          %v5374 = vld [vmem:[%s6 + $0x60] sm:$0xf]
          %v5375 = vld [vmem:[%s6 + $0x64] sm:$0xf]
          %v5376 = vld [vmem:[%s6 + $0x68] sm:$0xf]
          %v5377 = vld [vmem:[%s6 + $0x6c] sm:$0xf]
          %v5378 = vld [vmem:[%s6 + $0x70] sm:$0xf]
          %v5379 = vld [vmem:[%s6 + $0x74] sm:$0xf]
          %v5380 = vld [vmem:[%s6 + $0x78] sm:$0xf]
          %v5381 = vld [vmem:[%s6 + $0x7c] sm:$0xf]
          %v5382 = vld [vmem:[%s6 + $0x80] sm:$0xf]
          %v5383 = vld [vmem:[%s6 + $0x84] sm:$0xf]
          %v5384 = vld [vmem:[%s6 + $0x88] sm:$0xf]
          %v5385 = vld [vmem:[%s6 + $0x8c] sm:$0xf]
          %v5386 = vld [vmem:[%s6 + $0x90] sm:$0xf]
          %v5387 = vld [vmem:[%s6 + $0x94] sm:$0xf]
          %v5388 = vld [vmem:[%s6 + $0x98] sm:$0xf]
          %v5389 = vld [vmem:[%s6 + $0x9c] sm:$0xf]
          %v5390 = vld [vmem:[%s6 + $0xa0] sm:$0xf]
          %v5391 = vld [vmem:[%s6 + $0xa4] sm:$0xf]
          %v5392 = vld [vmem:[%s6 + $0xa8] sm:$0xf]
          %v5393 = vld [vmem:[%s6 + $0xac] sm:$0xf]
          %v5394 = vld [vmem:[%s6 + $0xb0] sm:$0xf]
          %v5395 = vld [vmem:[%s6 + $0xb4] sm:$0xf]
          %v5396 = vld [vmem:[%s6 + $0xb8] sm:$0xf]
          %v5397 = vld [vmem:[%s6 + $0xbc] sm:$0xf]
          %v5398 = vld [vmem:[%s6 + $0xc0] sm:$0xf]
          %v5399 = vld [vmem:[%s6 + $0xc4] sm:$0xf]
          %v5400 = vld [vmem:[%s6 + $0xc8] sm:$0xf]
          %v5401 = vld [vmem:[%s6 + $0xcc] sm:$0xf]
          %v5402 = vld [vmem:[%s6 + $0xd0] sm:$0xf]
          %v5403 = vld [vmem:[%s6 + $0xd4] sm:$0xf]
          %v5404 = vld [vmem:[%s6 + $0xd8] sm:$0xf]
          %v5405 = vld [vmem:[%s6 + $0xdc] sm:$0xf]
          %v5406 = vld [vmem:[%s6 + $0xe0] sm:$0xf]
          %v5407 = vld [vmem:[%s6 + $0xe4] sm:$0xf]
          %v5408 = vld [vmem:[%s6 + $0xe8] sm:$0xf]
          %v5409 = vld [vmem:[%s6 + $0xec] sm:$0xf]
          %v5410 = vld [vmem:[%s6 + $0xf0] sm:$0xf]
          %v5411 = vld [vmem:[%s6 + $0xf4] sm:$0xf]
          %v5412 = vld [vmem:[%s6 + $0xf8] sm:$0xf]
          %v5413 = vld [vmem:[%s6 + $0xfc] sm:$0xf]
          %v5414 = vld [vmem:[%s7] sm:$0x1]
          %v5416 = vlaneseq
          %v5417 = vshrl.u32 %v5416, 7
          %v5418 = vsub.s32 0, %v5417
          %v5419 = vrot.slane %v5414, %v5418
          %v5485 = vunpack.c.l.b16 %v5350
          %v5486 = vunpack.c.l.b16 %v5351
          %v5487 = vunpack.c.l.b16 %v5352
          %v5488 = vunpack.c.l.b16 %v5353
          %v5489 = vunpack.c.l.b16 %v5354
          %v5490 = vunpack.c.l.b16 %v5355
          %v5491 = vunpack.c.l.b16 %v5356
          %v5492 = vunpack.c.l.b16 %v5357
          %v5493 = vunpack.c.l.b16 %v5358
          %v5494 = vunpack.c.l.b16 %v5359
          %v5495 = vunpack.c.l.b16 %v5360
          %v5496 = vunpack.c.l.b16 %v5361
          %v5497 = vunpack.c.l.b16 %v5362
          %v5498 = vunpack.c.l.b16 %v5363
          %v5499 = vunpack.c.l.b16 %v5364
          %v5500 = vunpack.c.l.b16 %v5365
          %v5501 = vunpack.c.l.b16 %v5366
          %v5502 = vunpack.c.l.b16 %v5367
          %v5503 = vunpack.c.l.b16 %v5368
          %v5504 = vunpack.c.l.b16 %v5369
          %v5505 = vunpack.c.l.b16 %v5370
          %v5506 = vunpack.c.l.b16 %v5371
          %v5507 = vunpack.c.l.b16 %v5372
          %v5508 = vunpack.c.l.b16 %v5373
          %v5509 = vunpack.c.l.b16 %v5374
          %v5510 = vunpack.c.l.b16 %v5375
          %v5511 = vunpack.c.l.b16 %v5376
          %v5512 = vunpack.c.l.b16 %v5377
          %v5513 = vunpack.c.l.b16 %v5378
          %v5514 = vunpack.c.l.b16 %v5379
          %v5515 = vunpack.c.l.b16 %v5380
          %v5516 = vunpack.c.l.b16 %v5381
          %v5517 = vunpack.c.l.b16 %v5382
          %v5518 = vunpack.c.l.b16 %v5383
          %v5519 = vunpack.c.l.b16 %v5384
          %v5520 = vunpack.c.l.b16 %v5385
          %v5521 = vunpack.c.l.b16 %v5386
          %v5522 = vunpack.c.l.b16 %v5387
          %v5523 = vunpack.c.l.b16 %v5388
          %v5524 = vunpack.c.l.b16 %v5389
          %v5525 = vunpack.c.l.b16 %v5390
          %v5526 = vunpack.c.l.b16 %v5391
          %v5527 = vunpack.c.l.b16 %v5392
          %v5528 = vunpack.c.l.b16 %v5393
          %v5529 = vunpack.c.l.b16 %v5394
          %v5530 = vunpack.c.l.b16 %v5395
          %v5531 = vunpack.c.l.b16 %v5396
          %v5532 = vunpack.c.l.b16 %v5397
          %v5533 = vunpack.c.l.b16 %v5398
          %v5534 = vunpack.c.l.b16 %v5399
          %v5535 = vunpack.c.l.b16 %v5400
          %v5536 = vunpack.c.l.b16 %v5401
          %v5537 = vunpack.c.l.b16 %v5402
          %v5538 = vunpack.c.l.b16 %v5403
          %v5539 = vunpack.c.l.b16 %v5404
          %v5540 = vunpack.c.l.b16 %v5405
          %v5541 = vunpack.c.l.b16 %v5406
          %v5542 = vunpack.c.l.b16 %v5407
          %v5543 = vunpack.c.l.b16 %v5408
          %v5544 = vunpack.c.l.b16 %v5409
          %v5545 = vunpack.c.l.b16 %v5410
          %v5546 = vunpack.c.l.b16 %v5411
          %v5547 = vunpack.c.l.b16 %v5412
          %v5548 = vunpack.c.l.b16 %v5413
          %v5549 = vpack.c.b16 %v5486, %v5485
          %v5550 = vpack.c.b16 %v5488, %v5487
          %v5551 = vpack.c.b16 %v5490, %v5489
          %v5552 = vpack.c.b16 %v5492, %v5491
          %v5553 = vpack.c.b16 %v5494, %v5493
          %v5554 = vpack.c.b16 %v5496, %v5495
          %v5555 = vpack.c.b16 %v5498, %v5497
          %v5556 = vpack.c.b16 %v5500, %v5499
          %v5557 = vpack.c.b16 %v5502, %v5501
          %v5558 = vpack.c.b16 %v5504, %v5503
          %v5559 = vpack.c.b16 %v5506, %v5505
          %v5560 = vpack.c.b16 %v5508, %v5507
          %v5561 = vpack.c.b16 %v5510, %v5509
          %v5562 = vpack.c.b16 %v5512, %v5511
          %v5563 = vpack.c.b16 %v5514, %v5513
          %v5564 = vpack.c.b16 %v5516, %v5515
          %v5565 = vpack.c.b16 %v5518, %v5517
          %v5566 = vpack.c.b16 %v5520, %v5519
          %v5567 = vpack.c.b16 %v5522, %v5521
          %v5568 = vpack.c.b16 %v5524, %v5523
          %v5569 = vpack.c.b16 %v5526, %v5525
          %v5570 = vpack.c.b16 %v5528, %v5527
          %v5571 = vpack.c.b16 %v5530, %v5529
          %v5572 = vpack.c.b16 %v5532, %v5531
          %v5573 = vpack.c.b16 %v5534, %v5533
          %v5574 = vpack.c.b16 %v5536, %v5535
          %v5575 = vpack.c.b16 %v5538, %v5537
          %v5576 = vpack.c.b16 %v5540, %v5539
          %v5577 = vpack.c.b16 %v5542, %v5541
          %v5578 = vpack.c.b16 %v5544, %v5543
          %v5579 = vpack.c.b16 %v5546, %v5545
          %v5580 = vpack.c.b16 %v5548, %v5547
          %5613 = vmatprep.subr.bf16.mxu0 0
          %5614 = vmatpush1.bf16.msra.mxu0 %v5549
          %5615 = vmatprep.subr.bf16.mxu0 0
          %5616 = vmatpush1.bf16.msra.mxu0 %v5550
          %5617 = vmatprep.subr.bf16.mxu0 0
          %5618 = vmatpush1.bf16.msra.mxu0 %v5551
          %5619 = vmatprep.subr.bf16.mxu0 0
          %5620 = vmatpush1.bf16.msra.mxu0 %v5552
          %5621 = vmatprep.subr.bf16.mxu0 0
          %5622 = vmatpush1.bf16.msra.mxu0 %v5553
          %5623 = vmatprep.subr.bf16.mxu0 0
          %5624 = vmatpush1.bf16.msra.mxu0 %v5554
          %5625 = vmatprep.subr.bf16.mxu0 0
          %5626 = vmatpush1.bf16.msra.mxu0 %v5555
          %5627 = vmatprep.subr.bf16.mxu0 0
          %5628 = vmatpush1.bf16.msra.mxu0 %v5556
          %5629 = vmatprep.subr.bf16.mxu0 0
          %5630 = vmatpush1.bf16.msra.mxu0 %v5557
          %5631 = vmatprep.subr.bf16.mxu0 0
          %5632 = vmatpush1.bf16.msra.mxu0 %v5558
          %5633 = vmatprep.subr.bf16.mxu0 0
          %5634 = vmatpush1.bf16.msra.mxu0 %v5559
          %5635 = vmatprep.subr.bf16.mxu0 0
          %5636 = vmatpush1.bf16.msra.mxu0 %v5560
          %5637 = vmatprep.subr.bf16.mxu0 0
          %5638 = vmatpush1.bf16.msra.mxu0 %v5561
          %5639 = vmatprep.subr.bf16.mxu0 0
          %5640 = vmatpush1.bf16.msra.mxu0 %v5562
          %5641 = vmatprep.subr.bf16.mxu0 0
          %5642 = vmatpush1.bf16.msra.mxu0 %v5563
          %5643 = vmatprep.subr.bf16.mxu0 0
          %5644 = vmatpush1.bf16.msra.mxu0 %v5564
          %5645 = vmatprep.mubr.bf16.mxu0 %v5347
          %5646 = vmatmul.mubr.bf16.gmra.mrb[0].mxu0 %v5346
          %v5647 = vpop.f32.mrb[0].mxu0
          %v5648 = vadd.f32 %v5419, %v5647
          %v5649 = vpop.f32.mrb[0].mxu0
          %v5650 = vpop.f32.mrb[0].mxu0
          %v5651 = vadd.f32 %v5419, %v5650
          %v5652 = vpop.f32.mrb[0].mxu0
          %5653 = vdwg.mxu0
          %5654 = vmatprep.subr.bf16.mxu0 0
          %5655 = vmatpush1.bf16.msra.mxu0 %v5565
          %5656 = vmatprep.subr.bf16.mxu0 0
          %5657 = vmatpush1.bf16.msra.mxu0 %v5566
          %5658 = vmatprep.subr.bf16.mxu0 0
          %5659 = vmatpush1.bf16.msra.mxu0 %v5567
          %5660 = vmatprep.subr.bf16.mxu0 0
          %5661 = vmatpush1.bf16.msra.mxu0 %v5568
          %5662 = vmatprep.subr.bf16.mxu0 0
          %5663 = vmatpush1.bf16.msra.mxu0 %v5569
          %5664 = vmatprep.subr.bf16.mxu0 0
          %5665 = vmatpush1.bf16.msra.mxu0 %v5570
          %5666 = vmatprep.subr.bf16.mxu0 0
          %5667 = vmatpush1.bf16.msra.mxu0 %v5571
          %5668 = vmatprep.subr.bf16.mxu0 0
          %5669 = vmatpush1.bf16.msra.mxu0 %v5572
          %5670 = vmatprep.subr.bf16.mxu0 0
          %5671 = vmatpush1.bf16.msra.mxu0 %v5573
          %5672 = vmatprep.subr.bf16.mxu0 0
          %5673 = vmatpush1.bf16.msra.mxu0 %v5574
          %5674 = vmatprep.subr.bf16.mxu0 0
          %5675 = vmatpush1.bf16.msra.mxu0 %v5575
          %5676 = vmatprep.subr.bf16.mxu0 0
          %5677 = vmatpush1.bf16.msra.mxu0 %v5576
          %5678 = vmatprep.subr.bf16.mxu0 0
          %5679 = vmatpush1.bf16.msra.mxu0 %v5577
          %5680 = vmatprep.subr.bf16.mxu0 0
          %5681 = vmatpush1.bf16.msra.mxu0 %v5578
          %5682 = vmatprep.subr.bf16.mxu0 0
          %5683 = vmatpush1.bf16.msra.mxu0 %v5579
          %5684 = vmatprep.subr.bf16.mxu0 0
          %5685 = vmatpush1.bf16.msra.mxu0 %v5580
          %5686 = vmatprep.mubr.bf16.mxu0 %v5349
          %5687 = vmatmul.mubr.bf16.gmra.mrb[0].mxu0 %v5348
          %v5688 = vpop.f32.mrb[0].mxu0
          %v5689 = vadd.f32 %v5648, %v5688
          %v5690 = vpop.f32.mrb[0].mxu0
          %v5691 = vpop.f32.mrb[0].mxu0
          %v5692 = vadd.f32 %v5651, %v5691
          %v5693 = vpop.f32.mrb[0].mxu0
          %5694 = vdwg.mxu0
          %5695 = vst [vmem:[%s8] sm:$0xff] %v5689
          %5696 = vst [vmem:[%s8 + $0x8] sm:$0xff] %v5692
        $region83: #{latent_discriminator_forward.3} parent=70 // pred_fallthru
          _
        // Predicated region
        $region84: #{latent_discriminator_forward.3} parent=70 // pred_check
          %p5697 = pneg %p210
        $region85: #{latent_discriminator_forward.3} parent=70 // pred_check_branch
          %5699 = sbr.rel (%p5697) target = $region87
        $region86: #{latent_discriminator_forward.3} parent=70 // pred_region
          _
        $region87: #{latent_discriminator_forward.3} parent=70 // pred_fallthru
          _
        // Predicated region
        $region88: #{latent_discriminator_forward.3} parent=70 // pred_check
          %p5700 = pneg %p210
        $region89: #{latent_discriminator_forward.3} parent=70 // pred_check_branch
          %5702 = sbr.rel (%p5700) target = $region91
        $region90: #{latent_discriminator_forward.3} parent=70 // pred_region
          _
        $region91: #{latent_discriminator_forward.3} parent=70 // pred_fallthru
          _
      $region71: #{latent_discriminator_forward.3} parent=5 // pred_fallthru
        _
      %p5703 = scmp.le.s32.totalorder 2, %s14
      // Predicated region
      $region92: #{latent_discriminator_forward.3} parent=5 // pred_check
        %p5704 = pneg %p5703
      $region93: #{latent_discriminator_forward.3} parent=5 // pred_check_branch
        %5706 = sbr.rel (%p5704) target = $region95
      $region94: #{latent_discriminator_forward.3} parent=5 // pred_region
        %s5707 = ssub.s32 %s14, 2
      $region95: #{latent_discriminator_forward.3} parent=5 // pred_fallthru
        _
    $region6: #{latent_discriminator_forward.3} parent=1 // loop_footer
      %s18 = sadd.s32 1, %s14
    $region7: #{latent_discriminator_forward.3} parent=1 // loop_footer_branch
      %13 = sbr.rel target = $region3
    $region8: #{latent_discriminator_forward.3} parent=1 // loop_exit
      _

</llo_original>
